<compile_context>
chip_gen: v7x
topology: tpu7x:2x2x1
jax: 0.10.0
libtpu: 0.0.40
codegen_flags: <defaults>
</compile_context>

<pallas_src>
import jax
import jax.numpy as jnp
from jax.experimental import pallas as pl
from jax.experimental.pallas import tpu as pltpu


# ----------------------------- fused Pallas kernel ---------------------------

def decoder_kernel(x0_ref, w0_ref, w1_ref, w2_ref, w3_ref,
                   sh0_ref, sh1_ref, sh2_ref, sh3_ref,
                   o_ref, s0, s1, s2):
    """Whole decoder for one batch element.

    x0_ref : (1, H*W, 256) bf16   pre-packed stage-0 operand [A | x(,q+1) | x(p+1,) | x(p+1,q+1)]
    w0_ref : (256, 256)  bf16     stage-0 ConvT taps, K=[4 shifted slabs], N=[4 phases x 64]
    w1_ref : (3, 384, 128) bf16   stage-1 Conv taps per kh, K=[L|C|R planes], N=[2 col phases x 64]
    w2_ref : (512, 256)  bf16     stage-2 ConvT taps, K=[Cp|Rp|Cp1|Rp1], N=[2 row x 4 col phases x 32]
    w3_ref : (2, 512, 24) bf16    stage-3 ConvT taps per row phase, N=[8 col phases x 3]
    shN_ref: (1, N) f32           per-output-channel shift (folded BN shift / conv bias), tiled
    o_ref  : (1, 8H, W, 24) f32   o[0, i, a, 3v+c] = Y[i, 8a+v, c]
    s0, s1 : (2H+2, W+2, 128) bf16  column-phase-packed activations + 1-wide zero halo
    s2     : (4H+2, W+2, 128) bf16
    """
    H = o_ref.shape[1] // 8
    W = o_ref.shape[2]
    H2, H4, H8 = 2 * H, 4 * H, 8 * H
    f32, bf16 = jnp.float32, jnp.bfloat16

    def leaky(v):
        return jnp.where(v >= 0.0, v, 0.01 * v)

    def interleave_rows(z0, z1):
        # (P, W, C) x2 -> (2P, W, C): even rows from z0, odd rows from z1.
        p, w, c = z0.shape
        return jnp.stack([z0, z1], axis=1).reshape(2 * p, w, c)

    # ---- zero only the 1-wide halo edges (interiors are fully overwritten) ----
    zr = jnp.zeros((1, W + 2, 128), bf16)
    zc0 = jnp.zeros((H2 + 2, 1, 128), bf16)
    zc2 = jnp.zeros((H4 + 2, 1, 128), bf16)
    s0[0:1, :, :] = zr
    s0[H2 + 1:H2 + 2, :, :] = zr
    s0[:, 0:1, :] = zc0
    s0[:, W + 1:W + 2, :] = zc0
    s1[0:1, :, :] = zr
    s1[H2 + 1:H2 + 2, :, :] = zr
    s1[:, 0:1, :] = zc0
    s1[:, W + 1:W + 2, :] = zc0
    s2[0:1, :, :] = zr
    s2[H4 + 1:H4 + 2, :, :] = zr
    s2[:, 0:1, :] = zc2
    s2[:, W + 1:W + 2, :] = zc2

    # ---------------- stage 0: ConvT(64->64, s=2) + BN + LeakyReLU ----------
    X0 = x0_ref[0]                                                   # (H*W, 256) bf16
    Z = jnp.dot(X0, w0_ref[...], preferred_element_type=f32)        # (H*W, 256)
    Z = leaky(Z + sh0_ref[...])
    Z0 = Z[:, 0:128].reshape(H, W, 128)                              # row phase 0 (cols packed)
    Z1 = Z[:, 128:256].reshape(H, W, 128)                            # row phase 1
    s0[1:H2 + 1, 1:W + 1, :] = interleave_rows(Z0, Z1).astype(bf16)

    # ---------------- stage 1: Conv3x3(64->64, s=1, p=1) + BN + LeakyReLU ---
    acc = jnp.zeros((H2 * W, 128), f32)
    for kh in range(3):
        L = s0[kh:kh + H2, 0:W,     :].reshape(H2 * W, 128)
        C = s0[kh:kh + H2, 1:W + 1, :].reshape(H2 * W, 128)
        R = s0[kh:kh + H2, 2:W + 2, :].reshape(H2 * W, 128)
        Xk = jnp.concatenate([L, C, R], axis=-1)                     # (H2*W, 384)
        acc = acc + jnp.dot(Xk, w1_ref[kh], preferred_element_type=f32)
    Z = leaky(acc + sh1_ref[...])
    s1[1:H2 + 1, 1:W + 1, :] = Z.reshape(H2, W, 128).astype(bf16)

    # ---------------- stage 2: ConvT(64->32, s=2) + bias + LeakyReLU --------
    Cp  = s1[1:H2 + 1, 1:W + 1, :].reshape(H2 * W, 128)
    Rp  = s1[1:H2 + 1, 2:W + 2, :].reshape(H2 * W, 128)
    Cp1 = s1[2:H2 + 2, 1:W + 1, :].reshape(H2 * W, 128)
    Rp1 = s1[2:H2 + 2, 2:W + 2, :].reshape(H2 * W, 128)
    X2 = jnp.concatenate([Cp, Rp, Cp1, Rp1], axis=-1)                # (H2*W, 512)
    Z = jnp.dot(X2, w2_ref[...], preferred_element_type=f32)        # (H2*W, 256)
    Z = leaky(Z + sh2_ref[...])
    Z0 = Z[:, 0:128].reshape(H2, W, 128)
    Z1 = Z[:, 128:256].reshape(H2, W, 128)
    s2[1:H4 + 1, 1:W + 1, :] = interleave_rows(Z0, Z1).astype(bf16)

    # ---------------- stage 3: ConvT(32->3, s=2) + bias, sigmoid*2-1 --------
    Cp  = s2[1:H4 + 1, 1:W + 1, :].reshape(H4 * W, 128)
    Rp  = s2[1:H4 + 1, 2:W + 2, :].reshape(H4 * W, 128)
    Cp1 = s2[2:H4 + 2, 1:W + 1, :].reshape(H4 * W, 128)
    Rp1 = s2[2:H4 + 2, 2:W + 2, :].reshape(H4 * W, 128)
    X3 = jnp.concatenate([Cp, Rp, Cp1, Rp1], axis=-1)                # (H4*W, 512)
    sh3 = sh3_ref[...]
    outs = []
    for r in range(2):
        Zr = jnp.dot(X3, w3_ref[r], preferred_element_type=f32)     # (H4*W, 24)
        Zr = jax.nn.sigmoid(Zr + sh3) * 2.0 - 1.0
        outs.append(Zr.reshape(H4, W, 24))
    o_ref[0] = interleave_rows(outs[0], outs[1]).astype(o_ref.dtype)


# ------------------------------ wrapper ---------------------------------------

@jax.jit
def decoder_forward_nchw(x_nchw, params):
    """Matches Decoder.forward: x (B, 64, H, W) -> (B, 3, 8H, 8W), values in (-1, 1)."""
    B, _, H, W = x_nchw.shape

    # Stage-0 operand packing done in XLA (fuses into one tiny fusion with the transpose).
    x = jnp.transpose(x_nchw, (0, 2, 3, 1))                          # NHWC
    xp = jnp.pad(x, ((0, 0), (0, 1), (0, 1), (0, 0)))                # +1 zero row/col
    A  = xp[:, 0:H,     0:W,     :]
    Bc = xp[:, 0:H,     1:W + 1, :]
    Ar = xp[:, 1:H + 1, 0:W,     :]
    Br = xp[:, 1:H + 1, 1:W + 1, :]
    x0 = jnp.concatenate([A, Bc, Ar, Br], axis=-1)                   # (B, H, W, 256)
    x0 = x0.reshape(B, H * W, 256).astype(jnp.bfloat16)

    out = pl.pallas_call(
        decoder_kernel,
        out_shape=jax.ShapeDtypeStruct((B, 8 * H, W, 24), jnp.float32),
        grid=(B,),
        in_specs=[
            pl.BlockSpec((1, H * W, 256), lambda b: (b, 0, 0)),
            pl.BlockSpec((256, 256), lambda b: (0, 0)),
            pl.BlockSpec((3, 384, 128), lambda b: (0, 0, 0)),
            pl.BlockSpec((512, 256), lambda b: (0, 0)),
            pl.BlockSpec((2, 512, 24), lambda b: (0, 0, 0)),
            pl.BlockSpec((1, 256), lambda b: (0, 0)),
            pl.BlockSpec((1, 128), lambda b: (0, 0)),
            pl.BlockSpec((1, 256), lambda b: (0, 0)),
            pl.BlockSpec((1, 24), lambda b: (0, 0)),
        ],
        out_specs=pl.BlockSpec((1, 8 * H, W, 24), lambda b: (b, 0, 0, 0)),
        scratch_shapes=[
            pltpu.VMEM((2 * H + 2, W + 2, 128), jnp.bfloat16),
            pltpu.VMEM((2 * H + 2, W + 2, 128), jnp.bfloat16),
            pltpu.VMEM((4 * H + 2, W + 2, 128), jnp.bfloat16),
        ],
        compiler_params=pltpu.CompilerParams(dimension_semantics=("parallel",)),
    )(x0, params["w0"], params["w1"], params["w2"], params["w3"],
      params["sh0"], params["sh1"], params["sh2"], params["sh3"])

    # out[b, i, a, 3v + c] = Y[b, i, 8a + v, c]
    y = out.reshape(B, 8 * H, 8 * W, 3)
    return jnp.transpose(y, (0, 3, 1, 2))                            # NCHW


# ------------------------- host-side weight packing ---------------------------

def pack_convt_planes(t, P):
    """Pack ConvT(k=3, s=2, p=1, op=1) taps for an input stored as P column-phase planes
    (channels packed), producing both row phases and all 2P output column phases.

    t: (3, 3, Cin, Cout) tap matrices (ConvT taps NOT flipped).
    K layout: [C_p | R_p | C_p1 | R_p1], each P*Cin rows (plane-major, channel-minor).
    N layout: [r=0: u=0..2P-1 | r=1: u=0..2P-1], each Cout cols.
    """
    cin, cout = t.shape[2], t.shape[3]
    K, N = 4 * P * cin, 2 * (2 * P) * cout
    Wm = jnp.zeros((K, N), jnp.float32)

    def kstart(rowshift, colplane, colstep):
        return (2 * rowshift + colstep) * P * cin + colplane * cin

    phase_taps = {
        (0, 0): [(0, 0, (1, 1))],
        (0, 1): [(0, 0, (1, 2)), (0, 1, (1, 0))],
        (1, 0): [(0, 0, (2, 1)), (1, 0, (0, 1))],
        (1, 1): [(0, 0, (2, 2)), (0, 1, (2, 0)), (1, 0, (0, 2)), (1, 1, (0, 0))],
    }
    for r in (0, 1):
        for tt in range(P):
            for s_ in (0, 1):
                u = 2 * tt + s_
                ncol = (r * 2 * P + u) * cout
                for rowshift, colstep_q, (kh, kw) in phase_taps[(r, s_)]:
                    qp = tt + colstep_q
                    colplane, colstep = qp % P, qp // P
                    krow = kstart(rowshift, colplane, colstep)
                    Wm = Wm.at[krow:krow + cin, ncol:ncol + cout].set(t[kh, kw])
    return Wm


def pack_conv_stage1(t):
    """Pack Conv2d(k=3, s=1, p=1) taps over a 2-column-phase-packed input, per kh.

    t: (3, 3, Cin, Cout).  Returns (3, 6*Cin, 2*Cout); per-kh K layout
    [L plane0 | L plane1 | C plane0 | C plane1 | R plane0 | R plane1],
    N layout [out col phase 0 | out col phase 1].
    """
    cin, cout = t.shape[2], t.shape[3]
    blocks = []
    for kh in range(3):
        Wk = jnp.zeros((3 * 2 * cin, 2 * cout), jnp.float32)
        for s_out in (0, 1):
            for kw in range(3):
                jrel = s_out + kw - 1
                plane = jrel % 2
                blk = jrel // 2 + 1          # 0=L, 1=C, 2=R
                r0 = blk * 2 * cin + plane * cin
                c0 = s_out * cout
                Wk = Wk.at[r0:r0 + cin, c0:c0 + cout].set(t[kh, kw])
        blocks.append(Wk)
    return jnp.stack(blocks, axis=0)


# ------------------------------ params ----------------------------------------

def init_params(key):
    k0, k1, k2, k2b, k3, k3b = jax.random.split(key, 6)
    eps = 1e-5
    # PyTorch-layout weights: ConvT (Cin, Cout, kh, kw); Conv (Cout, Cin, kh, kw)
    w0_pt = jax.random.normal(k0, (64, 64, 3, 3), jnp.float32) * 0.05
    w1_pt = jax.random.normal(k1, (64, 64, 3, 3), jnp.float32) * 0.05
    w2_pt = jax.random.normal(k2, (64, 32, 3, 3), jnp.float32) * 0.05
    b2 = jax.random.normal(k2b, (32,), jnp.float32) * 0.05
    w3_pt = jax.random.normal(k3, (32, 3, 3, 3), jnp.float32) * 0.05
    b3 = jax.random.normal(k3b, (3,), jnp.float32) * 0.05

    # Eval-mode BatchNorm fold (general formula; PyTorch-default stats here):
    #   scale = gamma / sqrt(var + eps),  shift = beta - mean * scale
    gamma0, beta0 = jnp.ones((64,)), jnp.zeros((64,))
    mean0, var0 = jnp.zeros((64,)), jnp.ones((64,))
    gamma1, beta1 = jnp.ones((64,)), jnp.zeros((64,))
    mean1, var1 = jnp.zeros((64,)), jnp.ones((64,))
    scale0 = gamma0 / jnp.sqrt(var0 + eps)
    shift0 = beta0 - mean0 * scale0
    scale1 = gamma1 / jnp.sqrt(var1 + eps)
    shift1 = beta1 - mean1 * scale1

    # kernel-side tap tensors (kh, kw, Cin, Cout); BN scale folded into Cout.
    t0 = jnp.transpose(w0_pt, (2, 3, 0, 1)) * scale0[None, None, None, :]
    t1 = jnp.transpose(w1_pt, (2, 3, 1, 0)) * scale1[None, None, None, :]
    t2 = jnp.transpose(w2_pt, (2, 3, 0, 1))
    t3 = jnp.transpose(w3_pt, (2, 3, 0, 1))

    w0p = pack_convt_planes(t0, 1)                     # (256, 256)
    w1p = pack_conv_stage1(t1)                         # (3, 384, 128)
    w2p = pack_convt_planes(t2, 2)                     # (512, 256)
    w3full = pack_convt_planes(t3, 4)                  # (512, 48)
    w3p = jnp.stack([w3full[:, 0:24], w3full[:, 24:48]], axis=0)   # (2, 512, 24)

    params = {
        "w0": w0p.astype(jnp.bfloat16),
        "w1": w1p.astype(jnp.bfloat16),
        "w2": w2p.astype(jnp.bfloat16),
        "w3": w3p.astype(jnp.bfloat16),
        "sh0": jnp.tile(shift0, 4).reshape(1, 256).astype(jnp.float32),
        "sh1": jnp.tile(shift1, 2).reshape(1, 128).astype(jnp.float32),
        "sh2": jnp.tile(b2, 8).reshape(1, 256).astype(jnp.float32),
        "sh3": jnp.tile(b3, 8).reshape(1, 24).astype(jnp.float32),
    }
    torch_like = {"w0": w0_pt, "w1": w1_pt, "w2": w2_pt, "b2": b2,
                  "w3": w3_pt, "b3": b3,
                  "scale0": scale0, "shift0": shift0,
                  "scale1": scale1, "shift1": shift1}
    return params, torch_like


# ------------------------------ pure-JAX reference -----------------------------

def _ref_convT(x, w_pt):
    # ConvTranspose2d(k=3, s=2, p=1, output_padding=1) as a dilated conv
    w = jnp.transpose(jnp.flip(w_pt, (2, 3)), (1, 0, 2, 3))          # (Cout, Cin, kh, kw)
    return jax.lax.conv_general_dilated(
        x, w, window_strides=(1, 1), padding=((1, 2), (1, 2)),
        lhs_dilation=(2, 2), dimension_numbers=("NCHW", "OIHW", "NCHW"))


def _ref_conv(x, w_pt):
    return jax.lax.conv_general_dilated(
        x, w_pt, window_strides=(1, 1), padding=((1, 1), (1, 1)),
        dimension_numbers=("NCHW", "OIHW", "NCHW"))


def decoder_reference(x, tl):
    leaky = lambda v: jnp.where(v >= 0, v, 0.01 * v)
    h = _ref_convT(x, tl["w0"]) * tl["scale0"][None, :, None, None] \
        + tl["shift0"][None, :, None, None]
    h = leaky(h)
    h = _ref_conv(h, tl["w1"]) * tl["scale1"][None, :, None, None] \
        + tl["shift1"][None, :, None, None]
    h = leaky(h)
    h = leaky(_ref_convT(h, tl["w2"]) + tl["b2"][None, :, None, None])
    h = _ref_convT(h, tl["w3"]) + tl["b3"][None, :, None, None]
    return jax.nn.sigmoid(h) * 2.0 - 1.0


if __name__ == "__main__":
    key = jax.random.PRNGKey(0)
    kp, kx = jax.random.split(key)
    params, torch_like = init_params(kp)
    x = jax.random.normal(kx, (2, 64, 8, 8), jnp.float32)            # NCHW, like PyTorch

    out = decoder_forward_nchw(x, params)
    out = jax.block_until_ready(out)

    assert out.shape == (2, 3, 64, 64), out.shape
    assert bool(jnp.all(jnp.isfinite(out)))
    assert bool(jnp.all(out <= 1.0)) and bool(jnp.all(out >= -1.0))

    ref = decoder_reference(x, torch_like)
    max_err = float(jnp.max(jnp.abs(out - ref)))
    assert max_err < 5e-2, f"max abs err vs reference: {max_err}"
    print("KERNEL_OK")
</pallas_src>

<mosaic_0001>
module attributes {stable_mosaic.version = 11 : i64} {
  func.func @decoder_kernel(%arg0: i32, %arg1: memref<1x64x256xbf16, #tpu.memory_space<vmem>>, %arg2: memref<256x256xbf16, #tpu.memory_space<vmem>>, %arg3: memref<3x384x128xbf16, #tpu.memory_space<vmem>>, %arg4: memref<512x256xbf16, #tpu.memory_space<vmem>>, %arg5: memref<2x512x24xbf16, #tpu.memory_space<vmem>>, %arg6: memref<1x256xf32, #tpu.memory_space<vmem>>, %arg7: memref<1x128xf32, #tpu.memory_space<vmem>>, %arg8: memref<1x256xf32, #tpu.memory_space<vmem>>, %arg9: memref<1x24xf32, #tpu.memory_space<vmem>>, %arg10: memref<1x64x8x24xf32, #tpu.memory_space<vmem>>, %arg11: memref<18x10x128xbf16, #tpu.memory_space<vmem>>, %arg12: memref<18x10x128xbf16, #tpu.memory_space<vmem>>, %arg13: memref<34x10x128xbf16, #tpu.memory_space<vmem>>) attributes {dimension_semantics = [#tpu.dimension_semantics<parallel>], iteration_bounds = array<i64: 2>, scalar_prefetch = 0 : i64, scratch_operands = 3 : i64, tpu.core_type = #tpu.core_type<tc>, window_params = [{transform_indices = @transform_0, window_bounds = array<i64: 1, 64, 256>}, {pipeline_mode = #tpu.pipeline_mode<synchronous>, transform_indices = @transform_1, window_bounds = array<i64: 256, 256>}, {pipeline_mode = #tpu.pipeline_mode<synchronous>, transform_indices = @transform_2, window_bounds = array<i64: 3, 384, 128>}, {pipeline_mode = #tpu.pipeline_mode<synchronous>, transform_indices = @transform_3, window_bounds = array<i64: 512, 256>}, {pipeline_mode = #tpu.pipeline_mode<synchronous>, transform_indices = @transform_4, window_bounds = array<i64: 2, 512, 24>}, {pipeline_mode = #tpu.pipeline_mode<synchronous>, transform_indices = @transform_5, window_bounds = array<i64: 1, 256>}, {pipeline_mode = #tpu.pipeline_mode<synchronous>, transform_indices = @transform_6, window_bounds = array<i64: 1, 128>}, {pipeline_mode = #tpu.pipeline_mode<synchronous>, transform_indices = @transform_7, window_bounds = array<i64: 1, 256>}, {pipeline_mode = #tpu.pipeline_mode<synchronous>, transform_indices = @transform_8, window_bounds = array<i64: 1, 24>}, {transform_indices = @transform_9, window_bounds = array<i64: 1, 64, 8, 24>}]} {
    %cst = arith.constant 0.000000e+00 : bf16
    %0 = vector.broadcast %cst : bf16 to vector<1x10x128xbf16>
    %cst_0 = arith.constant 0.000000e+00 : bf16
    %1 = vector.broadcast %cst_0 : bf16 to vector<18x1x128xbf16>
    %cst_1 = arith.constant 0.000000e+00 : bf16
    %2 = vector.broadcast %cst_1 : bf16 to vector<34x1x128xbf16>
    %c0 = arith.constant 0 : index
    %c0_2 = arith.constant 0 : index
    %c0_3 = arith.constant 0 : index
    %3 = vector.load %arg11[%c0, %c0_2, %c0_3] : memref<18x10x128xbf16, #tpu.memory_space<vmem>>, vector<1x10x128xbf16>
    tpu.vector_store %arg11[%c0, %c0_2, %c0_3], %0 {strides = array<i32>} : memref<18x10x128xbf16, #tpu.memory_space<vmem>>, vector<1x10x128xbf16>,
    %c17 = arith.constant 17 : index
    %c0_4 = arith.constant 0 : index
    %c0_5 = arith.constant 0 : index
    %4 = vector.load %arg11[%c17, %c0_4, %c0_5] : memref<18x10x128xbf16, #tpu.memory_space<vmem>>, vector<1x10x128xbf16>
    tpu.vector_store %arg11[%c17, %c0_4, %c0_5], %0 {strides = array<i32>} : memref<18x10x128xbf16, #tpu.memory_space<vmem>>, vector<1x10x128xbf16>,
    %c0_6 = arith.constant 0 : index
    %c0_7 = arith.constant 0 : index
    %c0_8 = arith.constant 0 : index
    %5 = vector.load %arg11[%c0_6, %c0_7, %c0_8] : memref<18x10x128xbf16, #tpu.memory_space<vmem>>, vector<18x1x128xbf16>
    tpu.vector_store %arg11[%c0_6, %c0_7, %c0_8], %1 {strides = array<i32>} : memref<18x10x128xbf16, #tpu.memory_space<vmem>>, vector<18x1x128xbf16>,
    %c0_9 = arith.constant 0 : index
    %c9 = arith.constant 9 : index
    %c0_10 = arith.constant 0 : index
    %6 = vector.load %arg11[%c0_9, %c9, %c0_10] : memref<18x10x128xbf16, #tpu.memory_space<vmem>>, vector<18x1x128xbf16>
    tpu.vector_store %arg11[%c0_9, %c9, %c0_10], %1 {strides = array<i32>} : memref<18x10x128xbf16, #tpu.memory_space<vmem>>, vector<18x1x128xbf16>,
    %c0_11 = arith.constant 0 : index
    %c0_12 = arith.constant 0 : index
    %c0_13 = arith.constant 0 : index
    %7 = vector.load %arg12[%c0_11, %c0_12, %c0_13] : memref<18x10x128xbf16, #tpu.memory_space<vmem>>, vector<1x10x128xbf16>
    tpu.vector_store %arg12[%c0_11, %c0_12, %c0_13], %0 {strides = array<i32>} : memref<18x10x128xbf16, #tpu.memory_space<vmem>>, vector<1x10x128xbf16>,
    %c17_14 = arith.constant 17 : index
    %c0_15 = arith.constant 0 : index
    %c0_16 = arith.constant 0 : index
    %8 = vector.load %arg12[%c17_14, %c0_15, %c0_16] : memref<18x10x128xbf16, #tpu.memory_space<vmem>>, vector<1x10x128xbf16>
    tpu.vector_store %arg12[%c17_14, %c0_15, %c0_16], %0 {strides = array<i32>} : memref<18x10x128xbf16, #tpu.memory_space<vmem>>, vector<1x10x128xbf16>,
    %c0_17 = arith.constant 0 : index
    %c0_18 = arith.constant 0 : index
    %c0_19 = arith.constant 0 : index
    %9 = vector.load %arg12[%c0_17, %c0_18, %c0_19] : memref<18x10x128xbf16, #tpu.memory_space<vmem>>, vector<18x1x128xbf16>
    tpu.vector_store %arg12[%c0_17, %c0_18, %c0_19], %1 {strides = array<i32>} : memref<18x10x128xbf16, #tpu.memory_space<vmem>>, vector<18x1x128xbf16>,
    %c0_20 = arith.constant 0 : index
    %c9_21 = arith.constant 9 : index
    %c0_22 = arith.constant 0 : index
    %10 = vector.load %arg12[%c0_20, %c9_21, %c0_22] : memref<18x10x128xbf16, #tpu.memory_space<vmem>>, vector<18x1x128xbf16>
    tpu.vector_store %arg12[%c0_20, %c9_21, %c0_22], %1 {strides = array<i32>} : memref<18x10x128xbf16, #tpu.memory_space<vmem>>, vector<18x1x128xbf16>,
    %c0_23 = arith.constant 0 : index
    %c0_24 = arith.constant 0 : index
    %c0_25 = arith.constant 0 : index
    %11 = vector.load %arg13[%c0_23, %c0_24, %c0_25] : memref<34x10x128xbf16, #tpu.memory_space<vmem>>, vector<1x10x128xbf16>
    tpu.vector_store %arg13[%c0_23, %c0_24, %c0_25], %0 {strides = array<i32>} : memref<34x10x128xbf16, #tpu.memory_space<vmem>>, vector<1x10x128xbf16>,
    %c33 = arith.constant 33 : index
    %c0_26 = arith.constant 0 : index
    %c0_27 = arith.constant 0 : index
    %12 = vector.load %arg13[%c33, %c0_26, %c0_27] : memref<34x10x128xbf16, #tpu.memory_space<vmem>>, vector<1x10x128xbf16>
    tpu.vector_store %arg13[%c33, %c0_26, %c0_27], %0 {strides = array<i32>} : memref<34x10x128xbf16, #tpu.memory_space<vmem>>, vector<1x10x128xbf16>,
    %c0_28 = arith.constant 0 : index
    %c0_29 = arith.constant 0 : index
    %c0_30 = arith.constant 0 : index
    %13 = vector.load %arg13[%c0_28, %c0_29, %c0_30] : memref<34x10x128xbf16, #tpu.memory_space<vmem>>, vector<34x1x128xbf16>
    tpu.vector_store %arg13[%c0_28, %c0_29, %c0_30], %2 {strides = array<i32>} : memref<34x10x128xbf16, #tpu.memory_space<vmem>>, vector<34x1x128xbf16>,
    %c0_31 = arith.constant 0 : index
    %c9_32 = arith.constant 9 : index
    %c0_33 = arith.constant 0 : index
    %14 = vector.load %arg13[%c0_31, %c9_32, %c0_33] : memref<34x10x128xbf16, #tpu.memory_space<vmem>>, vector<34x1x128xbf16>
    tpu.vector_store %arg13[%c0_31, %c9_32, %c0_33], %2 {strides = array<i32>} : memref<34x10x128xbf16, #tpu.memory_space<vmem>>, vector<34x1x128xbf16>,
    %c0_34 = arith.constant 0 : index
    %c0_35 = arith.constant 0 : index
    %c0_36 = arith.constant 0 : index
    %15 = vector.load %arg1[%c0_34, %c0_35, %c0_36] : memref<1x64x256xbf16, #tpu.memory_space<vmem>>, vector<1x64x256xbf16>
    %16 = vector.shape_cast %15 : vector<1x64x256xbf16> to vector<64x256xbf16>
    %c0_37 = arith.constant 0 : index
    %c0_38 = arith.constant 0 : index
    %17 = vector.load %arg2[%c0_37, %c0_38] : memref<256x256xbf16, #tpu.memory_space<vmem>>, vector<256x256xbf16>
    %cst_39 = arith.constant dense<0.000000e+00> : vector<64x256xf32>
    %18 = tpu.matmul %16, %17, %cst_39 {dimension_numbers = #tpu.dot_dimension_numbers<[1], [0], [0], [1], [0, 0, 1, 1], [], []>} : vector<64x256xbf16>, vector<256x256xbf16>, vector<64x256xf32> -> vector<64x256xf32>
    %c0_40 = arith.constant 0 : index
    %c0_41 = arith.constant 0 : index
    %19 = vector.load %arg6[%c0_40, %c0_41] : memref<1x256xf32, #tpu.memory_space<vmem>>, vector<1x256xf32>
    %20 = vector.broadcast %19 : vector<1x256xf32> to vector<64x256xf32>
    %21 = arith.addf %18, %20 : vector<64x256xf32>
    %cst_42 = arith.constant 0.000000e+00 : f32
    %22 = vector.broadcast %cst_42 : f32 to vector<64x256xf32>
    %23 = arith.cmpf oge, %21, %22 : vector<64x256xf32>
    %cst_43 = arith.constant 0.00999999977 : f32
    %24 = vector.broadcast %cst_43 : f32 to vector<64x256xf32>
    %25 = arith.mulf %24, %21 : vector<64x256xf32>
    %26 = arith.select %23, %21, %25 : vector<64x256xi1>, vector<64x256xf32>
    %27 = vector.extract_strided_slice %26 {offsets = [0, 0], sizes = [64, 128], strides = [1, 1]} : vector<64x256xf32> to vector<64x128xf32>
    %28 = vector.shape_cast %27 : vector<64x128xf32> to vector<8x8x128xf32>
    %29 = vector.extract_strided_slice %26 {offsets = [0, 128], sizes = [64, 128], strides = [1, 1]} : vector<64x256xf32> to vector<64x128xf32>
    %30 = vector.shape_cast %29 : vector<64x128xf32> to vector<8x8x128xf32>
    %31 = vector.shape_cast %28 : vector<8x8x128xf32> to vector<8x1x8x128xf32>
    %32 = vector.shape_cast %30 : vector<8x8x128xf32> to vector<8x1x8x128xf32>
    %33 = tpu.concatenate %31, %32 in 1 : vector<8x1x8x128xf32>, vector<8x1x8x128xf32> -> vector<8x2x8x128xf32>
    %34 = vector.shape_cast %33 : vector<8x2x8x128xf32> to vector<16x8x128xf32>
    %35 = arith.truncf %34 : vector<16x8x128xf32> to vector<16x8x128xbf16>
    %c1 = arith.constant 1 : index
    %c1_44 = arith.constant 1 : index
    %c0_45 = arith.constant 0 : index
    %36 = vector.load %arg11[%c1, %c1_44, %c0_45] : memref<18x10x128xbf16, #tpu.memory_space<vmem>>, vector<16x8x128xbf16>
    tpu.vector_store %arg11[%c1, %c1_44, %c0_45], %35 {strides = array<i32>} : memref<18x10x128xbf16, #tpu.memory_space<vmem>>, vector<16x8x128xbf16>,
    %cst_46 = arith.constant 0.000000e+00 : f32
    %37 = vector.broadcast %cst_46 : f32 to vector<128x128xf32>
    %c0_47 = arith.constant 0 : index
    %c0_48 = arith.constant 0 : index
    %c0_49 = arith.constant 0 : index
    %38 = vector.load %arg11[%c0_47, %c0_48, %c0_49] : memref<18x10x128xbf16, #tpu.memory_space<vmem>>, vector<16x8x128xbf16>
    %39 = vector.shape_cast %38 : vector<16x8x128xbf16> to vector<128x128xbf16>
    %c0_50 = arith.constant 0 : index
    %c1_51 = arith.constant 1 : index
    %c0_52 = arith.constant 0 : index
    %40 = vector.load %arg11[%c0_50, %c1_51, %c0_52] : memref<18x10x128xbf16, #tpu.memory_space<vmem>>, vector<16x8x128xbf16>
    %41 = vector.shape_cast %40 : vector<16x8x128xbf16> to vector<128x128xbf16>
    %c0_53 = arith.constant 0 : index
    %c2 = arith.constant 2 : index
    %c0_54 = arith.constant 0 : index
    %42 = vector.load %arg11[%c0_53, %c2, %c0_54] : memref<18x10x128xbf16, #tpu.memory_space<vmem>>, vector<16x8x128xbf16>
    %43 = vector.shape_cast %42 : vector<16x8x128xbf16> to vector<128x128xbf16>
    %44 = tpu.concatenate %39, %41, %43 in 1 : vector<128x128xbf16>, vector<128x128xbf16>, vector<128x128xbf16> -> vector<128x384xbf16>
    %c0_55 = arith.constant 0 : index
    %c0_56 = arith.constant 0 : index
    %c0_57 = arith.constant 0 : index
    %45 = vector.load %arg3[%c0_55, %c0_56, %c0_57] : memref<3x384x128xbf16, #tpu.memory_space<vmem>>, vector<1x384x128xbf16>
    %46 = vector.shape_cast %45 : vector<1x384x128xbf16> to vector<384x128xbf16>
    %cst_58 = arith.constant dense<0.000000e+00> : vector<128x128xf32>
    %47 = tpu.matmul %44, %46, %cst_58 {dimension_numbers = #tpu.dot_dimension_numbers<[1], [0], [0], [1], [0, 0, 1, 1], [], []>} : vector<128x384xbf16>, vector<384x128xbf16>, vector<128x128xf32> -> vector<128x128xf32>
    %48 = arith.addf %37, %47 : vector<128x128xf32>
    %c1_59 = arith.constant 1 : index
    %c0_60 = arith.constant 0 : index
    %c0_61 = arith.constant 0 : index
    %49 = vector.load %arg11[%c1_59, %c0_60, %c0_61] : memref<18x10x128xbf16, #tpu.memory_space<vmem>>, vector<16x8x128xbf16>
    %50 = vector.shape_cast %49 : vector<16x8x128xbf16> to vector<128x128xbf16>
    %c1_62 = arith.constant 1 : index
    %c1_63 = arith.constant 1 : index
    %c0_64 = arith.constant 0 : index
    %51 = vector.load %arg11[%c1_62, %c1_63, %c0_64] : memref<18x10x128xbf16, #tpu.memory_space<vmem>>, vector<16x8x128xbf16>
    %52 = vector.shape_cast %51 : vector<16x8x128xbf16> to vector<128x128xbf16>
    %c1_65 = arith.constant 1 : index
    %c2_66 = arith.constant 2 : index
    %c0_67 = arith.constant 0 : index
    %53 = vector.load %arg11[%c1_65, %c2_66, %c0_67] : memref<18x10x128xbf16, #tpu.memory_space<vmem>>, vector<16x8x128xbf16>
    %54 = vector.shape_cast %53 : vector<16x8x128xbf16> to vector<128x128xbf16>
    %55 = tpu.concatenate %50, %52, %54 in 1 : vector<128x128xbf16>, vector<128x128xbf16>, vector<128x128xbf16> -> vector<128x384xbf16>
    %c1_68 = arith.constant 1 : index
    %c0_69 = arith.constant 0 : index
    %c0_70 = arith.constant 0 : index
    %56 = vector.load %arg3[%c1_68, %c0_69, %c0_70] : memref<3x384x128xbf16, #tpu.memory_space<vmem>>, vector<1x384x128xbf16>
    %57 = vector.shape_cast %56 : vector<1x384x128xbf16> to vector<384x128xbf16>
    %cst_71 = arith.constant dense<0.000000e+00> : vector<128x128xf32>
    %58 = tpu.matmul %55, %57, %cst_71 {dimension_numbers = #tpu.dot_dimension_numbers<[1], [0], [0], [1], [0, 0, 1, 1], [], []>} : vector<128x384xbf16>, vector<384x128xbf16>, vector<128x128xf32> -> vector<128x128xf32>
    %59 = arith.addf %48, %58 : vector<128x128xf32>
    %c2_72 = arith.constant 2 : index
    %c0_73 = arith.constant 0 : index
    %c0_74 = arith.constant 0 : index
    %60 = vector.load %arg11[%c2_72, %c0_73, %c0_74] : memref<18x10x128xbf16, #tpu.memory_space<vmem>>, vector<16x8x128xbf16>
    %61 = vector.shape_cast %60 : vector<16x8x128xbf16> to vector<128x128xbf16>
    %c2_75 = arith.constant 2 : index
    %c1_76 = arith.constant 1 : index
    %c0_77 = arith.constant 0 : index
    %62 = vector.load %arg11[%c2_75, %c1_76, %c0_77] : memref<18x10x128xbf16, #tpu.memory_space<vmem>>, vector<16x8x128xbf16>
    %63 = vector.shape_cast %62 : vector<16x8x128xbf16> to vector<128x128xbf16>
    %c2_78 = arith.constant 2 : index
    %c2_79 = arith.constant 2 : index
    %c0_80 = arith.constant 0 : index
    %64 = vector.load %arg11[%c2_78, %c2_79, %c0_80] : memref<18x10x128xbf16, #tpu.memory_space<vmem>>, vector<16x8x128xbf16>
    %65 = vector.shape_cast %64 : vector<16x8x128xbf16> to vector<128x128xbf16>
    %66 = tpu.concatenate %61, %63, %65 in 1 : vector<128x128xbf16>, vector<128x128xbf16>, vector<128x128xbf16> -> vector<128x384xbf16>
    %c2_81 = arith.constant 2 : index
    %c0_82 = arith.constant 0 : index
    %c0_83 = arith.constant 0 : index
    %67 = vector.load %arg3[%c2_81, %c0_82, %c0_83] : memref<3x384x128xbf16, #tpu.memory_space<vmem>>, vector<1x384x128xbf16>
    %68 = vector.shape_cast %67 : vector<1x384x128xbf16> to vector<384x128xbf16>
    %cst_84 = arith.constant dense<0.000000e+00> : vector<128x128xf32>
    %69 = tpu.matmul %66, %68, %cst_84 {dimension_numbers = #tpu.dot_dimension_numbers<[1], [0], [0], [1], [0, 0, 1, 1], [], []>} : vector<128x384xbf16>, vector<384x128xbf16>, vector<128x128xf32> -> vector<128x128xf32>
    %70 = arith.addf %59, %69 : vector<128x128xf32>
    %c0_85 = arith.constant 0 : index
    %c0_86 = arith.constant 0 : index
    %71 = vector.load %arg7[%c0_85, %c0_86] : memref<1x128xf32, #tpu.memory_space<vmem>>, vector<1x128xf32>
    %72 = vector.broadcast %71 : vector<1x128xf32> to vector<128x128xf32>
    %73 = arith.addf %70, %72 : vector<128x128xf32>
    %cst_87 = arith.constant 0.000000e+00 : f32
    %74 = vector.broadcast %cst_87 : f32 to vector<128x128xf32>
    %75 = arith.cmpf oge, %73, %74 : vector<128x128xf32>
    %cst_88 = arith.constant 0.00999999977 : f32
    %76 = vector.broadcast %cst_88 : f32 to vector<128x128xf32>
    %77 = arith.mulf %76, %73 : vector<128x128xf32>
    %78 = arith.select %75, %73, %77 : vector<128x128xi1>, vector<128x128xf32>
    %79 = vector.shape_cast %78 : vector<128x128xf32> to vector<16x8x128xf32>
    %80 = arith.truncf %79 : vector<16x8x128xf32> to vector<16x8x128xbf16>
    %c1_89 = arith.constant 1 : index
    %c1_90 = arith.constant 1 : index
    %c0_91 = arith.constant 0 : index
    %81 = vector.load %arg12[%c1_89, %c1_90, %c0_91] : memref<18x10x128xbf16, #tpu.memory_space<vmem>>, vector<16x8x128xbf16>
    tpu.vector_store %arg12[%c1_89, %c1_90, %c0_91], %80 {strides = array<i32>} : memref<18x10x128xbf16, #tpu.memory_space<vmem>>, vector<16x8x128xbf16>,
    %c1_92 = arith.constant 1 : index
    %c1_93 = arith.constant 1 : index
    %c0_94 = arith.constant 0 : index
    %82 = vector.load %arg12[%c1_92, %c1_93, %c0_94] : memref<18x10x128xbf16, #tpu.memory_space<vmem>>, vector<16x8x128xbf16>
    %83 = vector.shape_cast %82 : vector<16x8x128xbf16> to vector<128x128xbf16>
    %c1_95 = arith.constant 1 : index
    %c2_96 = arith.constant 2 : index
    %c0_97 = arith.constant 0 : index
    %84 = vector.load %arg12[%c1_95, %c2_96, %c0_97] : memref<18x10x128xbf16, #tpu.memory_space<vmem>>, vector<16x8x128xbf16>
    %85 = vector.shape_cast %84 : vector<16x8x128xbf16> to vector<128x128xbf16>
    %c2_98 = arith.constant 2 : index
    %c1_99 = arith.constant 1 : index
    %c0_100 = arith.constant 0 : index
    %86 = vector.load %arg12[%c2_98, %c1_99, %c0_100] : memref<18x10x128xbf16, #tpu.memory_space<vmem>>, vector<16x8x128xbf16>
    %87 = vector.shape_cast %86 : vector<16x8x128xbf16> to vector<128x128xbf16>
    %c2_101 = arith.constant 2 : index
    %c2_102 = arith.constant 2 : index
    %c0_103 = arith.constant 0 : index
    %88 = vector.load %arg12[%c2_101, %c2_102, %c0_103] : memref<18x10x128xbf16, #tpu.memory_space<vmem>>, vector<16x8x128xbf16>
    %89 = vector.shape_cast %88 : vector<16x8x128xbf16> to vector<128x128xbf16>
    %90 = tpu.concatenate %83, %85, %87, %89 in 1 : vector<128x128xbf16>, vector<128x128xbf16>, vector<128x128xbf16>, vector<128x128xbf16> -> vector<128x512xbf16>
    %c0_104 = arith.constant 0 : index
    %c0_105 = arith.constant 0 : index
    %91 = vector.load %arg4[%c0_104, %c0_105] : memref<512x256xbf16, #tpu.memory_space<vmem>>, vector<512x256xbf16>
    %cst_106 = arith.constant dense<0.000000e+00> : vector<128x256xf32>
    %92 = tpu.matmul %90, %91, %cst_106 {dimension_numbers = #tpu.dot_dimension_numbers<[1], [0], [0], [1], [0, 0, 1, 1], [], []>} : vector<128x512xbf16>, vector<512x256xbf16>, vector<128x256xf32> -> vector<128x256xf32>
    %c0_107 = arith.constant 0 : index
    %c0_108 = arith.constant 0 : index
    %93 = vector.load %arg8[%c0_107, %c0_108] : memref<1x256xf32, #tpu.memory_space<vmem>>, vector<1x256xf32>
    %94 = vector.broadcast %93 : vector<1x256xf32> to vector<128x256xf32>
    %95 = arith.addf %92, %94 : vector<128x256xf32>
    %cst_109 = arith.constant 0.000000e+00 : f32
    %96 = vector.broadcast %cst_109 : f32 to vector<128x256xf32>
    %97 = arith.cmpf oge, %95, %96 : vector<128x256xf32>
    %cst_110 = arith.constant 0.00999999977 : f32
    %98 = vector.broadcast %cst_110 : f32 to vector<128x256xf32>
    %99 = arith.mulf %98, %95 : vector<128x256xf32>
    %100 = arith.select %97, %95, %99 : vector<128x256xi1>, vector<128x256xf32>
    %101 = vector.extract_strided_slice %100 {offsets = [0, 0], sizes = [128, 128], strides = [1, 1]} : vector<128x256xf32> to vector<128x128xf32>
    %102 = vector.shape_cast %101 : vector<128x128xf32> to vector<16x8x128xf32>
    %103 = vector.extract_strided_slice %100 {offsets = [0, 128], sizes = [128, 128], strides = [1, 1]} : vector<128x256xf32> to vector<128x128xf32>
    %104 = vector.shape_cast %103 : vector<128x128xf32> to vector<16x8x128xf32>
    %105 = vector.shape_cast %102 : vector<16x8x128xf32> to vector<16x1x8x128xf32>
    %106 = vector.shape_cast %104 : vector<16x8x128xf32> to vector<16x1x8x128xf32>
    %107 = tpu.concatenate %105, %106 in 1 : vector<16x1x8x128xf32>, vector<16x1x8x128xf32> -> vector<16x2x8x128xf32>
    %108 = vector.shape_cast %107 : vector<16x2x8x128xf32> to vector<32x8x128xf32>
    %109 = arith.truncf %108 : vector<32x8x128xf32> to vector<32x8x128xbf16>
    %c1_111 = arith.constant 1 : index
    %c1_112 = arith.constant 1 : index
    %c0_113 = arith.constant 0 : index
    %110 = vector.load %arg13[%c1_111, %c1_112, %c0_113] : memref<34x10x128xbf16, #tpu.memory_space<vmem>>, vector<32x8x128xbf16>
    tpu.vector_store %arg13[%c1_111, %c1_112, %c0_113], %109 {strides = array<i32>} : memref<34x10x128xbf16, #tpu.memory_space<vmem>>, vector<32x8x128xbf16>,
    %c1_114 = arith.constant 1 : index
    %c1_115 = arith.constant 1 : index
    %c0_116 = arith.constant 0 : index
    %111 = vector.load %arg13[%c1_114, %c1_115, %c0_116] : memref<34x10x128xbf16, #tpu.memory_space<vmem>>, vector<32x8x128xbf16>
    %112 = vector.shape_cast %111 : vector<32x8x128xbf16> to vector<256x128xbf16>
    %c1_117 = arith.constant 1 : index
    %c2_118 = arith.constant 2 : index
    %c0_119 = arith.constant 0 : index
    %113 = vector.load %arg13[%c1_117, %c2_118, %c0_119] : memref<34x10x128xbf16, #tpu.memory_space<vmem>>, vector<32x8x128xbf16>
    %114 = vector.shape_cast %113 : vector<32x8x128xbf16> to vector<256x128xbf16>
    %c2_120 = arith.constant 2 : index
    %c1_121 = arith.constant 1 : index
    %c0_122 = arith.constant 0 : index
    %115 = vector.load %arg13[%c2_120, %c1_121, %c0_122] : memref<34x10x128xbf16, #tpu.memory_space<vmem>>, vector<32x8x128xbf16>
    %116 = vector.shape_cast %115 : vector<32x8x128xbf16> to vector<256x128xbf16>
    %c2_123 = arith.constant 2 : index
    %c2_124 = arith.constant 2 : index
    %c0_125 = arith.constant 0 : index
    %117 = vector.load %arg13[%c2_123, %c2_124, %c0_125] : memref<34x10x128xbf16, #tpu.memory_space<vmem>>, vector<32x8x128xbf16>
    %118 = vector.shape_cast %117 : vector<32x8x128xbf16> to vector<256x128xbf16>
    %119 = tpu.concatenate %112, %114, %116, %118 in 1 : vector<256x128xbf16>, vector<256x128xbf16>, vector<256x128xbf16>, vector<256x128xbf16> -> vector<256x512xbf16>
    %c0_126 = arith.constant 0 : index
    %c0_127 = arith.constant 0 : index
    %120 = vector.load %arg9[%c0_126, %c0_127] : memref<1x24xf32, #tpu.memory_space<vmem>>, vector<1x24xf32>
    %c0_128 = arith.constant 0 : index
    %c0_129 = arith.constant 0 : index
    %c0_130 = arith.constant 0 : index
    %121 = vector.load %arg5[%c0_128, %c0_129, %c0_130] : memref<2x512x24xbf16, #tpu.memory_space<vmem>>, vector<1x512x24xbf16>
    %122 = vector.shape_cast %121 : vector<1x512x24xbf16> to vector<512x24xbf16>
    %cst_131 = arith.constant dense<0.000000e+00> : vector<256x24xf32>
    %123 = tpu.matmul %119, %122, %cst_131 {dimension_numbers = #tpu.dot_dimension_numbers<[1], [0], [0], [1], [0, 0, 1, 1], [], []>} : vector<256x512xbf16>, vector<512x24xbf16>, vector<256x24xf32> -> vector<256x24xf32>
    %124 = vector.broadcast %120 : vector<1x24xf32> to vector<256x24xf32>
    %125 = arith.addf %123, %124 : vector<256x24xf32>
    %126 = arith.negf %125 : vector<256x24xf32>
    %127 = math.exp %126 : vector<256x24xf32>
    %cst_132 = arith.constant 1.000000e+00 : f32
    %128 = vector.broadcast %cst_132 : f32 to vector<256x24xf32>
    %129 = arith.addf %128, %127 : vector<256x24xf32>
    %130 = arith.divf %128, %129 : vector<256x24xf32>
    %cst_133 = arith.constant 2.000000e+00 : f32
    %131 = vector.broadcast %cst_133 : f32 to vector<256x24xf32>
    %132 = arith.mulf %130, %131 : vector<256x24xf32>
    %cst_134 = arith.constant 1.000000e+00 : f32
    %133 = vector.broadcast %cst_134 : f32 to vector<256x24xf32>
    %134 = arith.subf %132, %133 : vector<256x24xf32>
    %135 = vector.shape_cast %134 : vector<256x24xf32> to vector<32x8x24xf32>
    %c1_135 = arith.constant 1 : index
    %c0_136 = arith.constant 0 : index
    %c0_137 = arith.constant 0 : index
    %136 = vector.load %arg5[%c1_135, %c0_136, %c0_137] : memref<2x512x24xbf16, #tpu.memory_space<vmem>>, vector<1x512x24xbf16>
    %137 = vector.shape_cast %136 : vector<1x512x24xbf16> to vector<512x24xbf16>
    %cst_138 = arith.constant dense<0.000000e+00> : vector<256x24xf32>
    %138 = tpu.matmul %119, %137, %cst_138 {dimension_numbers = #tpu.dot_dimension_numbers<[1], [0], [0], [1], [0, 0, 1, 1], [], []>} : vector<256x512xbf16>, vector<512x24xbf16>, vector<256x24xf32> -> vector<256x24xf32>
    %139 = vector.broadcast %120 : vector<1x24xf32> to vector<256x24xf32>
    %140 = arith.addf %138, %139 : vector<256x24xf32>
    %141 = arith.negf %140 : vector<256x24xf32>
    %142 = math.exp %141 : vector<256x24xf32>
    %cst_139 = arith.constant 1.000000e+00 : f32
    %143 = vector.broadcast %cst_139 : f32 to vector<256x24xf32>
    %144 = arith.addf %143, %142 : vector<256x24xf32>
    %145 = arith.divf %143, %144 : vector<256x24xf32>
    %cst_140 = arith.constant 2.000000e+00 : f32
    %146 = vector.broadcast %cst_140 : f32 to vector<256x24xf32>
    %147 = arith.mulf %145, %146 : vector<256x24xf32>
    %cst_141 = arith.constant 1.000000e+00 : f32
    %148 = vector.broadcast %cst_141 : f32 to vector<256x24xf32>
    %149 = arith.subf %147, %148 : vector<256x24xf32>
    %150 = vector.shape_cast %149 : vector<256x24xf32> to vector<32x8x24xf32>
    %151 = vector.shape_cast %135 : vector<32x8x24xf32> to vector<32x1x8x24xf32>
    %152 = vector.shape_cast %150 : vector<32x8x24xf32> to vector<32x1x8x24xf32>
    %153 = tpu.concatenate %151, %152 in 1 : vector<32x1x8x24xf32>, vector<32x1x8x24xf32> -> vector<32x2x8x24xf32>
    %154 = vector.shape_cast %153 : vector<32x2x8x24xf32> to vector<64x8x24xf32>
    %c0_142 = arith.constant 0 : index
    %c0_143 = arith.constant 0 : index
    %c0_144 = arith.constant 0 : index
    %c0_145 = arith.constant 0 : index
    %155 = vector.load %arg10[%c0_142, %c0_143, %c0_144, %c0_145] : memref<1x64x8x24xf32, #tpu.memory_space<vmem>>, vector<1x64x8x24xf32>
    %156 = vector.shape_cast %155 : vector<1x64x8x24xf32> to vector<64x8x24xf32>
    %157 = vector.shape_cast %154 : vector<64x8x24xf32> to vector<1x64x8x24xf32>
    tpu.vector_store %arg10[%c0_142, %c0_143, %c0_144, %c0_145], %157 {strides = array<i32>} : memref<1x64x8x24xf32, #tpu.memory_space<vmem>>, vector<1x64x8x24xf32>,
    return
  }
  func.func @transform_0(%arg0: i32) -> (i32, i32, i32) {
    %c0_i32 = arith.constant 0 : i32
    %c0_i32_0 = arith.constant 0 : i32
    %c0_i32_1 = arith.constant 0 : i32
    return %arg0, %c0_i32, %c0_i32_0 : i32, i32, i32
  }
  func.func @transform_1(%arg0: i32) -> (i32, i32) {
    %c0_i32 = arith.constant 0 : i32
    %c0_i32_0 = arith.constant 0 : i32
    %c0_i32_1 = arith.constant 0 : i32
    return %c0_i32, %c0_i32_0 : i32, i32
  }
  func.func @transform_2(%arg0: i32) -> (i32, i32, i32) {
    %c0_i32 = arith.constant 0 : i32
    %c0_i32_0 = arith.constant 0 : i32
    %c0_i32_1 = arith.constant 0 : i32
    %c0_i32_2 = arith.constant 0 : i32
    return %c0_i32, %c0_i32_0, %c0_i32_1 : i32, i32, i32
  }
  func.func @transform_3(%arg0: i32) -> (i32, i32) {
    %c0_i32 = arith.constant 0 : i32
    %c0_i32_0 = arith.constant 0 : i32
    %c0_i32_1 = arith.constant 0 : i32
    return %c0_i32, %c0_i32_0 : i32, i32
  }
  func.func @transform_4(%arg0: i32) -> (i32, i32, i32) {
    %c0_i32 = arith.constant 0 : i32
    %c0_i32_0 = arith.constant 0 : i32
    %c0_i32_1 = arith.constant 0 : i32
    %c0_i32_2 = arith.constant 0 : i32
    return %c0_i32, %c0_i32_0, %c0_i32_1 : i32, i32, i32
  }
  func.func @transform_5(%arg0: i32) -> (i32, i32) {
    %c0_i32 = arith.constant 0 : i32
    %c0_i32_0 = arith.constant 0 : i32
    %c0_i32_1 = arith.constant 0 : i32
    return %c0_i32, %c0_i32_0 : i32, i32
  }
  func.func @transform_6(%arg0: i32) -> (i32, i32) {
    %c0_i32 = arith.constant 0 : i32
    %c0_i32_0 = arith.constant 0 : i32
    %c0_i32_1 = arith.constant 0 : i32
    return %c0_i32, %c0_i32_0 : i32, i32
  }
  func.func @transform_7(%arg0: i32) -> (i32, i32) {
    %c0_i32 = arith.constant 0 : i32
    %c0_i32_0 = arith.constant 0 : i32
    %c0_i32_1 = arith.constant 0 : i32
    return %c0_i32, %c0_i32_0 : i32, i32
  }
  func.func @transform_8(%arg0: i32) -> (i32, i32) {
    %c0_i32 = arith.constant 0 : i32
    %c0_i32_0 = arith.constant 0 : i32
    %c0_i32_1 = arith.constant 0 : i32
    return %c0_i32, %c0_i32_0 : i32, i32
  }
  func.func @transform_9(%arg0: i32) -> (i32, i32, i32, i32) {
    %c0_i32 = arith.constant 0 : i32
    %c0_i32_0 = arith.constant 0 : i32
    %c0_i32_1 = arith.constant 0 : i32
    %c0_i32_2 = arith.constant 0 : i32
    return %arg0, %c0_i32, %c0_i32_0, %c0_i32_1 : i32, i32, i32, i32
  }
}

</mosaic_0001>

<llo_original>
// kernel: decoder_forward_nchw.1
$region0: #{decoder_forward_nchw.1}
  #allocation0 [shape = 'u32[]', space=smem, size = 0x4, offset = 0x4, fixed_abs, tag = 'smem constant byte address 0x4 - core index']
  #allocation1 [shape = 'u32[144,128]{1,0:T(1,128)}', space=vmem, size = 0x12000, scoped, tag = 'internal scratch']
  #allocation2 [shape = 'bf16[18,10,128]{2,1,0:T(8,128)(2,1)}', space=vmem, size = 0x12000, scoped, tag = 'scratch operand']
  #allocation3 [shape = 'bf16[18,10,128]{2,1,0:T(8,128)(2,1)}', space=vmem, size = 0x12000, scoped, tag = 'scratch operand']
  #allocation4 [shape = 'bf16[34,10,128]{2,1,0:T(8,128)(2,1)}', space=vmem, size = 0x22000, scoped, tag = 'scratch operand']
  %s0 = inlined_call_operand.vmem [shape: bf16[2,64,256], index: 0, kind: input, shape index: {}]
  %s1 = inlined_call_operand.vmem [shape: bf16[256,256], index: 1, kind: input, shape index: {}]
  %s2 = inlined_call_operand.vmem [shape: bf16[3,384,128], index: 2, kind: input, shape index: {}]
  %s3 = inlined_call_operand.vmem [shape: bf16[512,256], index: 3, kind: input, shape index: {}]
  %s4 = inlined_call_operand.vmem [shape: bf16[2,512,24], index: 4, kind: input, shape index: {}]
  %s5 = inlined_call_operand.vmem [shape: f32[1,256], index: 5, kind: input, shape index: {}]
  %s6 = inlined_call_operand.vmem [shape: f32[1,128], index: 6, kind: input, shape index: {}]
  %s7 = inlined_call_operand.vmem [shape: f32[1,256], index: 7, kind: input, shape index: {}]
  %s8 = inlined_call_operand.vmem [shape: f32[1,24], index: 8, kind: input, shape index: {}]
  %s9 = inlined_call_operand.vmem [shape: f32[2,64,8,24], index: 9, kind: output, shape index: {}]
  %s10 = sld [smem:[#allocation0]]
  $region69: #{decoder_forward_nchw.1} parent=0
    _
  %s12 = ssub.s32 1, %s10
  %s13 = scalar_select 0, %s12, %s10
  loop: start=0, step=1, limit=4
  $region2: #{decoder_forward_nchw.1} parent=0 // loop_pre_header
    _
  $region3: #{decoder_forward_nchw.1} parent=0 // loop_header
    %s15 = sphi 0, %s19
    %p16 = scmp.ge.s32.totalorder %s15, 4
    %s25 = sphi 0, %s27
    %s28 = sphi 0, %s25
    %s29 = sphi 0, %s28
    %s45 = sphi 0, %s29
    %s49 = sphi 0, %s49
    %s51 = sphi 0, %s49
    %s52 = sphi 0, %s51
    %s66 = sphi 0, %s52
    %s70 = sphi 0, %s70
    %s72 = sphi 0, %s70
    %s73 = sphi 0, %s72
    %s87 = sphi 0, %s73
    %s91 = sphi 0, %s91
    %s93 = sphi 0, %s91
    %s94 = sphi 0, %s93
    %s108 = sphi 0, %s94
    %s112 = sphi 0, %s112
    %s114 = sphi 0, %s112
    %s115 = sphi 0, %s114
    %s129 = sphi 0, %s115
    %s133 = sphi 0, %s133
    %s135 = sphi 0, %s133
    %s136 = sphi 0, %s135
    %s150 = sphi 0, %s136
    %s154 = sphi 0, %s154
    %s156 = sphi 0, %s154
    %s157 = sphi 0, %s156
    %s171 = sphi 0, %s157
    %s175 = sphi 0, %s175
    %s177 = sphi 0, %s175
    %s178 = sphi 0, %s177
    %s192 = sphi 0, %s178
    %s196 = sphi 0, %s196
    %s198 = sphi 0, %s196
    %s199 = sphi 0, %s198
    %s213 = sphi 0, %s199
    %s219 = sphi 0, %s221
    %s222 = sphi 0, %s219
    %s223 = sphi 0, %s222
    %s239 = sphi 0, %s223
  $region4: #{decoder_forward_nchw.1} parent=0 // loop_header_branch
    %18 = sbr.rel (%p16) target = $region8
  $region5: #{decoder_forward_nchw.1} parent=0 // loop_body
    %s20 = ssub.s32 %s15, 1
    %s21 = ssub.s32 %s15, 2
    %s22 = sadd.s32 %s15, 1
    %s23 = ssub.s32 %s15, %s22
    %p24 = scmp.eq.s32.totalorder %s23, 0
    %s26 = sadd.s32 %s25, 1
    %s27 = scalar_select %p24, %s25, %s26
    %p30 = pneg %p24
    %p31 = scmp.eq.s32.totalorder %s15, 1
    %p32 = por %p30, %p31
    %p33 = scmp.ne.s32.totalorder %s25, %s28
    %p34 = scmp.eq.s32.totalorder %s15, 0
    %p35 = por %p33, %p34
    %p36 = scmp.ne.s32.totalorder %s25, %s28
    %p37 = scmp.eq.s32.totalorder %s20, 1
    %p38 = por %p36, %p37
    %p39 = scmp.ne.s32.totalorder %s28, %s29
    %p40 = scmp.eq.s32.totalorder %s20, 0
    %p41 = por %p39, %p40
    %p42 = scmp.ne.s32.totalorder %s28, %s29
    %p43 = scmp.eq.s32.totalorder %s21, 1
    %p44 = por %p42, %p43
    %p46 = scmp.ne.s32.totalorder %s29, %s45
    %p47 = scmp.eq.s32.totalorder %s21, 0
    %p48 = por %p46, %p47
    %s50 = sadd.s32 %s49, 1
    %p53 = scmp.eq.s32.totalorder %s15, 1
    %p54 = scmp.ne.s32.totalorder %s49, %s51
    %p55 = scmp.eq.s32.totalorder %s15, 0
    %p56 = por %p54, %p55
    %p57 = scmp.ne.s32.totalorder %s49, %s51
    %p58 = scmp.eq.s32.totalorder %s20, 1
    %p59 = por %p57, %p58
    %p60 = scmp.ne.s32.totalorder %s51, %s52
    %p61 = scmp.eq.s32.totalorder %s20, 0
    %p62 = por %p60, %p61
    %p63 = scmp.ne.s32.totalorder %s51, %s52
    %p64 = scmp.eq.s32.totalorder %s21, 1
    %p65 = por %p63, %p64
    %p67 = scmp.ne.s32.totalorder %s52, %s66
    %p68 = scmp.eq.s32.totalorder %s21, 0
    %p69 = por %p67, %p68
    %s71 = sadd.s32 %s70, 1
    %p74 = scmp.eq.s32.totalorder %s15, 1
    %p75 = scmp.ne.s32.totalorder %s70, %s72
    %p76 = scmp.eq.s32.totalorder %s15, 0
    %p77 = por %p75, %p76
    %p78 = scmp.ne.s32.totalorder %s70, %s72
    %p79 = scmp.eq.s32.totalorder %s20, 1
    %p80 = por %p78, %p79
    %p81 = scmp.ne.s32.totalorder %s72, %s73
    %p82 = scmp.eq.s32.totalorder %s20, 0
    %p83 = por %p81, %p82
    %p84 = scmp.ne.s32.totalorder %s72, %s73
    %p85 = scmp.eq.s32.totalorder %s21, 1
    %p86 = por %p84, %p85
    %p88 = scmp.ne.s32.totalorder %s73, %s87
    %p89 = scmp.eq.s32.totalorder %s21, 0
    %p90 = por %p88, %p89
    %s92 = sadd.s32 %s91, 1
    %p95 = scmp.eq.s32.totalorder %s15, 1
    %p96 = scmp.ne.s32.totalorder %s91, %s93
    %p97 = scmp.eq.s32.totalorder %s15, 0
    %p98 = por %p96, %p97
    %p99 = scmp.ne.s32.totalorder %s91, %s93
    %p100 = scmp.eq.s32.totalorder %s20, 1
    %p101 = por %p99, %p100
    %p102 = scmp.ne.s32.totalorder %s93, %s94
    %p103 = scmp.eq.s32.totalorder %s20, 0
    %p104 = por %p102, %p103
    %p105 = scmp.ne.s32.totalorder %s93, %s94
    %p106 = scmp.eq.s32.totalorder %s21, 1
    %p107 = por %p105, %p106
    %p109 = scmp.ne.s32.totalorder %s94, %s108
    %p110 = scmp.eq.s32.totalorder %s21, 0
    %p111 = por %p109, %p110
    %s113 = sadd.s32 %s112, 1
    %p116 = scmp.eq.s32.totalorder %s15, 1
    %p117 = scmp.ne.s32.totalorder %s112, %s114
    %p118 = scmp.eq.s32.totalorder %s15, 0
    %p119 = por %p117, %p118
    %p120 = scmp.ne.s32.totalorder %s112, %s114
    %p121 = scmp.eq.s32.totalorder %s20, 1
    %p122 = por %p120, %p121
    %p123 = scmp.ne.s32.totalorder %s114, %s115
    %p124 = scmp.eq.s32.totalorder %s20, 0
    %p125 = por %p123, %p124
    %p126 = scmp.ne.s32.totalorder %s114, %s115
    %p127 = scmp.eq.s32.totalorder %s21, 1
    %p128 = por %p126, %p127
    %p130 = scmp.ne.s32.totalorder %s115, %s129
    %p131 = scmp.eq.s32.totalorder %s21, 0
    %p132 = por %p130, %p131
    %s134 = sadd.s32 %s133, 1
    %p137 = scmp.eq.s32.totalorder %s15, 1
    %p138 = scmp.ne.s32.totalorder %s133, %s135
    %p139 = scmp.eq.s32.totalorder %s15, 0
    %p140 = por %p138, %p139
    %p141 = scmp.ne.s32.totalorder %s133, %s135
    %p142 = scmp.eq.s32.totalorder %s20, 1
    %p143 = por %p141, %p142
    %p144 = scmp.ne.s32.totalorder %s135, %s136
    %p145 = scmp.eq.s32.totalorder %s20, 0
    %p146 = por %p144, %p145
    %p147 = scmp.ne.s32.totalorder %s135, %s136
    %p148 = scmp.eq.s32.totalorder %s21, 1
    %p149 = por %p147, %p148
    %p151 = scmp.ne.s32.totalorder %s136, %s150
    %p152 = scmp.eq.s32.totalorder %s21, 0
    %p153 = por %p151, %p152
    %s155 = sadd.s32 %s154, 1
    %p158 = scmp.eq.s32.totalorder %s15, 1
    %p159 = scmp.ne.s32.totalorder %s154, %s156
    %p160 = scmp.eq.s32.totalorder %s15, 0
    %p161 = por %p159, %p160
    %p162 = scmp.ne.s32.totalorder %s154, %s156
    %p163 = scmp.eq.s32.totalorder %s20, 1
    %p164 = por %p162, %p163
    %p165 = scmp.ne.s32.totalorder %s156, %s157
    %p166 = scmp.eq.s32.totalorder %s20, 0
    %p167 = por %p165, %p166
    %p168 = scmp.ne.s32.totalorder %s156, %s157
    %p169 = scmp.eq.s32.totalorder %s21, 1
    %p170 = por %p168, %p169
    %p172 = scmp.ne.s32.totalorder %s157, %s171
    %p173 = scmp.eq.s32.totalorder %s21, 0
    %p174 = por %p172, %p173
    %s176 = sadd.s32 %s175, 1
    %p179 = scmp.eq.s32.totalorder %s15, 1
    %p180 = scmp.ne.s32.totalorder %s175, %s177
    %p181 = scmp.eq.s32.totalorder %s15, 0
    %p182 = por %p180, %p181
    %p183 = scmp.ne.s32.totalorder %s175, %s177
    %p184 = scmp.eq.s32.totalorder %s20, 1
    %p185 = por %p183, %p184
    %p186 = scmp.ne.s32.totalorder %s177, %s178
    %p187 = scmp.eq.s32.totalorder %s20, 0
    %p188 = por %p186, %p187
    %p189 = scmp.ne.s32.totalorder %s177, %s178
    %p190 = scmp.eq.s32.totalorder %s21, 1
    %p191 = por %p189, %p190
    %p193 = scmp.ne.s32.totalorder %s178, %s192
    %p194 = scmp.eq.s32.totalorder %s21, 0
    %p195 = por %p193, %p194
    %s197 = sadd.s32 %s196, 1
    %p200 = scmp.eq.s32.totalorder %s15, 1
    %p201 = scmp.ne.s32.totalorder %s196, %s198
    %p202 = scmp.eq.s32.totalorder %s15, 0
    %p203 = por %p201, %p202
    %p204 = scmp.ne.s32.totalorder %s196, %s198
    %p205 = scmp.eq.s32.totalorder %s20, 1
    %p206 = por %p204, %p205
    %p207 = scmp.ne.s32.totalorder %s198, %s199
    %p208 = scmp.eq.s32.totalorder %s20, 0
    %p209 = por %p207, %p208
    %p210 = scmp.ne.s32.totalorder %s198, %s199
    %p211 = scmp.eq.s32.totalorder %s21, 1
    %p212 = por %p210, %p211
    %p214 = scmp.ne.s32.totalorder %s199, %s213
    %p215 = scmp.eq.s32.totalorder %s21, 0
    %p216 = por %p214, %p215
    %s217 = ssub.s32 %s15, %s22
    %p218 = scmp.eq.s32.totalorder %s217, 0
    %s220 = sadd.s32 %s219, 1
    %s221 = scalar_select %p218, %s219, %s220
    %p224 = pneg %p218
    %p225 = scmp.eq.s32.totalorder %s15, 1
    %p226 = por %p224, %p225
    %p227 = scmp.ne.s32.totalorder %s219, %s222
    %p228 = scmp.eq.s32.totalorder %s15, 0
    %p229 = por %p227, %p228
    %p230 = scmp.ne.s32.totalorder %s219, %s222
    %p231 = scmp.eq.s32.totalorder %s20, 1
    %p232 = por %p230, %p231
    %p233 = scmp.ne.s32.totalorder %s222, %s223
    %p234 = scmp.eq.s32.totalorder %s20, 0
    %p235 = por %p233, %p234
    %p236 = scmp.ne.s32.totalorder %s222, %s223
    %p237 = scmp.eq.s32.totalorder %s21, 1
    %p238 = por %p236, %p237
    %p240 = scmp.ne.s32.totalorder %s223, %s239
    %p241 = scmp.eq.s32.totalorder %s21, 0
    %p242 = por %p240, %p241
    %p243 = scmp.le.s32.totalorder 1, %s15
    %p244 = scmp.lt.s32.totalorder %s15, 3
    %p245 = pnand %p243, %p244
    %p246 = pneg %p245
    // Predicated region
    $region9: #{decoder_forward_nchw.1} parent=5 // pred_check
      _
    $region10: #{decoder_forward_nchw.1} parent=5 // pred_check_branch
      %248 = sbr.rel (%p245) target = $region12
    $region11: #{decoder_forward_nchw.1} parent=5 // pred_region
      %s249 = ssub.s32 %s15, 1
      // Predicated region
      $region13: #{decoder_forward_nchw.1} parent=11 // pred_check
        %p250 = pneg %p62
      $region14: #{decoder_forward_nchw.1} parent=11 // pred_check_branch
        %252 = sbr.rel (%p250) target = $region16
      $region15: #{decoder_forward_nchw.1} parent=11 // pred_region
        _
      $region16: #{decoder_forward_nchw.1} parent=11 // pred_fallthru
        _
      // Predicated region
      $region17: #{decoder_forward_nchw.1} parent=11 // pred_check
        %p253 = pneg %p83
      $region18: #{decoder_forward_nchw.1} parent=11 // pred_check_branch
        %255 = sbr.rel (%p253) target = $region20
      $region19: #{decoder_forward_nchw.1} parent=11 // pred_region
        _
      $region20: #{decoder_forward_nchw.1} parent=11 // pred_fallthru
        _
      // Predicated region
      $region21: #{decoder_forward_nchw.1} parent=11 // pred_check
        %p256 = pneg %p104
      $region22: #{decoder_forward_nchw.1} parent=11 // pred_check_branch
        %258 = sbr.rel (%p256) target = $region24
      $region23: #{decoder_forward_nchw.1} parent=11 // pred_region
        _
      $region24: #{decoder_forward_nchw.1} parent=11 // pred_fallthru
        _
      // Predicated region
      $region25: #{decoder_forward_nchw.1} parent=11 // pred_check
        %p259 = pneg %p125
      $region26: #{decoder_forward_nchw.1} parent=11 // pred_check_branch
        %261 = sbr.rel (%p259) target = $region28
      $region27: #{decoder_forward_nchw.1} parent=11 // pred_region
        _
      $region28: #{decoder_forward_nchw.1} parent=11 // pred_fallthru
        _
      // Predicated region
      $region29: #{decoder_forward_nchw.1} parent=11 // pred_check
        %p262 = pneg %p146
      $region30: #{decoder_forward_nchw.1} parent=11 // pred_check_branch
        %264 = sbr.rel (%p262) target = $region32
      $region31: #{decoder_forward_nchw.1} parent=11 // pred_region
        _
      $region32: #{decoder_forward_nchw.1} parent=11 // pred_fallthru
        _
      // Predicated region
      $region33: #{decoder_forward_nchw.1} parent=11 // pred_check
        %p265 = pneg %p167
      $region34: #{decoder_forward_nchw.1} parent=11 // pred_check_branch
        %267 = sbr.rel (%p265) target = $region36
      $region35: #{decoder_forward_nchw.1} parent=11 // pred_region
        _
      $region36: #{decoder_forward_nchw.1} parent=11 // pred_fallthru
        _
      // Predicated region
      $region37: #{decoder_forward_nchw.1} parent=11 // pred_check
        %p268 = pneg %p188
      $region38: #{decoder_forward_nchw.1} parent=11 // pred_check_branch
        %270 = sbr.rel (%p268) target = $region40
      $region39: #{decoder_forward_nchw.1} parent=11 // pred_region
        _
      $region40: #{decoder_forward_nchw.1} parent=11 // pred_fallthru
        _
      // Predicated region
      $region41: #{decoder_forward_nchw.1} parent=11 // pred_check
        %p271 = pneg %p209
      $region42: #{decoder_forward_nchw.1} parent=11 // pred_check_branch
        %273 = sbr.rel (%p271) target = $region44
      $region43: #{decoder_forward_nchw.1} parent=11 // pred_region
        _
      $region44: #{decoder_forward_nchw.1} parent=11 // pred_fallthru
        _
    $region12: #{decoder_forward_nchw.1} parent=5 // pred_fallthru
      _
    %p274 = scmp.lt.s32.totalorder %s15, 2
    // Predicated region
    $region45: #{decoder_forward_nchw.1} parent=5 // pred_check
      %p275 = pneg %p274
    $region46: #{decoder_forward_nchw.1} parent=5 // pred_check_branch
      %277 = sbr.rel (%p275) target = $region48
    $region47: #{decoder_forward_nchw.1} parent=5 // pred_region
      // Predicated region
      $region49: #{decoder_forward_nchw.1} parent=47 // pred_check
        %p278 = pneg %p35
      $region50: #{decoder_forward_nchw.1} parent=47 // pred_check_branch
        %280 = sbr.rel (%p278) target = $region52
      $region51: #{decoder_forward_nchw.1} parent=47 // pred_region
        %p281 = scmp.lt.s32.totalorder %s15, 1
        %s282 = scalar_select %p281, %s15, 1
        %s283 = smul.addr %s282, 16
        %s284 = smul.addr %s283, 4
        %s285 = scalar_lea.vmem %s0, %s284
      $region52: #{decoder_forward_nchw.1} parent=47 // pred_fallthru
        _
    $region48: #{decoder_forward_nchw.1} parent=5 // pred_fallthru
      _
    %p286 = scmp.le.s32.totalorder 1, %s15
    %p287 = scmp.lt.s32.totalorder %s15, 3
    %p288 = pnand %p286, %p287
    %p289 = pneg %p288
    // Predicated region
    $region53: #{decoder_forward_nchw.1} parent=5 // pred_check
      _
    $region54: #{decoder_forward_nchw.1} parent=5 // pred_check_branch
      %291 = sbr.rel (%p288) target = $region56
    $region55: #{decoder_forward_nchw.1} parent=5 // pred_region
      %s292 = ssub.s32 %s15, 1
      %p293 = scmp.lt.s32.totalorder %s20, 1
      %s294 = scalar_select %p293, %s20, 1
      %s295 = smul.addr %s294, 16
      %s296 = smul.addr %s295, 4
      %s297 = scalar_lea.vmem %s0, %s296
      %p298 = pneg %p41
      %p299 = pneg %p38
      %p300 = pneg %p62
      %p301 = pneg %p59
      %p302 = pneg %p83
      %p303 = pneg %p80
      %p304 = pneg %p104
      %p305 = pneg %p101
      %p306 = pneg %p125
      %p307 = pneg %p122
      %p308 = pneg %p146
      %p309 = pneg %p143
      %p310 = pneg %p167
      %p311 = pneg %p164
      %p312 = pneg %p188
      %p313 = pneg %p185
      %p314 = pneg %p209
      %p315 = pneg %p206
      %p316 = pneg %p235
      %p317 = pneg %p232
      %p318 = scmp.lt.s32.totalorder %s20, 1
      %s319 = scalar_select %p318, %s20, 1
      %s320 = smul.addr %s319, 64
      %s321 = smul.addr %s320, 8
      %s322 = scalar_lea.vmem %s9, %s321
      %p323 = scmp.lt.s32.totalorder %s20, 1
      %s324 = scalar_select %p323, %s20, 1
      %s325 = smul.addr %s324, 16
      %s326 = smul.addr %s325, 4
      %s327 = scalar_lea.vmem %s0, %s326
      %p328 = scmp.lt.s32.totalorder %s20, 1
      %s329 = scalar_select %p328, %s20, 1
      %s330 = smul.addr %s329, 64
      %s331 = smul.addr %s330, 8
      %s332 = scalar_lea.vmem %s9, %s331
      %334 = vst [vmem:[#allocation2] sm:$0xf] 0
      %335 = vst [vmem:[#allocation2 + $0x4] sm:$0x1] 0
      %s336 = scalar_lea.vmem [#allocation2], 136
      %337 = vst [vmem:[%s336] sm:$0xf] 0
      %338 = vst [vmem:[%s336 + $0x4] sm:$0x1] 0
      %vm339 = vcmask 1040384
      %vm340 = vsmask.f32 256
      %vm341 = vmand %vm339, %vm340
      %v342 = vld [vmem:[#allocation2] sm:$0x1]
      %v343 = vsel %vm341, 0, %v342
      %344 = vst [vmem:[#allocation2] sm:$0x1] %v343
      %v345 = vld [vmem:[#allocation2 + $0x8] sm:$0x1]
      %v346 = vsel %vm341, 0, %v345
      %347 = vst [vmem:[#allocation2 + $0x8] sm:$0x1] %v346
      %v348 = vld [vmem:[#allocation2 + $0x10] sm:$0x1]
      %v349 = vsel %vm341, 0, %v348
      %350 = vst [vmem:[#allocation2 + $0x10] sm:$0x1] %v349
      %v351 = vld [vmem:[#allocation2 + $0x18] sm:$0x1]
      %v352 = vsel %vm341, 0, %v351
      %353 = vst [vmem:[#allocation2 + $0x18] sm:$0x1] %v352
      %v354 = vld [vmem:[#allocation2 + $0x20] sm:$0x1]
      %v355 = vsel %vm341, 0, %v354
      %356 = vst [vmem:[#allocation2 + $0x20] sm:$0x1] %v355
      %v357 = vld [vmem:[#allocation2 + $0x28] sm:$0x1]
      %v358 = vsel %vm341, 0, %v357
      %359 = vst [vmem:[#allocation2 + $0x28] sm:$0x1] %v358
      %v360 = vld [vmem:[#allocation2 + $0x30] sm:$0x1]
      %v361 = vsel %vm341, 0, %v360
      %362 = vst [vmem:[#allocation2 + $0x30] sm:$0x1] %v361
      %v363 = vld [vmem:[#allocation2 + $0x38] sm:$0x1]
      %v364 = vsel %vm341, 0, %v363
      %365 = vst [vmem:[#allocation2 + $0x38] sm:$0x1] %v364
      %v366 = vld [vmem:[#allocation2 + $0x40] sm:$0x1]
      %v367 = vsel %vm341, 0, %v366
      %368 = vst [vmem:[#allocation2 + $0x40] sm:$0x1] %v367
      %v369 = vld [vmem:[#allocation2 + $0x48] sm:$0x1]
      %v370 = vsel %vm341, 0, %v369
      %371 = vst [vmem:[#allocation2 + $0x48] sm:$0x1] %v370
      %v372 = vld [vmem:[#allocation2 + $0x50] sm:$0x1]
      %v373 = vsel %vm341, 0, %v372
      %374 = vst [vmem:[#allocation2 + $0x50] sm:$0x1] %v373
      %v375 = vld [vmem:[#allocation2 + $0x58] sm:$0x1]
      %v376 = vsel %vm341, 0, %v375
      %377 = vst [vmem:[#allocation2 + $0x58] sm:$0x1] %v376
      %v378 = vld [vmem:[#allocation2 + $0x60] sm:$0x1]
      %v379 = vsel %vm341, 0, %v378
      %380 = vst [vmem:[#allocation2 + $0x60] sm:$0x1] %v379
      %v381 = vld [vmem:[#allocation2 + $0x68] sm:$0x1]
      %v382 = vsel %vm341, 0, %v381
      %383 = vst [vmem:[#allocation2 + $0x68] sm:$0x1] %v382
      %v384 = vld [vmem:[#allocation2 + $0x70] sm:$0x1]
      %v385 = vsel %vm341, 0, %v384
      %386 = vst [vmem:[#allocation2 + $0x70] sm:$0x1] %v385
      %v387 = vld [vmem:[#allocation2 + $0x78] sm:$0x1]
      %v388 = vsel %vm341, 0, %v387
      %389 = vst [vmem:[#allocation2 + $0x78] sm:$0x1] %v388
      %v390 = vld [vmem:[#allocation2 + $0x80] sm:$0x1]
      %v391 = vsel %vm341, 0, %v390
      %392 = vst [vmem:[#allocation2 + $0x80] sm:$0x1] %v391
      %v393 = vld [vmem:[#allocation2 + $0x88] sm:$0x1]
      %v394 = vsel %vm341, 0, %v393
      %395 = vst [vmem:[#allocation2 + $0x88] sm:$0x1] %v394
      %vm396 = vsmask.f32 7938
      %vm397 = vmand %vm339, %vm396
      %v398 = vld [vmem:[#allocation2 + $0x4] sm:$0x1]
      %v399 = vsel %vm397, 0, %v398
      %400 = vst [vmem:[#allocation2 + $0x4] sm:$0x1] %v399
      %v401 = vld [vmem:[#allocation2 + $0xc] sm:$0x1]
      %v402 = vsel %vm397, 0, %v401
      %403 = vst [vmem:[#allocation2 + $0xc] sm:$0x1] %v402
      %v404 = vld [vmem:[#allocation2 + $0x14] sm:$0x1]
      %v405 = vsel %vm397, 0, %v404
      %406 = vst [vmem:[#allocation2 + $0x14] sm:$0x1] %v405
      %v407 = vld [vmem:[#allocation2 + $0x1c] sm:$0x1]
      %v408 = vsel %vm397, 0, %v407
      %409 = vst [vmem:[#allocation2 + $0x1c] sm:$0x1] %v408
      %v410 = vld [vmem:[#allocation2 + $0x24] sm:$0x1]
      %v411 = vsel %vm397, 0, %v410
      %412 = vst [vmem:[#allocation2 + $0x24] sm:$0x1] %v411
      %v413 = vld [vmem:[#allocation2 + $0x2c] sm:$0x1]
      %v414 = vsel %vm397, 0, %v413
      %415 = vst [vmem:[#allocation2 + $0x2c] sm:$0x1] %v414
      %v416 = vld [vmem:[#allocation2 + $0x34] sm:$0x1]
      %v417 = vsel %vm397, 0, %v416
      %418 = vst [vmem:[#allocation2 + $0x34] sm:$0x1] %v417
      %v419 = vld [vmem:[#allocation2 + $0x3c] sm:$0x1]
      %v420 = vsel %vm397, 0, %v419
      %421 = vst [vmem:[#allocation2 + $0x3c] sm:$0x1] %v420
      %v422 = vld [vmem:[#allocation2 + $0x44] sm:$0x1]
      %v423 = vsel %vm397, 0, %v422
      %424 = vst [vmem:[#allocation2 + $0x44] sm:$0x1] %v423
      %v425 = vld [vmem:[#allocation2 + $0x4c] sm:$0x1]
      %v426 = vsel %vm397, 0, %v425
      %427 = vst [vmem:[#allocation2 + $0x4c] sm:$0x1] %v426
      %v428 = vld [vmem:[#allocation2 + $0x54] sm:$0x1]
      %v429 = vsel %vm397, 0, %v428
      %430 = vst [vmem:[#allocation2 + $0x54] sm:$0x1] %v429
      %v431 = vld [vmem:[#allocation2 + $0x5c] sm:$0x1]
      %v432 = vsel %vm397, 0, %v431
      %433 = vst [vmem:[#allocation2 + $0x5c] sm:$0x1] %v432
      %v434 = vld [vmem:[#allocation2 + $0x64] sm:$0x1]
      %v435 = vsel %vm397, 0, %v434
      %436 = vst [vmem:[#allocation2 + $0x64] sm:$0x1] %v435
      %v437 = vld [vmem:[#allocation2 + $0x6c] sm:$0x1]
      %v438 = vsel %vm397, 0, %v437
      %439 = vst [vmem:[#allocation2 + $0x6c] sm:$0x1] %v438
      %v440 = vld [vmem:[#allocation2 + $0x74] sm:$0x1]
      %v441 = vsel %vm397, 0, %v440
      %442 = vst [vmem:[#allocation2 + $0x74] sm:$0x1] %v441
      %v443 = vld [vmem:[#allocation2 + $0x7c] sm:$0x1]
      %v444 = vsel %vm397, 0, %v443
      %445 = vst [vmem:[#allocation2 + $0x7c] sm:$0x1] %v444
      %v446 = vld [vmem:[#allocation2 + $0x84] sm:$0x1]
      %v447 = vsel %vm397, 0, %v446
      %448 = vst [vmem:[#allocation2 + $0x84] sm:$0x1] %v447
      %v449 = vld [vmem:[#allocation2 + $0x8c] sm:$0x1]
      %v450 = vsel %vm397, 0, %v449
      %451 = vst [vmem:[#allocation2 + $0x8c] sm:$0x1] %v450
      %452 = vst [vmem:[#allocation3] sm:$0xf] 0
      %453 = vst [vmem:[#allocation3 + $0x4] sm:$0x1] 0
      %s454 = scalar_lea.vmem [#allocation3], 136
      %455 = vst [vmem:[%s454] sm:$0xf] 0
      %456 = vst [vmem:[%s454 + $0x4] sm:$0x1] 0
      %v457 = vld [vmem:[#allocation3] sm:$0x1]
      %v458 = vsel %vm341, 0, %v457
      %459 = vst [vmem:[#allocation3] sm:$0x1] %v458
      %v460 = vld [vmem:[#allocation3 + $0x8] sm:$0x1]
      %v461 = vsel %vm341, 0, %v460
      %462 = vst [vmem:[#allocation3 + $0x8] sm:$0x1] %v461
      %v463 = vld [vmem:[#allocation3 + $0x10] sm:$0x1]
      %v464 = vsel %vm341, 0, %v463
      %465 = vst [vmem:[#allocation3 + $0x10] sm:$0x1] %v464
      %v466 = vld [vmem:[#allocation3 + $0x18] sm:$0x1]
      %v467 = vsel %vm341, 0, %v466
      %468 = vst [vmem:[#allocation3 + $0x18] sm:$0x1] %v467
      %v469 = vld [vmem:[#allocation3 + $0x20] sm:$0x1]
      %v470 = vsel %vm341, 0, %v469
      %471 = vst [vmem:[#allocation3 + $0x20] sm:$0x1] %v470
      %v472 = vld [vmem:[#allocation3 + $0x28] sm:$0x1]
      %v473 = vsel %vm341, 0, %v472
      %474 = vst [vmem:[#allocation3 + $0x28] sm:$0x1] %v473
      %v475 = vld [vmem:[#allocation3 + $0x30] sm:$0x1]
      %v476 = vsel %vm341, 0, %v475
      %477 = vst [vmem:[#allocation3 + $0x30] sm:$0x1] %v476
      %v478 = vld [vmem:[#allocation3 + $0x38] sm:$0x1]
      %v479 = vsel %vm341, 0, %v478
      %480 = vst [vmem:[#allocation3 + $0x38] sm:$0x1] %v479
      %v481 = vld [vmem:[#allocation3 + $0x40] sm:$0x1]
      %v482 = vsel %vm341, 0, %v481
      %483 = vst [vmem:[#allocation3 + $0x40] sm:$0x1] %v482
      %v484 = vld [vmem:[#allocation3 + $0x48] sm:$0x1]
      %v485 = vsel %vm341, 0, %v484
      %486 = vst [vmem:[#allocation3 + $0x48] sm:$0x1] %v485
      %v487 = vld [vmem:[#allocation3 + $0x50] sm:$0x1]
      %v488 = vsel %vm341, 0, %v487
      %489 = vst [vmem:[#allocation3 + $0x50] sm:$0x1] %v488
      %v490 = vld [vmem:[#allocation3 + $0x58] sm:$0x1]
      %v491 = vsel %vm341, 0, %v490
      %492 = vst [vmem:[#allocation3 + $0x58] sm:$0x1] %v491
      %v493 = vld [vmem:[#allocation3 + $0x60] sm:$0x1]
      %v494 = vsel %vm341, 0, %v493
      %495 = vst [vmem:[#allocation3 + $0x60] sm:$0x1] %v494
      %v496 = vld [vmem:[#allocation3 + $0x68] sm:$0x1]
      %v497 = vsel %vm341, 0, %v496
      %498 = vst [vmem:[#allocation3 + $0x68] sm:$0x1] %v497
      %v499 = vld [vmem:[#allocation3 + $0x70] sm:$0x1]
      %v500 = vsel %vm341, 0, %v499
      %501 = vst [vmem:[#allocation3 + $0x70] sm:$0x1] %v500
      %v502 = vld [vmem:[#allocation3 + $0x78] sm:$0x1]
      %v503 = vsel %vm341, 0, %v502
      %504 = vst [vmem:[#allocation3 + $0x78] sm:$0x1] %v503
      %v505 = vld [vmem:[#allocation3 + $0x80] sm:$0x1]
      %v506 = vsel %vm341, 0, %v505
      %507 = vst [vmem:[#allocation3 + $0x80] sm:$0x1] %v506
      %v508 = vld [vmem:[#allocation3 + $0x88] sm:$0x1]
      %v509 = vsel %vm341, 0, %v508
      %510 = vst [vmem:[#allocation3 + $0x88] sm:$0x1] %v509
      %v511 = vld [vmem:[#allocation3 + $0x4] sm:$0x1]
      %v512 = vsel %vm397, 0, %v511
      %513 = vst [vmem:[#allocation3 + $0x4] sm:$0x1] %v512
      %v514 = vld [vmem:[#allocation3 + $0xc] sm:$0x1]
      %v515 = vsel %vm397, 0, %v514
      %516 = vst [vmem:[#allocation3 + $0xc] sm:$0x1] %v515
      %v517 = vld [vmem:[#allocation3 + $0x14] sm:$0x1]
      %v518 = vsel %vm397, 0, %v517
      %519 = vst [vmem:[#allocation3 + $0x14] sm:$0x1] %v518
      %v520 = vld [vmem:[#allocation3 + $0x1c] sm:$0x1]
      %v521 = vsel %vm397, 0, %v520
      %522 = vst [vmem:[#allocation3 + $0x1c] sm:$0x1] %v521
      %v523 = vld [vmem:[#allocation3 + $0x24] sm:$0x1]
      %v524 = vsel %vm397, 0, %v523
      %525 = vst [vmem:[#allocation3 + $0x24] sm:$0x1] %v524
      %v526 = vld [vmem:[#allocation3 + $0x2c] sm:$0x1]
      %v527 = vsel %vm397, 0, %v526
      %528 = vst [vmem:[#allocation3 + $0x2c] sm:$0x1] %v527
      %v529 = vld [vmem:[#allocation3 + $0x34] sm:$0x1]
      %v530 = vsel %vm397, 0, %v529
      %531 = vst [vmem:[#allocation3 + $0x34] sm:$0x1] %v530
      %v532 = vld [vmem:[#allocation3 + $0x3c] sm:$0x1]
      %v533 = vsel %vm397, 0, %v532
      %534 = vst [vmem:[#allocation3 + $0x3c] sm:$0x1] %v533
      %v535 = vld [vmem:[#allocation3 + $0x44] sm:$0x1]
      %v536 = vsel %vm397, 0, %v535
      %537 = vst [vmem:[#allocation3 + $0x44] sm:$0x1] %v536
      %v538 = vld [vmem:[#allocation3 + $0x4c] sm:$0x1]
      %v539 = vsel %vm397, 0, %v538
      %540 = vst [vmem:[#allocation3 + $0x4c] sm:$0x1] %v539
      %v541 = vld [vmem:[#allocation3 + $0x54] sm:$0x1]
      %v542 = vsel %vm397, 0, %v541
      %543 = vst [vmem:[#allocation3 + $0x54] sm:$0x1] %v542
      %v544 = vld [vmem:[#allocation3 + $0x5c] sm:$0x1]
      %v545 = vsel %vm397, 0, %v544
      %546 = vst [vmem:[#allocation3 + $0x5c] sm:$0x1] %v545
      %v547 = vld [vmem:[#allocation3 + $0x64] sm:$0x1]
      %v548 = vsel %vm397, 0, %v547
      %549 = vst [vmem:[#allocation3 + $0x64] sm:$0x1] %v548
      %v550 = vld [vmem:[#allocation3 + $0x6c] sm:$0x1]
      %v551 = vsel %vm397, 0, %v550
      %552 = vst [vmem:[#allocation3 + $0x6c] sm:$0x1] %v551
      %v553 = vld [vmem:[#allocation3 + $0x74] sm:$0x1]
      %v554 = vsel %vm397, 0, %v553
      %555 = vst [vmem:[#allocation3 + $0x74] sm:$0x1] %v554
      %v556 = vld [vmem:[#allocation3 + $0x7c] sm:$0x1]
      %v557 = vsel %vm397, 0, %v556
      %558 = vst [vmem:[#allocation3 + $0x7c] sm:$0x1] %v557
      %v559 = vld [vmem:[#allocation3 + $0x84] sm:$0x1]
      %v560 = vsel %vm397, 0, %v559
      %561 = vst [vmem:[#allocation3 + $0x84] sm:$0x1] %v560
      %v562 = vld [vmem:[#allocation3 + $0x8c] sm:$0x1]
      %v563 = vsel %vm397, 0, %v562
      %564 = vst [vmem:[#allocation3 + $0x8c] sm:$0x1] %v563
      %565 = vst [vmem:[#allocation4] sm:$0xf] 0
      %566 = vst [vmem:[#allocation4 + $0x4] sm:$0x1] 0
      %s567 = scalar_lea.vmem [#allocation4], 264
      %568 = vst [vmem:[%s567] sm:$0xf] 0
      %569 = vst [vmem:[%s567 + $0x4] sm:$0x1] 0
      %v570 = vld [vmem:[#allocation4] sm:$0x1]
      %v571 = vsel %vm341, 0, %v570
      %572 = vst [vmem:[#allocation4] sm:$0x1] %v571
      %v573 = vld [vmem:[#allocation4 + $0x8] sm:$0x1]
      %v574 = vsel %vm341, 0, %v573
      %575 = vst [vmem:[#allocation4 + $0x8] sm:$0x1] %v574
      %v576 = vld [vmem:[#allocation4 + $0x10] sm:$0x1]
      %v577 = vsel %vm341, 0, %v576
      %578 = vst [vmem:[#allocation4 + $0x10] sm:$0x1] %v577
      %v579 = vld [vmem:[#allocation4 + $0x18] sm:$0x1]
      %v580 = vsel %vm341, 0, %v579
      %581 = vst [vmem:[#allocation4 + $0x18] sm:$0x1] %v580
      %v582 = vld [vmem:[#allocation4 + $0x20] sm:$0x1]
      %v583 = vsel %vm341, 0, %v582
      %584 = vst [vmem:[#allocation4 + $0x20] sm:$0x1] %v583
      %v585 = vld [vmem:[#allocation4 + $0x28] sm:$0x1]
      %v586 = vsel %vm341, 0, %v585
      %587 = vst [vmem:[#allocation4 + $0x28] sm:$0x1] %v586
      %v588 = vld [vmem:[#allocation4 + $0x30] sm:$0x1]
      %v589 = vsel %vm341, 0, %v588
      %590 = vst [vmem:[#allocation4 + $0x30] sm:$0x1] %v589
      %v591 = vld [vmem:[#allocation4 + $0x38] sm:$0x1]
      %v592 = vsel %vm341, 0, %v591
      %593 = vst [vmem:[#allocation4 + $0x38] sm:$0x1] %v592
      %v594 = vld [vmem:[#allocation4 + $0x40] sm:$0x1]
      %v595 = vsel %vm341, 0, %v594
      %596 = vst [vmem:[#allocation4 + $0x40] sm:$0x1] %v595
      %v597 = vld [vmem:[#allocation4 + $0x48] sm:$0x1]
      %v598 = vsel %vm341, 0, %v597
      %599 = vst [vmem:[#allocation4 + $0x48] sm:$0x1] %v598
      %v600 = vld [vmem:[#allocation4 + $0x50] sm:$0x1]
      %v601 = vsel %vm341, 0, %v600
      %602 = vst [vmem:[#allocation4 + $0x50] sm:$0x1] %v601
      %v603 = vld [vmem:[#allocation4 + $0x58] sm:$0x1]
      %v604 = vsel %vm341, 0, %v603
      %605 = vst [vmem:[#allocation4 + $0x58] sm:$0x1] %v604
      %v606 = vld [vmem:[#allocation4 + $0x60] sm:$0x1]
      %v607 = vsel %vm341, 0, %v606
      %608 = vst [vmem:[#allocation4 + $0x60] sm:$0x1] %v607
      %v609 = vld [vmem:[#allocation4 + $0x68] sm:$0x1]
      %v610 = vsel %vm341, 0, %v609
      %611 = vst [vmem:[#allocation4 + $0x68] sm:$0x1] %v610
      %v612 = vld [vmem:[#allocation4 + $0x70] sm:$0x1]
      %v613 = vsel %vm341, 0, %v612
      %614 = vst [vmem:[#allocation4 + $0x70] sm:$0x1] %v613
      %v615 = vld [vmem:[#allocation4 + $0x78] sm:$0x1]
      %v616 = vsel %vm341, 0, %v615
      %617 = vst [vmem:[#allocation4 + $0x78] sm:$0x1] %v616
      %v618 = vld [vmem:[#allocation4 + $0x80] sm:$0x1]
      %v619 = vsel %vm341, 0, %v618
      %620 = vst [vmem:[#allocation4 + $0x80] sm:$0x1] %v619
      %v621 = vld [vmem:[#allocation4 + $0x88] sm:$0x1]
      %v622 = vsel %vm341, 0, %v621
      %623 = vst [vmem:[#allocation4 + $0x88] sm:$0x1] %v622
      %v624 = vld [vmem:[#allocation4 + $0x90] sm:$0x1]
      %v625 = vsel %vm341, 0, %v624
      %626 = vst [vmem:[#allocation4 + $0x90] sm:$0x1] %v625
      %v627 = vld [vmem:[#allocation4 + $0x98] sm:$0x1]
      %v628 = vsel %vm341, 0, %v627
      %629 = vst [vmem:[#allocation4 + $0x98] sm:$0x1] %v628
      %v630 = vld [vmem:[#allocation4 + $0xa0] sm:$0x1]
      %v631 = vsel %vm341, 0, %v630
      %632 = vst [vmem:[#allocation4 + $0xa0] sm:$0x1] %v631
      %v633 = vld [vmem:[#allocation4 + $0xa8] sm:$0x1]
      %v634 = vsel %vm341, 0, %v633
      %635 = vst [vmem:[#allocation4 + $0xa8] sm:$0x1] %v634
      %v636 = vld [vmem:[#allocation4 + $0xb0] sm:$0x1]
      %v637 = vsel %vm341, 0, %v636
      %638 = vst [vmem:[#allocation4 + $0xb0] sm:$0x1] %v637
      %v639 = vld [vmem:[#allocation4 + $0xb8] sm:$0x1]
      %v640 = vsel %vm341, 0, %v639
      %641 = vst [vmem:[#allocation4 + $0xb8] sm:$0x1] %v640
      %v642 = vld [vmem:[#allocation4 + $0xc0] sm:$0x1]
      %v643 = vsel %vm341, 0, %v642
      %644 = vst [vmem:[#allocation4 + $0xc0] sm:$0x1] %v643
      %v645 = vld [vmem:[#allocation4 + $0xc8] sm:$0x1]
      %v646 = vsel %vm341, 0, %v645
      %647 = vst [vmem:[#allocation4 + $0xc8] sm:$0x1] %v646
      %v648 = vld [vmem:[#allocation4 + $0xd0] sm:$0x1]
      %v649 = vsel %vm341, 0, %v648
      %650 = vst [vmem:[#allocation4 + $0xd0] sm:$0x1] %v649
      %v651 = vld [vmem:[#allocation4 + $0xd8] sm:$0x1]
      %v652 = vsel %vm341, 0, %v651
      %653 = vst [vmem:[#allocation4 + $0xd8] sm:$0x1] %v652
      %v654 = vld [vmem:[#allocation4 + $0xe0] sm:$0x1]
      %v655 = vsel %vm341, 0, %v654
      %656 = vst [vmem:[#allocation4 + $0xe0] sm:$0x1] %v655
      %v657 = vld [vmem:[#allocation4 + $0xe8] sm:$0x1]
      %v658 = vsel %vm341, 0, %v657
      %659 = vst [vmem:[#allocation4 + $0xe8] sm:$0x1] %v658
      %v660 = vld [vmem:[#allocation4 + $0xf0] sm:$0x1]
      %v661 = vsel %vm341, 0, %v660
      %662 = vst [vmem:[#allocation4 + $0xf0] sm:$0x1] %v661
      %v663 = vld [vmem:[#allocation4 + $0xf8] sm:$0x1]
      %v664 = vsel %vm341, 0, %v663
      %665 = vst [vmem:[#allocation4 + $0xf8] sm:$0x1] %v664
      %v666 = vld [vmem:[#allocation4 + $0x100] sm:$0x1]
      %v667 = vsel %vm341, 0, %v666
      %668 = vst [vmem:[#allocation4 + $0x100] sm:$0x1] %v667
      %v669 = vld [vmem:[#allocation4 + $0x108] sm:$0x1]
      %v670 = vsel %vm341, 0, %v669
      %671 = vst [vmem:[#allocation4 + $0x108] sm:$0x1] %v670
      %v672 = vld [vmem:[#allocation4 + $0x4] sm:$0x1]
      %v673 = vsel %vm397, 0, %v672
      %674 = vst [vmem:[#allocation4 + $0x4] sm:$0x1] %v673
      %v675 = vld [vmem:[#allocation4 + $0xc] sm:$0x1]
      %v676 = vsel %vm397, 0, %v675
      %677 = vst [vmem:[#allocation4 + $0xc] sm:$0x1] %v676
      %v678 = vld [vmem:[#allocation4 + $0x14] sm:$0x1]
      %v679 = vsel %vm397, 0, %v678
      %680 = vst [vmem:[#allocation4 + $0x14] sm:$0x1] %v679
      %v681 = vld [vmem:[#allocation4 + $0x1c] sm:$0x1]
      %v682 = vsel %vm397, 0, %v681
      %683 = vst [vmem:[#allocation4 + $0x1c] sm:$0x1] %v682
      %v684 = vld [vmem:[#allocation4 + $0x24] sm:$0x1]
      %v685 = vsel %vm397, 0, %v684
      %686 = vst [vmem:[#allocation4 + $0x24] sm:$0x1] %v685
      %v687 = vld [vmem:[#allocation4 + $0x2c] sm:$0x1]
      %v688 = vsel %vm397, 0, %v687
      %689 = vst [vmem:[#allocation4 + $0x2c] sm:$0x1] %v688
      %v690 = vld [vmem:[#allocation4 + $0x34] sm:$0x1]
      %v691 = vsel %vm397, 0, %v690
      %692 = vst [vmem:[#allocation4 + $0x34] sm:$0x1] %v691
      %v693 = vld [vmem:[#allocation4 + $0x3c] sm:$0x1]
      %v694 = vsel %vm397, 0, %v693
      %695 = vst [vmem:[#allocation4 + $0x3c] sm:$0x1] %v694
      %v696 = vld [vmem:[#allocation4 + $0x44] sm:$0x1]
      %v697 = vsel %vm397, 0, %v696
      %698 = vst [vmem:[#allocation4 + $0x44] sm:$0x1] %v697
      %v699 = vld [vmem:[#allocation4 + $0x4c] sm:$0x1]
      %v700 = vsel %vm397, 0, %v699
      %701 = vst [vmem:[#allocation4 + $0x4c] sm:$0x1] %v700
      %v702 = vld [vmem:[#allocation4 + $0x54] sm:$0x1]
      %v703 = vsel %vm397, 0, %v702
      %704 = vst [vmem:[#allocation4 + $0x54] sm:$0x1] %v703
      %v705 = vld [vmem:[#allocation4 + $0x5c] sm:$0x1]
      %v706 = vsel %vm397, 0, %v705
      %707 = vst [vmem:[#allocation4 + $0x5c] sm:$0x1] %v706
      %v708 = vld [vmem:[#allocation4 + $0x64] sm:$0x1]
      %v709 = vsel %vm397, 0, %v708
      %710 = vst [vmem:[#allocation4 + $0x64] sm:$0x1] %v709
      %v711 = vld [vmem:[#allocation4 + $0x6c] sm:$0x1]
      %v712 = vsel %vm397, 0, %v711
      %713 = vst [vmem:[#allocation4 + $0x6c] sm:$0x1] %v712
      %v714 = vld [vmem:[#allocation4 + $0x74] sm:$0x1]
      %v715 = vsel %vm397, 0, %v714
      %716 = vst [vmem:[#allocation4 + $0x74] sm:$0x1] %v715
      %v717 = vld [vmem:[#allocation4 + $0x7c] sm:$0x1]
      %v718 = vsel %vm397, 0, %v717
      %719 = vst [vmem:[#allocation4 + $0x7c] sm:$0x1] %v718
      %v720 = vld [vmem:[#allocation4 + $0x84] sm:$0x1]
      %v721 = vsel %vm397, 0, %v720
      %722 = vst [vmem:[#allocation4 + $0x84] sm:$0x1] %v721
      %v723 = vld [vmem:[#allocation4 + $0x8c] sm:$0x1]
      %v724 = vsel %vm397, 0, %v723
      %725 = vst [vmem:[#allocation4 + $0x8c] sm:$0x1] %v724
      %v726 = vld [vmem:[#allocation4 + $0x94] sm:$0x1]
      %v727 = vsel %vm397, 0, %v726
      %728 = vst [vmem:[#allocation4 + $0x94] sm:$0x1] %v727
      %v729 = vld [vmem:[#allocation4 + $0x9c] sm:$0x1]
      %v730 = vsel %vm397, 0, %v729
      %731 = vst [vmem:[#allocation4 + $0x9c] sm:$0x1] %v730
      %v732 = vld [vmem:[#allocation4 + $0xa4] sm:$0x1]
      %v733 = vsel %vm397, 0, %v732
      %734 = vst [vmem:[#allocation4 + $0xa4] sm:$0x1] %v733
      %v735 = vld [vmem:[#allocation4 + $0xac] sm:$0x1]
      %v736 = vsel %vm397, 0, %v735
      %737 = vst [vmem:[#allocation4 + $0xac] sm:$0x1] %v736
      %v738 = vld [vmem:[#allocation4 + $0xb4] sm:$0x1]
      %v739 = vsel %vm397, 0, %v738
      %740 = vst [vmem:[#allocation4 + $0xb4] sm:$0x1] %v739
      %v741 = vld [vmem:[#allocation4 + $0xbc] sm:$0x1]
      %v742 = vsel %vm397, 0, %v741
      %743 = vst [vmem:[#allocation4 + $0xbc] sm:$0x1] %v742
      %v744 = vld [vmem:[#allocation4 + $0xc4] sm:$0x1]
      %v745 = vsel %vm397, 0, %v744
      %746 = vst [vmem:[#allocation4 + $0xc4] sm:$0x1] %v745
      %v747 = vld [vmem:[#allocation4 + $0xcc] sm:$0x1]
      %v748 = vsel %vm397, 0, %v747
      %749 = vst [vmem:[#allocation4 + $0xcc] sm:$0x1] %v748
      %v750 = vld [vmem:[#allocation4 + $0xd4] sm:$0x1]
      %v751 = vsel %vm397, 0, %v750
      %752 = vst [vmem:[#allocation4 + $0xd4] sm:$0x1] %v751
      %v753 = vld [vmem:[#allocation4 + $0xdc] sm:$0x1]
      %v754 = vsel %vm397, 0, %v753
      %755 = vst [vmem:[#allocation4 + $0xdc] sm:$0x1] %v754
      %v756 = vld [vmem:[#allocation4 + $0xe4] sm:$0x1]
      %v757 = vsel %vm397, 0, %v756
      %758 = vst [vmem:[#allocation4 + $0xe4] sm:$0x1] %v757
      %v759 = vld [vmem:[#allocation4 + $0xec] sm:$0x1]
      %v760 = vsel %vm397, 0, %v759
      %761 = vst [vmem:[#allocation4 + $0xec] sm:$0x1] %v760
      %v762 = vld [vmem:[#allocation4 + $0xf4] sm:$0x1]
      %v763 = vsel %vm397, 0, %v762
      %764 = vst [vmem:[#allocation4 + $0xf4] sm:$0x1] %v763
      %v765 = vld [vmem:[#allocation4 + $0xfc] sm:$0x1]
      %v766 = vsel %vm397, 0, %v765
      %767 = vst [vmem:[#allocation4 + $0xfc] sm:$0x1] %v766
      %v768 = vld [vmem:[#allocation4 + $0x104] sm:$0x1]
      %v769 = vsel %vm397, 0, %v768
      %770 = vst [vmem:[#allocation4 + $0x104] sm:$0x1] %v769
      %v771 = vld [vmem:[#allocation4 + $0x10c] sm:$0x1]
      %v772 = vsel %vm397, 0, %v771
      %773 = vst [vmem:[#allocation4 + $0x10c] sm:$0x1] %v772
      %v774 = vld [vmem:[%s327] sm:$0xff]
      %v775 = vld [vmem:[%s327 + $0x8] sm:$0xff]
      %v776 = vld [vmem:[%s327 + $0x10] sm:$0xff]
      %v777 = vld [vmem:[%s327 + $0x18] sm:$0xff]
      %v778 = vld [vmem:[%s327 + $0x20] sm:$0xff]
      %v779 = vld [vmem:[%s327 + $0x28] sm:$0xff]
      %v780 = vld [vmem:[%s327 + $0x30] sm:$0xff]
      %v781 = vld [vmem:[%s327 + $0x38] sm:$0xff]
      %v782 = vld [vmem:[%s1] sm:$0xff]
      %v783 = vld [vmem:[%s1 + $0x8] sm:$0xff]
      %v784 = vld [vmem:[%s1 + $0x10] sm:$0xff]
      %v785 = vld [vmem:[%s1 + $0x18] sm:$0xff]
      %v786 = vld [vmem:[%s1 + $0x20] sm:$0xff]
      %v787 = vld [vmem:[%s1 + $0x28] sm:$0xff]
      %v788 = vld [vmem:[%s1 + $0x30] sm:$0xff]
      %v789 = vld [vmem:[%s1 + $0x38] sm:$0xff]
      %v790 = vld [vmem:[%s1 + $0x40] sm:$0xff]
      %v791 = vld [vmem:[%s1 + $0x48] sm:$0xff]
      %v792 = vld [vmem:[%s1 + $0x50] sm:$0xff]
      %v793 = vld [vmem:[%s1 + $0x58] sm:$0xff]
      %v794 = vld [vmem:[%s1 + $0x60] sm:$0xff]
      %v795 = vld [vmem:[%s1 + $0x68] sm:$0xff]
      %v796 = vld [vmem:[%s1 + $0x70] sm:$0xff]
      %v797 = vld [vmem:[%s1 + $0x78] sm:$0xff]
      %v798 = vld [vmem:[%s1 + $0x80] sm:$0xff]
      %v799 = vld [vmem:[%s1 + $0x88] sm:$0xff]
      %v800 = vld [vmem:[%s1 + $0x90] sm:$0xff]
      %v801 = vld [vmem:[%s1 + $0x98] sm:$0xff]
      %v802 = vld [vmem:[%s1 + $0xa0] sm:$0xff]
      %v803 = vld [vmem:[%s1 + $0xa8] sm:$0xff]
      %v804 = vld [vmem:[%s1 + $0xb0] sm:$0xff]
      %v805 = vld [vmem:[%s1 + $0xb8] sm:$0xff]
      %v806 = vld [vmem:[%s1 + $0xc0] sm:$0xff]
      %v807 = vld [vmem:[%s1 + $0xc8] sm:$0xff]
      %v808 = vld [vmem:[%s1 + $0xd0] sm:$0xff]
      %v809 = vld [vmem:[%s1 + $0xd8] sm:$0xff]
      %v810 = vld [vmem:[%s1 + $0xe0] sm:$0xff]
      %v811 = vld [vmem:[%s1 + $0xe8] sm:$0xff]
      %v812 = vld [vmem:[%s1 + $0xf0] sm:$0xff]
      %v813 = vld [vmem:[%s1 + $0xf8] sm:$0xff]
      %v814 = vld [vmem:[%s5] sm:$0x3]
      %v816 = vlaneseq
      %v817 = vshrl.u32 %v816, 7
      %v818 = vsub.s32 0, %v817
      %v819 = vrot.slane %v814, %v818
      %v820 = vlaneseq
      %v821 = vshrl.u32 %v820, 7
      %v822 = vsub.s32 1, %v821
      %v823 = vrot.slane %v814, %v822
      %v834 = vunpack.c.l.b16 %v774
      %v835 = vunpack.c.h.b16 %v774
      %v836 = vunpack.c.l.b16 %v775
      %v837 = vunpack.c.h.b16 %v775
      %v838 = vunpack.c.l.b16 %v776
      %v839 = vunpack.c.h.b16 %v776
      %v840 = vunpack.c.l.b16 %v777
      %v841 = vunpack.c.h.b16 %v777
      %v842 = vunpack.c.l.b16 %v778
      %v843 = vunpack.c.h.b16 %v778
      %v844 = vunpack.c.l.b16 %v779
      %v845 = vunpack.c.h.b16 %v779
      %v846 = vunpack.c.l.b16 %v780
      %v847 = vunpack.c.h.b16 %v780
      %v848 = vunpack.c.l.b16 %v781
      %v849 = vunpack.c.h.b16 %v781
      %v850 = vpack.c.b16 %v836, %v834
      %v851 = vpack.c.b16 %v837, %v835
      %v852 = vpack.c.b16 %v840, %v838
      %v853 = vpack.c.b16 %v841, %v839
      %v854 = vpack.c.b16 %v844, %v842
      %v855 = vpack.c.b16 %v845, %v843
      %v856 = vpack.c.b16 %v848, %v846
      %v857 = vpack.c.b16 %v849, %v847
      %v898 = vunpack.c.l.b16 %v782
      %v899 = vunpack.c.h.b16 %v782
      %v900 = vunpack.c.l.b16 %v783
      %v901 = vunpack.c.h.b16 %v783
      %v902 = vunpack.c.l.b16 %v784
      %v903 = vunpack.c.h.b16 %v784
      %v904 = vunpack.c.l.b16 %v785
      %v905 = vunpack.c.h.b16 %v785
      %v906 = vunpack.c.l.b16 %v786
      %v907 = vunpack.c.h.b16 %v786
      %v908 = vunpack.c.l.b16 %v787
      %v909 = vunpack.c.h.b16 %v787
      %v910 = vunpack.c.l.b16 %v788
      %v911 = vunpack.c.h.b16 %v788
      %v912 = vunpack.c.l.b16 %v789
      %v913 = vunpack.c.h.b16 %v789
      %v914 = vunpack.c.l.b16 %v790
      %v915 = vunpack.c.h.b16 %v790
      %v916 = vunpack.c.l.b16 %v791
      %v917 = vunpack.c.h.b16 %v791
      %v918 = vunpack.c.l.b16 %v792
      %v919 = vunpack.c.h.b16 %v792
      %v920 = vunpack.c.l.b16 %v793
      %v921 = vunpack.c.h.b16 %v793
      %v922 = vunpack.c.l.b16 %v794
      %v923 = vunpack.c.h.b16 %v794
      %v924 = vunpack.c.l.b16 %v795
      %v925 = vunpack.c.h.b16 %v795
      %v926 = vunpack.c.l.b16 %v796
      %v927 = vunpack.c.h.b16 %v796
      %v928 = vunpack.c.l.b16 %v797
      %v929 = vunpack.c.h.b16 %v797
      %v930 = vunpack.c.l.b16 %v798
      %v931 = vunpack.c.h.b16 %v798
      %v932 = vunpack.c.l.b16 %v799
      %v933 = vunpack.c.h.b16 %v799
      %v934 = vunpack.c.l.b16 %v800
      %v935 = vunpack.c.h.b16 %v800
      %v936 = vunpack.c.l.b16 %v801
      %v937 = vunpack.c.h.b16 %v801
      %v938 = vunpack.c.l.b16 %v802
      %v939 = vunpack.c.h.b16 %v802
      %v940 = vunpack.c.l.b16 %v803
      %v941 = vunpack.c.h.b16 %v803
      %v942 = vunpack.c.l.b16 %v804
      %v943 = vunpack.c.h.b16 %v804
      %v944 = vunpack.c.l.b16 %v805
      %v945 = vunpack.c.h.b16 %v805
      %v946 = vunpack.c.l.b16 %v806
      %v947 = vunpack.c.h.b16 %v806
      %v948 = vunpack.c.l.b16 %v807
      %v949 = vunpack.c.h.b16 %v807
      %v950 = vunpack.c.l.b16 %v808
      %v951 = vunpack.c.h.b16 %v808
      %v952 = vunpack.c.l.b16 %v809
      %v953 = vunpack.c.h.b16 %v809
      %v954 = vunpack.c.l.b16 %v810
      %v955 = vunpack.c.h.b16 %v810
      %v956 = vunpack.c.l.b16 %v811
      %v957 = vunpack.c.h.b16 %v811
      %v958 = vunpack.c.l.b16 %v812
      %v959 = vunpack.c.h.b16 %v812
      %v960 = vunpack.c.l.b16 %v813
      %v961 = vunpack.c.h.b16 %v813
      %v962 = vpack.c.b16 %v900, %v898
      %v963 = vpack.c.b16 %v901, %v899
      %v964 = vpack.c.b16 %v904, %v902
      %v965 = vpack.c.b16 %v905, %v903
      %v966 = vpack.c.b16 %v908, %v906
      %v967 = vpack.c.b16 %v909, %v907
      %v968 = vpack.c.b16 %v912, %v910
      %v969 = vpack.c.b16 %v913, %v911
      %v970 = vpack.c.b16 %v916, %v914
      %v971 = vpack.c.b16 %v917, %v915
      %v972 = vpack.c.b16 %v920, %v918
      %v973 = vpack.c.b16 %v921, %v919
      %v974 = vpack.c.b16 %v924, %v922
      %v975 = vpack.c.b16 %v925, %v923
      %v976 = vpack.c.b16 %v928, %v926
      %v977 = vpack.c.b16 %v929, %v927
      %v978 = vpack.c.b16 %v932, %v930
      %v979 = vpack.c.b16 %v933, %v931
      %v980 = vpack.c.b16 %v936, %v934
      %v981 = vpack.c.b16 %v937, %v935
      %v982 = vpack.c.b16 %v940, %v938
      %v983 = vpack.c.b16 %v941, %v939
      %v984 = vpack.c.b16 %v944, %v942
      %v985 = vpack.c.b16 %v945, %v943
      %v986 = vpack.c.b16 %v948, %v946
      %v987 = vpack.c.b16 %v949, %v947
      %v988 = vpack.c.b16 %v952, %v950
      %v989 = vpack.c.b16 %v953, %v951
      %v990 = vpack.c.b16 %v956, %v954
      %v991 = vpack.c.b16 %v957, %v955
      %v992 = vpack.c.b16 %v960, %v958
      %v993 = vpack.c.b16 %v961, %v959
      %1026 = vmatprep.subr.bf16.mxu0 %v963
      %1027 = vmatpush1.bf16.msra.mxu0 %v962
      %1028 = vmatprep.subr.bf16.mxu0 %v965
      %1029 = vmatpush1.bf16.msra.mxu0 %v964
      %1030 = vmatprep.subr.bf16.mxu0 %v967
      %1031 = vmatpush1.bf16.msra.mxu0 %v966
      %1032 = vmatprep.subr.bf16.mxu0 %v969
      %1033 = vmatpush1.bf16.msra.mxu0 %v968
      %1034 = vmatprep.subr.bf16.mxu0 %v971
      %1035 = vmatpush1.bf16.msra.mxu0 %v970
      %1036 = vmatprep.subr.bf16.mxu0 %v973
      %1037 = vmatpush1.bf16.msra.mxu0 %v972
      %1038 = vmatprep.subr.bf16.mxu0 %v975
      %1039 = vmatpush1.bf16.msra.mxu0 %v974
      %1040 = vmatprep.subr.bf16.mxu0 %v977
      %1041 = vmatpush1.bf16.msra.mxu0 %v976
      %1042 = vmatprep.subr.bf16.mxu0 %v979
      %1043 = vmatpush1.bf16.msra.mxu0 %v978
      %1044 = vmatprep.subr.bf16.mxu0 %v981
      %1045 = vmatpush1.bf16.msra.mxu0 %v980
      %1046 = vmatprep.subr.bf16.mxu0 %v983
      %1047 = vmatpush1.bf16.msra.mxu0 %v982
      %1048 = vmatprep.subr.bf16.mxu0 %v985
      %1049 = vmatpush1.bf16.msra.mxu0 %v984
      %1050 = vmatprep.subr.bf16.mxu0 %v987
      %1051 = vmatpush1.bf16.msra.mxu0 %v986
      %1052 = vmatprep.subr.bf16.mxu0 %v989
      %1053 = vmatpush1.bf16.msra.mxu0 %v988
      %1054 = vmatprep.subr.bf16.mxu0 %v991
      %1055 = vmatpush1.bf16.msra.mxu0 %v990
      %1056 = vmatprep.subr.bf16.mxu0 %v993
      %1057 = vmatpush1.bf16.msra.mxu0 %v992
      %1058 = vmatprep.mubr.bf16.mxu0 %v851
      %1059 = vmatmul.mubr.bf16.gmra.mrb[0].mxu0 %v850
      %v1060 = vpop.f32.mrb[0].mxu0
      %v1061 = vadd.f32 %v819, %v1060
      %v1062 = vpop.f32.mrb[0].mxu0
      %v1063 = vadd.f32 %v823, %v1062
      %v1064 = vpop.f32.mrb[0].mxu0
      %v1065 = vadd.f32 %v819, %v1064
      %v1066 = vpop.f32.mrb[0].mxu0
      %v1067 = vadd.f32 %v823, %v1066
      %1068 = vmatprep.mubr.bf16.mxu0 %v853
      %1069 = vmatmul.mubr.bf16.gmra.mrb[0].mxu0 %v852
      %v1070 = vpop.f32.mrb[0].mxu0
      %v1071 = vadd.f32 %v819, %v1070
      %v1072 = vpop.f32.mrb[0].mxu0
      %v1073 = vadd.f32 %v823, %v1072
      %v1074 = vpop.f32.mrb[0].mxu0
      %v1075 = vadd.f32 %v819, %v1074
      %v1076 = vpop.f32.mrb[0].mxu0
      %v1077 = vadd.f32 %v823, %v1076
      %1078 = vmatprep.mubr.bf16.mxu0 %v855
      %1079 = vmatmul.mubr.bf16.gmra.mrb[0].mxu0 %v854
      %v1080 = vpop.f32.mrb[0].mxu0
      %v1081 = vadd.f32 %v819, %v1080
      %v1082 = vpop.f32.mrb[0].mxu0
      %v1083 = vadd.f32 %v823, %v1082
      %v1084 = vpop.f32.mrb[0].mxu0
      %v1085 = vadd.f32 %v819, %v1084
      %v1086 = vpop.f32.mrb[0].mxu0
      %v1087 = vadd.f32 %v823, %v1086
      %1088 = vmatprep.mubr.bf16.mxu0 %v857
      %1089 = vmatmul.mubr.bf16.gmra.mrb[0].mxu0 %v856
      %v1090 = vpop.f32.mrb[0].mxu0
      %v1091 = vadd.f32 %v819, %v1090
      %v1092 = vpop.f32.mrb[0].mxu0
      %v1093 = vadd.f32 %v823, %v1092
      %v1094 = vpop.f32.mrb[0].mxu0
      %v1095 = vadd.f32 %v819, %v1094
      %v1096 = vpop.f32.mrb[0].mxu0
      %v1097 = vadd.f32 %v823, %v1096
      %1098 = vdwg.mxu0
      %vm1099 = vcmp.ge.f32.partialorder %v1061, 0.0
      %vm1100 = vcmp.ge.f32.partialorder %v1063, 0.0
      %vm1101 = vcmp.ge.f32.partialorder %v1065, 0.0
      %vm1102 = vcmp.ge.f32.partialorder %v1067, 0.0
      %vm1103 = vcmp.ge.f32.partialorder %v1071, 0.0
      %vm1104 = vcmp.ge.f32.partialorder %v1073, 0.0
      %vm1105 = vcmp.ge.f32.partialorder %v1075, 0.0
      %vm1106 = vcmp.ge.f32.partialorder %v1077, 0.0
      %vm1107 = vcmp.ge.f32.partialorder %v1081, 0.0
      %vm1108 = vcmp.ge.f32.partialorder %v1083, 0.0
      %vm1109 = vcmp.ge.f32.partialorder %v1085, 0.0
      %vm1110 = vcmp.ge.f32.partialorder %v1087, 0.0
      %vm1111 = vcmp.ge.f32.partialorder %v1091, 0.0
      %vm1112 = vcmp.ge.f32.partialorder %v1093, 0.0
      %vm1113 = vcmp.ge.f32.partialorder %v1095, 0.0
      %vm1114 = vcmp.ge.f32.partialorder %v1097, 0.0
      %v1115 = vmul.f32 %v1061, 0.01
      %v1116 = vmul.f32 %v1063, 0.01
      %v1117 = vmul.f32 %v1065, 0.01
      %v1118 = vmul.f32 %v1067, 0.01
      %v1119 = vmul.f32 %v1071, 0.01
      %v1120 = vmul.f32 %v1073, 0.01
      %v1121 = vmul.f32 %v1075, 0.01
      %v1122 = vmul.f32 %v1077, 0.01
      %v1123 = vmul.f32 %v1081, 0.01
      %v1124 = vmul.f32 %v1083, 0.01
      %v1125 = vmul.f32 %v1085, 0.01
      %v1126 = vmul.f32 %v1087, 0.01
      %v1127 = vmul.f32 %v1091, 0.01
      %v1128 = vmul.f32 %v1093, 0.01
      %v1129 = vmul.f32 %v1095, 0.01
      %v1130 = vmul.f32 %v1097, 0.01
      %v1131 = vsel %vm1099, %v1061, %v1115
      %v1132 = vsel %vm1100, %v1063, %v1116
      %v1133 = vsel %vm1101, %v1065, %v1117
      %v1134 = vsel %vm1102, %v1067, %v1118
      %v1135 = vsel %vm1103, %v1071, %v1119
      %v1136 = vsel %vm1104, %v1073, %v1120
      %v1137 = vsel %vm1105, %v1075, %v1121
      %v1138 = vsel %vm1106, %v1077, %v1122
      %v1139 = vsel %vm1107, %v1081, %v1123
      %v1140 = vsel %vm1108, %v1083, %v1124
      %v1141 = vsel %vm1109, %v1085, %v1125
      %v1142 = vsel %vm1110, %v1087, %v1126
      %v1143 = vsel %vm1111, %v1091, %v1127
      %v1144 = vsel %vm1112, %v1093, %v1128
      %v1145 = vsel %vm1113, %v1095, %v1129
      %v1146 = vsel %vm1114, %v1097, %v1130
      %v1147 = vpack.c.bf16 %v1131, %v1131
      %v1148 = vpack.c.bf16 %v1132, %v1132
      %v1149 = vpack.c.bf16 %v1133, %v1133
      %v1150 = vpack.c.bf16 %v1134, %v1134
      %v1151 = vpack.c.bf16 %v1135, %v1135
      %v1152 = vpack.c.bf16 %v1136, %v1136
      %v1153 = vpack.c.bf16 %v1137, %v1137
      %v1154 = vpack.c.bf16 %v1138, %v1138
      %v1155 = vpack.c.bf16 %v1139, %v1139
      %v1156 = vpack.c.bf16 %v1140, %v1140
      %v1157 = vpack.c.bf16 %v1141, %v1141
      %v1158 = vpack.c.bf16 %v1142, %v1142
      %v1159 = vpack.c.bf16 %v1143, %v1143
      %v1160 = vpack.c.bf16 %v1144, %v1144
      %v1161 = vpack.c.bf16 %v1145, %v1145
      %v1162 = vpack.c.bf16 %v1146, %v1146
      %v1179 = vunpack.c.l.b16 %v1147
      %v1180 = vunpack.c.l.b16 %v1148
      %v1181 = vunpack.c.l.b16 %v1149
      %v1182 = vunpack.c.l.b16 %v1150
      %v1183 = vunpack.c.l.b16 %v1151
      %v1184 = vunpack.c.l.b16 %v1152
      %v1185 = vunpack.c.l.b16 %v1153
      %v1186 = vunpack.c.l.b16 %v1154
      %v1187 = vunpack.c.l.b16 %v1155
      %v1188 = vunpack.c.l.b16 %v1156
      %v1189 = vunpack.c.l.b16 %v1157
      %v1190 = vunpack.c.l.b16 %v1158
      %v1191 = vunpack.c.l.b16 %v1159
      %v1192 = vunpack.c.l.b16 %v1160
      %v1193 = vunpack.c.l.b16 %v1161
      %v1194 = vunpack.c.l.b16 %v1162
      %v1195 = vpack.c.b16 %v1179, %v1179
      %v1196 = vpack.c.b16 %v1180, %v1180
      %v1197 = vpack.c.b16 %v1181, %v1181
      %v1198 = vpack.c.b16 %v1182, %v1182
      %v1199 = vpack.c.b16 %v1183, %v1183
      %v1200 = vpack.c.b16 %v1184, %v1184
      %v1201 = vpack.c.b16 %v1185, %v1185
      %v1202 = vpack.c.b16 %v1186, %v1186
      %v1203 = vpack.c.b16 %v1187, %v1187
      %v1204 = vpack.c.b16 %v1188, %v1188
      %v1205 = vpack.c.b16 %v1189, %v1189
      %v1206 = vpack.c.b16 %v1190, %v1190
      %v1207 = vpack.c.b16 %v1191, %v1191
      %v1208 = vpack.c.b16 %v1192, %v1192
      %v1209 = vpack.c.b16 %v1193, %v1193
      %v1210 = vpack.c.b16 %v1194, %v1194
      %v1212 = vshrl.u32 %v1195, 16
      %v1214 = vrot.slane %v1212, 7
      %v1215 = vshll.u32 %v1195, 16
      %v1217 = vor.u32 %v1214, %v1215
      %v1218 = vrot.slane %v1214, 4
      %v1220 = vshrl.u32 %v1196, 16
      %v1222 = vrot.slane %v1220, 7
      %v1223 = vshll.u32 %v1196, 16
      %v1225 = vor.u32 %v1222, %v1223
      %v1226 = vrot.slane %v1222, 4
      %v1228 = vshrl.u32 %v1197, 16
      %v1230 = vrot.slane %v1228, 7
      %v1231 = vshll.u32 %v1197, 16
      %v1233 = vor.u32 %v1230, %v1231
      %v1234 = vrot.slane %v1230, 4
      %v1236 = vshrl.u32 %v1198, 16
      %v1238 = vrot.slane %v1236, 7
      %v1239 = vshll.u32 %v1198, 16
      %v1241 = vor.u32 %v1238, %v1239
      %v1242 = vrot.slane %v1238, 4
      %v1244 = vshrl.u32 %v1199, 16
      %v1246 = vrot.slane %v1244, 7
      %v1247 = vshll.u32 %v1199, 16
      %v1249 = vor.u32 %v1246, %v1247
      %v1250 = vrot.slane %v1246, 4
      %v1252 = vshrl.u32 %v1200, 16
      %v1254 = vrot.slane %v1252, 7
      %v1255 = vshll.u32 %v1200, 16
      %v1257 = vor.u32 %v1254, %v1255
      %v1258 = vrot.slane %v1254, 4
      %v1260 = vshrl.u32 %v1201, 16
      %v1262 = vrot.slane %v1260, 7
      %v1263 = vshll.u32 %v1201, 16
      %v1265 = vor.u32 %v1262, %v1263
      %v1266 = vrot.slane %v1262, 4
      %v1268 = vshrl.u32 %v1202, 16
      %v1270 = vrot.slane %v1268, 7
      %v1271 = vshll.u32 %v1202, 16
      %v1273 = vor.u32 %v1270, %v1271
      %v1274 = vrot.slane %v1270, 4
      %v1276 = vshrl.u32 %v1203, 16
      %v1278 = vrot.slane %v1276, 7
      %v1279 = vshll.u32 %v1203, 16
      %v1281 = vor.u32 %v1278, %v1279
      %v1282 = vrot.slane %v1278, 4
      %v1284 = vshrl.u32 %v1204, 16
      %v1286 = vrot.slane %v1284, 7
      %v1287 = vshll.u32 %v1204, 16
      %v1289 = vor.u32 %v1286, %v1287
      %v1290 = vrot.slane %v1286, 4
      %v1292 = vshrl.u32 %v1205, 16
      %v1294 = vrot.slane %v1292, 7
      %v1295 = vshll.u32 %v1205, 16
      %v1297 = vor.u32 %v1294, %v1295
      %v1298 = vrot.slane %v1294, 4
      %v1300 = vshrl.u32 %v1206, 16
      %v1302 = vrot.slane %v1300, 7
      %v1303 = vshll.u32 %v1206, 16
      %v1305 = vor.u32 %v1302, %v1303
      %v1306 = vrot.slane %v1302, 4
      %v1308 = vshrl.u32 %v1207, 16
      %v1310 = vrot.slane %v1308, 7
      %v1311 = vshll.u32 %v1207, 16
      %v1313 = vor.u32 %v1310, %v1311
      %v1314 = vrot.slane %v1310, 4
      %v1316 = vshrl.u32 %v1208, 16
      %v1318 = vrot.slane %v1316, 7
      %v1319 = vshll.u32 %v1208, 16
      %v1321 = vor.u32 %v1318, %v1319
      %v1322 = vrot.slane %v1318, 4
      %v1324 = vshrl.u32 %v1209, 16
      %v1326 = vrot.slane %v1324, 7
      %v1327 = vshll.u32 %v1209, 16
      %v1329 = vor.u32 %v1326, %v1327
      %v1330 = vrot.slane %v1326, 4
      %v1332 = vshrl.u32 %v1210, 16
      %v1334 = vrot.slane %v1332, 7
      %v1335 = vshll.u32 %v1210, 16
      %v1337 = vor.u32 %v1334, %v1335
      %v1338 = vrot.slane %v1334, 4
      %s1371 = scalar_lea.vmem [#allocation2], 8
      %vm1372 = vcmask 1043456
      %vm1373 = vmand %vm1372, %vm396
      %v1374 = vld [vmem:[%s1371] sm:$0xf]
      %v1375 = vsel %vm1373, %v1217, %v1374
      %1376 = vst [vmem:[%s1371] sm:$0xf] %v1375
      %v1377 = vld [vmem:[%s1371 + $0x4] sm:$0x1]
      %v1378 = vsel %vm341, %v1218, %v1377
      %1379 = vst [vmem:[%s1371 + $0x4] sm:$0x1] %v1378
      %v1380 = vld [vmem:[%s1371 + $0x8] sm:$0xf]
      %v1381 = vsel %vm1373, %v1225, %v1380
      %1382 = vst [vmem:[%s1371 + $0x8] sm:$0xf] %v1381
      %v1383 = vld [vmem:[%s1371 + $0xc] sm:$0x1]
      %v1384 = vsel %vm341, %v1226, %v1383
      %1385 = vst [vmem:[%s1371 + $0xc] sm:$0x1] %v1384
      %v1386 = vld [vmem:[%s1371 + $0x10] sm:$0xf]
      %v1387 = vsel %vm1373, %v1233, %v1386
      %1388 = vst [vmem:[%s1371 + $0x10] sm:$0xf] %v1387
      %v1389 = vld [vmem:[%s1371 + $0x14] sm:$0x1]
      %v1390 = vsel %vm341, %v1234, %v1389
      %1391 = vst [vmem:[%s1371 + $0x14] sm:$0x1] %v1390
      %v1392 = vld [vmem:[%s1371 + $0x18] sm:$0xf]
      %v1393 = vsel %vm1373, %v1241, %v1392
      %1394 = vst [vmem:[%s1371 + $0x18] sm:$0xf] %v1393
      %v1395 = vld [vmem:[%s1371 + $0x1c] sm:$0x1]
      %v1396 = vsel %vm341, %v1242, %v1395
      %1397 = vst [vmem:[%s1371 + $0x1c] sm:$0x1] %v1396
      %v1398 = vld [vmem:[%s1371 + $0x20] sm:$0xf]
      %v1399 = vsel %vm1373, %v1249, %v1398
      %1400 = vst [vmem:[%s1371 + $0x20] sm:$0xf] %v1399
      %v1401 = vld [vmem:[%s1371 + $0x24] sm:$0x1]
      %v1402 = vsel %vm341, %v1250, %v1401
      %1403 = vst [vmem:[%s1371 + $0x24] sm:$0x1] %v1402
      %v1404 = vld [vmem:[%s1371 + $0x28] sm:$0xf]
      %v1405 = vsel %vm1373, %v1257, %v1404
      %1406 = vst [vmem:[%s1371 + $0x28] sm:$0xf] %v1405
      %v1407 = vld [vmem:[%s1371 + $0x2c] sm:$0x1]
      %v1408 = vsel %vm341, %v1258, %v1407
      %1409 = vst [vmem:[%s1371 + $0x2c] sm:$0x1] %v1408
      %v1410 = vld [vmem:[%s1371 + $0x30] sm:$0xf]
      %v1411 = vsel %vm1373, %v1265, %v1410
      %1412 = vst [vmem:[%s1371 + $0x30] sm:$0xf] %v1411
      %v1413 = vld [vmem:[%s1371 + $0x34] sm:$0x1]
      %v1414 = vsel %vm341, %v1266, %v1413
      %1415 = vst [vmem:[%s1371 + $0x34] sm:$0x1] %v1414
      %v1416 = vld [vmem:[%s1371 + $0x38] sm:$0xf]
      %v1417 = vsel %vm1373, %v1273, %v1416
      %1418 = vst [vmem:[%s1371 + $0x38] sm:$0xf] %v1417
      %v1419 = vld [vmem:[%s1371 + $0x3c] sm:$0x1]
      %v1420 = vsel %vm341, %v1274, %v1419
      %1421 = vst [vmem:[%s1371 + $0x3c] sm:$0x1] %v1420
      %v1422 = vld [vmem:[%s1371 + $0x40] sm:$0xf]
      %v1423 = vsel %vm1373, %v1281, %v1422
      %1424 = vst [vmem:[%s1371 + $0x40] sm:$0xf] %v1423
      %v1425 = vld [vmem:[%s1371 + $0x44] sm:$0x1]
      %v1426 = vsel %vm341, %v1282, %v1425
      %1427 = vst [vmem:[%s1371 + $0x44] sm:$0x1] %v1426
      %v1428 = vld [vmem:[%s1371 + $0x48] sm:$0xf]
      %v1429 = vsel %vm1373, %v1289, %v1428
      %1430 = vst [vmem:[%s1371 + $0x48] sm:$0xf] %v1429
      %v1431 = vld [vmem:[%s1371 + $0x4c] sm:$0x1]
      %v1432 = vsel %vm341, %v1290, %v1431
      %1433 = vst [vmem:[%s1371 + $0x4c] sm:$0x1] %v1432
      %v1434 = vld [vmem:[%s1371 + $0x50] sm:$0xf]
      %v1435 = vsel %vm1373, %v1297, %v1434
      %1436 = vst [vmem:[%s1371 + $0x50] sm:$0xf] %v1435
      %v1437 = vld [vmem:[%s1371 + $0x54] sm:$0x1]
      %v1438 = vsel %vm341, %v1298, %v1437
      %1439 = vst [vmem:[%s1371 + $0x54] sm:$0x1] %v1438
      %v1440 = vld [vmem:[%s1371 + $0x58] sm:$0xf]
      %v1441 = vsel %vm1373, %v1305, %v1440
      %1442 = vst [vmem:[%s1371 + $0x58] sm:$0xf] %v1441
      %v1443 = vld [vmem:[%s1371 + $0x5c] sm:$0x1]
      %v1444 = vsel %vm341, %v1306, %v1443
      %1445 = vst [vmem:[%s1371 + $0x5c] sm:$0x1] %v1444
      %v1446 = vld [vmem:[%s1371 + $0x60] sm:$0xf]
      %v1447 = vsel %vm1373, %v1313, %v1446
      %1448 = vst [vmem:[%s1371 + $0x60] sm:$0xf] %v1447
      %v1449 = vld [vmem:[%s1371 + $0x64] sm:$0x1]
      %v1450 = vsel %vm341, %v1314, %v1449
      %1451 = vst [vmem:[%s1371 + $0x64] sm:$0x1] %v1450
      %v1452 = vld [vmem:[%s1371 + $0x68] sm:$0xf]
      %v1453 = vsel %vm1373, %v1321, %v1452
      %1454 = vst [vmem:[%s1371 + $0x68] sm:$0xf] %v1453
      %v1455 = vld [vmem:[%s1371 + $0x6c] sm:$0x1]
      %v1456 = vsel %vm341, %v1322, %v1455
      %1457 = vst [vmem:[%s1371 + $0x6c] sm:$0x1] %v1456
      %v1458 = vld [vmem:[%s1371 + $0x70] sm:$0xf]
      %v1459 = vsel %vm1373, %v1329, %v1458
      %1460 = vst [vmem:[%s1371 + $0x70] sm:$0xf] %v1459
      %v1461 = vld [vmem:[%s1371 + $0x74] sm:$0x1]
      %v1462 = vsel %vm341, %v1330, %v1461
      %1463 = vst [vmem:[%s1371 + $0x74] sm:$0x1] %v1462
      %v1464 = vld [vmem:[%s1371 + $0x78] sm:$0xf]
      %v1465 = vsel %vm1373, %v1337, %v1464
      %1466 = vst [vmem:[%s1371 + $0x78] sm:$0xf] %v1465
      %v1467 = vld [vmem:[%s1371 + $0x7c] sm:$0x1]
      %v1468 = vsel %vm341, %v1338, %v1467
      %1469 = vst [vmem:[%s1371 + $0x7c] sm:$0x1] %v1468
      %v1470 = vld [vmem:[#allocation2] sm:$0xf]
      %v1471 = vld [vmem:[#allocation2 + $0x8] sm:$0xf]
      %v1472 = vld [vmem:[#allocation2 + $0x10] sm:$0xf]
      %v1473 = vld [vmem:[#allocation2 + $0x18] sm:$0xf]
      %v1474 = vld [vmem:[#allocation2 + $0x20] sm:$0xf]
      %v1475 = vld [vmem:[#allocation2 + $0x28] sm:$0xf]
      %v1476 = vld [vmem:[#allocation2 + $0x30] sm:$0xf]
      %v1477 = vld [vmem:[#allocation2 + $0x38] sm:$0xf]
      %v1478 = vld [vmem:[#allocation2 + $0x40] sm:$0xf]
      %v1479 = vld [vmem:[#allocation2 + $0x48] sm:$0xf]
      %v1480 = vld [vmem:[#allocation2 + $0x50] sm:$0xf]
      %v1481 = vld [vmem:[#allocation2 + $0x58] sm:$0xf]
      %v1482 = vld [vmem:[#allocation2 + $0x60] sm:$0xf]
      %v1483 = vld [vmem:[#allocation2 + $0x68] sm:$0xf]
      %v1484 = vld [vmem:[#allocation2 + $0x70] sm:$0xf]
      %v1485 = vld [vmem:[#allocation2 + $0x78] sm:$0xf]
      %v1486 = vld [vmem:[#allocation2 + $0x4] sm:$0x1]
      %v1487 = vld [vmem:[#allocation2 + $0xc] sm:$0x1]
      %v1488 = vld [vmem:[#allocation2 + $0x14] sm:$0x1]
      %v1489 = vld [vmem:[#allocation2 + $0x1c] sm:$0x1]
      %v1490 = vld [vmem:[#allocation2 + $0x24] sm:$0x1]
      %v1491 = vld [vmem:[#allocation2 + $0x2c] sm:$0x1]
      %v1492 = vld [vmem:[#allocation2 + $0x34] sm:$0x1]
      %v1493 = vld [vmem:[#allocation2 + $0x3c] sm:$0x1]
      %v1494 = vld [vmem:[#allocation2 + $0x44] sm:$0x1]
      %v1495 = vld [vmem:[#allocation2 + $0x4c] sm:$0x1]
      %v1496 = vld [vmem:[#allocation2 + $0x54] sm:$0x1]
      %v1497 = vld [vmem:[#allocation2 + $0x5c] sm:$0x1]
      %v1498 = vld [vmem:[#allocation2 + $0x64] sm:$0x1]
      %v1499 = vld [vmem:[#allocation2 + $0x6c] sm:$0x1]
      %v1500 = vld [vmem:[#allocation2 + $0x74] sm:$0x1]
      %v1501 = vld [vmem:[#allocation2 + $0x7c] sm:$0x1]
      %vm1502 = vsmask.f32 3328
      %vm1503 = vsmask.f32 7440
      %vm1504 = vmor %vm1502, %vm1503
      %v1506 = vshrl.u32 %v1470, 16
      %v1508 = vrot.slane %v1506, 4
      %v1509 = vshll.u32 %v1470, 16
      %v1511 = vrot.slane %v1509, 5
      %v1512 = vor.u32 %v1508, %v1511
      %v1513 = vrot.slane %v1512, 4
      %v1515 = vshll.u32 %v1486, 16
      %v1517 = vrot.slane %v1515, 5
      %v1518 = vsel %vm1504, %v1513, %v1517
      %v1520 = vshrl.u32 %v1471, 16
      %v1522 = vrot.slane %v1520, 4
      %v1523 = vshll.u32 %v1471, 16
      %v1525 = vrot.slane %v1523, 5
      %v1526 = vor.u32 %v1522, %v1525
      %v1527 = vrot.slane %v1526, 4
      %v1529 = vshll.u32 %v1487, 16
      %v1531 = vrot.slane %v1529, 5
      %v1532 = vsel %vm1504, %v1527, %v1531
      %v1534 = vshrl.u32 %v1472, 16
      %v1536 = vrot.slane %v1534, 4
      %v1537 = vshll.u32 %v1472, 16
      %v1539 = vrot.slane %v1537, 5
      %v1540 = vor.u32 %v1536, %v1539
      %v1541 = vrot.slane %v1540, 4
      %v1543 = vshll.u32 %v1488, 16
      %v1545 = vrot.slane %v1543, 5
      %v1546 = vsel %vm1504, %v1541, %v1545
      %v1548 = vshrl.u32 %v1473, 16
      %v1550 = vrot.slane %v1548, 4
      %v1551 = vshll.u32 %v1473, 16
      %v1553 = vrot.slane %v1551, 5
      %v1554 = vor.u32 %v1550, %v1553
      %v1555 = vrot.slane %v1554, 4
      %v1557 = vshll.u32 %v1489, 16
      %v1559 = vrot.slane %v1557, 5
      %v1560 = vsel %vm1504, %v1555, %v1559
      %v1562 = vshrl.u32 %v1474, 16
      %v1564 = vrot.slane %v1562, 4
      %v1565 = vshll.u32 %v1474, 16
      %v1567 = vrot.slane %v1565, 5
      %v1568 = vor.u32 %v1564, %v1567
      %v1569 = vrot.slane %v1568, 4
      %v1571 = vshll.u32 %v1490, 16
      %v1573 = vrot.slane %v1571, 5
      %v1574 = vsel %vm1504, %v1569, %v1573
      %v1576 = vshrl.u32 %v1475, 16
      %v1578 = vrot.slane %v1576, 4
      %v1579 = vshll.u32 %v1475, 16
      %v1581 = vrot.slane %v1579, 5
      %v1582 = vor.u32 %v1578, %v1581
      %v1583 = vrot.slane %v1582, 4
      %v1585 = vshll.u32 %v1491, 16
      %v1587 = vrot.slane %v1585, 5
      %v1588 = vsel %vm1504, %v1583, %v1587
      %v1590 = vshrl.u32 %v1476, 16
      %v1592 = vrot.slane %v1590, 4
      %v1593 = vshll.u32 %v1476, 16
      %v1595 = vrot.slane %v1593, 5
      %v1596 = vor.u32 %v1592, %v1595
      %v1597 = vrot.slane %v1596, 4
      %v1599 = vshll.u32 %v1492, 16
      %v1601 = vrot.slane %v1599, 5
      %v1602 = vsel %vm1504, %v1597, %v1601
      %v1604 = vshrl.u32 %v1477, 16
      %v1606 = vrot.slane %v1604, 4
      %v1607 = vshll.u32 %v1477, 16
      %v1609 = vrot.slane %v1607, 5
      %v1610 = vor.u32 %v1606, %v1609
      %v1611 = vrot.slane %v1610, 4
      %v1613 = vshll.u32 %v1493, 16
      %v1615 = vrot.slane %v1613, 5
      %v1616 = vsel %vm1504, %v1611, %v1615
      %v1618 = vshrl.u32 %v1478, 16
      %v1620 = vrot.slane %v1618, 4
      %v1621 = vshll.u32 %v1478, 16
      %v1623 = vrot.slane %v1621, 5
      %v1624 = vor.u32 %v1620, %v1623
      %v1625 = vrot.slane %v1624, 4
      %v1627 = vshll.u32 %v1494, 16
      %v1629 = vrot.slane %v1627, 5
      %v1630 = vsel %vm1504, %v1625, %v1629
      %v1632 = vshrl.u32 %v1479, 16
      %v1634 = vrot.slane %v1632, 4
      %v1635 = vshll.u32 %v1479, 16
      %v1637 = vrot.slane %v1635, 5
      %v1638 = vor.u32 %v1634, %v1637
      %v1639 = vrot.slane %v1638, 4
      %v1641 = vshll.u32 %v1495, 16
      %v1643 = vrot.slane %v1641, 5
      %v1644 = vsel %vm1504, %v1639, %v1643
      %v1646 = vshrl.u32 %v1480, 16
      %v1648 = vrot.slane %v1646, 4
      %v1649 = vshll.u32 %v1480, 16
      %v1651 = vrot.slane %v1649, 5
      %v1652 = vor.u32 %v1648, %v1651
      %v1653 = vrot.slane %v1652, 4
      %v1655 = vshll.u32 %v1496, 16
      %v1657 = vrot.slane %v1655, 5
      %v1658 = vsel %vm1504, %v1653, %v1657
      %v1660 = vshrl.u32 %v1481, 16
      %v1662 = vrot.slane %v1660, 4
      %v1663 = vshll.u32 %v1481, 16
      %v1665 = vrot.slane %v1663, 5
      %v1666 = vor.u32 %v1662, %v1665
      %v1667 = vrot.slane %v1666, 4
      %v1669 = vshll.u32 %v1497, 16
      %v1671 = vrot.slane %v1669, 5
      %v1672 = vsel %vm1504, %v1667, %v1671
      %v1674 = vshrl.u32 %v1482, 16
      %v1676 = vrot.slane %v1674, 4
      %v1677 = vshll.u32 %v1482, 16
      %v1679 = vrot.slane %v1677, 5
      %v1680 = vor.u32 %v1676, %v1679
      %v1681 = vrot.slane %v1680, 4
      %v1683 = vshll.u32 %v1498, 16
      %v1685 = vrot.slane %v1683, 5
      %v1686 = vsel %vm1504, %v1681, %v1685
      %v1688 = vshrl.u32 %v1483, 16
      %v1690 = vrot.slane %v1688, 4
      %v1691 = vshll.u32 %v1483, 16
      %v1693 = vrot.slane %v1691, 5
      %v1694 = vor.u32 %v1690, %v1693
      %v1695 = vrot.slane %v1694, 4
      %v1697 = vshll.u32 %v1499, 16
      %v1699 = vrot.slane %v1697, 5
      %v1700 = vsel %vm1504, %v1695, %v1699
      %v1702 = vshrl.u32 %v1484, 16
      %v1704 = vrot.slane %v1702, 4
      %v1705 = vshll.u32 %v1484, 16
      %v1707 = vrot.slane %v1705, 5
      %v1708 = vor.u32 %v1704, %v1707
      %v1709 = vrot.slane %v1708, 4
      %v1711 = vshll.u32 %v1500, 16
      %v1713 = vrot.slane %v1711, 5
      %v1714 = vsel %vm1504, %v1709, %v1713
      %v1716 = vshrl.u32 %v1485, 16
      %v1718 = vrot.slane %v1716, 4
      %v1719 = vshll.u32 %v1485, 16
      %v1721 = vrot.slane %v1719, 5
      %v1722 = vor.u32 %v1718, %v1721
      %v1723 = vrot.slane %v1722, 4
      %v1725 = vshll.u32 %v1501, 16
      %v1727 = vrot.slane %v1725, 5
      %v1728 = vsel %vm1504, %v1723, %v1727
      %v1729 = vld [vmem:[#allocation2] sm:$0xe]
      %v1730 = vld [vmem:[#allocation2 + $0x8] sm:$0xe]
      %v1731 = vld [vmem:[#allocation2 + $0x10] sm:$0xe]
      %v1732 = vld [vmem:[#allocation2 + $0x18] sm:$0xe]
      %v1733 = vld [vmem:[#allocation2 + $0x20] sm:$0xe]
      %v1734 = vld [vmem:[#allocation2 + $0x28] sm:$0xe]
      %v1735 = vld [vmem:[#allocation2 + $0x30] sm:$0xe]
      %v1736 = vld [vmem:[#allocation2 + $0x38] sm:$0xe]
      %v1737 = vld [vmem:[#allocation2 + $0x40] sm:$0xe]
      %v1738 = vld [vmem:[#allocation2 + $0x48] sm:$0xe]
      %v1739 = vld [vmem:[#allocation2 + $0x50] sm:$0xe]
      %v1740 = vld [vmem:[#allocation2 + $0x58] sm:$0xe]
      %v1741 = vld [vmem:[#allocation2 + $0x60] sm:$0xe]
      %v1742 = vld [vmem:[#allocation2 + $0x68] sm:$0xe]
      %v1743 = vld [vmem:[#allocation2 + $0x70] sm:$0xe]
      %v1744 = vld [vmem:[#allocation2 + $0x78] sm:$0xe]
      %vm1777 = vcmask 1042432
      %vm1778 = vcmask 1046532
      %vm1779 = vmor %vm1777, %vm1778
      %v1780 = vrot.slane %v1729, 5
      %v1781 = vrot.slane %v1780, 4
      %v1782 = vrot.slane %v1486, 5
      %v1783 = vsel %vm1779, %v1781, %v1782
      %v1784 = vrot.slane %v1730, 5
      %v1785 = vrot.slane %v1784, 4
      %v1786 = vrot.slane %v1487, 5
      %v1787 = vsel %vm1779, %v1785, %v1786
      %v1788 = vrot.slane %v1731, 5
      %v1789 = vrot.slane %v1788, 4
      %v1790 = vrot.slane %v1488, 5
      %v1791 = vsel %vm1779, %v1789, %v1790
      %v1792 = vrot.slane %v1732, 5
      %v1793 = vrot.slane %v1792, 4
      %v1794 = vrot.slane %v1489, 5
      %v1795 = vsel %vm1779, %v1793, %v1794
      %v1796 = vrot.slane %v1733, 5
      %v1797 = vrot.slane %v1796, 4
      %v1798 = vrot.slane %v1490, 5
      %v1799 = vsel %vm1779, %v1797, %v1798
      %v1800 = vrot.slane %v1734, 5
      %v1801 = vrot.slane %v1800, 4
      %v1802 = vrot.slane %v1491, 5
      %v1803 = vsel %vm1779, %v1801, %v1802
      %v1804 = vrot.slane %v1735, 5
      %v1805 = vrot.slane %v1804, 4
      %v1806 = vrot.slane %v1492, 5
      %v1807 = vsel %vm1779, %v1805, %v1806
      %v1808 = vrot.slane %v1736, 5
      %v1809 = vrot.slane %v1808, 4
      %v1810 = vrot.slane %v1493, 5
      %v1811 = vsel %vm1779, %v1809, %v1810
      %v1812 = vrot.slane %v1737, 5
      %v1813 = vrot.slane %v1812, 4
      %v1814 = vrot.slane %v1494, 5
      %v1815 = vsel %vm1779, %v1813, %v1814
      %v1816 = vrot.slane %v1738, 5
      %v1817 = vrot.slane %v1816, 4
      %v1818 = vrot.slane %v1495, 5
      %v1819 = vsel %vm1779, %v1817, %v1818
      %v1820 = vrot.slane %v1739, 5
      %v1821 = vrot.slane %v1820, 4
      %v1822 = vrot.slane %v1496, 5
      %v1823 = vsel %vm1779, %v1821, %v1822
      %v1824 = vrot.slane %v1740, 5
      %v1825 = vrot.slane %v1824, 4
      %v1826 = vrot.slane %v1497, 5
      %v1827 = vsel %vm1779, %v1825, %v1826
      %v1828 = vrot.slane %v1741, 5
      %v1829 = vrot.slane %v1828, 4
      %v1830 = vrot.slane %v1498, 5
      %v1831 = vsel %vm1779, %v1829, %v1830
      %v1832 = vrot.slane %v1742, 5
      %v1833 = vrot.slane %v1832, 4
      %v1834 = vrot.slane %v1499, 5
      %v1835 = vsel %vm1779, %v1833, %v1834
      %v1836 = vrot.slane %v1743, 5
      %v1837 = vrot.slane %v1836, 4
      %v1838 = vrot.slane %v1500, 5
      %v1839 = vsel %vm1779, %v1837, %v1838
      %v1840 = vrot.slane %v1744, 5
      %v1841 = vrot.slane %v1840, 4
      %v1842 = vrot.slane %v1501, 5
      %v1843 = vsel %vm1779, %v1841, %v1842
      %v1860 = vunpack.c.l.b16 %v1470
      %v1861 = vunpack.c.l.b16 %v1471
      %v1862 = vunpack.c.l.b16 %v1472
      %v1863 = vunpack.c.l.b16 %v1473
      %v1864 = vunpack.c.l.b16 %v1474
      %v1865 = vunpack.c.l.b16 %v1475
      %v1866 = vunpack.c.l.b16 %v1476
      %v1867 = vunpack.c.l.b16 %v1477
      %v1868 = vunpack.c.l.b16 %v1478
      %v1869 = vunpack.c.l.b16 %v1479
      %v1870 = vunpack.c.l.b16 %v1480
      %v1871 = vunpack.c.l.b16 %v1481
      %v1872 = vunpack.c.l.b16 %v1482
      %v1873 = vunpack.c.l.b16 %v1483
      %v1874 = vunpack.c.l.b16 %v1484
      %v1875 = vunpack.c.l.b16 %v1485
      %v1876 = vpack.c.b16 %v1861, %v1860
      %v1877 = vpack.c.b16 %v1863, %v1862
      %v1878 = vpack.c.b16 %v1865, %v1864
      %v1879 = vpack.c.b16 %v1867, %v1866
      %v1880 = vpack.c.b16 %v1869, %v1868
      %v1881 = vpack.c.b16 %v1871, %v1870
      %v1882 = vpack.c.b16 %v1873, %v1872
      %v1883 = vpack.c.b16 %v1875, %v1874
      %v1892 = vunpack.c.l.b16 %v1518
      %v1893 = vunpack.c.l.b16 %v1532
      %v1894 = vunpack.c.l.b16 %v1546
      %v1895 = vunpack.c.l.b16 %v1560
      %v1896 = vunpack.c.l.b16 %v1574
      %v1897 = vunpack.c.l.b16 %v1588
      %v1898 = vunpack.c.l.b16 %v1602
      %v1899 = vunpack.c.l.b16 %v1616
      %v1900 = vunpack.c.l.b16 %v1630
      %v1901 = vunpack.c.l.b16 %v1644
      %v1902 = vunpack.c.l.b16 %v1658
      %v1903 = vunpack.c.l.b16 %v1672
      %v1904 = vunpack.c.l.b16 %v1686
      %v1905 = vunpack.c.l.b16 %v1700
      %v1906 = vunpack.c.l.b16 %v1714
      %v1907 = vunpack.c.l.b16 %v1728
      %v1908 = vpack.c.b16 %v1893, %v1892
      %v1909 = vpack.c.b16 %v1895, %v1894
      %v1910 = vpack.c.b16 %v1897, %v1896
      %v1911 = vpack.c.b16 %v1899, %v1898
      %v1912 = vpack.c.b16 %v1901, %v1900
      %v1913 = vpack.c.b16 %v1903, %v1902
      %v1914 = vpack.c.b16 %v1905, %v1904
      %v1915 = vpack.c.b16 %v1907, %v1906
      %v1924 = vunpack.c.l.b16 %v1783
      %v1925 = vunpack.c.l.b16 %v1787
      %v1926 = vunpack.c.l.b16 %v1791
      %v1927 = vunpack.c.l.b16 %v1795
      %v1928 = vunpack.c.l.b16 %v1799
      %v1929 = vunpack.c.l.b16 %v1803
      %v1930 = vunpack.c.l.b16 %v1807
      %v1931 = vunpack.c.l.b16 %v1811
      %v1932 = vunpack.c.l.b16 %v1815
      %v1933 = vunpack.c.l.b16 %v1819
      %v1934 = vunpack.c.l.b16 %v1823
      %v1935 = vunpack.c.l.b16 %v1827
      %v1936 = vunpack.c.l.b16 %v1831
      %v1937 = vunpack.c.l.b16 %v1835
      %v1938 = vunpack.c.l.b16 %v1839
      %v1939 = vunpack.c.l.b16 %v1843
      %v1940 = vpack.c.b16 %v1925, %v1924
      %v1941 = vpack.c.b16 %v1927, %v1926
      %v1942 = vpack.c.b16 %v1929, %v1928
      %v1943 = vpack.c.b16 %v1931, %v1930
      %v1944 = vpack.c.b16 %v1933, %v1932
      %v1945 = vpack.c.b16 %v1935, %v1934
      %v1946 = vpack.c.b16 %v1937, %v1936
      %v1947 = vpack.c.b16 %v1939, %v1938
      %v1956 = vld [vmem:[%s2] sm:$0xf]
      %v1957 = vld [vmem:[%s2 + $0x4] sm:$0xf]
      %v1958 = vld [vmem:[%s2 + $0x8] sm:$0xf]
      %v1959 = vld [vmem:[%s2 + $0xc] sm:$0xf]
      %v1960 = vld [vmem:[%s2 + $0x10] sm:$0xf]
      %v1961 = vld [vmem:[%s2 + $0x14] sm:$0xf]
      %v1962 = vld [vmem:[%s2 + $0x18] sm:$0xf]
      %v1963 = vld [vmem:[%s2 + $0x1c] sm:$0xf]
      %v1964 = vld [vmem:[%s2 + $0x20] sm:$0xf]
      %v1965 = vld [vmem:[%s2 + $0x24] sm:$0xf]
      %v1966 = vld [vmem:[%s2 + $0x28] sm:$0xf]
      %v1967 = vld [vmem:[%s2 + $0x2c] sm:$0xf]
      %v1968 = vld [vmem:[%s2 + $0x30] sm:$0xf]
      %v1969 = vld [vmem:[%s2 + $0x34] sm:$0xf]
      %v1970 = vld [vmem:[%s2 + $0x38] sm:$0xf]
      %v1971 = vld [vmem:[%s2 + $0x3c] sm:$0xf]
      %v1972 = vld [vmem:[%s2 + $0x40] sm:$0xf]
      %v1973 = vld [vmem:[%s2 + $0x44] sm:$0xf]
      %v1974 = vld [vmem:[%s2 + $0x48] sm:$0xf]
      %v1975 = vld [vmem:[%s2 + $0x4c] sm:$0xf]
      %v1976 = vld [vmem:[%s2 + $0x50] sm:$0xf]
      %v1977 = vld [vmem:[%s2 + $0x54] sm:$0xf]
      %v1978 = vld [vmem:[%s2 + $0x58] sm:$0xf]
      %v1979 = vld [vmem:[%s2 + $0x5c] sm:$0xf]
      %v1980 = vld [vmem:[%s2 + $0x60] sm:$0xf]
      %v1981 = vld [vmem:[%s2 + $0x64] sm:$0xf]
      %v1982 = vld [vmem:[%s2 + $0x68] sm:$0xf]
      %v1983 = vld [vmem:[%s2 + $0x6c] sm:$0xf]
      %v1984 = vld [vmem:[%s2 + $0x70] sm:$0xf]
      %v1985 = vld [vmem:[%s2 + $0x74] sm:$0xf]
      %v1986 = vld [vmem:[%s2 + $0x78] sm:$0xf]
      %v1987 = vld [vmem:[%s2 + $0x7c] sm:$0xf]
      %v1988 = vld [vmem:[%s2 + $0x80] sm:$0xf]
      %v1989 = vld [vmem:[%s2 + $0x84] sm:$0xf]
      %v1990 = vld [vmem:[%s2 + $0x88] sm:$0xf]
      %v1991 = vld [vmem:[%s2 + $0x8c] sm:$0xf]
      %v1992 = vld [vmem:[%s2 + $0x90] sm:$0xf]
      %v1993 = vld [vmem:[%s2 + $0x94] sm:$0xf]
      %v1994 = vld [vmem:[%s2 + $0x98] sm:$0xf]
      %v1995 = vld [vmem:[%s2 + $0x9c] sm:$0xf]
      %v1996 = vld [vmem:[%s2 + $0xa0] sm:$0xf]
      %v1997 = vld [vmem:[%s2 + $0xa4] sm:$0xf]
      %v1998 = vld [vmem:[%s2 + $0xa8] sm:$0xf]
      %v1999 = vld [vmem:[%s2 + $0xac] sm:$0xf]
      %v2000 = vld [vmem:[%s2 + $0xb0] sm:$0xf]
      %v2001 = vld [vmem:[%s2 + $0xb4] sm:$0xf]
      %v2002 = vld [vmem:[%s2 + $0xb8] sm:$0xf]
      %v2003 = vld [vmem:[%s2 + $0xbc] sm:$0xf]
      %v2004 = vld [vmem:[%s1371] sm:$0xf]
      %v2005 = vld [vmem:[%s1371 + $0x8] sm:$0xf]
      %v2006 = vld [vmem:[%s1371 + $0x10] sm:$0xf]
      %v2007 = vld [vmem:[%s1371 + $0x18] sm:$0xf]
      %v2008 = vld [vmem:[%s1371 + $0x20] sm:$0xf]
      %v2009 = vld [vmem:[%s1371 + $0x28] sm:$0xf]
      %v2010 = vld [vmem:[%s1371 + $0x30] sm:$0xf]
      %v2011 = vld [vmem:[%s1371 + $0x38] sm:$0xf]
      %v2012 = vld [vmem:[%s1371 + $0x40] sm:$0xf]
      %v2013 = vld [vmem:[%s1371 + $0x48] sm:$0xf]
      %v2014 = vld [vmem:[%s1371 + $0x50] sm:$0xf]
      %v2015 = vld [vmem:[%s1371 + $0x58] sm:$0xf]
      %v2016 = vld [vmem:[%s1371 + $0x60] sm:$0xf]
      %v2017 = vld [vmem:[%s1371 + $0x68] sm:$0xf]
      %v2018 = vld [vmem:[%s1371 + $0x70] sm:$0xf]
      %v2019 = vld [vmem:[%s1371 + $0x78] sm:$0xf]
      %v2020 = vld [vmem:[%s1371 + $0x4] sm:$0x1]
      %v2021 = vld [vmem:[%s1371 + $0xc] sm:$0x1]
      %v2022 = vld [vmem:[%s1371 + $0x14] sm:$0x1]
      %v2023 = vld [vmem:[%s1371 + $0x1c] sm:$0x1]
      %v2024 = vld [vmem:[%s1371 + $0x24] sm:$0x1]
      %v2025 = vld [vmem:[%s1371 + $0x2c] sm:$0x1]
      %v2026 = vld [vmem:[%s1371 + $0x34] sm:$0x1]
      %v2027 = vld [vmem:[%s1371 + $0x3c] sm:$0x1]
      %v2028 = vld [vmem:[%s1371 + $0x44] sm:$0x1]
      %v2029 = vld [vmem:[%s1371 + $0x4c] sm:$0x1]
      %v2030 = vld [vmem:[%s1371 + $0x54] sm:$0x1]
      %v2031 = vld [vmem:[%s1371 + $0x5c] sm:$0x1]
      %v2032 = vld [vmem:[%s1371 + $0x64] sm:$0x1]
      %v2033 = vld [vmem:[%s1371 + $0x6c] sm:$0x1]
      %v2034 = vld [vmem:[%s1371 + $0x74] sm:$0x1]
      %v2035 = vld [vmem:[%s1371 + $0x7c] sm:$0x1]
      %v2037 = vshrl.u32 %v2004, 16
      %v2039 = vrot.slane %v2037, 4
      %v2040 = vshll.u32 %v2004, 16
      %v2042 = vrot.slane %v2040, 5
      %v2043 = vor.u32 %v2039, %v2042
      %v2044 = vrot.slane %v2043, 4
      %v2046 = vshll.u32 %v2020, 16
      %v2048 = vrot.slane %v2046, 5
      %v2049 = vsel %vm1504, %v2044, %v2048
      %v2051 = vshrl.u32 %v2005, 16
      %v2053 = vrot.slane %v2051, 4
      %v2054 = vshll.u32 %v2005, 16
      %v2056 = vrot.slane %v2054, 5
      %v2057 = vor.u32 %v2053, %v2056
      %v2058 = vrot.slane %v2057, 4
      %v2060 = vshll.u32 %v2021, 16
      %v2062 = vrot.slane %v2060, 5
      %v2063 = vsel %vm1504, %v2058, %v2062
      %v2065 = vshrl.u32 %v2006, 16
      %v2067 = vrot.slane %v2065, 4
      %v2068 = vshll.u32 %v2006, 16
      %v2070 = vrot.slane %v2068, 5
      %v2071 = vor.u32 %v2067, %v2070
      %v2072 = vrot.slane %v2071, 4
      %v2074 = vshll.u32 %v2022, 16
      %v2076 = vrot.slane %v2074, 5
      %v2077 = vsel %vm1504, %v2072, %v2076
      %v2079 = vshrl.u32 %v2007, 16
      %v2081 = vrot.slane %v2079, 4
      %v2082 = vshll.u32 %v2007, 16
      %v2084 = vrot.slane %v2082, 5
      %v2085 = vor.u32 %v2081, %v2084
      %v2086 = vrot.slane %v2085, 4
      %v2088 = vshll.u32 %v2023, 16
      %v2090 = vrot.slane %v2088, 5
      %v2091 = vsel %vm1504, %v2086, %v2090
      %v2093 = vshrl.u32 %v2008, 16
      %v2095 = vrot.slane %v2093, 4
      %v2096 = vshll.u32 %v2008, 16
      %v2098 = vrot.slane %v2096, 5
      %v2099 = vor.u32 %v2095, %v2098
      %v2100 = vrot.slane %v2099, 4
      %v2102 = vshll.u32 %v2024, 16
      %v2104 = vrot.slane %v2102, 5
      %v2105 = vsel %vm1504, %v2100, %v2104
      %v2107 = vshrl.u32 %v2009, 16
      %v2109 = vrot.slane %v2107, 4
      %v2110 = vshll.u32 %v2009, 16
      %v2112 = vrot.slane %v2110, 5
      %v2113 = vor.u32 %v2109, %v2112
      %v2114 = vrot.slane %v2113, 4
      %v2116 = vshll.u32 %v2025, 16
      %v2118 = vrot.slane %v2116, 5
      %v2119 = vsel %vm1504, %v2114, %v2118
      %v2121 = vshrl.u32 %v2010, 16
      %v2123 = vrot.slane %v2121, 4
      %v2124 = vshll.u32 %v2010, 16
      %v2126 = vrot.slane %v2124, 5
      %v2127 = vor.u32 %v2123, %v2126
      %v2128 = vrot.slane %v2127, 4
      %v2130 = vshll.u32 %v2026, 16
      %v2132 = vrot.slane %v2130, 5
      %v2133 = vsel %vm1504, %v2128, %v2132
      %v2135 = vshrl.u32 %v2011, 16
      %v2137 = vrot.slane %v2135, 4
      %v2138 = vshll.u32 %v2011, 16
      %v2140 = vrot.slane %v2138, 5
      %v2141 = vor.u32 %v2137, %v2140
      %v2142 = vrot.slane %v2141, 4
      %v2144 = vshll.u32 %v2027, 16
      %v2146 = vrot.slane %v2144, 5
      %v2147 = vsel %vm1504, %v2142, %v2146
      %v2149 = vshrl.u32 %v2012, 16
      %v2151 = vrot.slane %v2149, 4
      %v2152 = vshll.u32 %v2012, 16
      %v2154 = vrot.slane %v2152, 5
      %v2155 = vor.u32 %v2151, %v2154
      %v2156 = vrot.slane %v2155, 4
      %v2158 = vshll.u32 %v2028, 16
      %v2160 = vrot.slane %v2158, 5
      %v2161 = vsel %vm1504, %v2156, %v2160
      %v2163 = vshrl.u32 %v2013, 16
      %v2165 = vrot.slane %v2163, 4
      %v2166 = vshll.u32 %v2013, 16
      %v2168 = vrot.slane %v2166, 5
      %v2169 = vor.u32 %v2165, %v2168
      %v2170 = vrot.slane %v2169, 4
      %v2172 = vshll.u32 %v2029, 16
      %v2174 = vrot.slane %v2172, 5
      %v2175 = vsel %vm1504, %v2170, %v2174
      %v2177 = vshrl.u32 %v2014, 16
      %v2179 = vrot.slane %v2177, 4
      %v2180 = vshll.u32 %v2014, 16
      %v2182 = vrot.slane %v2180, 5
      %v2183 = vor.u32 %v2179, %v2182
      %v2184 = vrot.slane %v2183, 4
      %v2186 = vshll.u32 %v2030, 16
      %v2188 = vrot.slane %v2186, 5
      %v2189 = vsel %vm1504, %v2184, %v2188
      %v2191 = vshrl.u32 %v2015, 16
      %v2193 = vrot.slane %v2191, 4
      %v2194 = vshll.u32 %v2015, 16
      %v2196 = vrot.slane %v2194, 5
      %v2197 = vor.u32 %v2193, %v2196
      %v2198 = vrot.slane %v2197, 4
      %v2200 = vshll.u32 %v2031, 16
      %v2202 = vrot.slane %v2200, 5
      %v2203 = vsel %vm1504, %v2198, %v2202
      %v2205 = vshrl.u32 %v2016, 16
      %v2207 = vrot.slane %v2205, 4
      %v2208 = vshll.u32 %v2016, 16
      %v2210 = vrot.slane %v2208, 5
      %v2211 = vor.u32 %v2207, %v2210
      %v2212 = vrot.slane %v2211, 4
      %v2214 = vshll.u32 %v2032, 16
      %v2216 = vrot.slane %v2214, 5
      %v2217 = vsel %vm1504, %v2212, %v2216
      %v2219 = vshrl.u32 %v2017, 16
      %v2221 = vrot.slane %v2219, 4
      %v2222 = vshll.u32 %v2017, 16
      %v2224 = vrot.slane %v2222, 5
      %v2225 = vor.u32 %v2221, %v2224
      %v2226 = vrot.slane %v2225, 4
      %v2228 = vshll.u32 %v2033, 16
      %v2230 = vrot.slane %v2228, 5
      %v2231 = vsel %vm1504, %v2226, %v2230
      %v2233 = vshrl.u32 %v2018, 16
      %v2235 = vrot.slane %v2233, 4
      %v2236 = vshll.u32 %v2018, 16
      %v2238 = vrot.slane %v2236, 5
      %v2239 = vor.u32 %v2235, %v2238
      %v2240 = vrot.slane %v2239, 4
      %v2242 = vshll.u32 %v2034, 16
      %v2244 = vrot.slane %v2242, 5
      %v2245 = vsel %vm1504, %v2240, %v2244
      %v2247 = vshrl.u32 %v2019, 16
      %v2249 = vrot.slane %v2247, 4
      %v2250 = vshll.u32 %v2019, 16
      %v2252 = vrot.slane %v2250, 5
      %v2253 = vor.u32 %v2249, %v2252
      %v2254 = vrot.slane %v2253, 4
      %v2256 = vshll.u32 %v2035, 16
      %v2258 = vrot.slane %v2256, 5
      %v2259 = vsel %vm1504, %v2254, %v2258
      %v2260 = vld [vmem:[%s1371] sm:$0xe]
      %v2261 = vld [vmem:[%s1371 + $0x8] sm:$0xe]
      %v2262 = vld [vmem:[%s1371 + $0x10] sm:$0xe]
      %v2263 = vld [vmem:[%s1371 + $0x18] sm:$0xe]
      %v2264 = vld [vmem:[%s1371 + $0x20] sm:$0xe]
      %v2265 = vld [vmem:[%s1371 + $0x28] sm:$0xe]
      %v2266 = vld [vmem:[%s1371 + $0x30] sm:$0xe]
      %v2267 = vld [vmem:[%s1371 + $0x38] sm:$0xe]
      %v2268 = vld [vmem:[%s1371 + $0x40] sm:$0xe]
      %v2269 = vld [vmem:[%s1371 + $0x48] sm:$0xe]
      %v2270 = vld [vmem:[%s1371 + $0x50] sm:$0xe]
      %v2271 = vld [vmem:[%s1371 + $0x58] sm:$0xe]
      %v2272 = vld [vmem:[%s1371 + $0x60] sm:$0xe]
      %v2273 = vld [vmem:[%s1371 + $0x68] sm:$0xe]
      %v2274 = vld [vmem:[%s1371 + $0x70] sm:$0xe]
      %v2275 = vld [vmem:[%s1371 + $0x78] sm:$0xe]
      %v2308 = vrot.slane %v2260, 5
      %v2309 = vrot.slane %v2308, 4
      %v2310 = vrot.slane %v2020, 5
      %v2311 = vsel %vm1779, %v2309, %v2310
      %v2312 = vrot.slane %v2261, 5
      %v2313 = vrot.slane %v2312, 4
      %v2314 = vrot.slane %v2021, 5
      %v2315 = vsel %vm1779, %v2313, %v2314
      %v2316 = vrot.slane %v2262, 5
      %v2317 = vrot.slane %v2316, 4
      %v2318 = vrot.slane %v2022, 5
      %v2319 = vsel %vm1779, %v2317, %v2318
      %v2320 = vrot.slane %v2263, 5
      %v2321 = vrot.slane %v2320, 4
      %v2322 = vrot.slane %v2023, 5
      %v2323 = vsel %vm1779, %v2321, %v2322
      %v2324 = vrot.slane %v2264, 5
      %v2325 = vrot.slane %v2324, 4
      %v2326 = vrot.slane %v2024, 5
      %v2327 = vsel %vm1779, %v2325, %v2326
      %v2328 = vrot.slane %v2265, 5
      %v2329 = vrot.slane %v2328, 4
      %v2330 = vrot.slane %v2025, 5
      %v2331 = vsel %vm1779, %v2329, %v2330
      %v2332 = vrot.slane %v2266, 5
      %v2333 = vrot.slane %v2332, 4
      %v2334 = vrot.slane %v2026, 5
      %v2335 = vsel %vm1779, %v2333, %v2334
      %v2336 = vrot.slane %v2267, 5
      %v2337 = vrot.slane %v2336, 4
      %v2338 = vrot.slane %v2027, 5
      %v2339 = vsel %vm1779, %v2337, %v2338
      %v2340 = vrot.slane %v2268, 5
      %v2341 = vrot.slane %v2340, 4
      %v2342 = vrot.slane %v2028, 5
      %v2343 = vsel %vm1779, %v2341, %v2342
      %v2344 = vrot.slane %v2269, 5
      %v2345 = vrot.slane %v2344, 4
      %v2346 = vrot.slane %v2029, 5
      %v2347 = vsel %vm1779, %v2345, %v2346
      %v2348 = vrot.slane %v2270, 5
      %v2349 = vrot.slane %v2348, 4
      %v2350 = vrot.slane %v2030, 5
      %v2351 = vsel %vm1779, %v2349, %v2350
      %v2352 = vrot.slane %v2271, 5
      %v2353 = vrot.slane %v2352, 4
      %v2354 = vrot.slane %v2031, 5
      %v2355 = vsel %vm1779, %v2353, %v2354
      %v2356 = vrot.slane %v2272, 5
      %v2357 = vrot.slane %v2356, 4
      %v2358 = vrot.slane %v2032, 5
      %v2359 = vsel %vm1779, %v2357, %v2358
      %v2360 = vrot.slane %v2273, 5
      %v2361 = vrot.slane %v2360, 4
      %v2362 = vrot.slane %v2033, 5
      %v2363 = vsel %vm1779, %v2361, %v2362
      %v2364 = vrot.slane %v2274, 5
      %v2365 = vrot.slane %v2364, 4
      %v2366 = vrot.slane %v2034, 5
      %v2367 = vsel %vm1779, %v2365, %v2366
      %v2368 = vrot.slane %v2275, 5
      %v2369 = vrot.slane %v2368, 4
      %v2370 = vrot.slane %v2035, 5
      %v2371 = vsel %vm1779, %v2369, %v2370
      %v2388 = vunpack.c.l.b16 %v2004
      %v2389 = vunpack.c.l.b16 %v2005
      %v2390 = vunpack.c.l.b16 %v2006
      %v2391 = vunpack.c.l.b16 %v2007
      %v2392 = vunpack.c.l.b16 %v2008
      %v2393 = vunpack.c.l.b16 %v2009
      %v2394 = vunpack.c.l.b16 %v2010
      %v2395 = vunpack.c.l.b16 %v2011
      %v2396 = vunpack.c.l.b16 %v2012
      %v2397 = vunpack.c.l.b16 %v2013
      %v2398 = vunpack.c.l.b16 %v2014
      %v2399 = vunpack.c.l.b16 %v2015
      %v2400 = vunpack.c.l.b16 %v2016
      %v2401 = vunpack.c.l.b16 %v2017
      %v2402 = vunpack.c.l.b16 %v2018
      %v2403 = vunpack.c.l.b16 %v2019
      %v2404 = vpack.c.b16 %v2389, %v2388
      %v2405 = vpack.c.b16 %v2391, %v2390
      %v2406 = vpack.c.b16 %v2393, %v2392
      %v2407 = vpack.c.b16 %v2395, %v2394
      %v2408 = vpack.c.b16 %v2397, %v2396
      %v2409 = vpack.c.b16 %v2399, %v2398
      %v2410 = vpack.c.b16 %v2401, %v2400
      %v2411 = vpack.c.b16 %v2403, %v2402
      %v2420 = vunpack.c.l.b16 %v2049
      %v2421 = vunpack.c.l.b16 %v2063
      %v2422 = vunpack.c.l.b16 %v2077
      %v2423 = vunpack.c.l.b16 %v2091
      %v2424 = vunpack.c.l.b16 %v2105
      %v2425 = vunpack.c.l.b16 %v2119
      %v2426 = vunpack.c.l.b16 %v2133
      %v2427 = vunpack.c.l.b16 %v2147
      %v2428 = vunpack.c.l.b16 %v2161
      %v2429 = vunpack.c.l.b16 %v2175
      %v2430 = vunpack.c.l.b16 %v2189
      %v2431 = vunpack.c.l.b16 %v2203
      %v2432 = vunpack.c.l.b16 %v2217
      %v2433 = vunpack.c.l.b16 %v2231
      %v2434 = vunpack.c.l.b16 %v2245
      %v2435 = vunpack.c.l.b16 %v2259
      %v2436 = vpack.c.b16 %v2421, %v2420
      %v2437 = vpack.c.b16 %v2423, %v2422
      %v2438 = vpack.c.b16 %v2425, %v2424
      %v2439 = vpack.c.b16 %v2427, %v2426
      %v2440 = vpack.c.b16 %v2429, %v2428
      %v2441 = vpack.c.b16 %v2431, %v2430
      %v2442 = vpack.c.b16 %v2433, %v2432
      %v2443 = vpack.c.b16 %v2435, %v2434
      %v2452 = vunpack.c.l.b16 %v2311
      %v2453 = vunpack.c.l.b16 %v2315
      %v2454 = vunpack.c.l.b16 %v2319
      %v2455 = vunpack.c.l.b16 %v2323
      %v2456 = vunpack.c.l.b16 %v2327
      %v2457 = vunpack.c.l.b16 %v2331
      %v2458 = vunpack.c.l.b16 %v2335
      %v2459 = vunpack.c.l.b16 %v2339
      %v2460 = vunpack.c.l.b16 %v2343
      %v2461 = vunpack.c.l.b16 %v2347
      %v2462 = vunpack.c.l.b16 %v2351
      %v2463 = vunpack.c.l.b16 %v2355
      %v2464 = vunpack.c.l.b16 %v2359
      %v2465 = vunpack.c.l.b16 %v2363
      %v2466 = vunpack.c.l.b16 %v2367
      %v2467 = vunpack.c.l.b16 %v2371
      %v2468 = vpack.c.b16 %v2453, %v2452
      %v2469 = vpack.c.b16 %v2455, %v2454
      %v2470 = vpack.c.b16 %v2457, %v2456
      %v2471 = vpack.c.b16 %v2459, %v2458
      %v2472 = vpack.c.b16 %v2461, %v2460
      %v2473 = vpack.c.b16 %v2463, %v2462
      %v2474 = vpack.c.b16 %v2465, %v2464
      %v2475 = vpack.c.b16 %v2467, %v2466
      %s2484 = scalar_lea.vmem %s2, 192
      %v2485 = vld [vmem:[%s2484] sm:$0xf]
      %v2486 = vld [vmem:[%s2484 + $0x4] sm:$0xf]
      %v2487 = vld [vmem:[%s2484 + $0x8] sm:$0xf]
      %v2488 = vld [vmem:[%s2484 + $0xc] sm:$0xf]
      %v2489 = vld [vmem:[%s2484 + $0x10] sm:$0xf]
      %v2490 = vld [vmem:[%s2484 + $0x14] sm:$0xf]
      %v2491 = vld [vmem:[%s2484 + $0x18] sm:$0xf]
      %v2492 = vld [vmem:[%s2484 + $0x1c] sm:$0xf]
      %v2493 = vld [vmem:[%s2484 + $0x20] sm:$0xf]
      %v2494 = vld [vmem:[%s2484 + $0x24] sm:$0xf]
      %v2495 = vld [vmem:[%s2484 + $0x28] sm:$0xf]
      %v2496 = vld [vmem:[%s2484 + $0x2c] sm:$0xf]
      %v2497 = vld [vmem:[%s2484 + $0x30] sm:$0xf]
      %v2498 = vld [vmem:[%s2484 + $0x34] sm:$0xf]
      %v2499 = vld [vmem:[%s2484 + $0x38] sm:$0xf]
      %v2500 = vld [vmem:[%s2484 + $0x3c] sm:$0xf]
      %v2501 = vld [vmem:[%s2484 + $0x40] sm:$0xf]
      %v2502 = vld [vmem:[%s2484 + $0x44] sm:$0xf]
      %v2503 = vld [vmem:[%s2484 + $0x48] sm:$0xf]
      %v2504 = vld [vmem:[%s2484 + $0x4c] sm:$0xf]
      %v2505 = vld [vmem:[%s2484 + $0x50] sm:$0xf]
      %v2506 = vld [vmem:[%s2484 + $0x54] sm:$0xf]
      %v2507 = vld [vmem:[%s2484 + $0x58] sm:$0xf]
      %v2508 = vld [vmem:[%s2484 + $0x5c] sm:$0xf]
      %v2509 = vld [vmem:[%s2484 + $0x60] sm:$0xf]
      %v2510 = vld [vmem:[%s2484 + $0x64] sm:$0xf]
      %v2511 = vld [vmem:[%s2484 + $0x68] sm:$0xf]
      %v2512 = vld [vmem:[%s2484 + $0x6c] sm:$0xf]
      %v2513 = vld [vmem:[%s2484 + $0x70] sm:$0xf]
      %v2514 = vld [vmem:[%s2484 + $0x74] sm:$0xf]
      %v2515 = vld [vmem:[%s2484 + $0x78] sm:$0xf]
      %v2516 = vld [vmem:[%s2484 + $0x7c] sm:$0xf]
      %v2517 = vld [vmem:[%s2484 + $0x80] sm:$0xf]
      %v2518 = vld [vmem:[%s2484 + $0x84] sm:$0xf]
      %v2519 = vld [vmem:[%s2484 + $0x88] sm:$0xf]
      %v2520 = vld [vmem:[%s2484 + $0x8c] sm:$0xf]
      %v2521 = vld [vmem:[%s2484 + $0x90] sm:$0xf]
      %v2522 = vld [vmem:[%s2484 + $0x94] sm:$0xf]
      %v2523 = vld [vmem:[%s2484 + $0x98] sm:$0xf]
      %v2524 = vld [vmem:[%s2484 + $0x9c] sm:$0xf]
      %v2525 = vld [vmem:[%s2484 + $0xa0] sm:$0xf]
      %v2526 = vld [vmem:[%s2484 + $0xa4] sm:$0xf]
      %v2527 = vld [vmem:[%s2484 + $0xa8] sm:$0xf]
      %v2528 = vld [vmem:[%s2484 + $0xac] sm:$0xf]
      %v2529 = vld [vmem:[%s2484 + $0xb0] sm:$0xf]
      %v2530 = vld [vmem:[%s2484 + $0xb4] sm:$0xf]
      %v2531 = vld [vmem:[%s2484 + $0xb8] sm:$0xf]
      %v2532 = vld [vmem:[%s2484 + $0xbc] sm:$0xf]
      %v2581 = vunpack.c.l.b16 %v2485
      %v2582 = vunpack.c.l.b16 %v2486
      %v2583 = vunpack.c.l.b16 %v2487
      %v2584 = vunpack.c.l.b16 %v2488
      %v2585 = vunpack.c.l.b16 %v2489
      %v2586 = vunpack.c.l.b16 %v2490
      %v2587 = vunpack.c.l.b16 %v2491
      %v2588 = vunpack.c.l.b16 %v2492
      %v2589 = vunpack.c.l.b16 %v2493
      %v2590 = vunpack.c.l.b16 %v2494
      %v2591 = vunpack.c.l.b16 %v2495
      %v2592 = vunpack.c.l.b16 %v2496
      %v2593 = vunpack.c.l.b16 %v2497
      %v2594 = vunpack.c.l.b16 %v2498
      %v2595 = vunpack.c.l.b16 %v2499
      %v2596 = vunpack.c.l.b16 %v2500
      %v2597 = vunpack.c.l.b16 %v2501
      %v2598 = vunpack.c.l.b16 %v2502
      %v2599 = vunpack.c.l.b16 %v2503
      %v2600 = vunpack.c.l.b16 %v2504
      %v2601 = vunpack.c.l.b16 %v2505
      %v2602 = vunpack.c.l.b16 %v2506
      %v2603 = vunpack.c.l.b16 %v2507
      %v2604 = vunpack.c.l.b16 %v2508
      %v2605 = vunpack.c.l.b16 %v2509
      %v2606 = vunpack.c.l.b16 %v2510
      %v2607 = vunpack.c.l.b16 %v2511
      %v2608 = vunpack.c.l.b16 %v2512
      %v2609 = vunpack.c.l.b16 %v2513
      %v2610 = vunpack.c.l.b16 %v2514
      %v2611 = vunpack.c.l.b16 %v2515
      %v2612 = vunpack.c.l.b16 %v2516
      %v2613 = vunpack.c.l.b16 %v2517
      %v2614 = vunpack.c.l.b16 %v2518
      %v2615 = vunpack.c.l.b16 %v2519
      %v2616 = vunpack.c.l.b16 %v2520
      %v2617 = vunpack.c.l.b16 %v2521
      %v2618 = vunpack.c.l.b16 %v2522
      %v2619 = vunpack.c.l.b16 %v2523
      %v2620 = vunpack.c.l.b16 %v2524
      %v2621 = vunpack.c.l.b16 %v2525
      %v2622 = vunpack.c.l.b16 %v2526
      %v2623 = vunpack.c.l.b16 %v2527
      %v2624 = vunpack.c.l.b16 %v2528
      %v2625 = vunpack.c.l.b16 %v2529
      %v2626 = vunpack.c.l.b16 %v2530
      %v2627 = vunpack.c.l.b16 %v2531
      %v2628 = vunpack.c.l.b16 %v2532
      %v2629 = vpack.c.b16 %v2582, %v2581
      %v2630 = vpack.c.b16 %v2584, %v2583
      %v2631 = vpack.c.b16 %v2586, %v2585
      %v2632 = vpack.c.b16 %v2588, %v2587
      %v2633 = vpack.c.b16 %v2590, %v2589
      %v2634 = vpack.c.b16 %v2592, %v2591
      %v2635 = vpack.c.b16 %v2594, %v2593
      %v2636 = vpack.c.b16 %v2596, %v2595
      %v2637 = vpack.c.b16 %v2598, %v2597
      %v2638 = vpack.c.b16 %v2600, %v2599
      %v2639 = vpack.c.b16 %v2602, %v2601
      %v2640 = vpack.c.b16 %v2604, %v2603
      %v2641 = vpack.c.b16 %v2606, %v2605
      %v2642 = vpack.c.b16 %v2608, %v2607
      %v2643 = vpack.c.b16 %v2610, %v2609
      %v2644 = vpack.c.b16 %v2612, %v2611
      %v2645 = vpack.c.b16 %v2614, %v2613
      %v2646 = vpack.c.b16 %v2616, %v2615
      %v2647 = vpack.c.b16 %v2618, %v2617
      %v2648 = vpack.c.b16 %v2620, %v2619
      %v2649 = vpack.c.b16 %v2622, %v2621
      %v2650 = vpack.c.b16 %v2624, %v2623
      %v2651 = vpack.c.b16 %v2626, %v2625
      %v2652 = vpack.c.b16 %v2628, %v2627
      %2677 = vmatprep.subr.bf16.mxu0 0
      %2678 = vmatpush1.bf16.msra.mxu0 %v2629
      %2679 = vmatprep.subr.bf16.mxu0 0
      %2680 = vmatpush1.bf16.msra.mxu0 %v2630
      %2681 = vmatprep.subr.bf16.mxu0 0
      %2682 = vmatpush1.bf16.msra.mxu0 %v2631
      %2683 = vmatprep.subr.bf16.mxu0 0
      %2684 = vmatpush1.bf16.msra.mxu0 %v2632
      %2685 = vmatprep.subr.bf16.mxu0 0
      %2686 = vmatpush1.bf16.msra.mxu0 %v2633
      %2687 = vmatprep.subr.bf16.mxu0 0
      %2688 = vmatpush1.bf16.msra.mxu0 %v2634
      %2689 = vmatprep.subr.bf16.mxu0 0
      %2690 = vmatpush1.bf16.msra.mxu0 %v2635
      %2691 = vmatprep.subr.bf16.mxu0 0
      %2692 = vmatpush1.bf16.msra.mxu0 %v2636
      %2693 = vmatprep.subr.bf16.mxu0 0
      %2694 = vmatpush1.bf16.msra.mxu0 %v2637
      %2695 = vmatprep.subr.bf16.mxu0 0
      %2696 = vmatpush1.bf16.msra.mxu0 %v2638
      %2697 = vmatprep.subr.bf16.mxu0 0
      %2698 = vmatpush1.bf16.msra.mxu0 %v2639
      %2699 = vmatprep.subr.bf16.mxu0 0
      %2700 = vmatpush1.bf16.msra.mxu0 %v2640
      %2701 = vmatprep.subr.bf16.mxu0 0
      %2702 = vmatpush1.bf16.msra.mxu0 %v2641
      %2703 = vmatprep.subr.bf16.mxu0 0
      %2704 = vmatpush1.bf16.msra.mxu0 %v2642
      %2705 = vmatprep.subr.bf16.mxu0 0
      %2706 = vmatpush1.bf16.msra.mxu0 %v2643
      %2707 = vmatprep.subr.bf16.mxu0 0
      %2708 = vmatpush1.bf16.msra.mxu0 %v2644
      %2709 = vmatprep.mubr.bf16.mxu0 %v2436
      %2710 = vmatmul.mubr.bf16.gmra.mrb[0].mxu0 %v2404
      %v2711 = vpop.f32.mrb[0].mxu0
      %v2712 = vadd.f32 0.0, %v2711
      %v2713 = vpop.f32.mrb[0].mxu0
      %v2714 = vpop.f32.mrb[0].mxu0
      %v2715 = vadd.f32 0.0, %v2714
      %v2716 = vpop.f32.mrb[0].mxu0
      %2717 = vmatprep.mubr.bf16.mxu0 %v2437
      %2718 = vmatmul.mubr.bf16.gmra.mrb[0].mxu0 %v2405
      %v2719 = vpop.f32.mrb[0].mxu0
      %v2720 = vadd.f32 0.0, %v2719
      %v2721 = vpop.f32.mrb[0].mxu0
      %v2722 = vpop.f32.mrb[0].mxu0
      %v2723 = vadd.f32 0.0, %v2722
      %v2724 = vpop.f32.mrb[0].mxu0
      %2725 = vmatprep.mubr.bf16.mxu0 %v2438
      %2726 = vmatmul.mubr.bf16.gmra.mrb[0].mxu0 %v2406
      %v2727 = vpop.f32.mrb[0].mxu0
      %v2728 = vadd.f32 0.0, %v2727
      %v2729 = vpop.f32.mrb[0].mxu0
      %v2730 = vpop.f32.mrb[0].mxu0
      %v2731 = vadd.f32 0.0, %v2730
      %v2732 = vpop.f32.mrb[0].mxu0
      %2733 = vmatprep.mubr.bf16.mxu0 %v2439
      %2734 = vmatmul.mubr.bf16.gmra.mrb[0].mxu0 %v2407
      %v2735 = vpop.f32.mrb[0].mxu0
      %v2736 = vadd.f32 0.0, %v2735
      %v2737 = vpop.f32.mrb[0].mxu0
      %v2738 = vpop.f32.mrb[0].mxu0
      %v2739 = vadd.f32 0.0, %v2738
      %v2740 = vpop.f32.mrb[0].mxu0
      %2741 = vmatprep.mubr.bf16.mxu0 %v2440
      %2742 = vmatmul.mubr.bf16.gmra.mrb[0].mxu0 %v2408
      %v2743 = vpop.f32.mrb[0].mxu0
      %v2744 = vadd.f32 0.0, %v2743
      %v2745 = vpop.f32.mrb[0].mxu0
      %v2746 = vpop.f32.mrb[0].mxu0
      %v2747 = vadd.f32 0.0, %v2746
      %v2748 = vpop.f32.mrb[0].mxu0
      %2749 = vmatprep.mubr.bf16.mxu0 %v2441
      %2750 = vmatmul.mubr.bf16.gmra.mrb[0].mxu0 %v2409
      %v2751 = vpop.f32.mrb[0].mxu0
      %v2752 = vadd.f32 0.0, %v2751
      %v2753 = vpop.f32.mrb[0].mxu0
      %v2754 = vpop.f32.mrb[0].mxu0
      %v2755 = vadd.f32 0.0, %v2754
      %v2756 = vpop.f32.mrb[0].mxu0
      %2757 = vmatprep.mubr.bf16.mxu0 %v2442
      %2758 = vmatmul.mubr.bf16.gmra.mrb[0].mxu0 %v2410
      %v2759 = vpop.f32.mrb[0].mxu0
      %v2760 = vadd.f32 0.0, %v2759
      %v2761 = vpop.f32.mrb[0].mxu0
      %v2762 = vpop.f32.mrb[0].mxu0
      %v2763 = vadd.f32 0.0, %v2762
      %v2764 = vpop.f32.mrb[0].mxu0
      %2765 = vmatprep.mubr.bf16.mxu0 %v2443
      %2766 = vmatmul.mubr.bf16.gmra.mrb[0].mxu0 %v2411
      %v2767 = vpop.f32.mrb[0].mxu0
      %v2768 = vadd.f32 0.0, %v2767
      %v2769 = vpop.f32.mrb[0].mxu0
      %v2770 = vpop.f32.mrb[0].mxu0
      %v2771 = vadd.f32 0.0, %v2770
      %v2772 = vpop.f32.mrb[0].mxu0
      %2773 = vdwg.mxu0
      %2774 = vmatprep.subr.bf16.mxu0 0
      %2775 = vmatpush1.bf16.msra.mxu0 %v2645
      %2776 = vmatprep.subr.bf16.mxu0 0
      %2777 = vmatpush1.bf16.msra.mxu0 %v2646
      %2778 = vmatprep.subr.bf16.mxu0 0
      %2779 = vmatpush1.bf16.msra.mxu0 %v2647
      %2780 = vmatprep.subr.bf16.mxu0 0
      %2781 = vmatpush1.bf16.msra.mxu0 %v2648
      %2782 = vmatprep.subr.bf16.mxu0 0
      %2783 = vmatpush1.bf16.msra.mxu0 %v2649
      %2784 = vmatprep.subr.bf16.mxu0 0
      %2785 = vmatpush1.bf16.msra.mxu0 %v2650
      %2786 = vmatprep.subr.bf16.mxu0 0
      %2787 = vmatpush1.bf16.msra.mxu0 %v2651
      %2788 = vmatprep.subr.bf16.mxu0 0
      %2789 = vmatpush1.bf16.msra.mxu0 %v2652
      %2790 = vmatprep.subr.bf16.mxu0 0
      %2791 = vmatpush1.bf16.msra.mxu0 0
      %2792 = vmatprep.subr.bf16.mxu0 0
      %2793 = vmatpush1.bf16.msra.mxu0 0
      %2794 = vmatprep.subr.bf16.mxu0 0
      %2795 = vmatpush1.bf16.msra.mxu0 0
      %2796 = vmatprep.subr.bf16.mxu0 0
      %2797 = vmatpush1.bf16.msra.mxu0 0
      %2798 = vmatprep.subr.bf16.mxu0 0
      %2799 = vmatpush1.bf16.msra.mxu0 0
      %2800 = vmatprep.subr.bf16.mxu0 0
      %2801 = vmatpush1.bf16.msra.mxu0 0
      %2802 = vmatprep.subr.bf16.mxu0 0
      %2803 = vmatpush1.bf16.msra.mxu0 0
      %2804 = vmatprep.subr.bf16.mxu0 0
      %2805 = vmatpush1.bf16.msra.mxu0 0
      %2806 = vmatprep.mubr.bf16.mxu0 0
      %2807 = vmatmul.mubr.bf16.gmra.mrb[0].mxu0 %v2468
      %v2808 = vpop.f32.mrb[0].mxu0
      %v2809 = vadd.f32 %v2712, %v2808
      %v2810 = vpop.f32.mrb[0].mxu0
      %v2811 = vpop.f32.mrb[0].mxu0
      %v2812 = vadd.f32 %v2715, %v2811
      %v2813 = vpop.f32.mrb[0].mxu0
      %2814 = vmatprep.mubr.bf16.mxu0 0
      %2815 = vmatmul.mubr.bf16.gmra.mrb[0].mxu0 %v2469
      %v2816 = vpop.f32.mrb[0].mxu0
      %v2817 = vadd.f32 %v2720, %v2816
      %v2818 = vpop.f32.mrb[0].mxu0
      %v2819 = vpop.f32.mrb[0].mxu0
      %v2820 = vadd.f32 %v2723, %v2819
      %v2821 = vpop.f32.mrb[0].mxu0
      %2822 = vmatprep.mubr.bf16.mxu0 0
      %2823 = vmatmul.mubr.bf16.gmra.mrb[0].mxu0 %v2470
      %v2824 = vpop.f32.mrb[0].mxu0
      %v2825 = vadd.f32 %v2728, %v2824
      %v2826 = vpop.f32.mrb[0].mxu0
      %v2827 = vpop.f32.mrb[0].mxu0
      %v2828 = vadd.f32 %v2731, %v2827
      %v2829 = vpop.f32.mrb[0].mxu0
      %2830 = vmatprep.mubr.bf16.mxu0 0
      %2831 = vmatmul.mubr.bf16.gmra.mrb[0].mxu0 %v2471
      %v2832 = vpop.f32.mrb[0].mxu0
      %v2833 = vadd.f32 %v2736, %v2832
      %v2834 = vpop.f32.mrb[0].mxu0
      %v2835 = vpop.f32.mrb[0].mxu0
      %v2836 = vadd.f32 %v2739, %v2835
      %v2837 = vpop.f32.mrb[0].mxu0
      %2838 = vmatprep.mubr.bf16.mxu0 0
      %2839 = vmatmul.mubr.bf16.gmra.mrb[0].mxu0 %v2472
      %v2840 = vpop.f32.mrb[0].mxu0
      %v2841 = vadd.f32 %v2744, %v2840
      %v2842 = vpop.f32.mrb[0].mxu0
      %v2843 = vpop.f32.mrb[0].mxu0
      %v2844 = vadd.f32 %v2747, %v2843
      %v2845 = vpop.f32.mrb[0].mxu0
      %2846 = vmatprep.mubr.bf16.mxu0 0
      %2847 = vmatmul.mubr.bf16.gmra.mrb[0].mxu0 %v2473
      %v2848 = vpop.f32.mrb[0].mxu0
      %v2849 = vadd.f32 %v2752, %v2848
      %v2850 = vpop.f32.mrb[0].mxu0
      %v2851 = vpop.f32.mrb[0].mxu0
      %v2852 = vadd.f32 %v2755, %v2851
      %v2853 = vpop.f32.mrb[0].mxu0
      %2854 = vmatprep.mubr.bf16.mxu0 0
      %2855 = vmatmul.mubr.bf16.gmra.mrb[0].mxu0 %v2474
      %v2856 = vpop.f32.mrb[0].mxu0
      %v2857 = vadd.f32 %v2760, %v2856
      %v2858 = vpop.f32.mrb[0].mxu0
      %v2859 = vpop.f32.mrb[0].mxu0
      %v2860 = vadd.f32 %v2763, %v2859
      %v2861 = vpop.f32.mrb[0].mxu0
      %2862 = vmatprep.mubr.bf16.mxu0 0
      %2863 = vmatmul.mubr.bf16.gmra.mrb[0].mxu0 %v2475
      %v2864 = vpop.f32.mrb[0].mxu0
      %v2865 = vadd.f32 %v2768, %v2864
      %v2866 = vpop.f32.mrb[0].mxu0
      %v2867 = vpop.f32.mrb[0].mxu0
      %v2868 = vadd.f32 %v2771, %v2867
      %v2869 = vpop.f32.mrb[0].mxu0
      %2870 = vdwg.mxu0
      %v2919 = vunpack.c.l.b16 %v1956
      %v2920 = vunpack.c.l.b16 %v1957
      %v2921 = vunpack.c.l.b16 %v1958
      %v2922 = vunpack.c.l.b16 %v1959
      %v2923 = vunpack.c.l.b16 %v1960
      %v2924 = vunpack.c.l.b16 %v1961
      %v2925 = vunpack.c.l.b16 %v1962
      %v2926 = vunpack.c.l.b16 %v1963
      %v2927 = vunpack.c.l.b16 %v1964
      %v2928 = vunpack.c.l.b16 %v1965
      %v2929 = vunpack.c.l.b16 %v1966
      %v2930 = vunpack.c.l.b16 %v1967
      %v2931 = vunpack.c.l.b16 %v1968
      %v2932 = vunpack.c.l.b16 %v1969
      %v2933 = vunpack.c.l.b16 %v1970
      %v2934 = vunpack.c.l.b16 %v1971
      %v2935 = vunpack.c.l.b16 %v1972
      %v2936 = vunpack.c.l.b16 %v1973
      %v2937 = vunpack.c.l.b16 %v1974
      %v2938 = vunpack.c.l.b16 %v1975
      %v2939 = vunpack.c.l.b16 %v1976
      %v2940 = vunpack.c.l.b16 %v1977
      %v2941 = vunpack.c.l.b16 %v1978
      %v2942 = vunpack.c.l.b16 %v1979
      %v2943 = vunpack.c.l.b16 %v1980
      %v2944 = vunpack.c.l.b16 %v1981
      %v2945 = vunpack.c.l.b16 %v1982
      %v2946 = vunpack.c.l.b16 %v1983
      %v2947 = vunpack.c.l.b16 %v1984
      %v2948 = vunpack.c.l.b16 %v1985
      %v2949 = vunpack.c.l.b16 %v1986
      %v2950 = vunpack.c.l.b16 %v1987
      %v2951 = vunpack.c.l.b16 %v1988
      %v2952 = vunpack.c.l.b16 %v1989
      %v2953 = vunpack.c.l.b16 %v1990
      %v2954 = vunpack.c.l.b16 %v1991
      %v2955 = vunpack.c.l.b16 %v1992
      %v2956 = vunpack.c.l.b16 %v1993
      %v2957 = vunpack.c.l.b16 %v1994
      %v2958 = vunpack.c.l.b16 %v1995
      %v2959 = vunpack.c.l.b16 %v1996
      %v2960 = vunpack.c.l.b16 %v1997
      %v2961 = vunpack.c.l.b16 %v1998
      %v2962 = vunpack.c.l.b16 %v1999
      %v2963 = vunpack.c.l.b16 %v2000
      %v2964 = vunpack.c.l.b16 %v2001
      %v2965 = vunpack.c.l.b16 %v2002
      %v2966 = vunpack.c.l.b16 %v2003
      %v2967 = vpack.c.b16 %v2920, %v2919
      %v2968 = vpack.c.b16 %v2922, %v2921
      %v2969 = vpack.c.b16 %v2924, %v2923
      %v2970 = vpack.c.b16 %v2926, %v2925
      %v2971 = vpack.c.b16 %v2928, %v2927
      %v2972 = vpack.c.b16 %v2930, %v2929
      %v2973 = vpack.c.b16 %v2932, %v2931
      %v2974 = vpack.c.b16 %v2934, %v2933
      %v2975 = vpack.c.b16 %v2936, %v2935
      %v2976 = vpack.c.b16 %v2938, %v2937
      %v2977 = vpack.c.b16 %v2940, %v2939
      %v2978 = vpack.c.b16 %v2942, %v2941
      %v2979 = vpack.c.b16 %v2944, %v2943
      %v2980 = vpack.c.b16 %v2946, %v2945
      %v2981 = vpack.c.b16 %v2948, %v2947
      %v2982 = vpack.c.b16 %v2950, %v2949
      %v2983 = vpack.c.b16 %v2952, %v2951
      %v2984 = vpack.c.b16 %v2954, %v2953
      %v2985 = vpack.c.b16 %v2956, %v2955
      %v2986 = vpack.c.b16 %v2958, %v2957
      %v2987 = vpack.c.b16 %v2960, %v2959
      %v2988 = vpack.c.b16 %v2962, %v2961
      %v2989 = vpack.c.b16 %v2964, %v2963
      %v2990 = vpack.c.b16 %v2966, %v2965
      %3015 = vmatprep.subr.bf16.mxu0 0
      %3016 = vmatpush1.bf16.msra.mxu0 %v2967
      %3017 = vmatprep.subr.bf16.mxu0 0
      %3018 = vmatpush1.bf16.msra.mxu0 %v2968
      %3019 = vmatprep.subr.bf16.mxu0 0
      %3020 = vmatpush1.bf16.msra.mxu0 %v2969
      %3021 = vmatprep.subr.bf16.mxu0 0
      %3022 = vmatpush1.bf16.msra.mxu0 %v2970
      %3023 = vmatprep.subr.bf16.mxu0 0
      %3024 = vmatpush1.bf16.msra.mxu0 %v2971
      %3025 = vmatprep.subr.bf16.mxu0 0
      %3026 = vmatpush1.bf16.msra.mxu0 %v2972
      %3027 = vmatprep.subr.bf16.mxu0 0
      %3028 = vmatpush1.bf16.msra.mxu0 %v2973
      %3029 = vmatprep.subr.bf16.mxu0 0
      %3030 = vmatpush1.bf16.msra.mxu0 %v2974
      %3031 = vmatprep.subr.bf16.mxu0 0
      %3032 = vmatpush1.bf16.msra.mxu0 %v2975
      %3033 = vmatprep.subr.bf16.mxu0 0
      %3034 = vmatpush1.bf16.msra.mxu0 %v2976
      %3035 = vmatprep.subr.bf16.mxu0 0
      %3036 = vmatpush1.bf16.msra.mxu0 %v2977
      %3037 = vmatprep.subr.bf16.mxu0 0
      %3038 = vmatpush1.bf16.msra.mxu0 %v2978
      %3039 = vmatprep.subr.bf16.mxu0 0
      %3040 = vmatpush1.bf16.msra.mxu0 %v2979
      %3041 = vmatprep.subr.bf16.mxu0 0
      %3042 = vmatpush1.bf16.msra.mxu0 %v2980
      %3043 = vmatprep.subr.bf16.mxu0 0
      %3044 = vmatpush1.bf16.msra.mxu0 %v2981
      %3045 = vmatprep.subr.bf16.mxu0 0
      %3046 = vmatpush1.bf16.msra.mxu0 %v2982
      %3047 = vmatprep.mubr.bf16.mxu0 %v1908
      %3048 = vmatmul.mubr.bf16.gmra.mrb[0].mxu0 %v1876
      %v3049 = vpop.f32.mrb[0].mxu0
      %v3050 = vadd.f32 %v2809, %v3049
      %v3051 = vpop.f32.mrb[0].mxu0
      %v3052 = vpop.f32.mrb[0].mxu0
      %v3053 = vadd.f32 %v2812, %v3052
      %v3054 = vpop.f32.mrb[0].mxu0
      %3055 = vmatprep.mubr.bf16.mxu0 %v1909
      %3056 = vmatmul.mubr.bf16.gmra.mrb[0].mxu0 %v1877
      %v3057 = vpop.f32.mrb[0].mxu0
      %v3058 = vadd.f32 %v2817, %v3057
      %v3059 = vpop.f32.mrb[0].mxu0
      %v3060 = vpop.f32.mrb[0].mxu0
      %v3061 = vadd.f32 %v2820, %v3060
      %v3062 = vpop.f32.mrb[0].mxu0
      %3063 = vmatprep.mubr.bf16.mxu0 %v1910
      %3064 = vmatmul.mubr.bf16.gmra.mrb[0].mxu0 %v1878
      %v3065 = vpop.f32.mrb[0].mxu0
      %v3066 = vadd.f32 %v2825, %v3065
      %v3067 = vpop.f32.mrb[0].mxu0
      %v3068 = vpop.f32.mrb[0].mxu0
      %v3069 = vadd.f32 %v2828, %v3068
      %v3070 = vpop.f32.mrb[0].mxu0
      %3071 = vmatprep.mubr.bf16.mxu0 %v1911
      %3072 = vmatmul.mubr.bf16.gmra.mrb[0].mxu0 %v1879
      %v3073 = vpop.f32.mrb[0].mxu0
      %v3074 = vadd.f32 %v2833, %v3073
      %v3075 = vpop.f32.mrb[0].mxu0
      %v3076 = vpop.f32.mrb[0].mxu0
      %v3077 = vadd.f32 %v2836, %v3076
      %v3078 = vpop.f32.mrb[0].mxu0
      %3079 = vmatprep.mubr.bf16.mxu0 %v1912
      %3080 = vmatmul.mubr.bf16.gmra.mrb[0].mxu0 %v1880
      %v3081 = vpop.f32.mrb[0].mxu0
      %v3082 = vadd.f32 %v2841, %v3081
      %v3083 = vpop.f32.mrb[0].mxu0
      %v3084 = vpop.f32.mrb[0].mxu0
      %v3085 = vadd.f32 %v2844, %v3084
      %v3086 = vpop.f32.mrb[0].mxu0
      %3087 = vmatprep.mubr.bf16.mxu0 %v1913
      %3088 = vmatmul.mubr.bf16.gmra.mrb[0].mxu0 %v1881
      %v3089 = vpop.f32.mrb[0].mxu0
      %v3090 = vadd.f32 %v2849, %v3089
      %v3091 = vpop.f32.mrb[0].mxu0
      %v3092 = vpop.f32.mrb[0].mxu0
      %v3093 = vadd.f32 %v2852, %v3092
      %v3094 = vpop.f32.mrb[0].mxu0
      %3095 = vmatprep.mubr.bf16.mxu0 %v1914
      %3096 = vmatmul.mubr.bf16.gmra.mrb[0].mxu0 %v1882
      %v3097 = vpop.f32.mrb[0].mxu0
      %v3098 = vadd.f32 %v2857, %v3097
      %v3099 = vpop.f32.mrb[0].mxu0
      %v3100 = vpop.f32.mrb[0].mxu0
      %v3101 = vadd.f32 %v2860, %v3100
      %v3102 = vpop.f32.mrb[0].mxu0
      %3103 = vmatprep.mubr.bf16.mxu0 %v1915
      %3104 = vmatmul.mubr.bf16.gmra.mrb[0].mxu0 %v1883
      %v3105 = vpop.f32.mrb[0].mxu0
      %v3106 = vadd.f32 %v2865, %v3105
      %v3107 = vpop.f32.mrb[0].mxu0
      %v3108 = vpop.f32.mrb[0].mxu0
      %v3109 = vadd.f32 %v2868, %v3108
      %v3110 = vpop.f32.mrb[0].mxu0
      %3111 = vdwg.mxu0
      %3112 = vmatprep.subr.bf16.mxu0 0
      %3113 = vmatpush1.bf16.msra.mxu0 %v2983
      %3114 = vmatprep.subr.bf16.mxu0 0
      %3115 = vmatpush1.bf16.msra.mxu0 %v2984
      %3116 = vmatprep.subr.bf16.mxu0 0
      %3117 = vmatpush1.bf16.msra.mxu0 %v2985
      %3118 = vmatprep.subr.bf16.mxu0 0
      %3119 = vmatpush1.bf16.msra.mxu0 %v2986
      %3120 = vmatprep.subr.bf16.mxu0 0
      %3121 = vmatpush1.bf16.msra.mxu0 %v2987
      %3122 = vmatprep.subr.bf16.mxu0 0
      %3123 = vmatpush1.bf16.msra.mxu0 %v2988
      %3124 = vmatprep.subr.bf16.mxu0 0
      %3125 = vmatpush1.bf16.msra.mxu0 %v2989
      %3126 = vmatprep.subr.bf16.mxu0 0
      %3127 = vmatpush1.bf16.msra.mxu0 %v2990
      %3128 = vmatprep.subr.bf16.mxu0 0
      %3129 = vmatpush1.bf16.msra.mxu0 0
      %3130 = vmatprep.subr.bf16.mxu0 0
      %3131 = vmatpush1.bf16.msra.mxu0 0
      %3132 = vmatprep.subr.bf16.mxu0 0
      %3133 = vmatpush1.bf16.msra.mxu0 0
      %3134 = vmatprep.subr.bf16.mxu0 0
      %3135 = vmatpush1.bf16.msra.mxu0 0
      %3136 = vmatprep.subr.bf16.mxu0 0
      %3137 = vmatpush1.bf16.msra.mxu0 0
      %3138 = vmatprep.subr.bf16.mxu0 0
      %3139 = vmatpush1.bf16.msra.mxu0 0
      %3140 = vmatprep.subr.bf16.mxu0 0
      %3141 = vmatpush1.bf16.msra.mxu0 0
      %3142 = vmatprep.subr.bf16.mxu0 0
      %3143 = vmatpush1.bf16.msra.mxu0 0
      %3144 = vmatprep.mubr.bf16.mxu0 0
      %3145 = vmatmul.mubr.bf16.gmra.mrb[0].mxu0 %v1940
      %v3146 = vpop.f32.mrb[0].mxu0
      %v3147 = vadd.f32 %v3050, %v3146
      %v3148 = vpop.f32.mrb[0].mxu0
      %v3149 = vpop.f32.mrb[0].mxu0
      %v3150 = vadd.f32 %v3053, %v3149
      %v3151 = vpop.f32.mrb[0].mxu0
      %3152 = vmatprep.mubr.bf16.mxu0 0
      %3153 = vmatmul.mubr.bf16.gmra.mrb[0].mxu0 %v1941
      %v3154 = vpop.f32.mrb[0].mxu0
      %v3155 = vadd.f32 %v3058, %v3154
      %v3156 = vpop.f32.mrb[0].mxu0
      %v3157 = vpop.f32.mrb[0].mxu0
      %v3158 = vadd.f32 %v3061, %v3157
      %v3159 = vpop.f32.mrb[0].mxu0
      %3160 = vmatprep.mubr.bf16.mxu0 0
      %3161 = vmatmul.mubr.bf16.gmra.mrb[0].mxu0 %v1942
      %v3162 = vpop.f32.mrb[0].mxu0
      %v3163 = vadd.f32 %v3066, %v3162
      %v3164 = vpop.f32.mrb[0].mxu0
      %v3165 = vpop.f32.mrb[0].mxu0
      %v3166 = vadd.f32 %v3069, %v3165
      %v3167 = vpop.f32.mrb[0].mxu0
      %3168 = vmatprep.mubr.bf16.mxu0 0
      %3169 = vmatmul.mubr.bf16.gmra.mrb[0].mxu0 %v1943
      %v3170 = vpop.f32.mrb[0].mxu0
      %v3171 = vadd.f32 %v3074, %v3170
      %v3172 = vpop.f32.mrb[0].mxu0
      %v3173 = vpop.f32.mrb[0].mxu0
      %v3174 = vadd.f32 %v3077, %v3173
      %v3175 = vpop.f32.mrb[0].mxu0
      %3176 = vmatprep.mubr.bf16.mxu0 0
      %3177 = vmatmul.mubr.bf16.gmra.mrb[0].mxu0 %v1944
      %v3178 = vpop.f32.mrb[0].mxu0
      %v3179 = vadd.f32 %v3082, %v3178
      %v3180 = vpop.f32.mrb[0].mxu0
      %v3181 = vpop.f32.mrb[0].mxu0
      %v3182 = vadd.f32 %v3085, %v3181
      %v3183 = vpop.f32.mrb[0].mxu0
      %3184 = vmatprep.mubr.bf16.mxu0 0
      %3185 = vmatmul.mubr.bf16.gmra.mrb[0].mxu0 %v1945
      %v3186 = vpop.f32.mrb[0].mxu0
      %v3187 = vadd.f32 %v3090, %v3186
      %v3188 = vpop.f32.mrb[0].mxu0
      %v3189 = vpop.f32.mrb[0].mxu0
      %v3190 = vadd.f32 %v3093, %v3189
      %v3191 = vpop.f32.mrb[0].mxu0
      %3192 = vmatprep.mubr.bf16.mxu0 0
      %3193 = vmatmul.mubr.bf16.gmra.mrb[0].mxu0 %v1946
      %v3194 = vpop.f32.mrb[0].mxu0
      %v3195 = vadd.f32 %v3098, %v3194
      %v3196 = vpop.f32.mrb[0].mxu0
      %v3197 = vpop.f32.mrb[0].mxu0
      %v3198 = vadd.f32 %v3101, %v3197
      %v3199 = vpop.f32.mrb[0].mxu0
      %3200 = vmatprep.mubr.bf16.mxu0 0
      %3201 = vmatmul.mubr.bf16.gmra.mrb[0].mxu0 %v1947
      %v3202 = vpop.f32.mrb[0].mxu0
      %v3203 = vadd.f32 %v3106, %v3202
      %v3204 = vpop.f32.mrb[0].mxu0
      %v3205 = vpop.f32.mrb[0].mxu0
      %v3206 = vadd.f32 %v3109, %v3205
      %v3207 = vpop.f32.mrb[0].mxu0
      %3208 = vdwg.mxu0
      %s3209 = scalar_lea.vmem [#allocation2], 16
      %v3210 = vld [vmem:[%s3209] sm:$0xf]
      %v3211 = vld [vmem:[%s3209 + $0x8] sm:$0xf]
      %v3212 = vld [vmem:[%s3209 + $0x10] sm:$0xf]
      %v3213 = vld [vmem:[%s3209 + $0x18] sm:$0xf]
      %v3214 = vld [vmem:[%s3209 + $0x20] sm:$0xf]
      %v3215 = vld [vmem:[%s3209 + $0x28] sm:$0xf]
      %v3216 = vld [vmem:[%s3209 + $0x30] sm:$0xf]
      %v3217 = vld [vmem:[%s3209 + $0x38] sm:$0xf]
      %v3218 = vld [vmem:[%s3209 + $0x40] sm:$0xf]
      %v3219 = vld [vmem:[%s3209 + $0x48] sm:$0xf]
      %v3220 = vld [vmem:[%s3209 + $0x50] sm:$0xf]
      %v3221 = vld [vmem:[%s3209 + $0x58] sm:$0xf]
      %v3222 = vld [vmem:[%s3209 + $0x60] sm:$0xf]
      %v3223 = vld [vmem:[%s3209 + $0x68] sm:$0xf]
      %v3224 = vld [vmem:[%s3209 + $0x70] sm:$0xf]
      %v3225 = vld [vmem:[%s3209 + $0x78] sm:$0xf]
      %v3226 = vld [vmem:[%s3209 + $0x4] sm:$0x1]
      %v3227 = vld [vmem:[%s3209 + $0xc] sm:$0x1]
      %v3228 = vld [vmem:[%s3209 + $0x14] sm:$0x1]
      %v3229 = vld [vmem:[%s3209 + $0x1c] sm:$0x1]
      %v3230 = vld [vmem:[%s3209 + $0x24] sm:$0x1]
      %v3231 = vld [vmem:[%s3209 + $0x2c] sm:$0x1]
      %v3232 = vld [vmem:[%s3209 + $0x34] sm:$0x1]
      %v3233 = vld [vmem:[%s3209 + $0x3c] sm:$0x1]
      %v3234 = vld [vmem:[%s3209 + $0x44] sm:$0x1]
      %v3235 = vld [vmem:[%s3209 + $0x4c] sm:$0x1]
      %v3236 = vld [vmem:[%s3209 + $0x54] sm:$0x1]
      %v3237 = vld [vmem:[%s3209 + $0x5c] sm:$0x1]
      %v3238 = vld [vmem:[%s3209 + $0x64] sm:$0x1]
      %v3239 = vld [vmem:[%s3209 + $0x6c] sm:$0x1]
      %v3240 = vld [vmem:[%s3209 + $0x74] sm:$0x1]
      %v3241 = vld [vmem:[%s3209 + $0x7c] sm:$0x1]
      %v3243 = vshrl.u32 %v3210, 16
      %v3245 = vrot.slane %v3243, 4
      %v3246 = vshll.u32 %v3210, 16
      %v3248 = vrot.slane %v3246, 5
      %v3249 = vor.u32 %v3245, %v3248
      %v3250 = vrot.slane %v3249, 4
      %v3252 = vshll.u32 %v3226, 16
      %v3254 = vrot.slane %v3252, 5
      %v3255 = vsel %vm1504, %v3250, %v3254
      %v3257 = vshrl.u32 %v3211, 16
      %v3259 = vrot.slane %v3257, 4
      %v3260 = vshll.u32 %v3211, 16
      %v3262 = vrot.slane %v3260, 5
      %v3263 = vor.u32 %v3259, %v3262
      %v3264 = vrot.slane %v3263, 4
      %v3266 = vshll.u32 %v3227, 16
      %v3268 = vrot.slane %v3266, 5
      %v3269 = vsel %vm1504, %v3264, %v3268
      %v3271 = vshrl.u32 %v3212, 16
      %v3273 = vrot.slane %v3271, 4
      %v3274 = vshll.u32 %v3212, 16
      %v3276 = vrot.slane %v3274, 5
      %v3277 = vor.u32 %v3273, %v3276
      %v3278 = vrot.slane %v3277, 4
      %v3280 = vshll.u32 %v3228, 16
      %v3282 = vrot.slane %v3280, 5
      %v3283 = vsel %vm1504, %v3278, %v3282
      %v3285 = vshrl.u32 %v3213, 16
      %v3287 = vrot.slane %v3285, 4
      %v3288 = vshll.u32 %v3213, 16
      %v3290 = vrot.slane %v3288, 5
      %v3291 = vor.u32 %v3287, %v3290
      %v3292 = vrot.slane %v3291, 4
      %v3294 = vshll.u32 %v3229, 16
      %v3296 = vrot.slane %v3294, 5
      %v3297 = vsel %vm1504, %v3292, %v3296
      %v3299 = vshrl.u32 %v3214, 16
      %v3301 = vrot.slane %v3299, 4
      %v3302 = vshll.u32 %v3214, 16
      %v3304 = vrot.slane %v3302, 5
      %v3305 = vor.u32 %v3301, %v3304
      %v3306 = vrot.slane %v3305, 4
      %v3308 = vshll.u32 %v3230, 16
      %v3310 = vrot.slane %v3308, 5
      %v3311 = vsel %vm1504, %v3306, %v3310
      %v3313 = vshrl.u32 %v3215, 16
      %v3315 = vrot.slane %v3313, 4
      %v3316 = vshll.u32 %v3215, 16
      %v3318 = vrot.slane %v3316, 5
      %v3319 = vor.u32 %v3315, %v3318
      %v3320 = vrot.slane %v3319, 4
      %v3322 = vshll.u32 %v3231, 16
      %v3324 = vrot.slane %v3322, 5
      %v3325 = vsel %vm1504, %v3320, %v3324
      %v3327 = vshrl.u32 %v3216, 16
      %v3329 = vrot.slane %v3327, 4
      %v3330 = vshll.u32 %v3216, 16
      %v3332 = vrot.slane %v3330, 5
      %v3333 = vor.u32 %v3329, %v3332
      %v3334 = vrot.slane %v3333, 4
      %v3336 = vshll.u32 %v3232, 16
      %v3338 = vrot.slane %v3336, 5
      %v3339 = vsel %vm1504, %v3334, %v3338
      %v3341 = vshrl.u32 %v3217, 16
      %v3343 = vrot.slane %v3341, 4
      %v3344 = vshll.u32 %v3217, 16
      %v3346 = vrot.slane %v3344, 5
      %v3347 = vor.u32 %v3343, %v3346
      %v3348 = vrot.slane %v3347, 4
      %v3350 = vshll.u32 %v3233, 16
      %v3352 = vrot.slane %v3350, 5
      %v3353 = vsel %vm1504, %v3348, %v3352
      %v3355 = vshrl.u32 %v3218, 16
      %v3357 = vrot.slane %v3355, 4
      %v3358 = vshll.u32 %v3218, 16
      %v3360 = vrot.slane %v3358, 5
      %v3361 = vor.u32 %v3357, %v3360
      %v3362 = vrot.slane %v3361, 4
      %v3364 = vshll.u32 %v3234, 16
      %v3366 = vrot.slane %v3364, 5
      %v3367 = vsel %vm1504, %v3362, %v3366
      %v3369 = vshrl.u32 %v3219, 16
      %v3371 = vrot.slane %v3369, 4
      %v3372 = vshll.u32 %v3219, 16
      %v3374 = vrot.slane %v3372, 5
      %v3375 = vor.u32 %v3371, %v3374
      %v3376 = vrot.slane %v3375, 4
      %v3378 = vshll.u32 %v3235, 16
      %v3380 = vrot.slane %v3378, 5
      %v3381 = vsel %vm1504, %v3376, %v3380
      %v3383 = vshrl.u32 %v3220, 16
      %v3385 = vrot.slane %v3383, 4
      %v3386 = vshll.u32 %v3220, 16
      %v3388 = vrot.slane %v3386, 5
      %v3389 = vor.u32 %v3385, %v3388
      %v3390 = vrot.slane %v3389, 4
      %v3392 = vshll.u32 %v3236, 16
      %v3394 = vrot.slane %v3392, 5
      %v3395 = vsel %vm1504, %v3390, %v3394
      %v3397 = vshrl.u32 %v3221, 16
      %v3399 = vrot.slane %v3397, 4
      %v3400 = vshll.u32 %v3221, 16
      %v3402 = vrot.slane %v3400, 5
      %v3403 = vor.u32 %v3399, %v3402
      %v3404 = vrot.slane %v3403, 4
      %v3406 = vshll.u32 %v3237, 16
      %v3408 = vrot.slane %v3406, 5
      %v3409 = vsel %vm1504, %v3404, %v3408
      %v3411 = vshrl.u32 %v3222, 16
      %v3413 = vrot.slane %v3411, 4
      %v3414 = vshll.u32 %v3222, 16
      %v3416 = vrot.slane %v3414, 5
      %v3417 = vor.u32 %v3413, %v3416
      %v3418 = vrot.slane %v3417, 4
      %v3420 = vshll.u32 %v3238, 16
      %v3422 = vrot.slane %v3420, 5
      %v3423 = vsel %vm1504, %v3418, %v3422
      %v3425 = vshrl.u32 %v3223, 16
      %v3427 = vrot.slane %v3425, 4
      %v3428 = vshll.u32 %v3223, 16
      %v3430 = vrot.slane %v3428, 5
      %v3431 = vor.u32 %v3427, %v3430
      %v3432 = vrot.slane %v3431, 4
      %v3434 = vshll.u32 %v3239, 16
      %v3436 = vrot.slane %v3434, 5
      %v3437 = vsel %vm1504, %v3432, %v3436
      %v3439 = vshrl.u32 %v3224, 16
      %v3441 = vrot.slane %v3439, 4
      %v3442 = vshll.u32 %v3224, 16
      %v3444 = vrot.slane %v3442, 5
      %v3445 = vor.u32 %v3441, %v3444
      %v3446 = vrot.slane %v3445, 4
      %v3448 = vshll.u32 %v3240, 16
      %v3450 = vrot.slane %v3448, 5
      %v3451 = vsel %vm1504, %v3446, %v3450
      %v3453 = vshrl.u32 %v3225, 16
      %v3455 = vrot.slane %v3453, 4
      %v3456 = vshll.u32 %v3225, 16
      %v3458 = vrot.slane %v3456, 5
      %v3459 = vor.u32 %v3455, %v3458
      %v3460 = vrot.slane %v3459, 4
      %v3462 = vshll.u32 %v3241, 16
      %v3464 = vrot.slane %v3462, 5
      %v3465 = vsel %vm1504, %v3460, %v3464
      %v3466 = vld [vmem:[%s3209] sm:$0xe]
      %v3467 = vld [vmem:[%s3209 + $0x8] sm:$0xe]
      %v3468 = vld [vmem:[%s3209 + $0x10] sm:$0xe]
      %v3469 = vld [vmem:[%s3209 + $0x18] sm:$0xe]
      %v3470 = vld [vmem:[%s3209 + $0x20] sm:$0xe]
      %v3471 = vld [vmem:[%s3209 + $0x28] sm:$0xe]
      %v3472 = vld [vmem:[%s3209 + $0x30] sm:$0xe]
      %v3473 = vld [vmem:[%s3209 + $0x38] sm:$0xe]
      %v3474 = vld [vmem:[%s3209 + $0x40] sm:$0xe]
      %v3475 = vld [vmem:[%s3209 + $0x48] sm:$0xe]
      %v3476 = vld [vmem:[%s3209 + $0x50] sm:$0xe]
      %v3477 = vld [vmem:[%s3209 + $0x58] sm:$0xe]
      %v3478 = vld [vmem:[%s3209 + $0x60] sm:$0xe]
      %v3479 = vld [vmem:[%s3209 + $0x68] sm:$0xe]
      %v3480 = vld [vmem:[%s3209 + $0x70] sm:$0xe]
      %v3481 = vld [vmem:[%s3209 + $0x78] sm:$0xe]
      %v3514 = vrot.slane %v3466, 5
      %v3515 = vrot.slane %v3514, 4
      %v3516 = vrot.slane %v3226, 5
      %v3517 = vsel %vm1779, %v3515, %v3516
      %v3518 = vrot.slane %v3467, 5
      %v3519 = vrot.slane %v3518, 4
      %v3520 = vrot.slane %v3227, 5
      %v3521 = vsel %vm1779, %v3519, %v3520
      %v3522 = vrot.slane %v3468, 5
      %v3523 = vrot.slane %v3522, 4
      %v3524 = vrot.slane %v3228, 5
      %v3525 = vsel %vm1779, %v3523, %v3524
      %v3526 = vrot.slane %v3469, 5
      %v3527 = vrot.slane %v3526, 4
      %v3528 = vrot.slane %v3229, 5
      %v3529 = vsel %vm1779, %v3527, %v3528
      %v3530 = vrot.slane %v3470, 5
      %v3531 = vrot.slane %v3530, 4
      %v3532 = vrot.slane %v3230, 5
      %v3533 = vsel %vm1779, %v3531, %v3532
      %v3534 = vrot.slane %v3471, 5
      %v3535 = vrot.slane %v3534, 4
      %v3536 = vrot.slane %v3231, 5
      %v3537 = vsel %vm1779, %v3535, %v3536
      %v3538 = vrot.slane %v3472, 5
      %v3539 = vrot.slane %v3538, 4
      %v3540 = vrot.slane %v3232, 5
      %v3541 = vsel %vm1779, %v3539, %v3540
      %v3542 = vrot.slane %v3473, 5
      %v3543 = vrot.slane %v3542, 4
      %v3544 = vrot.slane %v3233, 5
      %v3545 = vsel %vm1779, %v3543, %v3544
      %v3546 = vrot.slane %v3474, 5
      %v3547 = vrot.slane %v3546, 4
      %v3548 = vrot.slane %v3234, 5
      %v3549 = vsel %vm1779, %v3547, %v3548
      %v3550 = vrot.slane %v3475, 5
      %v3551 = vrot.slane %v3550, 4
      %v3552 = vrot.slane %v3235, 5
      %v3553 = vsel %vm1779, %v3551, %v3552
      %v3554 = vrot.slane %v3476, 5
      %v3555 = vrot.slane %v3554, 4
      %v3556 = vrot.slane %v3236, 5
      %v3557 = vsel %vm1779, %v3555, %v3556
      %v3558 = vrot.slane %v3477, 5
      %v3559 = vrot.slane %v3558, 4
      %v3560 = vrot.slane %v3237, 5
      %v3561 = vsel %vm1779, %v3559, %v3560
      %v3562 = vrot.slane %v3478, 5
      %v3563 = vrot.slane %v3562, 4
      %v3564 = vrot.slane %v3238, 5
      %v3565 = vsel %vm1779, %v3563, %v3564
      %v3566 = vrot.slane %v3479, 5
      %v3567 = vrot.slane %v3566, 4
      %v3568 = vrot.slane %v3239, 5
      %v3569 = vsel %vm1779, %v3567, %v3568
      %v3570 = vrot.slane %v3480, 5
      %v3571 = vrot.slane %v3570, 4
      %v3572 = vrot.slane %v3240, 5
      %v3573 = vsel %vm1779, %v3571, %v3572
      %v3574 = vrot.slane %v3481, 5
      %v3575 = vrot.slane %v3574, 4
      %v3576 = vrot.slane %v3241, 5
      %v3577 = vsel %vm1779, %v3575, %v3576
      %v3594 = vunpack.c.l.b16 %v3210
      %v3595 = vunpack.c.l.b16 %v3211
      %v3596 = vunpack.c.l.b16 %v3212
      %v3597 = vunpack.c.l.b16 %v3213
      %v3598 = vunpack.c.l.b16 %v3214
      %v3599 = vunpack.c.l.b16 %v3215
      %v3600 = vunpack.c.l.b16 %v3216
      %v3601 = vunpack.c.l.b16 %v3217
      %v3602 = vunpack.c.l.b16 %v3218
      %v3603 = vunpack.c.l.b16 %v3219
      %v3604 = vunpack.c.l.b16 %v3220
      %v3605 = vunpack.c.l.b16 %v3221
      %v3606 = vunpack.c.l.b16 %v3222
      %v3607 = vunpack.c.l.b16 %v3223
      %v3608 = vunpack.c.l.b16 %v3224
      %v3609 = vunpack.c.l.b16 %v3225
      %v3610 = vpack.c.b16 %v3595, %v3594
      %v3611 = vpack.c.b16 %v3597, %v3596
      %v3612 = vpack.c.b16 %v3599, %v3598
      %v3613 = vpack.c.b16 %v3601, %v3600
      %v3614 = vpack.c.b16 %v3603, %v3602
      %v3615 = vpack.c.b16 %v3605, %v3604
      %v3616 = vpack.c.b16 %v3607, %v3606
      %v3617 = vpack.c.b16 %v3609, %v3608
      %v3626 = vunpack.c.l.b16 %v3255
      %v3627 = vunpack.c.l.b16 %v3269
      %v3628 = vunpack.c.l.b16 %v3283
      %v3629 = vunpack.c.l.b16 %v3297
      %v3630 = vunpack.c.l.b16 %v3311
      %v3631 = vunpack.c.l.b16 %v3325
      %v3632 = vunpack.c.l.b16 %v3339
      %v3633 = vunpack.c.l.b16 %v3353
      %v3634 = vunpack.c.l.b16 %v3367
      %v3635 = vunpack.c.l.b16 %v3381
      %v3636 = vunpack.c.l.b16 %v3395
      %v3637 = vunpack.c.l.b16 %v3409
      %v3638 = vunpack.c.l.b16 %v3423
      %v3639 = vunpack.c.l.b16 %v3437
      %v3640 = vunpack.c.l.b16 %v3451
      %v3641 = vunpack.c.l.b16 %v3465
      %v3642 = vpack.c.b16 %v3627, %v3626
      %v3643 = vpack.c.b16 %v3629, %v3628
      %v3644 = vpack.c.b16 %v3631, %v3630
      %v3645 = vpack.c.b16 %v3633, %v3632
      %v3646 = vpack.c.b16 %v3635, %v3634
      %v3647 = vpack.c.b16 %v3637, %v3636
      %v3648 = vpack.c.b16 %v3639, %v3638
      %v3649 = vpack.c.b16 %v3641, %v3640
      %v3658 = vunpack.c.l.b16 %v3517
      %v3659 = vunpack.c.l.b16 %v3521
      %v3660 = vunpack.c.l.b16 %v3525
      %v3661 = vunpack.c.l.b16 %v3529
      %v3662 = vunpack.c.l.b16 %v3533
      %v3663 = vunpack.c.l.b16 %v3537
      %v3664 = vunpack.c.l.b16 %v3541
      %v3665 = vunpack.c.l.b16 %v3545
      %v3666 = vunpack.c.l.b16 %v3549
      %v3667 = vunpack.c.l.b16 %v3553
      %v3668 = vunpack.c.l.b16 %v3557
      %v3669 = vunpack.c.l.b16 %v3561
      %v3670 = vunpack.c.l.b16 %v3565
      %v3671 = vunpack.c.l.b16 %v3569
      %v3672 = vunpack.c.l.b16 %v3573
      %v3673 = vunpack.c.l.b16 %v3577
      %v3674 = vpack.c.b16 %v3659, %v3658
      %v3675 = vpack.c.b16 %v3661, %v3660
      %v3676 = vpack.c.b16 %v3663, %v3662
      %v3677 = vpack.c.b16 %v3665, %v3664
      %v3678 = vpack.c.b16 %v3667, %v3666
      %v3679 = vpack.c.b16 %v3669, %v3668
      %v3680 = vpack.c.b16 %v3671, %v3670
      %v3681 = vpack.c.b16 %v3673, %v3672
      %s3690 = scalar_lea.vmem %s2, 384
      %v3691 = vld [vmem:[%s3690] sm:$0xf]
      %v3692 = vld [vmem:[%s3690 + $0x4] sm:$0xf]
      %v3693 = vld [vmem:[%s3690 + $0x8] sm:$0xf]
      %v3694 = vld [vmem:[%s3690 + $0xc] sm:$0xf]
      %v3695 = vld [vmem:[%s3690 + $0x10] sm:$0xf]
      %v3696 = vld [vmem:[%s3690 + $0x14] sm:$0xf]
      %v3697 = vld [vmem:[%s3690 + $0x18] sm:$0xf]
      %v3698 = vld [vmem:[%s3690 + $0x1c] sm:$0xf]
      %v3699 = vld [vmem:[%s3690 + $0x20] sm:$0xf]
      %v3700 = vld [vmem:[%s3690 + $0x24] sm:$0xf]
      %v3701 = vld [vmem:[%s3690 + $0x28] sm:$0xf]
      %v3702 = vld [vmem:[%s3690 + $0x2c] sm:$0xf]
      %v3703 = vld [vmem:[%s3690 + $0x30] sm:$0xf]
      %v3704 = vld [vmem:[%s3690 + $0x34] sm:$0xf]
      %v3705 = vld [vmem:[%s3690 + $0x38] sm:$0xf]
      %v3706 = vld [vmem:[%s3690 + $0x3c] sm:$0xf]
      %v3707 = vld [vmem:[%s3690 + $0x40] sm:$0xf]
      %v3708 = vld [vmem:[%s3690 + $0x44] sm:$0xf]
      %v3709 = vld [vmem:[%s3690 + $0x48] sm:$0xf]
      %v3710 = vld [vmem:[%s3690 + $0x4c] sm:$0xf]
      %v3711 = vld [vmem:[%s3690 + $0x50] sm:$0xf]
      %v3712 = vld [vmem:[%s3690 + $0x54] sm:$0xf]
      %v3713 = vld [vmem:[%s3690 + $0x58] sm:$0xf]
      %v3714 = vld [vmem:[%s3690 + $0x5c] sm:$0xf]
      %v3715 = vld [vmem:[%s3690 + $0x60] sm:$0xf]
      %v3716 = vld [vmem:[%s3690 + $0x64] sm:$0xf]
      %v3717 = vld [vmem:[%s3690 + $0x68] sm:$0xf]
      %v3718 = vld [vmem:[%s3690 + $0x6c] sm:$0xf]
      %v3719 = vld [vmem:[%s3690 + $0x70] sm:$0xf]
      %v3720 = vld [vmem:[%s3690 + $0x74] sm:$0xf]
      %v3721 = vld [vmem:[%s3690 + $0x78] sm:$0xf]
      %v3722 = vld [vmem:[%s3690 + $0x7c] sm:$0xf]
      %v3723 = vld [vmem:[%s3690 + $0x80] sm:$0xf]
      %v3724 = vld [vmem:[%s3690 + $0x84] sm:$0xf]
      %v3725 = vld [vmem:[%s3690 + $0x88] sm:$0xf]
      %v3726 = vld [vmem:[%s3690 + $0x8c] sm:$0xf]
      %v3727 = vld [vmem:[%s3690 + $0x90] sm:$0xf]
      %v3728 = vld [vmem:[%s3690 + $0x94] sm:$0xf]
      %v3729 = vld [vmem:[%s3690 + $0x98] sm:$0xf]
      %v3730 = vld [vmem:[%s3690 + $0x9c] sm:$0xf]
      %v3731 = vld [vmem:[%s3690 + $0xa0] sm:$0xf]
      %v3732 = vld [vmem:[%s3690 + $0xa4] sm:$0xf]
      %v3733 = vld [vmem:[%s3690 + $0xa8] sm:$0xf]
      %v3734 = vld [vmem:[%s3690 + $0xac] sm:$0xf]
      %v3735 = vld [vmem:[%s3690 + $0xb0] sm:$0xf]
      %v3736 = vld [vmem:[%s3690 + $0xb4] sm:$0xf]
      %v3737 = vld [vmem:[%s3690 + $0xb8] sm:$0xf]
      %v3738 = vld [vmem:[%s3690 + $0xbc] sm:$0xf]
      %v3787 = vunpack.c.l.b16 %v3691
      %v3788 = vunpack.c.l.b16 %v3692
      %v3789 = vunpack.c.l.b16 %v3693
      %v3790 = vunpack.c.l.b16 %v3694
      %v3791 = vunpack.c.l.b16 %v3695
      %v3792 = vunpack.c.l.b16 %v3696
      %v3793 = vunpack.c.l.b16 %v3697
      %v3794 = vunpack.c.l.b16 %v3698
      %v3795 = vunpack.c.l.b16 %v3699
      %v3796 = vunpack.c.l.b16 %v3700
      %v3797 = vunpack.c.l.b16 %v3701
      %v3798 = vunpack.c.l.b16 %v3702
      %v3799 = vunpack.c.l.b16 %v3703
      %v3800 = vunpack.c.l.b16 %v3704
      %v3801 = vunpack.c.l.b16 %v3705
      %v3802 = vunpack.c.l.b16 %v3706
      %v3803 = vunpack.c.l.b16 %v3707
      %v3804 = vunpack.c.l.b16 %v3708
      %v3805 = vunpack.c.l.b16 %v3709
      %v3806 = vunpack.c.l.b16 %v3710
      %v3807 = vunpack.c.l.b16 %v3711
      %v3808 = vunpack.c.l.b16 %v3712
      %v3809 = vunpack.c.l.b16 %v3713
      %v3810 = vunpack.c.l.b16 %v3714
      %v3811 = vunpack.c.l.b16 %v3715
      %v3812 = vunpack.c.l.b16 %v3716
      %v3813 = vunpack.c.l.b16 %v3717
      %v3814 = vunpack.c.l.b16 %v3718
      %v3815 = vunpack.c.l.b16 %v3719
      %v3816 = vunpack.c.l.b16 %v3720
      %v3817 = vunpack.c.l.b16 %v3721
      %v3818 = vunpack.c.l.b16 %v3722
      %v3819 = vunpack.c.l.b16 %v3723
      %v3820 = vunpack.c.l.b16 %v3724
      %v3821 = vunpack.c.l.b16 %v3725
      %v3822 = vunpack.c.l.b16 %v3726
      %v3823 = vunpack.c.l.b16 %v3727
      %v3824 = vunpack.c.l.b16 %v3728
      %v3825 = vunpack.c.l.b16 %v3729
      %v3826 = vunpack.c.l.b16 %v3730
      %v3827 = vunpack.c.l.b16 %v3731
      %v3828 = vunpack.c.l.b16 %v3732
      %v3829 = vunpack.c.l.b16 %v3733
      %v3830 = vunpack.c.l.b16 %v3734
      %v3831 = vunpack.c.l.b16 %v3735
      %v3832 = vunpack.c.l.b16 %v3736
      %v3833 = vunpack.c.l.b16 %v3737
      %v3834 = vunpack.c.l.b16 %v3738
      %v3835 = vpack.c.b16 %v3788, %v3787
      %v3836 = vpack.c.b16 %v3790, %v3789
      %v3837 = vpack.c.b16 %v3792, %v3791
      %v3838 = vpack.c.b16 %v3794, %v3793
      %v3839 = vpack.c.b16 %v3796, %v3795
      %v3840 = vpack.c.b16 %v3798, %v3797
      %v3841 = vpack.c.b16 %v3800, %v3799
      %v3842 = vpack.c.b16 %v3802, %v3801
      %v3843 = vpack.c.b16 %v3804, %v3803
      %v3844 = vpack.c.b16 %v3806, %v3805
      %v3845 = vpack.c.b16 %v3808, %v3807
      %v3846 = vpack.c.b16 %v3810, %v3809
      %v3847 = vpack.c.b16 %v3812, %v3811
      %v3848 = vpack.c.b16 %v3814, %v3813
      %v3849 = vpack.c.b16 %v3816, %v3815
      %v3850 = vpack.c.b16 %v3818, %v3817
      %v3851 = vpack.c.b16 %v3820, %v3819
      %v3852 = vpack.c.b16 %v3822, %v3821
      %v3853 = vpack.c.b16 %v3824, %v3823
      %v3854 = vpack.c.b16 %v3826, %v3825
      %v3855 = vpack.c.b16 %v3828, %v3827
      %v3856 = vpack.c.b16 %v3830, %v3829
      %v3857 = vpack.c.b16 %v3832, %v3831
      %v3858 = vpack.c.b16 %v3834, %v3833
      %3883 = vmatprep.subr.bf16.mxu0 0
      %3884 = vmatpush1.bf16.msra.mxu0 %v3835
      %3885 = vmatprep.subr.bf16.mxu0 0
      %3886 = vmatpush1.bf16.msra.mxu0 %v3836
      %3887 = vmatprep.subr.bf16.mxu0 0
      %3888 = vmatpush1.bf16.msra.mxu0 %v3837
      %3889 = vmatprep.subr.bf16.mxu0 0
      %3890 = vmatpush1.bf16.msra.mxu0 %v3838
      %3891 = vmatprep.subr.bf16.mxu0 0
      %3892 = vmatpush1.bf16.msra.mxu0 %v3839
      %3893 = vmatprep.subr.bf16.mxu0 0
      %3894 = vmatpush1.bf16.msra.mxu0 %v3840
      %3895 = vmatprep.subr.bf16.mxu0 0
      %3896 = vmatpush1.bf16.msra.mxu0 %v3841
      %3897 = vmatprep.subr.bf16.mxu0 0
      %3898 = vmatpush1.bf16.msra.mxu0 %v3842
      %3899 = vmatprep.subr.bf16.mxu0 0
      %3900 = vmatpush1.bf16.msra.mxu0 %v3843
      %3901 = vmatprep.subr.bf16.mxu0 0
      %3902 = vmatpush1.bf16.msra.mxu0 %v3844
      %3903 = vmatprep.subr.bf16.mxu0 0
      %3904 = vmatpush1.bf16.msra.mxu0 %v3845
      %3905 = vmatprep.subr.bf16.mxu0 0
      %3906 = vmatpush1.bf16.msra.mxu0 %v3846
      %3907 = vmatprep.subr.bf16.mxu0 0
      %3908 = vmatpush1.bf16.msra.mxu0 %v3847
      %3909 = vmatprep.subr.bf16.mxu0 0
      %3910 = vmatpush1.bf16.msra.mxu0 %v3848
      %3911 = vmatprep.subr.bf16.mxu0 0
      %3912 = vmatpush1.bf16.msra.mxu0 %v3849
      %3913 = vmatprep.subr.bf16.mxu0 0
      %3914 = vmatpush1.bf16.msra.mxu0 %v3850
      %3915 = vmatprep.mubr.bf16.mxu0 %v3642
      %3916 = vmatmul.mubr.bf16.gmra.mrb[0].mxu0 %v3610
      %v3917 = vpop.f32.mrb[0].mxu0
      %v3918 = vadd.f32 0.0, %v3917
      %v3919 = vpop.f32.mrb[0].mxu0
      %v3920 = vpop.f32.mrb[0].mxu0
      %v3921 = vadd.f32 0.0, %v3920
      %v3922 = vpop.f32.mrb[0].mxu0
      %3923 = vmatprep.mubr.bf16.mxu0 %v3643
      %3924 = vmatmul.mubr.bf16.gmra.mrb[0].mxu0 %v3611
      %v3925 = vpop.f32.mrb[0].mxu0
      %v3926 = vadd.f32 0.0, %v3925
      %v3927 = vpop.f32.mrb[0].mxu0
      %v3928 = vpop.f32.mrb[0].mxu0
      %v3929 = vadd.f32 0.0, %v3928
      %v3930 = vpop.f32.mrb[0].mxu0
      %3931 = vmatprep.mubr.bf16.mxu0 %v3644
      %3932 = vmatmul.mubr.bf16.gmra.mrb[0].mxu0 %v3612
      %v3933 = vpop.f32.mrb[0].mxu0
      %v3934 = vadd.f32 0.0, %v3933
      %v3935 = vpop.f32.mrb[0].mxu0
      %v3936 = vpop.f32.mrb[0].mxu0
      %v3937 = vadd.f32 0.0, %v3936
      %v3938 = vpop.f32.mrb[0].mxu0
      %3939 = vmatprep.mubr.bf16.mxu0 %v3645
      %3940 = vmatmul.mubr.bf16.gmra.mrb[0].mxu0 %v3613
      %v3941 = vpop.f32.mrb[0].mxu0
      %v3942 = vadd.f32 0.0, %v3941
      %v3943 = vpop.f32.mrb[0].mxu0
      %v3944 = vpop.f32.mrb[0].mxu0
      %v3945 = vadd.f32 0.0, %v3944
      %v3946 = vpop.f32.mrb[0].mxu0
      %3947 = vmatprep.mubr.bf16.mxu0 %v3646
      %3948 = vmatmul.mubr.bf16.gmra.mrb[0].mxu0 %v3614
      %v3949 = vpop.f32.mrb[0].mxu0
      %v3950 = vadd.f32 0.0, %v3949
      %v3951 = vpop.f32.mrb[0].mxu0
      %v3952 = vpop.f32.mrb[0].mxu0
      %v3953 = vadd.f32 0.0, %v3952
      %v3954 = vpop.f32.mrb[0].mxu0
      %3955 = vmatprep.mubr.bf16.mxu0 %v3647
      %3956 = vmatmul.mubr.bf16.gmra.mrb[0].mxu0 %v3615
      %v3957 = vpop.f32.mrb[0].mxu0
      %v3958 = vadd.f32 0.0, %v3957
      %v3959 = vpop.f32.mrb[0].mxu0
      %v3960 = vpop.f32.mrb[0].mxu0
      %v3961 = vadd.f32 0.0, %v3960
      %v3962 = vpop.f32.mrb[0].mxu0
      %3963 = vmatprep.mubr.bf16.mxu0 %v3648
      %3964 = vmatmul.mubr.bf16.gmra.mrb[0].mxu0 %v3616
      %v3965 = vpop.f32.mrb[0].mxu0
      %v3966 = vadd.f32 0.0, %v3965
      %v3967 = vpop.f32.mrb[0].mxu0
      %v3968 = vpop.f32.mrb[0].mxu0
      %v3969 = vadd.f32 0.0, %v3968
      %v3970 = vpop.f32.mrb[0].mxu0
      %3971 = vmatprep.mubr.bf16.mxu0 %v3649
      %3972 = vmatmul.mubr.bf16.gmra.mrb[0].mxu0 %v3617
      %v3973 = vpop.f32.mrb[0].mxu0
      %v3974 = vadd.f32 0.0, %v3973
      %v3975 = vpop.f32.mrb[0].mxu0
      %v3976 = vpop.f32.mrb[0].mxu0
      %v3977 = vadd.f32 0.0, %v3976
      %v3978 = vpop.f32.mrb[0].mxu0
      %3979 = vdwg.mxu0
      %3980 = vmatprep.subr.bf16.mxu0 0
      %3981 = vmatpush1.bf16.msra.mxu0 %v3851
      %3982 = vmatprep.subr.bf16.mxu0 0
      %3983 = vmatpush1.bf16.msra.mxu0 %v3852
      %3984 = vmatprep.subr.bf16.mxu0 0
      %3985 = vmatpush1.bf16.msra.mxu0 %v3853
      %3986 = vmatprep.subr.bf16.mxu0 0
      %3987 = vmatpush1.bf16.msra.mxu0 %v3854
      %3988 = vmatprep.subr.bf16.mxu0 0
      %3989 = vmatpush1.bf16.msra.mxu0 %v3855
      %3990 = vmatprep.subr.bf16.mxu0 0
      %3991 = vmatpush1.bf16.msra.mxu0 %v3856
      %3992 = vmatprep.subr.bf16.mxu0 0
      %3993 = vmatpush1.bf16.msra.mxu0 %v3857
      %3994 = vmatprep.subr.bf16.mxu0 0
      %3995 = vmatpush1.bf16.msra.mxu0 %v3858
      %3996 = vmatprep.subr.bf16.mxu0 0
      %3997 = vmatpush1.bf16.msra.mxu0 0
      %3998 = vmatprep.subr.bf16.mxu0 0
      %3999 = vmatpush1.bf16.msra.mxu0 0
      %4000 = vmatprep.subr.bf16.mxu0 0
      %4001 = vmatpush1.bf16.msra.mxu0 0
      %4002 = vmatprep.subr.bf16.mxu0 0
      %4003 = vmatpush1.bf16.msra.mxu0 0
      %4004 = vmatprep.subr.bf16.mxu0 0
      %4005 = vmatpush1.bf16.msra.mxu0 0
      %4006 = vmatprep.subr.bf16.mxu0 0
      %4007 = vmatpush1.bf16.msra.mxu0 0
      %4008 = vmatprep.subr.bf16.mxu0 0
      %4009 = vmatpush1.bf16.msra.mxu0 0
      %4010 = vmatprep.subr.bf16.mxu0 0
      %4011 = vmatpush1.bf16.msra.mxu0 0
      %4012 = vmatprep.mubr.bf16.mxu0 0
      %4013 = vmatmul.mubr.bf16.gmra.mrb[0].mxu0 %v3674
      %v4014 = vpop.f32.mrb[0].mxu0
      %v4015 = vadd.f32 %v3918, %v4014
      %v4016 = vpop.f32.mrb[0].mxu0
      %v4017 = vpop.f32.mrb[0].mxu0
      %v4018 = vadd.f32 %v3921, %v4017
      %v4019 = vpop.f32.mrb[0].mxu0
      %4020 = vmatprep.mubr.bf16.mxu0 0
      %4021 = vmatmul.mubr.bf16.gmra.mrb[0].mxu0 %v3675
      %v4022 = vpop.f32.mrb[0].mxu0
      %v4023 = vadd.f32 %v3926, %v4022
      %v4024 = vpop.f32.mrb[0].mxu0
      %v4025 = vpop.f32.mrb[0].mxu0
      %v4026 = vadd.f32 %v3929, %v4025
      %v4027 = vpop.f32.mrb[0].mxu0
      %4028 = vmatprep.mubr.bf16.mxu0 0
      %4029 = vmatmul.mubr.bf16.gmra.mrb[0].mxu0 %v3676
      %v4030 = vpop.f32.mrb[0].mxu0
      %v4031 = vadd.f32 %v3934, %v4030
      %v4032 = vpop.f32.mrb[0].mxu0
      %v4033 = vpop.f32.mrb[0].mxu0
      %v4034 = vadd.f32 %v3937, %v4033
      %v4035 = vpop.f32.mrb[0].mxu0
      %4036 = vmatprep.mubr.bf16.mxu0 0
      %4037 = vmatmul.mubr.bf16.gmra.mrb[0].mxu0 %v3677
      %v4038 = vpop.f32.mrb[0].mxu0
      %v4039 = vadd.f32 %v3942, %v4038
      %v4040 = vpop.f32.mrb[0].mxu0
      %v4041 = vpop.f32.mrb[0].mxu0
      %v4042 = vadd.f32 %v3945, %v4041
      %v4043 = vpop.f32.mrb[0].mxu0
      %4044 = vmatprep.mubr.bf16.mxu0 0
      %4045 = vmatmul.mubr.bf16.gmra.mrb[0].mxu0 %v3678
      %v4046 = vpop.f32.mrb[0].mxu0
      %v4047 = vadd.f32 %v3950, %v4046
      %v4048 = vpop.f32.mrb[0].mxu0
      %v4049 = vpop.f32.mrb[0].mxu0
      %v4050 = vadd.f32 %v3953, %v4049
      %v4051 = vpop.f32.mrb[0].mxu0
      %4052 = vmatprep.mubr.bf16.mxu0 0
      %4053 = vmatmul.mubr.bf16.gmra.mrb[0].mxu0 %v3679
      %v4054 = vpop.f32.mrb[0].mxu0
      %v4055 = vadd.f32 %v3958, %v4054
      %v4056 = vpop.f32.mrb[0].mxu0
      %v4057 = vpop.f32.mrb[0].mxu0
      %v4058 = vadd.f32 %v3961, %v4057
      %v4059 = vpop.f32.mrb[0].mxu0
      %4060 = vmatprep.mubr.bf16.mxu0 0
      %4061 = vmatmul.mubr.bf16.gmra.mrb[0].mxu0 %v3680
      %v4062 = vpop.f32.mrb[0].mxu0
      %v4063 = vadd.f32 %v3966, %v4062
      %v4064 = vpop.f32.mrb[0].mxu0
      %v4065 = vpop.f32.mrb[0].mxu0
      %v4066 = vadd.f32 %v3969, %v4065
      %v4067 = vpop.f32.mrb[0].mxu0
      %4068 = vmatprep.mubr.bf16.mxu0 0
      %4069 = vmatmul.mubr.bf16.gmra.mrb[0].mxu0 %v3681
      %v4070 = vpop.f32.mrb[0].mxu0
      %v4071 = vadd.f32 %v3974, %v4070
      %v4072 = vpop.f32.mrb[0].mxu0
      %v4073 = vpop.f32.mrb[0].mxu0
      %v4074 = vadd.f32 %v3977, %v4073
      %v4075 = vpop.f32.mrb[0].mxu0
      %4076 = vdwg.mxu0
      %v4077 = vadd.f32 %v3147, %v4015
      %v4078 = vadd.f32 %v3150, %v4018
      %v4079 = vadd.f32 %v3155, %v4023
      %v4080 = vadd.f32 %v3158, %v4026
      %v4081 = vadd.f32 %v3163, %v4031
      %v4082 = vadd.f32 %v3166, %v4034
      %v4083 = vadd.f32 %v3171, %v4039
      %v4084 = vadd.f32 %v3174, %v4042
      %v4085 = vadd.f32 %v3179, %v4047
      %v4086 = vadd.f32 %v3182, %v4050
      %v4087 = vadd.f32 %v3187, %v4055
      %v4088 = vadd.f32 %v3190, %v4058
      %v4089 = vadd.f32 %v3195, %v4063
      %v4090 = vadd.f32 %v3198, %v4066
      %v4091 = vadd.f32 %v3203, %v4071
      %v4092 = vadd.f32 %v3206, %v4074
      %v4093 = vld [vmem:[%s6] sm:$0x1]
      %v4095 = vlaneseq
      %v4096 = vshrl.u32 %v4095, 7
      %v4097 = vsub.s32 0, %v4096
      %v4098 = vrot.slane %v4093, %v4097
      %v4100 = vadd.f32 %v4077, %v4098
      %v4101 = vadd.f32 %v4078, %v4098
      %v4102 = vadd.f32 %v4079, %v4098
      %v4103 = vadd.f32 %v4080, %v4098
      %v4104 = vadd.f32 %v4081, %v4098
      %v4105 = vadd.f32 %v4082, %v4098
      %v4106 = vadd.f32 %v4083, %v4098
      %v4107 = vadd.f32 %v4084, %v4098
      %v4108 = vadd.f32 %v4085, %v4098
      %v4109 = vadd.f32 %v4086, %v4098
      %v4110 = vadd.f32 %v4087, %v4098
      %v4111 = vadd.f32 %v4088, %v4098
      %v4112 = vadd.f32 %v4089, %v4098
      %v4113 = vadd.f32 %v4090, %v4098
      %v4114 = vadd.f32 %v4091, %v4098
      %v4115 = vadd.f32 %v4092, %v4098
      %vm4116 = vcmp.ge.f32.partialorder %v4100, 0.0
      %vm4117 = vcmp.ge.f32.partialorder %v4101, 0.0
      %vm4118 = vcmp.ge.f32.partialorder %v4102, 0.0
      %vm4119 = vcmp.ge.f32.partialorder %v4103, 0.0
      %vm4120 = vcmp.ge.f32.partialorder %v4104, 0.0
      %vm4121 = vcmp.ge.f32.partialorder %v4105, 0.0
      %vm4122 = vcmp.ge.f32.partialorder %v4106, 0.0
      %vm4123 = vcmp.ge.f32.partialorder %v4107, 0.0
      %vm4124 = vcmp.ge.f32.partialorder %v4108, 0.0
      %vm4125 = vcmp.ge.f32.partialorder %v4109, 0.0
      %vm4126 = vcmp.ge.f32.partialorder %v4110, 0.0
      %vm4127 = vcmp.ge.f32.partialorder %v4111, 0.0
      %vm4128 = vcmp.ge.f32.partialorder %v4112, 0.0
      %vm4129 = vcmp.ge.f32.partialorder %v4113, 0.0
      %vm4130 = vcmp.ge.f32.partialorder %v4114, 0.0
      %vm4131 = vcmp.ge.f32.partialorder %v4115, 0.0
      %v4132 = vmul.f32 %v4100, 0.01
      %v4133 = vmul.f32 %v4101, 0.01
      %v4134 = vmul.f32 %v4102, 0.01
      %v4135 = vmul.f32 %v4103, 0.01
      %v4136 = vmul.f32 %v4104, 0.01
      %v4137 = vmul.f32 %v4105, 0.01
      %v4138 = vmul.f32 %v4106, 0.01
      %v4139 = vmul.f32 %v4107, 0.01
      %v4140 = vmul.f32 %v4108, 0.01
      %v4141 = vmul.f32 %v4109, 0.01
      %v4142 = vmul.f32 %v4110, 0.01
      %v4143 = vmul.f32 %v4111, 0.01
      %v4144 = vmul.f32 %v4112, 0.01
      %v4145 = vmul.f32 %v4113, 0.01
      %v4146 = vmul.f32 %v4114, 0.01
      %v4147 = vmul.f32 %v4115, 0.01
      %v4148 = vsel %vm4116, %v4100, %v4132
      %v4149 = vsel %vm4117, %v4101, %v4133
      %v4150 = vsel %vm4118, %v4102, %v4134
      %v4151 = vsel %vm4119, %v4103, %v4135
      %v4152 = vsel %vm4120, %v4104, %v4136
      %v4153 = vsel %vm4121, %v4105, %v4137
      %v4154 = vsel %vm4122, %v4106, %v4138
      %v4155 = vsel %vm4123, %v4107, %v4139
      %v4156 = vsel %vm4124, %v4108, %v4140
      %v4157 = vsel %vm4125, %v4109, %v4141
      %v4158 = vsel %vm4126, %v4110, %v4142
      %v4159 = vsel %vm4127, %v4111, %v4143
      %v4160 = vsel %vm4128, %v4112, %v4144
      %v4161 = vsel %vm4129, %v4113, %v4145
      %v4162 = vsel %vm4130, %v4114, %v4146
      %v4163 = vsel %vm4131, %v4115, %v4147
      %v4164 = vpack.c.bf16 %v4148, %v4148
      %v4165 = vpack.c.bf16 %v4149, %v4149
      %v4166 = vpack.c.bf16 %v4150, %v4150
      %v4167 = vpack.c.bf16 %v4151, %v4151
      %v4168 = vpack.c.bf16 %v4152, %v4152
      %v4169 = vpack.c.bf16 %v4153, %v4153
      %v4170 = vpack.c.bf16 %v4154, %v4154
      %v4171 = vpack.c.bf16 %v4155, %v4155
      %v4172 = vpack.c.bf16 %v4156, %v4156
      %v4173 = vpack.c.bf16 %v4157, %v4157
      %v4174 = vpack.c.bf16 %v4158, %v4158
      %v4175 = vpack.c.bf16 %v4159, %v4159
      %v4176 = vpack.c.bf16 %v4160, %v4160
      %v4177 = vpack.c.bf16 %v4161, %v4161
      %v4178 = vpack.c.bf16 %v4162, %v4162
      %v4179 = vpack.c.bf16 %v4163, %v4163
      %v4196 = vunpack.c.l.b16 %v4164
      %v4197 = vunpack.c.l.b16 %v4165
      %v4198 = vunpack.c.l.b16 %v4166
      %v4199 = vunpack.c.l.b16 %v4167
      %v4200 = vunpack.c.l.b16 %v4168
      %v4201 = vunpack.c.l.b16 %v4169
      %v4202 = vunpack.c.l.b16 %v4170
      %v4203 = vunpack.c.l.b16 %v4171
      %v4204 = vunpack.c.l.b16 %v4172
      %v4205 = vunpack.c.l.b16 %v4173
      %v4206 = vunpack.c.l.b16 %v4174
      %v4207 = vunpack.c.l.b16 %v4175
      %v4208 = vunpack.c.l.b16 %v4176
      %v4209 = vunpack.c.l.b16 %v4177
      %v4210 = vunpack.c.l.b16 %v4178
      %v4211 = vunpack.c.l.b16 %v4179
      %v4212 = vpack.c.b16 %v4196, %v4196
      %v4213 = vpack.c.b16 %v4197, %v4197
      %v4214 = vpack.c.b16 %v4198, %v4198
      %v4215 = vpack.c.b16 %v4199, %v4199
      %v4216 = vpack.c.b16 %v4200, %v4200
      %v4217 = vpack.c.b16 %v4201, %v4201
      %v4218 = vpack.c.b16 %v4202, %v4202
      %v4219 = vpack.c.b16 %v4203, %v4203
      %v4220 = vpack.c.b16 %v4204, %v4204
      %v4221 = vpack.c.b16 %v4205, %v4205
      %v4222 = vpack.c.b16 %v4206, %v4206
      %v4223 = vpack.c.b16 %v4207, %v4207
      %v4224 = vpack.c.b16 %v4208, %v4208
      %v4225 = vpack.c.b16 %v4209, %v4209
      %v4226 = vpack.c.b16 %v4210, %v4210
      %v4227 = vpack.c.b16 %v4211, %v4211
      %v4229 = vshrl.u32 %v4212, 16
      %v4231 = vrot.slane %v4229, 7
      %v4232 = vshll.u32 %v4212, 16
      %v4234 = vor.u32 %v4231, %v4232
      %v4235 = vrot.slane %v4231, 4
      %v4237 = vshrl.u32 %v4213, 16
      %v4239 = vrot.slane %v4237, 7
      %v4240 = vshll.u32 %v4213, 16
      %v4242 = vor.u32 %v4239, %v4240
      %v4243 = vrot.slane %v4239, 4
      %v4245 = vshrl.u32 %v4214, 16
      %v4247 = vrot.slane %v4245, 7
      %v4248 = vshll.u32 %v4214, 16
      %v4250 = vor.u32 %v4247, %v4248
      %v4251 = vrot.slane %v4247, 4
      %v4253 = vshrl.u32 %v4215, 16
      %v4255 = vrot.slane %v4253, 7
      %v4256 = vshll.u32 %v4215, 16
      %v4258 = vor.u32 %v4255, %v4256
      %v4259 = vrot.slane %v4255, 4
      %v4261 = vshrl.u32 %v4216, 16
      %v4263 = vrot.slane %v4261, 7
      %v4264 = vshll.u32 %v4216, 16
      %v4266 = vor.u32 %v4263, %v4264
      %v4267 = vrot.slane %v4263, 4
      %v4269 = vshrl.u32 %v4217, 16
      %v4271 = vrot.slane %v4269, 7
      %v4272 = vshll.u32 %v4217, 16
      %v4274 = vor.u32 %v4271, %v4272
      %v4275 = vrot.slane %v4271, 4
      %v4277 = vshrl.u32 %v4218, 16
      %v4279 = vrot.slane %v4277, 7
      %v4280 = vshll.u32 %v4218, 16
      %v4282 = vor.u32 %v4279, %v4280
      %v4283 = vrot.slane %v4279, 4
      %v4285 = vshrl.u32 %v4219, 16
      %v4287 = vrot.slane %v4285, 7
      %v4288 = vshll.u32 %v4219, 16
      %v4290 = vor.u32 %v4287, %v4288
      %v4291 = vrot.slane %v4287, 4
      %v4293 = vshrl.u32 %v4220, 16
      %v4295 = vrot.slane %v4293, 7
      %v4296 = vshll.u32 %v4220, 16
      %v4298 = vor.u32 %v4295, %v4296
      %v4299 = vrot.slane %v4295, 4
      %v4301 = vshrl.u32 %v4221, 16
      %v4303 = vrot.slane %v4301, 7
      %v4304 = vshll.u32 %v4221, 16
      %v4306 = vor.u32 %v4303, %v4304
      %v4307 = vrot.slane %v4303, 4
      %v4309 = vshrl.u32 %v4222, 16
      %v4311 = vrot.slane %v4309, 7
      %v4312 = vshll.u32 %v4222, 16
      %v4314 = vor.u32 %v4311, %v4312
      %v4315 = vrot.slane %v4311, 4
      %v4317 = vshrl.u32 %v4223, 16
      %v4319 = vrot.slane %v4317, 7
      %v4320 = vshll.u32 %v4223, 16
      %v4322 = vor.u32 %v4319, %v4320
      %v4323 = vrot.slane %v4319, 4
      %v4325 = vshrl.u32 %v4224, 16
      %v4327 = vrot.slane %v4325, 7
      %v4328 = vshll.u32 %v4224, 16
      %v4330 = vor.u32 %v4327, %v4328
      %v4331 = vrot.slane %v4327, 4
      %v4333 = vshrl.u32 %v4225, 16
      %v4335 = vrot.slane %v4333, 7
      %v4336 = vshll.u32 %v4225, 16
      %v4338 = vor.u32 %v4335, %v4336
      %v4339 = vrot.slane %v4335, 4
      %v4341 = vshrl.u32 %v4226, 16
      %v4343 = vrot.slane %v4341, 7
      %v4344 = vshll.u32 %v4226, 16
      %v4346 = vor.u32 %v4343, %v4344
      %v4347 = vrot.slane %v4343, 4
      %v4349 = vshrl.u32 %v4227, 16
      %v4351 = vrot.slane %v4349, 7
      %v4352 = vshll.u32 %v4227, 16
      %v4354 = vor.u32 %v4351, %v4352
      %v4355 = vrot.slane %v4351, 4
      %s4388 = scalar_lea.vmem [#allocation3], 8
      %v4389 = vld [vmem:[%s4388] sm:$0xf]
      %v4390 = vsel %vm1373, %v4234, %v4389
      %4391 = vst [vmem:[%s4388] sm:$0xf] %v4390
      %v4392 = vld [vmem:[%s4388 + $0x4] sm:$0x1]
      %v4393 = vsel %vm341, %v4235, %v4392
      %4394 = vst [vmem:[%s4388 + $0x4] sm:$0x1] %v4393
      %v4395 = vld [vmem:[%s4388 + $0x8] sm:$0xf]
      %v4396 = vsel %vm1373, %v4242, %v4395
      %4397 = vst [vmem:[%s4388 + $0x8] sm:$0xf] %v4396
      %v4398 = vld [vmem:[%s4388 + $0xc] sm:$0x1]
      %v4399 = vsel %vm341, %v4243, %v4398
      %4400 = vst [vmem:[%s4388 + $0xc] sm:$0x1] %v4399
      %v4401 = vld [vmem:[%s4388 + $0x10] sm:$0xf]
      %v4402 = vsel %vm1373, %v4250, %v4401
      %4403 = vst [vmem:[%s4388 + $0x10] sm:$0xf] %v4402
      %v4404 = vld [vmem:[%s4388 + $0x14] sm:$0x1]
      %v4405 = vsel %vm341, %v4251, %v4404
      %4406 = vst [vmem:[%s4388 + $0x14] sm:$0x1] %v4405
      %v4407 = vld [vmem:[%s4388 + $0x18] sm:$0xf]
      %v4408 = vsel %vm1373, %v4258, %v4407
      %4409 = vst [vmem:[%s4388 + $0x18] sm:$0xf] %v4408
      %v4410 = vld [vmem:[%s4388 + $0x1c] sm:$0x1]
      %v4411 = vsel %vm341, %v4259, %v4410
      %4412 = vst [vmem:[%s4388 + $0x1c] sm:$0x1] %v4411
      %v4413 = vld [vmem:[%s4388 + $0x20] sm:$0xf]
      %v4414 = vsel %vm1373, %v4266, %v4413
      %4415 = vst [vmem:[%s4388 + $0x20] sm:$0xf] %v4414
      %v4416 = vld [vmem:[%s4388 + $0x24] sm:$0x1]
      %v4417 = vsel %vm341, %v4267, %v4416
      %4418 = vst [vmem:[%s4388 + $0x24] sm:$0x1] %v4417
      %v4419 = vld [vmem:[%s4388 + $0x28] sm:$0xf]
      %v4420 = vsel %vm1373, %v4274, %v4419
      %4421 = vst [vmem:[%s4388 + $0x28] sm:$0xf] %v4420
      %v4422 = vld [vmem:[%s4388 + $0x2c] sm:$0x1]
      %v4423 = vsel %vm341, %v4275, %v4422
      %4424 = vst [vmem:[%s4388 + $0x2c] sm:$0x1] %v4423
      %v4425 = vld [vmem:[%s4388 + $0x30] sm:$0xf]
      %v4426 = vsel %vm1373, %v4282, %v4425
      %4427 = vst [vmem:[%s4388 + $0x30] sm:$0xf] %v4426
      %v4428 = vld [vmem:[%s4388 + $0x34] sm:$0x1]
      %v4429 = vsel %vm341, %v4283, %v4428
      %4430 = vst [vmem:[%s4388 + $0x34] sm:$0x1] %v4429
      %v4431 = vld [vmem:[%s4388 + $0x38] sm:$0xf]
      %v4432 = vsel %vm1373, %v4290, %v4431
      %4433 = vst [vmem:[%s4388 + $0x38] sm:$0xf] %v4432
      %v4434 = vld [vmem:[%s4388 + $0x3c] sm:$0x1]
      %v4435 = vsel %vm341, %v4291, %v4434
      %4436 = vst [vmem:[%s4388 + $0x3c] sm:$0x1] %v4435
      %v4437 = vld [vmem:[%s4388 + $0x40] sm:$0xf]
      %v4438 = vsel %vm1373, %v4298, %v4437
      %4439 = vst [vmem:[%s4388 + $0x40] sm:$0xf] %v4438
      %v4440 = vld [vmem:[%s4388 + $0x44] sm:$0x1]
      %v4441 = vsel %vm341, %v4299, %v4440
      %4442 = vst [vmem:[%s4388 + $0x44] sm:$0x1] %v4441
      %v4443 = vld [vmem:[%s4388 + $0x48] sm:$0xf]
      %v4444 = vsel %vm1373, %v4306, %v4443
      %4445 = vst [vmem:[%s4388 + $0x48] sm:$0xf] %v4444
      %v4446 = vld [vmem:[%s4388 + $0x4c] sm:$0x1]
      %v4447 = vsel %vm341, %v4307, %v4446
      %4448 = vst [vmem:[%s4388 + $0x4c] sm:$0x1] %v4447
      %v4449 = vld [vmem:[%s4388 + $0x50] sm:$0xf]
      %v4450 = vsel %vm1373, %v4314, %v4449
      %4451 = vst [vmem:[%s4388 + $0x50] sm:$0xf] %v4450
      %v4452 = vld [vmem:[%s4388 + $0x54] sm:$0x1]
      %v4453 = vsel %vm341, %v4315, %v4452
      %4454 = vst [vmem:[%s4388 + $0x54] sm:$0x1] %v4453
      %v4455 = vld [vmem:[%s4388 + $0x58] sm:$0xf]
      %v4456 = vsel %vm1373, %v4322, %v4455
      %4457 = vst [vmem:[%s4388 + $0x58] sm:$0xf] %v4456
      %v4458 = vld [vmem:[%s4388 + $0x5c] sm:$0x1]
      %v4459 = vsel %vm341, %v4323, %v4458
      %4460 = vst [vmem:[%s4388 + $0x5c] sm:$0x1] %v4459
      %v4461 = vld [vmem:[%s4388 + $0x60] sm:$0xf]
      %v4462 = vsel %vm1373, %v4330, %v4461
      %4463 = vst [vmem:[%s4388 + $0x60] sm:$0xf] %v4462
      %v4464 = vld [vmem:[%s4388 + $0x64] sm:$0x1]
      %v4465 = vsel %vm341, %v4331, %v4464
      %4466 = vst [vmem:[%s4388 + $0x64] sm:$0x1] %v4465
      %v4467 = vld [vmem:[%s4388 + $0x68] sm:$0xf]
      %v4468 = vsel %vm1373, %v4338, %v4467
      %4469 = vst [vmem:[%s4388 + $0x68] sm:$0xf] %v4468
      %v4470 = vld [vmem:[%s4388 + $0x6c] sm:$0x1]
      %v4471 = vsel %vm341, %v4339, %v4470
      %4472 = vst [vmem:[%s4388 + $0x6c] sm:$0x1] %v4471
      %v4473 = vld [vmem:[%s4388 + $0x70] sm:$0xf]
      %v4474 = vsel %vm1373, %v4346, %v4473
      %4475 = vst [vmem:[%s4388 + $0x70] sm:$0xf] %v4474
      %v4476 = vld [vmem:[%s4388 + $0x74] sm:$0x1]
      %v4477 = vsel %vm341, %v4347, %v4476
      %4478 = vst [vmem:[%s4388 + $0x74] sm:$0x1] %v4477
      %v4479 = vld [vmem:[%s4388 + $0x78] sm:$0xf]
      %v4480 = vsel %vm1373, %v4354, %v4479
      %4481 = vst [vmem:[%s4388 + $0x78] sm:$0xf] %v4480
      %v4482 = vld [vmem:[%s4388 + $0x7c] sm:$0x1]
      %v4483 = vsel %vm341, %v4355, %v4482
      %4484 = vst [vmem:[%s4388 + $0x7c] sm:$0x1] %v4483
      %v4485 = vld [vmem:[%s4388] sm:$0xf]
      %v4486 = vld [vmem:[%s4388 + $0x4] sm:$0x1]
      %v4487 = vld [vmem:[%s4388 + $0x8] sm:$0xf]
      %v4488 = vld [vmem:[%s4388 + $0xc] sm:$0x1]
      %v4489 = vld [vmem:[%s4388 + $0x10] sm:$0xf]
      %v4490 = vld [vmem:[%s4388 + $0x14] sm:$0x1]
      %v4491 = vld [vmem:[%s4388 + $0x18] sm:$0xf]
      %v4492 = vld [vmem:[%s4388 + $0x1c] sm:$0x1]
      %v4493 = vld [vmem:[%s4388 + $0x20] sm:$0xf]
      %v4494 = vld [vmem:[%s4388 + $0x24] sm:$0x1]
      %v4495 = vld [vmem:[%s4388 + $0x28] sm:$0xf]
      %v4496 = vld [vmem:[%s4388 + $0x2c] sm:$0x1]
      %v4497 = vld [vmem:[%s4388 + $0x30] sm:$0xf]
      %v4498 = vld [vmem:[%s4388 + $0x34] sm:$0x1]
      %v4499 = vld [vmem:[%s4388 + $0x38] sm:$0xf]
      %v4500 = vld [vmem:[%s4388 + $0x3c] sm:$0x1]
      %v4501 = vld [vmem:[%s4388 + $0x40] sm:$0xf]
      %v4502 = vld [vmem:[%s4388 + $0x44] sm:$0x1]
      %v4503 = vld [vmem:[%s4388 + $0x48] sm:$0xf]
      %v4504 = vld [vmem:[%s4388 + $0x4c] sm:$0x1]
      %v4505 = vld [vmem:[%s4388 + $0x50] sm:$0xf]
      %v4506 = vld [vmem:[%s4388 + $0x54] sm:$0x1]
      %v4507 = vld [vmem:[%s4388 + $0x58] sm:$0xf]
      %v4508 = vld [vmem:[%s4388 + $0x5c] sm:$0x1]
      %v4509 = vld [vmem:[%s4388 + $0x60] sm:$0xf]
      %v4510 = vld [vmem:[%s4388 + $0x64] sm:$0x1]
      %v4511 = vld [vmem:[%s4388 + $0x68] sm:$0xf]
      %v4512 = vld [vmem:[%s4388 + $0x6c] sm:$0x1]
      %v4513 = vld [vmem:[%s4388 + $0x70] sm:$0xf]
      %v4514 = vld [vmem:[%s4388 + $0x74] sm:$0x1]
      %v4515 = vld [vmem:[%s4388 + $0x78] sm:$0xf]
      %v4516 = vld [vmem:[%s4388 + $0x7c] sm:$0x1]
      %v4518 = vshrl.u32 %v4485, 16
      %v4520 = vrot.slane %v4518, 4
      %v4521 = vshll.u32 %v4485, 16
      %v4523 = vrot.slane %v4521, 5
      %v4524 = vor.u32 %v4520, %v4523
      %v4525 = vrot.slane %v4524, 4
      %v4527 = vshll.u32 %v4486, 16
      %v4529 = vrot.slane %v4527, 5
      %v4530 = vsel %vm1504, %v4525, %v4529
      %v4532 = vshrl.u32 %v4487, 16
      %v4534 = vrot.slane %v4532, 4
      %v4535 = vshll.u32 %v4487, 16
      %v4537 = vrot.slane %v4535, 5
      %v4538 = vor.u32 %v4534, %v4537
      %v4539 = vrot.slane %v4538, 4
      %v4541 = vshll.u32 %v4488, 16
      %v4543 = vrot.slane %v4541, 5
      %v4544 = vsel %vm1504, %v4539, %v4543
      %v4546 = vshrl.u32 %v4489, 16
      %v4548 = vrot.slane %v4546, 4
      %v4549 = vshll.u32 %v4489, 16
      %v4551 = vrot.slane %v4549, 5
      %v4552 = vor.u32 %v4548, %v4551
      %v4553 = vrot.slane %v4552, 4
      %v4555 = vshll.u32 %v4490, 16
      %v4557 = vrot.slane %v4555, 5
      %v4558 = vsel %vm1504, %v4553, %v4557
      %v4560 = vshrl.u32 %v4491, 16
      %v4562 = vrot.slane %v4560, 4
      %v4563 = vshll.u32 %v4491, 16
      %v4565 = vrot.slane %v4563, 5
      %v4566 = vor.u32 %v4562, %v4565
      %v4567 = vrot.slane %v4566, 4
      %v4569 = vshll.u32 %v4492, 16
      %v4571 = vrot.slane %v4569, 5
      %v4572 = vsel %vm1504, %v4567, %v4571
      %v4574 = vshrl.u32 %v4493, 16
      %v4576 = vrot.slane %v4574, 4
      %v4577 = vshll.u32 %v4493, 16
      %v4579 = vrot.slane %v4577, 5
      %v4580 = vor.u32 %v4576, %v4579
      %v4581 = vrot.slane %v4580, 4
      %v4583 = vshll.u32 %v4494, 16
      %v4585 = vrot.slane %v4583, 5
      %v4586 = vsel %vm1504, %v4581, %v4585
      %v4588 = vshrl.u32 %v4495, 16
      %v4590 = vrot.slane %v4588, 4
      %v4591 = vshll.u32 %v4495, 16
      %v4593 = vrot.slane %v4591, 5
      %v4594 = vor.u32 %v4590, %v4593
      %v4595 = vrot.slane %v4594, 4
      %v4597 = vshll.u32 %v4496, 16
      %v4599 = vrot.slane %v4597, 5
      %v4600 = vsel %vm1504, %v4595, %v4599
      %v4602 = vshrl.u32 %v4497, 16
      %v4604 = vrot.slane %v4602, 4
      %v4605 = vshll.u32 %v4497, 16
      %v4607 = vrot.slane %v4605, 5
      %v4608 = vor.u32 %v4604, %v4607
      %v4609 = vrot.slane %v4608, 4
      %v4611 = vshll.u32 %v4498, 16
      %v4613 = vrot.slane %v4611, 5
      %v4614 = vsel %vm1504, %v4609, %v4613
      %v4616 = vshrl.u32 %v4499, 16
      %v4618 = vrot.slane %v4616, 4
      %v4619 = vshll.u32 %v4499, 16
      %v4621 = vrot.slane %v4619, 5
      %v4622 = vor.u32 %v4618, %v4621
      %v4623 = vrot.slane %v4622, 4
      %v4625 = vshll.u32 %v4500, 16
      %v4627 = vrot.slane %v4625, 5
      %v4628 = vsel %vm1504, %v4623, %v4627
      %v4630 = vshrl.u32 %v4501, 16
      %v4632 = vrot.slane %v4630, 4
      %v4633 = vshll.u32 %v4501, 16
      %v4635 = vrot.slane %v4633, 5
      %v4636 = vor.u32 %v4632, %v4635
      %v4637 = vrot.slane %v4636, 4
      %v4639 = vshll.u32 %v4502, 16
      %v4641 = vrot.slane %v4639, 5
      %v4642 = vsel %vm1504, %v4637, %v4641
      %v4644 = vshrl.u32 %v4503, 16
      %v4646 = vrot.slane %v4644, 4
      %v4647 = vshll.u32 %v4503, 16
      %v4649 = vrot.slane %v4647, 5
      %v4650 = vor.u32 %v4646, %v4649
      %v4651 = vrot.slane %v4650, 4
      %v4653 = vshll.u32 %v4504, 16
      %v4655 = vrot.slane %v4653, 5
      %v4656 = vsel %vm1504, %v4651, %v4655
      %v4658 = vshrl.u32 %v4505, 16
      %v4660 = vrot.slane %v4658, 4
      %v4661 = vshll.u32 %v4505, 16
      %v4663 = vrot.slane %v4661, 5
      %v4664 = vor.u32 %v4660, %v4663
      %v4665 = vrot.slane %v4664, 4
      %v4667 = vshll.u32 %v4506, 16
      %v4669 = vrot.slane %v4667, 5
      %v4670 = vsel %vm1504, %v4665, %v4669
      %v4672 = vshrl.u32 %v4507, 16
      %v4674 = vrot.slane %v4672, 4
      %v4675 = vshll.u32 %v4507, 16
      %v4677 = vrot.slane %v4675, 5
      %v4678 = vor.u32 %v4674, %v4677
      %v4679 = vrot.slane %v4678, 4
      %v4681 = vshll.u32 %v4508, 16
      %v4683 = vrot.slane %v4681, 5
      %v4684 = vsel %vm1504, %v4679, %v4683
      %v4686 = vshrl.u32 %v4509, 16
      %v4688 = vrot.slane %v4686, 4
      %v4689 = vshll.u32 %v4509, 16
      %v4691 = vrot.slane %v4689, 5
      %v4692 = vor.u32 %v4688, %v4691
      %v4693 = vrot.slane %v4692, 4
      %v4695 = vshll.u32 %v4510, 16
      %v4697 = vrot.slane %v4695, 5
      %v4698 = vsel %vm1504, %v4693, %v4697
      %v4700 = vshrl.u32 %v4511, 16
      %v4702 = vrot.slane %v4700, 4
      %v4703 = vshll.u32 %v4511, 16
      %v4705 = vrot.slane %v4703, 5
      %v4706 = vor.u32 %v4702, %v4705
      %v4707 = vrot.slane %v4706, 4
      %v4709 = vshll.u32 %v4512, 16
      %v4711 = vrot.slane %v4709, 5
      %v4712 = vsel %vm1504, %v4707, %v4711
      %v4714 = vshrl.u32 %v4513, 16
      %v4716 = vrot.slane %v4714, 4
      %v4717 = vshll.u32 %v4513, 16
      %v4719 = vrot.slane %v4717, 5
      %v4720 = vor.u32 %v4716, %v4719
      %v4721 = vrot.slane %v4720, 4
      %v4723 = vshll.u32 %v4514, 16
      %v4725 = vrot.slane %v4723, 5
      %v4726 = vsel %vm1504, %v4721, %v4725
      %v4728 = vshrl.u32 %v4515, 16
      %v4730 = vrot.slane %v4728, 4
      %v4731 = vshll.u32 %v4515, 16
      %v4733 = vrot.slane %v4731, 5
      %v4734 = vor.u32 %v4730, %v4733
      %v4735 = vrot.slane %v4734, 4
      %v4737 = vshll.u32 %v4516, 16
      %v4739 = vrot.slane %v4737, 5
      %v4740 = vsel %vm1504, %v4735, %v4739
      %v4741 = vld [vmem:[%s4388] sm:$0xe]
      %v4742 = vld [vmem:[%s4388 + $0x8] sm:$0xe]
      %v4743 = vld [vmem:[%s4388 + $0x10] sm:$0xe]
      %v4744 = vld [vmem:[%s4388 + $0x18] sm:$0xe]
      %v4745 = vld [vmem:[%s4388 + $0x20] sm:$0xe]
      %v4746 = vld [vmem:[%s4388 + $0x28] sm:$0xe]
      %v4747 = vld [vmem:[%s4388 + $0x30] sm:$0xe]
      %v4748 = vld [vmem:[%s4388 + $0x38] sm:$0xe]
      %v4749 = vld [vmem:[%s4388 + $0x40] sm:$0xe]
      %v4750 = vld [vmem:[%s4388 + $0x48] sm:$0xe]
      %v4751 = vld [vmem:[%s4388 + $0x50] sm:$0xe]
      %v4752 = vld [vmem:[%s4388 + $0x58] sm:$0xe]
      %v4753 = vld [vmem:[%s4388 + $0x60] sm:$0xe]
      %v4754 = vld [vmem:[%s4388 + $0x68] sm:$0xe]
      %v4755 = vld [vmem:[%s4388 + $0x70] sm:$0xe]
      %v4756 = vld [vmem:[%s4388 + $0x78] sm:$0xe]
      %v4789 = vrot.slane %v4741, 5
      %v4790 = vrot.slane %v4789, 4
      %v4791 = vrot.slane %v4486, 5
      %v4792 = vsel %vm1779, %v4790, %v4791
      %v4793 = vrot.slane %v4742, 5
      %v4794 = vrot.slane %v4793, 4
      %v4795 = vrot.slane %v4488, 5
      %v4796 = vsel %vm1779, %v4794, %v4795
      %v4797 = vrot.slane %v4743, 5
      %v4798 = vrot.slane %v4797, 4
      %v4799 = vrot.slane %v4490, 5
      %v4800 = vsel %vm1779, %v4798, %v4799
      %v4801 = vrot.slane %v4744, 5
      %v4802 = vrot.slane %v4801, 4
      %v4803 = vrot.slane %v4492, 5
      %v4804 = vsel %vm1779, %v4802, %v4803
      %v4805 = vrot.slane %v4745, 5
      %v4806 = vrot.slane %v4805, 4
      %v4807 = vrot.slane %v4494, 5
      %v4808 = vsel %vm1779, %v4806, %v4807
      %v4809 = vrot.slane %v4746, 5
      %v4810 = vrot.slane %v4809, 4
      %v4811 = vrot.slane %v4496, 5
      %v4812 = vsel %vm1779, %v4810, %v4811
      %v4813 = vrot.slane %v4747, 5
      %v4814 = vrot.slane %v4813, 4
      %v4815 = vrot.slane %v4498, 5
      %v4816 = vsel %vm1779, %v4814, %v4815
      %v4817 = vrot.slane %v4748, 5
      %v4818 = vrot.slane %v4817, 4
      %v4819 = vrot.slane %v4500, 5
      %v4820 = vsel %vm1779, %v4818, %v4819
      %v4821 = vrot.slane %v4749, 5
      %v4822 = vrot.slane %v4821, 4
      %v4823 = vrot.slane %v4502, 5
      %v4824 = vsel %vm1779, %v4822, %v4823
      %v4825 = vrot.slane %v4750, 5
      %v4826 = vrot.slane %v4825, 4
      %v4827 = vrot.slane %v4504, 5
      %v4828 = vsel %vm1779, %v4826, %v4827
      %v4829 = vrot.slane %v4751, 5
      %v4830 = vrot.slane %v4829, 4
      %v4831 = vrot.slane %v4506, 5
      %v4832 = vsel %vm1779, %v4830, %v4831
      %v4833 = vrot.slane %v4752, 5
      %v4834 = vrot.slane %v4833, 4
      %v4835 = vrot.slane %v4508, 5
      %v4836 = vsel %vm1779, %v4834, %v4835
      %v4837 = vrot.slane %v4753, 5
      %v4838 = vrot.slane %v4837, 4
      %v4839 = vrot.slane %v4510, 5
      %v4840 = vsel %vm1779, %v4838, %v4839
      %v4841 = vrot.slane %v4754, 5
      %v4842 = vrot.slane %v4841, 4
      %v4843 = vrot.slane %v4512, 5
      %v4844 = vsel %vm1779, %v4842, %v4843
      %v4845 = vrot.slane %v4755, 5
      %v4846 = vrot.slane %v4845, 4
      %v4847 = vrot.slane %v4514, 5
      %v4848 = vsel %vm1779, %v4846, %v4847
      %v4849 = vrot.slane %v4756, 5
      %v4850 = vrot.slane %v4849, 4
      %v4851 = vrot.slane %v4516, 5
      %v4852 = vsel %vm1779, %v4850, %v4851
      %s4853 = scalar_lea.vmem [#allocation3], 16
      %v4854 = vld [vmem:[%s4853] sm:$0xf]
      %v4855 = vld [vmem:[%s4853 + $0x4] sm:$0x1]
      %v4856 = vld [vmem:[%s4853 + $0x8] sm:$0xf]
      %v4857 = vld [vmem:[%s4853 + $0xc] sm:$0x1]
      %v4858 = vld [vmem:[%s4853 + $0x10] sm:$0xf]
      %v4859 = vld [vmem:[%s4853 + $0x14] sm:$0x1]
      %v4860 = vld [vmem:[%s4853 + $0x18] sm:$0xf]
      %v4861 = vld [vmem:[%s4853 + $0x1c] sm:$0x1]
      %v4862 = vld [vmem:[%s4853 + $0x20] sm:$0xf]
      %v4863 = vld [vmem:[%s4853 + $0x24] sm:$0x1]
      %v4864 = vld [vmem:[%s4853 + $0x28] sm:$0xf]
      %v4865 = vld [vmem:[%s4853 + $0x2c] sm:$0x1]
      %v4866 = vld [vmem:[%s4853 + $0x30] sm:$0xf]
      %v4867 = vld [vmem:[%s4853 + $0x34] sm:$0x1]
      %v4868 = vld [vmem:[%s4853 + $0x38] sm:$0xf]
      %v4869 = vld [vmem:[%s4853 + $0x3c] sm:$0x1]
      %v4870 = vld [vmem:[%s4853 + $0x40] sm:$0xf]
      %v4871 = vld [vmem:[%s4853 + $0x44] sm:$0x1]
      %v4872 = vld [vmem:[%s4853 + $0x48] sm:$0xf]
      %v4873 = vld [vmem:[%s4853 + $0x4c] sm:$0x1]
      %v4874 = vld [vmem:[%s4853 + $0x50] sm:$0xf]
      %v4875 = vld [vmem:[%s4853 + $0x54] sm:$0x1]
      %v4876 = vld [vmem:[%s4853 + $0x58] sm:$0xf]
      %v4877 = vld [vmem:[%s4853 + $0x5c] sm:$0x1]
      %v4878 = vld [vmem:[%s4853 + $0x60] sm:$0xf]
      %v4879 = vld [vmem:[%s4853 + $0x64] sm:$0x1]
      %v4880 = vld [vmem:[%s4853 + $0x68] sm:$0xf]
      %v4881 = vld [vmem:[%s4853 + $0x6c] sm:$0x1]
      %v4882 = vld [vmem:[%s4853 + $0x70] sm:$0xf]
      %v4883 = vld [vmem:[%s4853 + $0x74] sm:$0x1]
      %v4884 = vld [vmem:[%s4853 + $0x78] sm:$0xf]
      %v4885 = vld [vmem:[%s4853 + $0x7c] sm:$0x1]
      %v4887 = vshrl.u32 %v4854, 16
      %v4889 = vrot.slane %v4887, 4
      %v4890 = vshll.u32 %v4854, 16
      %v4892 = vrot.slane %v4890, 5
      %v4893 = vor.u32 %v4889, %v4892
      %v4894 = vrot.slane %v4893, 4
      %v4896 = vshll.u32 %v4855, 16
      %v4898 = vrot.slane %v4896, 5
      %v4899 = vsel %vm1504, %v4894, %v4898
      %v4901 = vshrl.u32 %v4856, 16
      %v4903 = vrot.slane %v4901, 4
      %v4904 = vshll.u32 %v4856, 16
      %v4906 = vrot.slane %v4904, 5
      %v4907 = vor.u32 %v4903, %v4906
      %v4908 = vrot.slane %v4907, 4
      %v4910 = vshll.u32 %v4857, 16
      %v4912 = vrot.slane %v4910, 5
      %v4913 = vsel %vm1504, %v4908, %v4912
      %v4915 = vshrl.u32 %v4858, 16
      %v4917 = vrot.slane %v4915, 4
      %v4918 = vshll.u32 %v4858, 16
      %v4920 = vrot.slane %v4918, 5
      %v4921 = vor.u32 %v4917, %v4920
      %v4922 = vrot.slane %v4921, 4
      %v4924 = vshll.u32 %v4859, 16
      %v4926 = vrot.slane %v4924, 5
      %v4927 = vsel %vm1504, %v4922, %v4926
      %v4929 = vshrl.u32 %v4860, 16
      %v4931 = vrot.slane %v4929, 4
      %v4932 = vshll.u32 %v4860, 16
      %v4934 = vrot.slane %v4932, 5
      %v4935 = vor.u32 %v4931, %v4934
      %v4936 = vrot.slane %v4935, 4
      %v4938 = vshll.u32 %v4861, 16
      %v4940 = vrot.slane %v4938, 5
      %v4941 = vsel %vm1504, %v4936, %v4940
      %v4943 = vshrl.u32 %v4862, 16
      %v4945 = vrot.slane %v4943, 4
      %v4946 = vshll.u32 %v4862, 16
      %v4948 = vrot.slane %v4946, 5
      %v4949 = vor.u32 %v4945, %v4948
      %v4950 = vrot.slane %v4949, 4
      %v4952 = vshll.u32 %v4863, 16
      %v4954 = vrot.slane %v4952, 5
      %v4955 = vsel %vm1504, %v4950, %v4954
      %v4957 = vshrl.u32 %v4864, 16
      %v4959 = vrot.slane %v4957, 4
      %v4960 = vshll.u32 %v4864, 16
      %v4962 = vrot.slane %v4960, 5
      %v4963 = vor.u32 %v4959, %v4962
      %v4964 = vrot.slane %v4963, 4
      %v4966 = vshll.u32 %v4865, 16
      %v4968 = vrot.slane %v4966, 5
      %v4969 = vsel %vm1504, %v4964, %v4968
      %v4971 = vshrl.u32 %v4866, 16
      %v4973 = vrot.slane %v4971, 4
      %v4974 = vshll.u32 %v4866, 16
      %v4976 = vrot.slane %v4974, 5
      %v4977 = vor.u32 %v4973, %v4976
      %v4978 = vrot.slane %v4977, 4
      %v4980 = vshll.u32 %v4867, 16
      %v4982 = vrot.slane %v4980, 5
      %v4983 = vsel %vm1504, %v4978, %v4982
      %v4985 = vshrl.u32 %v4868, 16
      %v4987 = vrot.slane %v4985, 4
      %v4988 = vshll.u32 %v4868, 16
      %v4990 = vrot.slane %v4988, 5
      %v4991 = vor.u32 %v4987, %v4990
      %v4992 = vrot.slane %v4991, 4
      %v4994 = vshll.u32 %v4869, 16
      %v4996 = vrot.slane %v4994, 5
      %v4997 = vsel %vm1504, %v4992, %v4996
      %v4999 = vshrl.u32 %v4870, 16
      %v5001 = vrot.slane %v4999, 4
      %v5002 = vshll.u32 %v4870, 16
      %v5004 = vrot.slane %v5002, 5
      %v5005 = vor.u32 %v5001, %v5004
      %v5006 = vrot.slane %v5005, 4
      %v5008 = vshll.u32 %v4871, 16
      %v5010 = vrot.slane %v5008, 5
      %v5011 = vsel %vm1504, %v5006, %v5010
      %v5013 = vshrl.u32 %v4872, 16
      %v5015 = vrot.slane %v5013, 4
      %v5016 = vshll.u32 %v4872, 16
      %v5018 = vrot.slane %v5016, 5
      %v5019 = vor.u32 %v5015, %v5018
      %v5020 = vrot.slane %v5019, 4
      %v5022 = vshll.u32 %v4873, 16
      %v5024 = vrot.slane %v5022, 5
      %v5025 = vsel %vm1504, %v5020, %v5024
      %v5027 = vshrl.u32 %v4874, 16
      %v5029 = vrot.slane %v5027, 4
      %v5030 = vshll.u32 %v4874, 16
      %v5032 = vrot.slane %v5030, 5
      %v5033 = vor.u32 %v5029, %v5032
      %v5034 = vrot.slane %v5033, 4
      %v5036 = vshll.u32 %v4875, 16
      %v5038 = vrot.slane %v5036, 5
      %v5039 = vsel %vm1504, %v5034, %v5038
      %v5041 = vshrl.u32 %v4876, 16
      %v5043 = vrot.slane %v5041, 4
      %v5044 = vshll.u32 %v4876, 16
      %v5046 = vrot.slane %v5044, 5
      %v5047 = vor.u32 %v5043, %v5046
      %v5048 = vrot.slane %v5047, 4
      %v5050 = vshll.u32 %v4877, 16
      %v5052 = vrot.slane %v5050, 5
      %v5053 = vsel %vm1504, %v5048, %v5052
      %v5055 = vshrl.u32 %v4878, 16
      %v5057 = vrot.slane %v5055, 4
      %v5058 = vshll.u32 %v4878, 16
      %v5060 = vrot.slane %v5058, 5
      %v5061 = vor.u32 %v5057, %v5060
      %v5062 = vrot.slane %v5061, 4
      %v5064 = vshll.u32 %v4879, 16
      %v5066 = vrot.slane %v5064, 5
      %v5067 = vsel %vm1504, %v5062, %v5066
      %v5069 = vshrl.u32 %v4880, 16
      %v5071 = vrot.slane %v5069, 4
      %v5072 = vshll.u32 %v4880, 16
      %v5074 = vrot.slane %v5072, 5
      %v5075 = vor.u32 %v5071, %v5074
      %v5076 = vrot.slane %v5075, 4
      %v5078 = vshll.u32 %v4881, 16
      %v5080 = vrot.slane %v5078, 5
      %v5081 = vsel %vm1504, %v5076, %v5080
      %v5083 = vshrl.u32 %v4882, 16
      %v5085 = vrot.slane %v5083, 4
      %v5086 = vshll.u32 %v4882, 16
      %v5088 = vrot.slane %v5086, 5
      %v5089 = vor.u32 %v5085, %v5088
      %v5090 = vrot.slane %v5089, 4
      %v5092 = vshll.u32 %v4883, 16
      %v5094 = vrot.slane %v5092, 5
      %v5095 = vsel %vm1504, %v5090, %v5094
      %v5097 = vshrl.u32 %v4884, 16
      %v5099 = vrot.slane %v5097, 4
      %v5100 = vshll.u32 %v4884, 16
      %v5102 = vrot.slane %v5100, 5
      %v5103 = vor.u32 %v5099, %v5102
      %v5104 = vrot.slane %v5103, 4
      %v5106 = vshll.u32 %v4885, 16
      %v5108 = vrot.slane %v5106, 5
      %v5109 = vsel %vm1504, %v5104, %v5108
      %v5110 = vld [vmem:[%s4853] sm:$0xe]
      %v5111 = vld [vmem:[%s4853 + $0x8] sm:$0xe]
      %v5112 = vld [vmem:[%s4853 + $0x10] sm:$0xe]
      %v5113 = vld [vmem:[%s4853 + $0x18] sm:$0xe]
      %v5114 = vld [vmem:[%s4853 + $0x20] sm:$0xe]
      %v5115 = vld [vmem:[%s4853 + $0x28] sm:$0xe]
      %v5116 = vld [vmem:[%s4853 + $0x30] sm:$0xe]
      %v5117 = vld [vmem:[%s4853 + $0x38] sm:$0xe]
      %v5118 = vld [vmem:[%s4853 + $0x40] sm:$0xe]
      %v5119 = vld [vmem:[%s4853 + $0x48] sm:$0xe]
      %v5120 = vld [vmem:[%s4853 + $0x50] sm:$0xe]
      %v5121 = vld [vmem:[%s4853 + $0x58] sm:$0xe]
      %v5122 = vld [vmem:[%s4853 + $0x60] sm:$0xe]
      %v5123 = vld [vmem:[%s4853 + $0x68] sm:$0xe]
      %v5124 = vld [vmem:[%s4853 + $0x70] sm:$0xe]
      %v5125 = vld [vmem:[%s4853 + $0x78] sm:$0xe]
      %v5158 = vrot.slane %v5110, 5
      %v5159 = vrot.slane %v5158, 4
      %v5160 = vrot.slane %v4855, 5
      %v5161 = vsel %vm1779, %v5159, %v5160
      %v5162 = vrot.slane %v5111, 5
      %v5163 = vrot.slane %v5162, 4
      %v5164 = vrot.slane %v4857, 5
      %v5165 = vsel %vm1779, %v5163, %v5164
      %v5166 = vrot.slane %v5112, 5
      %v5167 = vrot.slane %v5166, 4
      %v5168 = vrot.slane %v4859, 5
      %v5169 = vsel %vm1779, %v5167, %v5168
      %v5170 = vrot.slane %v5113, 5
      %v5171 = vrot.slane %v5170, 4
      %v5172 = vrot.slane %v4861, 5
      %v5173 = vsel %vm1779, %v5171, %v5172
      %v5174 = vrot.slane %v5114, 5
      %v5175 = vrot.slane %v5174, 4
      %v5176 = vrot.slane %v4863, 5
      %v5177 = vsel %vm1779, %v5175, %v5176
      %v5178 = vrot.slane %v5115, 5
      %v5179 = vrot.slane %v5178, 4
      %v5180 = vrot.slane %v4865, 5
      %v5181 = vsel %vm1779, %v5179, %v5180
      %v5182 = vrot.slane %v5116, 5
      %v5183 = vrot.slane %v5182, 4
      %v5184 = vrot.slane %v4867, 5
      %v5185 = vsel %vm1779, %v5183, %v5184
      %v5186 = vrot.slane %v5117, 5
      %v5187 = vrot.slane %v5186, 4
      %v5188 = vrot.slane %v4869, 5
      %v5189 = vsel %vm1779, %v5187, %v5188
      %v5190 = vrot.slane %v5118, 5
      %v5191 = vrot.slane %v5190, 4
      %v5192 = vrot.slane %v4871, 5
      %v5193 = vsel %vm1779, %v5191, %v5192
      %v5194 = vrot.slane %v5119, 5
      %v5195 = vrot.slane %v5194, 4
      %v5196 = vrot.slane %v4873, 5
      %v5197 = vsel %vm1779, %v5195, %v5196
      %v5198 = vrot.slane %v5120, 5
      %v5199 = vrot.slane %v5198, 4
      %v5200 = vrot.slane %v4875, 5
      %v5201 = vsel %vm1779, %v5199, %v5200
      %v5202 = vrot.slane %v5121, 5
      %v5203 = vrot.slane %v5202, 4
      %v5204 = vrot.slane %v4877, 5
      %v5205 = vsel %vm1779, %v5203, %v5204
      %v5206 = vrot.slane %v5122, 5
      %v5207 = vrot.slane %v5206, 4
      %v5208 = vrot.slane %v4879, 5
      %v5209 = vsel %vm1779, %v5207, %v5208
      %v5210 = vrot.slane %v5123, 5
      %v5211 = vrot.slane %v5210, 4
      %v5212 = vrot.slane %v4881, 5
      %v5213 = vsel %vm1779, %v5211, %v5212
      %v5214 = vrot.slane %v5124, 5
      %v5215 = vrot.slane %v5214, 4
      %v5216 = vrot.slane %v4883, 5
      %v5217 = vsel %vm1779, %v5215, %v5216
      %v5218 = vrot.slane %v5125, 5
      %v5219 = vrot.slane %v5218, 4
      %v5220 = vrot.slane %v4885, 5
      %v5221 = vsel %vm1779, %v5219, %v5220
      %v5222 = vunpack.c.l.b16 %v4530
      %v5223 = vunpack.c.l.b16 %v4544
      %v5224 = vunpack.c.l.b16 %v4558
      %v5225 = vunpack.c.l.b16 %v4572
      %v5226 = vunpack.c.l.b16 %v4586
      %v5227 = vunpack.c.l.b16 %v4600
      %v5228 = vunpack.c.l.b16 %v4614
      %v5229 = vunpack.c.l.b16 %v4628
      %v5230 = vunpack.c.l.b16 %v4642
      %v5231 = vunpack.c.l.b16 %v4656
      %v5232 = vunpack.c.l.b16 %v4670
      %v5233 = vunpack.c.l.b16 %v4684
      %v5234 = vunpack.c.l.b16 %v4698
      %v5235 = vunpack.c.l.b16 %v4712
      %v5236 = vunpack.c.l.b16 %v4726
      %v5237 = vunpack.c.l.b16 %v4740
      %v5238 = vpack.c.b16 %v5223, %v5222
      %v5239 = vpack.c.b16 %v5225, %v5224
      %v5240 = vpack.c.b16 %v5227, %v5226
      %v5241 = vpack.c.b16 %v5229, %v5228
      %v5242 = vpack.c.b16 %v5231, %v5230
      %v5243 = vpack.c.b16 %v5233, %v5232
      %v5244 = vpack.c.b16 %v5235, %v5234
      %v5245 = vpack.c.b16 %v5237, %v5236
      %v5254 = vunpack.c.l.b16 %v4792
      %v5255 = vunpack.c.l.b16 %v4796
      %v5256 = vunpack.c.l.b16 %v4800
      %v5257 = vunpack.c.l.b16 %v4804
      %v5258 = vunpack.c.l.b16 %v4808
      %v5259 = vunpack.c.l.b16 %v4812
      %v5260 = vunpack.c.l.b16 %v4816
      %v5261 = vunpack.c.l.b16 %v4820
      %v5262 = vunpack.c.l.b16 %v4824
      %v5263 = vunpack.c.l.b16 %v4828
      %v5264 = vunpack.c.l.b16 %v4832
      %v5265 = vunpack.c.l.b16 %v4836
      %v5266 = vunpack.c.l.b16 %v4840
      %v5267 = vunpack.c.l.b16 %v4844
      %v5268 = vunpack.c.l.b16 %v4848
      %v5269 = vunpack.c.l.b16 %v4852
      %v5270 = vpack.c.b16 %v5255, %v5254
      %v5271 = vpack.c.b16 %v5257, %v5256
      %v5272 = vpack.c.b16 %v5259, %v5258
      %v5273 = vpack.c.b16 %v5261, %v5260
      %v5274 = vpack.c.b16 %v5263, %v5262
      %v5275 = vpack.c.b16 %v5265, %v5264
      %v5276 = vpack.c.b16 %v5267, %v5266
      %v5277 = vpack.c.b16 %v5269, %v5268
      %v5286 = vunpack.c.l.b16 %v4899
      %v5287 = vunpack.c.l.b16 %v4913
      %v5288 = vunpack.c.l.b16 %v4927
      %v5289 = vunpack.c.l.b16 %v4941
      %v5290 = vunpack.c.l.b16 %v4955
      %v5291 = vunpack.c.l.b16 %v4969
      %v5292 = vunpack.c.l.b16 %v4983
      %v5293 = vunpack.c.l.b16 %v4997
      %v5294 = vunpack.c.l.b16 %v5011
      %v5295 = vunpack.c.l.b16 %v5025
      %v5296 = vunpack.c.l.b16 %v5039
      %v5297 = vunpack.c.l.b16 %v5053
      %v5298 = vunpack.c.l.b16 %v5067
      %v5299 = vunpack.c.l.b16 %v5081
      %v5300 = vunpack.c.l.b16 %v5095
      %v5301 = vunpack.c.l.b16 %v5109
      %v5302 = vpack.c.b16 %v5287, %v5286
      %v5303 = vpack.c.b16 %v5289, %v5288
      %v5304 = vpack.c.b16 %v5291, %v5290
      %v5305 = vpack.c.b16 %v5293, %v5292
      %v5306 = vpack.c.b16 %v5295, %v5294
      %v5307 = vpack.c.b16 %v5297, %v5296
      %v5308 = vpack.c.b16 %v5299, %v5298
      %v5309 = vpack.c.b16 %v5301, %v5300
      %v5318 = vunpack.c.l.b16 %v5161
      %v5319 = vunpack.c.l.b16 %v5165
      %v5320 = vunpack.c.l.b16 %v5169
      %v5321 = vunpack.c.l.b16 %v5173
      %v5322 = vunpack.c.l.b16 %v5177
      %v5323 = vunpack.c.l.b16 %v5181
      %v5324 = vunpack.c.l.b16 %v5185
      %v5325 = vunpack.c.l.b16 %v5189
      %v5326 = vunpack.c.l.b16 %v5193
      %v5327 = vunpack.c.l.b16 %v5197
      %v5328 = vunpack.c.l.b16 %v5201
      %v5329 = vunpack.c.l.b16 %v5205
      %v5330 = vunpack.c.l.b16 %v5209
      %v5331 = vunpack.c.l.b16 %v5213
      %v5332 = vunpack.c.l.b16 %v5217
      %v5333 = vunpack.c.l.b16 %v5221
      %v5334 = vpack.c.b16 %v5319, %v5318
      %v5335 = vpack.c.b16 %v5321, %v5320
      %v5336 = vpack.c.b16 %v5323, %v5322
      %v5337 = vpack.c.b16 %v5325, %v5324
      %v5338 = vpack.c.b16 %v5327, %v5326
      %v5339 = vpack.c.b16 %v5329, %v5328
      %v5340 = vpack.c.b16 %v5331, %v5330
      %v5341 = vpack.c.b16 %v5333, %v5332
      %v5350 = vld [vmem:[%s3] sm:$0xff]
      %v5351 = vld [vmem:[%s3 + $0x8] sm:$0xff]
      %v5352 = vld [vmem:[%s3 + $0x10] sm:$0xff]
      %v5353 = vld [vmem:[%s3 + $0x18] sm:$0xff]
      %v5354 = vld [vmem:[%s3 + $0x20] sm:$0xff]
      %v5355 = vld [vmem:[%s3 + $0x28] sm:$0xff]
      %v5356 = vld [vmem:[%s3 + $0x30] sm:$0xff]
      %v5357 = vld [vmem:[%s3 + $0x38] sm:$0xff]
      %v5358 = vld [vmem:[%s3 + $0x40] sm:$0xff]
      %v5359 = vld [vmem:[%s3 + $0x48] sm:$0xff]
      %v5360 = vld [vmem:[%s3 + $0x50] sm:$0xff]
      %v5361 = vld [vmem:[%s3 + $0x58] sm:$0xff]
      %v5362 = vld [vmem:[%s3 + $0x60] sm:$0xff]
      %v5363 = vld [vmem:[%s3 + $0x68] sm:$0xff]
      %v5364 = vld [vmem:[%s3 + $0x70] sm:$0xff]
      %v5365 = vld [vmem:[%s3 + $0x78] sm:$0xff]
      %v5366 = vld [vmem:[%s3 + $0x80] sm:$0xff]
      %v5367 = vld [vmem:[%s3 + $0x88] sm:$0xff]
      %v5368 = vld [vmem:[%s3 + $0x90] sm:$0xff]
      %v5369 = vld [vmem:[%s3 + $0x98] sm:$0xff]
      %v5370 = vld [vmem:[%s3 + $0xa0] sm:$0xff]
      %v5371 = vld [vmem:[%s3 + $0xa8] sm:$0xff]
      %v5372 = vld [vmem:[%s3 + $0xb0] sm:$0xff]
      %v5373 = vld [vmem:[%s3 + $0xb8] sm:$0xff]
      %v5374 = vld [vmem:[%s3 + $0xc0] sm:$0xff]
      %v5375 = vld [vmem:[%s3 + $0xc8] sm:$0xff]
      %v5376 = vld [vmem:[%s3 + $0xd0] sm:$0xff]
      %v5377 = vld [vmem:[%s3 + $0xd8] sm:$0xff]
      %v5378 = vld [vmem:[%s3 + $0xe0] sm:$0xff]
      %v5379 = vld [vmem:[%s3 + $0xe8] sm:$0xff]
      %v5380 = vld [vmem:[%s3 + $0xf0] sm:$0xff]
      %v5381 = vld [vmem:[%s3 + $0xf8] sm:$0xff]
      %v5382 = vld [vmem:[%s3 + $0x100] sm:$0xff]
      %v5383 = vld [vmem:[%s3 + $0x108] sm:$0xff]
      %v5384 = vld [vmem:[%s3 + $0x110] sm:$0xff]
      %v5385 = vld [vmem:[%s3 + $0x118] sm:$0xff]
      %v5386 = vld [vmem:[%s3 + $0x120] sm:$0xff]
      %v5387 = vld [vmem:[%s3 + $0x128] sm:$0xff]
      %v5388 = vld [vmem:[%s3 + $0x130] sm:$0xff]
      %v5389 = vld [vmem:[%s3 + $0x138] sm:$0xff]
      %v5390 = vld [vmem:[%s3 + $0x140] sm:$0xff]
      %v5391 = vld [vmem:[%s3 + $0x148] sm:$0xff]
      %v5392 = vld [vmem:[%s3 + $0x150] sm:$0xff]
      %v5393 = vld [vmem:[%s3 + $0x158] sm:$0xff]
      %v5394 = vld [vmem:[%s3 + $0x160] sm:$0xff]
      %v5395 = vld [vmem:[%s3 + $0x168] sm:$0xff]
      %v5396 = vld [vmem:[%s3 + $0x170] sm:$0xff]
      %v5397 = vld [vmem:[%s3 + $0x178] sm:$0xff]
      %v5398 = vld [vmem:[%s3 + $0x180] sm:$0xff]
      %v5399 = vld [vmem:[%s3 + $0x188] sm:$0xff]
      %v5400 = vld [vmem:[%s3 + $0x190] sm:$0xff]
      %v5401 = vld [vmem:[%s3 + $0x198] sm:$0xff]
      %v5402 = vld [vmem:[%s3 + $0x1a0] sm:$0xff]
      %v5403 = vld [vmem:[%s3 + $0x1a8] sm:$0xff]
      %v5404 = vld [vmem:[%s3 + $0x1b0] sm:$0xff]
      %v5405 = vld [vmem:[%s3 + $0x1b8] sm:$0xff]
      %v5406 = vld [vmem:[%s3 + $0x1c0] sm:$0xff]
      %v5407 = vld [vmem:[%s3 + $0x1c8] sm:$0xff]
      %v5408 = vld [vmem:[%s3 + $0x1d0] sm:$0xff]
      %v5409 = vld [vmem:[%s3 + $0x1d8] sm:$0xff]
      %v5410 = vld [vmem:[%s3 + $0x1e0] sm:$0xff]
      %v5411 = vld [vmem:[%s3 + $0x1e8] sm:$0xff]
      %v5412 = vld [vmem:[%s3 + $0x1f0] sm:$0xff]
      %v5413 = vld [vmem:[%s3 + $0x1f8] sm:$0xff]
      %v5414 = vld [vmem:[%s7] sm:$0x3]
      %v5416 = vlaneseq
      %v5417 = vshrl.u32 %v5416, 7
      %v5418 = vsub.s32 0, %v5417
      %v5419 = vrot.slane %v5414, %v5418
      %v5420 = vlaneseq
      %v5421 = vshrl.u32 %v5420, 7
      %v5422 = vsub.s32 1, %v5421
      %v5423 = vrot.slane %v5414, %v5422
      %v5490 = vunpack.c.l.b16 %v5350
      %v5491 = vunpack.c.h.b16 %v5350
      %v5492 = vunpack.c.l.b16 %v5351
      %v5493 = vunpack.c.h.b16 %v5351
      %v5494 = vunpack.c.l.b16 %v5352
      %v5495 = vunpack.c.h.b16 %v5352
      %v5496 = vunpack.c.l.b16 %v5353
      %v5497 = vunpack.c.h.b16 %v5353
      %v5498 = vunpack.c.l.b16 %v5354
      %v5499 = vunpack.c.h.b16 %v5354
      %v5500 = vunpack.c.l.b16 %v5355
      %v5501 = vunpack.c.h.b16 %v5355
      %v5502 = vunpack.c.l.b16 %v5356
      %v5503 = vunpack.c.h.b16 %v5356
      %v5504 = vunpack.c.l.b16 %v5357
      %v5505 = vunpack.c.h.b16 %v5357
      %v5506 = vunpack.c.l.b16 %v5358
      %v5507 = vunpack.c.h.b16 %v5358
      %v5508 = vunpack.c.l.b16 %v5359
      %v5509 = vunpack.c.h.b16 %v5359
      %v5510 = vunpack.c.l.b16 %v5360
      %v5511 = vunpack.c.h.b16 %v5360
      %v5512 = vunpack.c.l.b16 %v5361
      %v5513 = vunpack.c.h.b16 %v5361
      %v5514 = vunpack.c.l.b16 %v5362
      %v5515 = vunpack.c.h.b16 %v5362
      %v5516 = vunpack.c.l.b16 %v5363
      %v5517 = vunpack.c.h.b16 %v5363
      %v5518 = vunpack.c.l.b16 %v5364
      %v5519 = vunpack.c.h.b16 %v5364
      %v5520 = vunpack.c.l.b16 %v5365
      %v5521 = vunpack.c.h.b16 %v5365
      %v5522 = vunpack.c.l.b16 %v5366
      %v5523 = vunpack.c.h.b16 %v5366
      %v5524 = vunpack.c.l.b16 %v5367
      %v5525 = vunpack.c.h.b16 %v5367
      %v5526 = vunpack.c.l.b16 %v5368
      %v5527 = vunpack.c.h.b16 %v5368
      %v5528 = vunpack.c.l.b16 %v5369
      %v5529 = vunpack.c.h.b16 %v5369
      %v5530 = vunpack.c.l.b16 %v5370
      %v5531 = vunpack.c.h.b16 %v5370
      %v5532 = vunpack.c.l.b16 %v5371
      %v5533 = vunpack.c.h.b16 %v5371
      %v5534 = vunpack.c.l.b16 %v5372
      %v5535 = vunpack.c.h.b16 %v5372
      %v5536 = vunpack.c.l.b16 %v5373
      %v5537 = vunpack.c.h.b16 %v5373
      %v5538 = vunpack.c.l.b16 %v5374
      %v5539 = vunpack.c.h.b16 %v5374
      %v5540 = vunpack.c.l.b16 %v5375
      %v5541 = vunpack.c.h.b16 %v5375
      %v5542 = vunpack.c.l.b16 %v5376
      %v5543 = vunpack.c.h.b16 %v5376
      %v5544 = vunpack.c.l.b16 %v5377
      %v5545 = vunpack.c.h.b16 %v5377
      %v5546 = vunpack.c.l.b16 %v5378
      %v5547 = vunpack.c.h.b16 %v5378
      %v5548 = vunpack.c.l.b16 %v5379
      %v5549 = vunpack.c.h.b16 %v5379
      %v5550 = vunpack.c.l.b16 %v5380
      %v5551 = vunpack.c.h.b16 %v5380
      %v5552 = vunpack.c.l.b16 %v5381
      %v5553 = vunpack.c.h.b16 %v5381
      %v5554 = vunpack.c.l.b16 %v5382
      %v5555 = vunpack.c.h.b16 %v5382
      %v5556 = vunpack.c.l.b16 %v5383
      %v5557 = vunpack.c.h.b16 %v5383
      %v5558 = vunpack.c.l.b16 %v5384
      %v5559 = vunpack.c.h.b16 %v5384
      %v5560 = vunpack.c.l.b16 %v5385
      %v5561 = vunpack.c.h.b16 %v5385
      %v5562 = vunpack.c.l.b16 %v5386
      %v5563 = vunpack.c.h.b16 %v5386
      %v5564 = vunpack.c.l.b16 %v5387
      %v5565 = vunpack.c.h.b16 %v5387
      %v5566 = vunpack.c.l.b16 %v5388
      %v5567 = vunpack.c.h.b16 %v5388
      %v5568 = vunpack.c.l.b16 %v5389
      %v5569 = vunpack.c.h.b16 %v5389
      %v5570 = vunpack.c.l.b16 %v5390
      %v5571 = vunpack.c.h.b16 %v5390
      %v5572 = vunpack.c.l.b16 %v5391
      %v5573 = vunpack.c.h.b16 %v5391
      %v5574 = vunpack.c.l.b16 %v5392
      %v5575 = vunpack.c.h.b16 %v5392
      %v5576 = vunpack.c.l.b16 %v5393
      %v5577 = vunpack.c.h.b16 %v5393
      %v5578 = vunpack.c.l.b16 %v5394
      %v5579 = vunpack.c.h.b16 %v5394
      %v5580 = vunpack.c.l.b16 %v5395
      %v5581 = vunpack.c.h.b16 %v5395
      %v5582 = vunpack.c.l.b16 %v5396
      %v5583 = vunpack.c.h.b16 %v5396
      %v5584 = vunpack.c.l.b16 %v5397
      %v5585 = vunpack.c.h.b16 %v5397
      %v5586 = vunpack.c.l.b16 %v5398
      %v5587 = vunpack.c.h.b16 %v5398
      %v5588 = vunpack.c.l.b16 %v5399
      %v5589 = vunpack.c.h.b16 %v5399
      %v5590 = vunpack.c.l.b16 %v5400
      %v5591 = vunpack.c.h.b16 %v5400
      %v5592 = vunpack.c.l.b16 %v5401
      %v5593 = vunpack.c.h.b16 %v5401
      %v5594 = vunpack.c.l.b16 %v5402
      %v5595 = vunpack.c.h.b16 %v5402
      %v5596 = vunpack.c.l.b16 %v5403
      %v5597 = vunpack.c.h.b16 %v5403
      %v5598 = vunpack.c.l.b16 %v5404
      %v5599 = vunpack.c.h.b16 %v5404
      %v5600 = vunpack.c.l.b16 %v5405
      %v5601 = vunpack.c.h.b16 %v5405
      %v5602 = vunpack.c.l.b16 %v5406
      %v5603 = vunpack.c.h.b16 %v5406
      %v5604 = vunpack.c.l.b16 %v5407
      %v5605 = vunpack.c.h.b16 %v5407
      %v5606 = vunpack.c.l.b16 %v5408
      %v5607 = vunpack.c.h.b16 %v5408
      %v5608 = vunpack.c.l.b16 %v5409
      %v5609 = vunpack.c.h.b16 %v5409
      %v5610 = vunpack.c.l.b16 %v5410
      %v5611 = vunpack.c.h.b16 %v5410
      %v5612 = vunpack.c.l.b16 %v5411
      %v5613 = vunpack.c.h.b16 %v5411
      %v5614 = vunpack.c.l.b16 %v5412
      %v5615 = vunpack.c.h.b16 %v5412
      %v5616 = vunpack.c.l.b16 %v5413
      %v5617 = vunpack.c.h.b16 %v5413
      %v5618 = vpack.c.b16 %v5492, %v5490
      %v5619 = vpack.c.b16 %v5493, %v5491
      %v5620 = vpack.c.b16 %v5496, %v5494
      %v5621 = vpack.c.b16 %v5497, %v5495
      %v5622 = vpack.c.b16 %v5500, %v5498
      %v5623 = vpack.c.b16 %v5501, %v5499
      %v5624 = vpack.c.b16 %v5504, %v5502
      %v5625 = vpack.c.b16 %v5505, %v5503
      %v5626 = vpack.c.b16 %v5508, %v5506
      %v5627 = vpack.c.b16 %v5509, %v5507
      %v5628 = vpack.c.b16 %v5512, %v5510
      %v5629 = vpack.c.b16 %v5513, %v5511
      %v5630 = vpack.c.b16 %v5516, %v5514
      %v5631 = vpack.c.b16 %v5517, %v5515
      %v5632 = vpack.c.b16 %v5520, %v5518
      %v5633 = vpack.c.b16 %v5521, %v5519
      %v5634 = vpack.c.b16 %v5524, %v5522
      %v5635 = vpack.c.b16 %v5525, %v5523
      %v5636 = vpack.c.b16 %v5528, %v5526
      %v5637 = vpack.c.b16 %v5529, %v5527
      %v5638 = vpack.c.b16 %v5532, %v5530
      %v5639 = vpack.c.b16 %v5533, %v5531
      %v5640 = vpack.c.b16 %v5536, %v5534
      %v5641 = vpack.c.b16 %v5537, %v5535
      %v5642 = vpack.c.b16 %v5540, %v5538
      %v5643 = vpack.c.b16 %v5541, %v5539
      %v5644 = vpack.c.b16 %v5544, %v5542
      %v5645 = vpack.c.b16 %v5545, %v5543
      %v5646 = vpack.c.b16 %v5548, %v5546
      %v5647 = vpack.c.b16 %v5549, %v5547
      %v5648 = vpack.c.b16 %v5552, %v5550
      %v5649 = vpack.c.b16 %v5553, %v5551
      %v5650 = vpack.c.b16 %v5556, %v5554
      %v5651 = vpack.c.b16 %v5557, %v5555
      %v5652 = vpack.c.b16 %v5560, %v5558
      %v5653 = vpack.c.b16 %v5561, %v5559
      %v5654 = vpack.c.b16 %v5564, %v5562
      %v5655 = vpack.c.b16 %v5565, %v5563
      %v5656 = vpack.c.b16 %v5568, %v5566
      %v5657 = vpack.c.b16 %v5569, %v5567
      %v5658 = vpack.c.b16 %v5572, %v5570
      %v5659 = vpack.c.b16 %v5573, %v5571
      %v5660 = vpack.c.b16 %v5576, %v5574
      %v5661 = vpack.c.b16 %v5577, %v5575
      %v5662 = vpack.c.b16 %v5580, %v5578
      %v5663 = vpack.c.b16 %v5581, %v5579
      %v5664 = vpack.c.b16 %v5584, %v5582
      %v5665 = vpack.c.b16 %v5585, %v5583
      %v5666 = vpack.c.b16 %v5588, %v5586
      %v5667 = vpack.c.b16 %v5589, %v5587
      %v5668 = vpack.c.b16 %v5592, %v5590
      %v5669 = vpack.c.b16 %v5593, %v5591
      %v5670 = vpack.c.b16 %v5596, %v5594
      %v5671 = vpack.c.b16 %v5597, %v5595
      %v5672 = vpack.c.b16 %v5600, %v5598
      %v5673 = vpack.c.b16 %v5601, %v5599
      %v5674 = vpack.c.b16 %v5604, %v5602
      %v5675 = vpack.c.b16 %v5605, %v5603
      %v5676 = vpack.c.b16 %v5608, %v5606
      %v5677 = vpack.c.b16 %v5609, %v5607
      %v5678 = vpack.c.b16 %v5612, %v5610
      %v5679 = vpack.c.b16 %v5613, %v5611
      %v5680 = vpack.c.b16 %v5616, %v5614
      %v5681 = vpack.c.b16 %v5617, %v5615
      %5746 = vmatprep.subr.bf16.mxu0 %v5619
      %5747 = vmatpush1.bf16.msra.mxu0 %v5618
      %5748 = vmatprep.subr.bf16.mxu0 %v5621
      %5749 = vmatpush1.bf16.msra.mxu0 %v5620
      %5750 = vmatprep.subr.bf16.mxu0 %v5623
      %5751 = vmatpush1.bf16.msra.mxu0 %v5622
      %5752 = vmatprep.subr.bf16.mxu0 %v5625
      %5753 = vmatpush1.bf16.msra.mxu0 %v5624
      %5754 = vmatprep.subr.bf16.mxu0 %v5627
      %5755 = vmatpush1.bf16.msra.mxu0 %v5626
      %5756 = vmatprep.subr.bf16.mxu0 %v5629
      %5757 = vmatpush1.bf16.msra.mxu0 %v5628
      %5758 = vmatprep.subr.bf16.mxu0 %v5631
      %5759 = vmatpush1.bf16.msra.mxu0 %v5630
      %5760 = vmatprep.subr.bf16.mxu0 %v5633
      %5761 = vmatpush1.bf16.msra.mxu0 %v5632
      %5762 = vmatprep.subr.bf16.mxu0 %v5635
      %5763 = vmatpush1.bf16.msra.mxu0 %v5634
      %5764 = vmatprep.subr.bf16.mxu0 %v5637
      %5765 = vmatpush1.bf16.msra.mxu0 %v5636
      %5766 = vmatprep.subr.bf16.mxu0 %v5639
      %5767 = vmatpush1.bf16.msra.mxu0 %v5638
      %5768 = vmatprep.subr.bf16.mxu0 %v5641
      %5769 = vmatpush1.bf16.msra.mxu0 %v5640
      %5770 = vmatprep.subr.bf16.mxu0 %v5643
      %5771 = vmatpush1.bf16.msra.mxu0 %v5642
      %5772 = vmatprep.subr.bf16.mxu0 %v5645
      %5773 = vmatpush1.bf16.msra.mxu0 %v5644
      %5774 = vmatprep.subr.bf16.mxu0 %v5647
      %5775 = vmatpush1.bf16.msra.mxu0 %v5646
      %5776 = vmatprep.subr.bf16.mxu0 %v5649
      %5777 = vmatpush1.bf16.msra.mxu0 %v5648
      %5778 = vmatprep.mubr.bf16.mxu0 %v5270
      %5779 = vmatmul.mubr.bf16.gmra.mrb[0].mxu0 %v5238
      %v5780 = vpop.f32.mrb[0].mxu0
      %v5781 = vadd.f32 %v5419, %v5780
      %v5782 = vpop.f32.mrb[0].mxu0
      %v5783 = vadd.f32 %v5423, %v5782
      %v5784 = vpop.f32.mrb[0].mxu0
      %v5785 = vadd.f32 %v5419, %v5784
      %v5786 = vpop.f32.mrb[0].mxu0
      %v5787 = vadd.f32 %v5423, %v5786
      %5788 = vmatprep.mubr.bf16.mxu0 %v5271
      %5789 = vmatmul.mubr.bf16.gmra.mrb[0].mxu0 %v5239
      %v5790 = vpop.f32.mrb[0].mxu0
      %v5791 = vadd.f32 %v5419, %v5790
      %v5792 = vpop.f32.mrb[0].mxu0
      %v5793 = vadd.f32 %v5423, %v5792
      %v5794 = vpop.f32.mrb[0].mxu0
      %v5795 = vadd.f32 %v5419, %v5794
      %v5796 = vpop.f32.mrb[0].mxu0
      %v5797 = vadd.f32 %v5423, %v5796
      %5798 = vmatprep.mubr.bf16.mxu0 %v5272
      %5799 = vmatmul.mubr.bf16.gmra.mrb[0].mxu0 %v5240
      %v5800 = vpop.f32.mrb[0].mxu0
      %v5801 = vadd.f32 %v5419, %v5800
      %v5802 = vpop.f32.mrb[0].mxu0
      %v5803 = vadd.f32 %v5423, %v5802
      %v5804 = vpop.f32.mrb[0].mxu0
      %v5805 = vadd.f32 %v5419, %v5804
      %v5806 = vpop.f32.mrb[0].mxu0
      %v5807 = vadd.f32 %v5423, %v5806
      %5808 = vmatprep.mubr.bf16.mxu0 %v5273
      %5809 = vmatmul.mubr.bf16.gmra.mrb[0].mxu0 %v5241
      %v5810 = vpop.f32.mrb[0].mxu0
      %v5811 = vadd.f32 %v5419, %v5810
      %v5812 = vpop.f32.mrb[0].mxu0
      %v5813 = vadd.f32 %v5423, %v5812
      %v5814 = vpop.f32.mrb[0].mxu0
      %v5815 = vadd.f32 %v5419, %v5814
      %v5816 = vpop.f32.mrb[0].mxu0
      %v5817 = vadd.f32 %v5423, %v5816
      %5818 = vmatprep.mubr.bf16.mxu0 %v5274
      %5819 = vmatmul.mubr.bf16.gmra.mrb[0].mxu0 %v5242
      %v5820 = vpop.f32.mrb[0].mxu0
      %v5821 = vadd.f32 %v5419, %v5820
      %v5822 = vpop.f32.mrb[0].mxu0
      %v5823 = vadd.f32 %v5423, %v5822
      %v5824 = vpop.f32.mrb[0].mxu0
      %v5825 = vadd.f32 %v5419, %v5824
      %v5826 = vpop.f32.mrb[0].mxu0
      %v5827 = vadd.f32 %v5423, %v5826
      %5828 = vmatprep.mubr.bf16.mxu0 %v5275
      %5829 = vmatmul.mubr.bf16.gmra.mrb[0].mxu0 %v5243
      %v5830 = vpop.f32.mrb[0].mxu0
      %v5831 = vadd.f32 %v5419, %v5830
      %v5832 = vpop.f32.mrb[0].mxu0
      %v5833 = vadd.f32 %v5423, %v5832
      %v5834 = vpop.f32.mrb[0].mxu0
      %v5835 = vadd.f32 %v5419, %v5834
      %v5836 = vpop.f32.mrb[0].mxu0
      %v5837 = vadd.f32 %v5423, %v5836
      %5838 = vmatprep.mubr.bf16.mxu0 %v5276
      %5839 = vmatmul.mubr.bf16.gmra.mrb[0].mxu0 %v5244
      %v5840 = vpop.f32.mrb[0].mxu0
      %v5841 = vadd.f32 %v5419, %v5840
      %v5842 = vpop.f32.mrb[0].mxu0
      %v5843 = vadd.f32 %v5423, %v5842
      %v5844 = vpop.f32.mrb[0].mxu0
      %v5845 = vadd.f32 %v5419, %v5844
      %v5846 = vpop.f32.mrb[0].mxu0
      %v5847 = vadd.f32 %v5423, %v5846
      %5848 = vmatprep.mubr.bf16.mxu0 %v5277
      %5849 = vmatmul.mubr.bf16.gmra.mrb[0].mxu0 %v5245
      %v5850 = vpop.f32.mrb[0].mxu0
      %v5851 = vadd.f32 %v5419, %v5850
      %v5852 = vpop.f32.mrb[0].mxu0
      %v5853 = vadd.f32 %v5423, %v5852
      %v5854 = vpop.f32.mrb[0].mxu0
      %v5855 = vadd.f32 %v5419, %v5854
      %v5856 = vpop.f32.mrb[0].mxu0
      %v5857 = vadd.f32 %v5423, %v5856
      %5858 = vdwg.mxu0
      %5859 = vmatprep.subr.bf16.mxu0 %v5651
      %5860 = vmatpush1.bf16.msra.mxu0 %v5650
      %5861 = vmatprep.subr.bf16.mxu0 %v5653
      %5862 = vmatpush1.bf16.msra.mxu0 %v5652
      %5863 = vmatprep.subr.bf16.mxu0 %v5655
      %5864 = vmatpush1.bf16.msra.mxu0 %v5654
      %5865 = vmatprep.subr.bf16.mxu0 %v5657
      %5866 = vmatpush1.bf16.msra.mxu0 %v5656
      %5867 = vmatprep.subr.bf16.mxu0 %v5659
      %5868 = vmatpush1.bf16.msra.mxu0 %v5658
      %5869 = vmatprep.subr.bf16.mxu0 %v5661
      %5870 = vmatpush1.bf16.msra.mxu0 %v5660
      %5871 = vmatprep.subr.bf16.mxu0 %v5663
      %5872 = vmatpush1.bf16.msra.mxu0 %v5662
      %5873 = vmatprep.subr.bf16.mxu0 %v5665
      %5874 = vmatpush1.bf16.msra.mxu0 %v5664
      %5875 = vmatprep.subr.bf16.mxu0 %v5667
      %5876 = vmatpush1.bf16.msra.mxu0 %v5666
      %5877 = vmatprep.subr.bf16.mxu0 %v5669
      %5878 = vmatpush1.bf16.msra.mxu0 %v5668
      %5879 = vmatprep.subr.bf16.mxu0 %v5671
      %5880 = vmatpush1.bf16.msra.mxu0 %v5670
      %5881 = vmatprep.subr.bf16.mxu0 %v5673
      %5882 = vmatpush1.bf16.msra.mxu0 %v5672
      %5883 = vmatprep.subr.bf16.mxu0 %v5675
      %5884 = vmatpush1.bf16.msra.mxu0 %v5674
      %5885 = vmatprep.subr.bf16.mxu0 %v5677
      %5886 = vmatpush1.bf16.msra.mxu0 %v5676
      %5887 = vmatprep.subr.bf16.mxu0 %v5679
      %5888 = vmatpush1.bf16.msra.mxu0 %v5678
      %5889 = vmatprep.subr.bf16.mxu0 %v5681
      %5890 = vmatpush1.bf16.msra.mxu0 %v5680
      %5891 = vmatprep.mubr.bf16.mxu0 %v5334
      %5892 = vmatmul.mubr.bf16.gmra.mrb[0].mxu0 %v5302
      %v5893 = vpop.f32.mrb[0].mxu0
      %v5894 = vadd.f32 %v5781, %v5893
      %v5895 = vpop.f32.mrb[0].mxu0
      %v5896 = vadd.f32 %v5783, %v5895
      %v5897 = vpop.f32.mrb[0].mxu0
      %v5898 = vadd.f32 %v5785, %v5897
      %v5899 = vpop.f32.mrb[0].mxu0
      %v5900 = vadd.f32 %v5787, %v5899
      %5901 = vmatprep.mubr.bf16.mxu0 %v5335
      %5902 = vmatmul.mubr.bf16.gmra.mrb[0].mxu0 %v5303
      %v5903 = vpop.f32.mrb[0].mxu0
      %v5904 = vadd.f32 %v5791, %v5903
      %v5905 = vpop.f32.mrb[0].mxu0
      %v5906 = vadd.f32 %v5793, %v5905
      %v5907 = vpop.f32.mrb[0].mxu0
      %v5908 = vadd.f32 %v5795, %v5907
      %v5909 = vpop.f32.mrb[0].mxu0
      %v5910 = vadd.f32 %v5797, %v5909
      %5911 = vmatprep.mubr.bf16.mxu0 %v5336
      %5912 = vmatmul.mubr.bf16.gmra.mrb[0].mxu0 %v5304
      %v5913 = vpop.f32.mrb[0].mxu0
      %v5914 = vadd.f32 %v5801, %v5913
      %v5915 = vpop.f32.mrb[0].mxu0
      %v5916 = vadd.f32 %v5803, %v5915
      %v5917 = vpop.f32.mrb[0].mxu0
      %v5918 = vadd.f32 %v5805, %v5917
      %v5919 = vpop.f32.mrb[0].mxu0
      %v5920 = vadd.f32 %v5807, %v5919
      %5921 = vmatprep.mubr.bf16.mxu0 %v5337
      %5922 = vmatmul.mubr.bf16.gmra.mrb[0].mxu0 %v5305
      %v5923 = vpop.f32.mrb[0].mxu0
      %v5924 = vadd.f32 %v5811, %v5923
      %v5925 = vpop.f32.mrb[0].mxu0
      %v5926 = vadd.f32 %v5813, %v5925
      %v5927 = vpop.f32.mrb[0].mxu0
      %v5928 = vadd.f32 %v5815, %v5927
      %v5929 = vpop.f32.mrb[0].mxu0
      %v5930 = vadd.f32 %v5817, %v5929
      %5931 = vmatprep.mubr.bf16.mxu0 %v5338
      %5932 = vmatmul.mubr.bf16.gmra.mrb[0].mxu0 %v5306
      %v5933 = vpop.f32.mrb[0].mxu0
      %v5934 = vadd.f32 %v5821, %v5933
      %v5935 = vpop.f32.mrb[0].mxu0
      %v5936 = vadd.f32 %v5823, %v5935
      %v5937 = vpop.f32.mrb[0].mxu0
      %v5938 = vadd.f32 %v5825, %v5937
      %v5939 = vpop.f32.mrb[0].mxu0
      %v5940 = vadd.f32 %v5827, %v5939
      %5941 = vmatprep.mubr.bf16.mxu0 %v5339
      %5942 = vmatmul.mubr.bf16.gmra.mrb[0].mxu0 %v5307
      %v5943 = vpop.f32.mrb[0].mxu0
      %v5944 = vadd.f32 %v5831, %v5943
      %v5945 = vpop.f32.mrb[0].mxu0
      %v5946 = vadd.f32 %v5833, %v5945
      %v5947 = vpop.f32.mrb[0].mxu0
      %v5948 = vadd.f32 %v5835, %v5947
      %v5949 = vpop.f32.mrb[0].mxu0
      %v5950 = vadd.f32 %v5837, %v5949
      %5951 = vmatprep.mubr.bf16.mxu0 %v5340
      %5952 = vmatmul.mubr.bf16.gmra.mrb[0].mxu0 %v5308
      %v5953 = vpop.f32.mrb[0].mxu0
      %v5954 = vadd.f32 %v5841, %v5953
      %v5955 = vpop.f32.mrb[0].mxu0
      %v5956 = vadd.f32 %v5843, %v5955
      %v5957 = vpop.f32.mrb[0].mxu0
      %v5958 = vadd.f32 %v5845, %v5957
      %v5959 = vpop.f32.mrb[0].mxu0
      %v5960 = vadd.f32 %v5847, %v5959
      %5961 = vmatprep.mubr.bf16.mxu0 %v5341
      %5962 = vmatmul.mubr.bf16.gmra.mrb[0].mxu0 %v5309
      %v5963 = vpop.f32.mrb[0].mxu0
      %v5964 = vadd.f32 %v5851, %v5963
      %v5965 = vpop.f32.mrb[0].mxu0
      %v5966 = vadd.f32 %v5853, %v5965
      %v5967 = vpop.f32.mrb[0].mxu0
      %v5968 = vadd.f32 %v5855, %v5967
      %v5969 = vpop.f32.mrb[0].mxu0
      %v5970 = vadd.f32 %v5857, %v5969
      %5971 = vdwg.mxu0
      %vm5972 = vcmp.ge.f32.partialorder %v5894, 0.0
      %vm5973 = vcmp.ge.f32.partialorder %v5896, 0.0
      %vm5974 = vcmp.ge.f32.partialorder %v5898, 0.0
      %vm5975 = vcmp.ge.f32.partialorder %v5900, 0.0
      %vm5976 = vcmp.ge.f32.partialorder %v5904, 0.0
      %vm5977 = vcmp.ge.f32.partialorder %v5906, 0.0
      %vm5978 = vcmp.ge.f32.partialorder %v5908, 0.0
      %vm5979 = vcmp.ge.f32.partialorder %v5910, 0.0
      %vm5980 = vcmp.ge.f32.partialorder %v5914, 0.0
      %vm5981 = vcmp.ge.f32.partialorder %v5916, 0.0
      %vm5982 = vcmp.ge.f32.partialorder %v5918, 0.0
      %vm5983 = vcmp.ge.f32.partialorder %v5920, 0.0
      %vm5984 = vcmp.ge.f32.partialorder %v5924, 0.0
      %vm5985 = vcmp.ge.f32.partialorder %v5926, 0.0
      %vm5986 = vcmp.ge.f32.partialorder %v5928, 0.0
      %vm5987 = vcmp.ge.f32.partialorder %v5930, 0.0
      %vm5988 = vcmp.ge.f32.partialorder %v5934, 0.0
      %vm5989 = vcmp.ge.f32.partialorder %v5936, 0.0
      %vm5990 = vcmp.ge.f32.partialorder %v5938, 0.0
      %vm5991 = vcmp.ge.f32.partialorder %v5940, 0.0
      %vm5992 = vcmp.ge.f32.partialorder %v5944, 0.0
      %vm5993 = vcmp.ge.f32.partialorder %v5946, 0.0
      %vm5994 = vcmp.ge.f32.partialorder %v5948, 0.0
      %vm5995 = vcmp.ge.f32.partialorder %v5950, 0.0
      %vm5996 = vcmp.ge.f32.partialorder %v5954, 0.0
      %vm5997 = vcmp.ge.f32.partialorder %v5956, 0.0
      %vm5998 = vcmp.ge.f32.partialorder %v5958, 0.0
      %vm5999 = vcmp.ge.f32.partialorder %v5960, 0.0
      %vm6000 = vcmp.ge.f32.partialorder %v5964, 0.0
      %vm6001 = vcmp.ge.f32.partialorder %v5966, 0.0
      %vm6002 = vcmp.ge.f32.partialorder %v5968, 0.0
      %vm6003 = vcmp.ge.f32.partialorder %v5970, 0.0
      %v6004 = vmul.f32 %v5894, 0.01
      %v6005 = vmul.f32 %v5896, 0.01
      %v6006 = vmul.f32 %v5898, 0.01
      %v6007 = vmul.f32 %v5900, 0.01
      %v6008 = vmul.f32 %v5904, 0.01
      %v6009 = vmul.f32 %v5906, 0.01
      %v6010 = vmul.f32 %v5908, 0.01
      %v6011 = vmul.f32 %v5910, 0.01
      %v6012 = vmul.f32 %v5914, 0.01
      %v6013 = vmul.f32 %v5916, 0.01
      %v6014 = vmul.f32 %v5918, 0.01
      %v6015 = vmul.f32 %v5920, 0.01
      %v6016 = vmul.f32 %v5924, 0.01
      %v6017 = vmul.f32 %v5926, 0.01
      %v6018 = vmul.f32 %v5928, 0.01
      %v6019 = vmul.f32 %v5930, 0.01
      %v6020 = vmul.f32 %v5934, 0.01
      %v6021 = vmul.f32 %v5936, 0.01
      %v6022 = vmul.f32 %v5938, 0.01
      %v6023 = vmul.f32 %v5940, 0.01
      %v6024 = vmul.f32 %v5944, 0.01
      %v6025 = vmul.f32 %v5946, 0.01
      %v6026 = vmul.f32 %v5948, 0.01
      %v6027 = vmul.f32 %v5950, 0.01
      %v6028 = vmul.f32 %v5954, 0.01
      %v6029 = vmul.f32 %v5956, 0.01
      %v6030 = vmul.f32 %v5958, 0.01
      %v6031 = vmul.f32 %v5960, 0.01
      %v6032 = vmul.f32 %v5964, 0.01
      %v6033 = vmul.f32 %v5966, 0.01
      %v6034 = vmul.f32 %v5968, 0.01
      %v6035 = vmul.f32 %v5970, 0.01
      %v6036 = vsel %vm5972, %v5894, %v6004
      %v6037 = vsel %vm5973, %v5896, %v6005
      %v6038 = vsel %vm5974, %v5898, %v6006
      %v6039 = vsel %vm5975, %v5900, %v6007
      %v6040 = vsel %vm5976, %v5904, %v6008
      %v6041 = vsel %vm5977, %v5906, %v6009
      %v6042 = vsel %vm5978, %v5908, %v6010
      %v6043 = vsel %vm5979, %v5910, %v6011
      %v6044 = vsel %vm5980, %v5914, %v6012
      %v6045 = vsel %vm5981, %v5916, %v6013
      %v6046 = vsel %vm5982, %v5918, %v6014
      %v6047 = vsel %vm5983, %v5920, %v6015
      %v6048 = vsel %vm5984, %v5924, %v6016
      %v6049 = vsel %vm5985, %v5926, %v6017
      %v6050 = vsel %vm5986, %v5928, %v6018
      %v6051 = vsel %vm5987, %v5930, %v6019
      %v6052 = vsel %vm5988, %v5934, %v6020
      %v6053 = vsel %vm5989, %v5936, %v6021
      %v6054 = vsel %vm5990, %v5938, %v6022
      %v6055 = vsel %vm5991, %v5940, %v6023
      %v6056 = vsel %vm5992, %v5944, %v6024
      %v6057 = vsel %vm5993, %v5946, %v6025
      %v6058 = vsel %vm5994, %v5948, %v6026
      %v6059 = vsel %vm5995, %v5950, %v6027
      %v6060 = vsel %vm5996, %v5954, %v6028
      %v6061 = vsel %vm5997, %v5956, %v6029
      %v6062 = vsel %vm5998, %v5958, %v6030
      %v6063 = vsel %vm5999, %v5960, %v6031
      %v6064 = vsel %vm6000, %v5964, %v6032
      %v6065 = vsel %vm6001, %v5966, %v6033
      %v6066 = vsel %vm6002, %v5968, %v6034
      %v6067 = vsel %vm6003, %v5970, %v6035
      %v6068 = vpack.c.bf16 %v6036, %v6036
      %v6069 = vpack.c.bf16 %v6037, %v6037
      %v6070 = vpack.c.bf16 %v6038, %v6038
      %v6071 = vpack.c.bf16 %v6039, %v6039
      %v6072 = vpack.c.bf16 %v6040, %v6040
      %v6073 = vpack.c.bf16 %v6041, %v6041
      %v6074 = vpack.c.bf16 %v6042, %v6042
      %v6075 = vpack.c.bf16 %v6043, %v6043
      %v6076 = vpack.c.bf16 %v6044, %v6044
      %v6077 = vpack.c.bf16 %v6045, %v6045
      %v6078 = vpack.c.bf16 %v6046, %v6046
      %v6079 = vpack.c.bf16 %v6047, %v6047
      %v6080 = vpack.c.bf16 %v6048, %v6048
      %v6081 = vpack.c.bf16 %v6049, %v6049
      %v6082 = vpack.c.bf16 %v6050, %v6050
      %v6083 = vpack.c.bf16 %v6051, %v6051
      %v6084 = vpack.c.bf16 %v6052, %v6052
      %v6085 = vpack.c.bf16 %v6053, %v6053
      %v6086 = vpack.c.bf16 %v6054, %v6054
      %v6087 = vpack.c.bf16 %v6055, %v6055
      %v6088 = vpack.c.bf16 %v6056, %v6056
      %v6089 = vpack.c.bf16 %v6057, %v6057
      %v6090 = vpack.c.bf16 %v6058, %v6058
      %v6091 = vpack.c.bf16 %v6059, %v6059
      %v6092 = vpack.c.bf16 %v6060, %v6060
      %v6093 = vpack.c.bf16 %v6061, %v6061
      %v6094 = vpack.c.bf16 %v6062, %v6062
      %v6095 = vpack.c.bf16 %v6063, %v6063
      %v6096 = vpack.c.bf16 %v6064, %v6064
      %v6097 = vpack.c.bf16 %v6065, %v6065
      %v6098 = vpack.c.bf16 %v6066, %v6066
      %v6099 = vpack.c.bf16 %v6067, %v6067
      %v6132 = vunpack.c.l.b16 %v6068
      %v6133 = vunpack.c.l.b16 %v6069
      %v6134 = vunpack.c.l.b16 %v6070
      %v6135 = vunpack.c.l.b16 %v6071
      %v6136 = vunpack.c.l.b16 %v6072
      %v6137 = vunpack.c.l.b16 %v6073
      %v6138 = vunpack.c.l.b16 %v6074
      %v6139 = vunpack.c.l.b16 %v6075
      %v6140 = vunpack.c.l.b16 %v6076
      %v6141 = vunpack.c.l.b16 %v6077
      %v6142 = vunpack.c.l.b16 %v6078
      %v6143 = vunpack.c.l.b16 %v6079
      %v6144 = vunpack.c.l.b16 %v6080
      %v6145 = vunpack.c.l.b16 %v6081
      %v6146 = vunpack.c.l.b16 %v6082
      %v6147 = vunpack.c.l.b16 %v6083
      %v6148 = vunpack.c.l.b16 %v6084
      %v6149 = vunpack.c.l.b16 %v6085
      %v6150 = vunpack.c.l.b16 %v6086
      %v6151 = vunpack.c.l.b16 %v6087
      %v6152 = vunpack.c.l.b16 %v6088
      %v6153 = vunpack.c.l.b16 %v6089
      %v6154 = vunpack.c.l.b16 %v6090
      %v6155 = vunpack.c.l.b16 %v6091
      %v6156 = vunpack.c.l.b16 %v6092
      %v6157 = vunpack.c.l.b16 %v6093
      %v6158 = vunpack.c.l.b16 %v6094
      %v6159 = vunpack.c.l.b16 %v6095
      %v6160 = vunpack.c.l.b16 %v6096
      %v6161 = vunpack.c.l.b16 %v6097
      %v6162 = vunpack.c.l.b16 %v6098
      %v6163 = vunpack.c.l.b16 %v6099
      %v6164 = vpack.c.b16 %v6132, %v6132
      %v6165 = vpack.c.b16 %v6133, %v6133
      %v6166 = vpack.c.b16 %v6134, %v6134
      %v6167 = vpack.c.b16 %v6135, %v6135
      %v6168 = vpack.c.b16 %v6136, %v6136
      %v6169 = vpack.c.b16 %v6137, %v6137
      %v6170 = vpack.c.b16 %v6138, %v6138
      %v6171 = vpack.c.b16 %v6139, %v6139
      %v6172 = vpack.c.b16 %v6140, %v6140
      %v6173 = vpack.c.b16 %v6141, %v6141
      %v6174 = vpack.c.b16 %v6142, %v6142
      %v6175 = vpack.c.b16 %v6143, %v6143
      %v6176 = vpack.c.b16 %v6144, %v6144
      %v6177 = vpack.c.b16 %v6145, %v6145
      %v6178 = vpack.c.b16 %v6146, %v6146
      %v6179 = vpack.c.b16 %v6147, %v6147
      %v6180 = vpack.c.b16 %v6148, %v6148
      %v6181 = vpack.c.b16 %v6149, %v6149
      %v6182 = vpack.c.b16 %v6150, %v6150
      %v6183 = vpack.c.b16 %v6151, %v6151
      %v6184 = vpack.c.b16 %v6152, %v6152
      %v6185 = vpack.c.b16 %v6153, %v6153
      %v6186 = vpack.c.b16 %v6154, %v6154
      %v6187 = vpack.c.b16 %v6155, %v6155
      %v6188 = vpack.c.b16 %v6156, %v6156
      %v6189 = vpack.c.b16 %v6157, %v6157
      %v6190 = vpack.c.b16 %v6158, %v6158
      %v6191 = vpack.c.b16 %v6159, %v6159
      %v6192 = vpack.c.b16 %v6160, %v6160
      %v6193 = vpack.c.b16 %v6161, %v6161
      %v6194 = vpack.c.b16 %v6162, %v6162
      %v6195 = vpack.c.b16 %v6163, %v6163
      %v6197 = vshrl.u32 %v6164, 16
      %v6199 = vrot.slane %v6197, 7
      %v6200 = vshll.u32 %v6164, 16
      %v6202 = vor.u32 %v6199, %v6200
      %v6203 = vrot.slane %v6199, 4
      %v6205 = vshrl.u32 %v6165, 16
      %v6207 = vrot.slane %v6205, 7
      %v6208 = vshll.u32 %v6165, 16
      %v6210 = vor.u32 %v6207, %v6208
      %v6211 = vrot.slane %v6207, 4
      %v6213 = vshrl.u32 %v6166, 16
      %v6215 = vrot.slane %v6213, 7
      %v6216 = vshll.u32 %v6166, 16
      %v6218 = vor.u32 %v6215, %v6216
      %v6219 = vrot.slane %v6215, 4
      %v6221 = vshrl.u32 %v6167, 16
      %v6223 = vrot.slane %v6221, 7
      %v6224 = vshll.u32 %v6167, 16
      %v6226 = vor.u32 %v6223, %v6224
      %v6227 = vrot.slane %v6223, 4
      %v6229 = vshrl.u32 %v6168, 16
      %v6231 = vrot.slane %v6229, 7
      %v6232 = vshll.u32 %v6168, 16
      %v6234 = vor.u32 %v6231, %v6232
      %v6235 = vrot.slane %v6231, 4
      %v6237 = vshrl.u32 %v6169, 16
      %v6239 = vrot.slane %v6237, 7
      %v6240 = vshll.u32 %v6169, 16
      %v6242 = vor.u32 %v6239, %v6240
      %v6243 = vrot.slane %v6239, 4
      %v6245 = vshrl.u32 %v6170, 16
      %v6247 = vrot.slane %v6245, 7
      %v6248 = vshll.u32 %v6170, 16
      %v6250 = vor.u32 %v6247, %v6248
      %v6251 = vrot.slane %v6247, 4
      %v6253 = vshrl.u32 %v6171, 16
      %v6255 = vrot.slane %v6253, 7
      %v6256 = vshll.u32 %v6171, 16
      %v6258 = vor.u32 %v6255, %v6256
      %v6259 = vrot.slane %v6255, 4
      %v6261 = vshrl.u32 %v6172, 16
      %v6263 = vrot.slane %v6261, 7
      %v6264 = vshll.u32 %v6172, 16
      %v6266 = vor.u32 %v6263, %v6264
      %v6267 = vrot.slane %v6263, 4
      %v6269 = vshrl.u32 %v6173, 16
      %v6271 = vrot.slane %v6269, 7
      %v6272 = vshll.u32 %v6173, 16
      %v6274 = vor.u32 %v6271, %v6272
      %v6275 = vrot.slane %v6271, 4
      %v6277 = vshrl.u32 %v6174, 16
      %v6279 = vrot.slane %v6277, 7
      %v6280 = vshll.u32 %v6174, 16
      %v6282 = vor.u32 %v6279, %v6280
      %v6283 = vrot.slane %v6279, 4
      %v6285 = vshrl.u32 %v6175, 16
      %v6287 = vrot.slane %v6285, 7
      %v6288 = vshll.u32 %v6175, 16
      %v6290 = vor.u32 %v6287, %v6288
      %v6291 = vrot.slane %v6287, 4
      %v6293 = vshrl.u32 %v6176, 16
      %v6295 = vrot.slane %v6293, 7
      %v6296 = vshll.u32 %v6176, 16
      %v6298 = vor.u32 %v6295, %v6296
      %v6299 = vrot.slane %v6295, 4
      %v6301 = vshrl.u32 %v6177, 16
      %v6303 = vrot.slane %v6301, 7
      %v6304 = vshll.u32 %v6177, 16
      %v6306 = vor.u32 %v6303, %v6304
      %v6307 = vrot.slane %v6303, 4
      %v6309 = vshrl.u32 %v6178, 16
      %v6311 = vrot.slane %v6309, 7
      %v6312 = vshll.u32 %v6178, 16
      %v6314 = vor.u32 %v6311, %v6312
      %v6315 = vrot.slane %v6311, 4
      %v6317 = vshrl.u32 %v6179, 16
      %v6319 = vrot.slane %v6317, 7
      %v6320 = vshll.u32 %v6179, 16
      %v6322 = vor.u32 %v6319, %v6320
      %v6323 = vrot.slane %v6319, 4
      %v6325 = vshrl.u32 %v6180, 16
      %v6327 = vrot.slane %v6325, 7
      %v6328 = vshll.u32 %v6180, 16
      %v6330 = vor.u32 %v6327, %v6328
      %v6331 = vrot.slane %v6327, 4
      %v6333 = vshrl.u32 %v6181, 16
      %v6335 = vrot.slane %v6333, 7
      %v6336 = vshll.u32 %v6181, 16
      %v6338 = vor.u32 %v6335, %v6336
      %v6339 = vrot.slane %v6335, 4
      %v6341 = vshrl.u32 %v6182, 16
      %v6343 = vrot.slane %v6341, 7
      %v6344 = vshll.u32 %v6182, 16
      %v6346 = vor.u32 %v6343, %v6344
      %v6347 = vrot.slane %v6343, 4
      %v6349 = vshrl.u32 %v6183, 16
      %v6351 = vrot.slane %v6349, 7
      %v6352 = vshll.u32 %v6183, 16
      %v6354 = vor.u32 %v6351, %v6352
      %v6355 = vrot.slane %v6351, 4
      %v6357 = vshrl.u32 %v6184, 16
      %v6359 = vrot.slane %v6357, 7
      %v6360 = vshll.u32 %v6184, 16
      %v6362 = vor.u32 %v6359, %v6360
      %v6363 = vrot.slane %v6359, 4
      %v6365 = vshrl.u32 %v6185, 16
      %v6367 = vrot.slane %v6365, 7
      %v6368 = vshll.u32 %v6185, 16
      %v6370 = vor.u32 %v6367, %v6368
      %v6371 = vrot.slane %v6367, 4
      %v6373 = vshrl.u32 %v6186, 16
      %v6375 = vrot.slane %v6373, 7
      %v6376 = vshll.u32 %v6186, 16
      %v6378 = vor.u32 %v6375, %v6376
      %v6379 = vrot.slane %v6375, 4
      %v6381 = vshrl.u32 %v6187, 16
      %v6383 = vrot.slane %v6381, 7
      %v6384 = vshll.u32 %v6187, 16
      %v6386 = vor.u32 %v6383, %v6384
      %v6387 = vrot.slane %v6383, 4
      %v6389 = vshrl.u32 %v6188, 16
      %v6391 = vrot.slane %v6389, 7
      %v6392 = vshll.u32 %v6188, 16
      %v6394 = vor.u32 %v6391, %v6392
      %v6395 = vrot.slane %v6391, 4
      %v6397 = vshrl.u32 %v6189, 16
      %v6399 = vrot.slane %v6397, 7
      %v6400 = vshll.u32 %v6189, 16
      %v6402 = vor.u32 %v6399, %v6400
      %v6403 = vrot.slane %v6399, 4
      %v6405 = vshrl.u32 %v6190, 16
      %v6407 = vrot.slane %v6405, 7
      %v6408 = vshll.u32 %v6190, 16
      %v6410 = vor.u32 %v6407, %v6408
      %v6411 = vrot.slane %v6407, 4
      %v6413 = vshrl.u32 %v6191, 16
      %v6415 = vrot.slane %v6413, 7
      %v6416 = vshll.u32 %v6191, 16
      %v6418 = vor.u32 %v6415, %v6416
      %v6419 = vrot.slane %v6415, 4
      %v6421 = vshrl.u32 %v6192, 16
      %v6423 = vrot.slane %v6421, 7
      %v6424 = vshll.u32 %v6192, 16
      %v6426 = vor.u32 %v6423, %v6424
      %v6427 = vrot.slane %v6423, 4
      %v6429 = vshrl.u32 %v6193, 16
      %v6431 = vrot.slane %v6429, 7
      %v6432 = vshll.u32 %v6193, 16
      %v6434 = vor.u32 %v6431, %v6432
      %v6435 = vrot.slane %v6431, 4
      %v6437 = vshrl.u32 %v6194, 16
      %v6439 = vrot.slane %v6437, 7
      %v6440 = vshll.u32 %v6194, 16
      %v6442 = vor.u32 %v6439, %v6440
      %v6443 = vrot.slane %v6439, 4
      %v6445 = vshrl.u32 %v6195, 16
      %v6447 = vrot.slane %v6445, 7
      %v6448 = vshll.u32 %v6195, 16
      %v6450 = vor.u32 %v6447, %v6448
      %v6451 = vrot.slane %v6447, 4
      %s6516 = scalar_lea.vmem [#allocation4], 8
      %v6517 = vld [vmem:[%s6516] sm:$0xf]
      %v6518 = vsel %vm1373, %v6202, %v6517
      %6519 = vst [vmem:[%s6516] sm:$0xf] %v6518
      %v6520 = vld [vmem:[%s6516 + $0x4] sm:$0x1]
      %v6521 = vsel %vm341, %v6203, %v6520
      %6522 = vst [vmem:[%s6516 + $0x4] sm:$0x1] %v6521
      %v6523 = vld [vmem:[%s6516 + $0x8] sm:$0xf]
      %v6524 = vsel %vm1373, %v6210, %v6523
      %6525 = vst [vmem:[%s6516 + $0x8] sm:$0xf] %v6524
      %v6526 = vld [vmem:[%s6516 + $0xc] sm:$0x1]
      %v6527 = vsel %vm341, %v6211, %v6526
      %6528 = vst [vmem:[%s6516 + $0xc] sm:$0x1] %v6527
      %v6529 = vld [vmem:[%s6516 + $0x10] sm:$0xf]
      %v6530 = vsel %vm1373, %v6218, %v6529
      %6531 = vst [vmem:[%s6516 + $0x10] sm:$0xf] %v6530
      %v6532 = vld [vmem:[%s6516 + $0x14] sm:$0x1]
      %v6533 = vsel %vm341, %v6219, %v6532
      %6534 = vst [vmem:[%s6516 + $0x14] sm:$0x1] %v6533
      %v6535 = vld [vmem:[%s6516 + $0x18] sm:$0xf]
      %v6536 = vsel %vm1373, %v6226, %v6535
      %6537 = vst [vmem:[%s6516 + $0x18] sm:$0xf] %v6536
      %v6538 = vld [vmem:[%s6516 + $0x1c] sm:$0x1]
      %v6539 = vsel %vm341, %v6227, %v6538
      %6540 = vst [vmem:[%s6516 + $0x1c] sm:$0x1] %v6539
      %v6541 = vld [vmem:[%s6516 + $0x20] sm:$0xf]
      %v6542 = vsel %vm1373, %v6234, %v6541
      %6543 = vst [vmem:[%s6516 + $0x20] sm:$0xf] %v6542
      %v6544 = vld [vmem:[%s6516 + $0x24] sm:$0x1]
      %v6545 = vsel %vm341, %v6235, %v6544
      %6546 = vst [vmem:[%s6516 + $0x24] sm:$0x1] %v6545
      %v6547 = vld [vmem:[%s6516 + $0x28] sm:$0xf]
      %v6548 = vsel %vm1373, %v6242, %v6547
      %6549 = vst [vmem:[%s6516 + $0x28] sm:$0xf] %v6548
      %v6550 = vld [vmem:[%s6516 + $0x2c] sm:$0x1]
      %v6551 = vsel %vm341, %v6243, %v6550
      %6552 = vst [vmem:[%s6516 + $0x2c] sm:$0x1] %v6551
      %v6553 = vld [vmem:[%s6516 + $0x30] sm:$0xf]
      %v6554 = vsel %vm1373, %v6250, %v6553
      %6555 = vst [vmem:[%s6516 + $0x30] sm:$0xf] %v6554
      %v6556 = vld [vmem:[%s6516 + $0x34] sm:$0x1]
      %v6557 = vsel %vm341, %v6251, %v6556
      %6558 = vst [vmem:[%s6516 + $0x34] sm:$0x1] %v6557
      %v6559 = vld [vmem:[%s6516 + $0x38] sm:$0xf]
      %v6560 = vsel %vm1373, %v6258, %v6559
      %6561 = vst [vmem:[%s6516 + $0x38] sm:$0xf] %v6560
      %v6562 = vld [vmem:[%s6516 + $0x3c] sm:$0x1]
      %v6563 = vsel %vm341, %v6259, %v6562
      %6564 = vst [vmem:[%s6516 + $0x3c] sm:$0x1] %v6563
      %v6565 = vld [vmem:[%s6516 + $0x40] sm:$0xf]
      %v6566 = vsel %vm1373, %v6266, %v6565
      %6567 = vst [vmem:[%s6516 + $0x40] sm:$0xf] %v6566
      %v6568 = vld [vmem:[%s6516 + $0x44] sm:$0x1]
      %v6569 = vsel %vm341, %v6267, %v6568
      %6570 = vst [vmem:[%s6516 + $0x44] sm:$0x1] %v6569
      %v6571 = vld [vmem:[%s6516 + $0x48] sm:$0xf]
      %v6572 = vsel %vm1373, %v6274, %v6571
      %6573 = vst [vmem:[%s6516 + $0x48] sm:$0xf] %v6572
      %v6574 = vld [vmem:[%s6516 + $0x4c] sm:$0x1]
      %v6575 = vsel %vm341, %v6275, %v6574
      %6576 = vst [vmem:[%s6516 + $0x4c] sm:$0x1] %v6575
      %v6577 = vld [vmem:[%s6516 + $0x50] sm:$0xf]
      %v6578 = vsel %vm1373, %v6282, %v6577
      %6579 = vst [vmem:[%s6516 + $0x50] sm:$0xf] %v6578
      %v6580 = vld [vmem:[%s6516 + $0x54] sm:$0x1]
      %v6581 = vsel %vm341, %v6283, %v6580
      %6582 = vst [vmem:[%s6516 + $0x54] sm:$0x1] %v6581
      %v6583 = vld [vmem:[%s6516 + $0x58] sm:$0xf]
      %v6584 = vsel %vm1373, %v6290, %v6583
      %6585 = vst [vmem:[%s6516 + $0x58] sm:$0xf] %v6584
      %v6586 = vld [vmem:[%s6516 + $0x5c] sm:$0x1]
      %v6587 = vsel %vm341, %v6291, %v6586
      %6588 = vst [vmem:[%s6516 + $0x5c] sm:$0x1] %v6587
      %v6589 = vld [vmem:[%s6516 + $0x60] sm:$0xf]
      %v6590 = vsel %vm1373, %v6298, %v6589
      %6591 = vst [vmem:[%s6516 + $0x60] sm:$0xf] %v6590
      %v6592 = vld [vmem:[%s6516 + $0x64] sm:$0x1]
      %v6593 = vsel %vm341, %v6299, %v6592
      %6594 = vst [vmem:[%s6516 + $0x64] sm:$0x1] %v6593
      %v6595 = vld [vmem:[%s6516 + $0x68] sm:$0xf]
      %v6596 = vsel %vm1373, %v6306, %v6595
      %6597 = vst [vmem:[%s6516 + $0x68] sm:$0xf] %v6596
      %v6598 = vld [vmem:[%s6516 + $0x6c] sm:$0x1]
      %v6599 = vsel %vm341, %v6307, %v6598
      %6600 = vst [vmem:[%s6516 + $0x6c] sm:$0x1] %v6599
      %v6601 = vld [vmem:[%s6516 + $0x70] sm:$0xf]
      %v6602 = vsel %vm1373, %v6314, %v6601
      %6603 = vst [vmem:[%s6516 + $0x70] sm:$0xf] %v6602
      %v6604 = vld [vmem:[%s6516 + $0x74] sm:$0x1]
      %v6605 = vsel %vm341, %v6315, %v6604
      %6606 = vst [vmem:[%s6516 + $0x74] sm:$0x1] %v6605
      %v6607 = vld [vmem:[%s6516 + $0x78] sm:$0xf]
      %v6608 = vsel %vm1373, %v6322, %v6607
      %6609 = vst [vmem:[%s6516 + $0x78] sm:$0xf] %v6608
      %v6610 = vld [vmem:[%s6516 + $0x7c] sm:$0x1]
      %v6611 = vsel %vm341, %v6323, %v6610
      %6612 = vst [vmem:[%s6516 + $0x7c] sm:$0x1] %v6611
      %v6613 = vld [vmem:[%s6516 + $0x80] sm:$0xf]
      %v6614 = vsel %vm1373, %v6330, %v6613
      %6615 = vst [vmem:[%s6516 + $0x80] sm:$0xf] %v6614
      %v6616 = vld [vmem:[%s6516 + $0x84] sm:$0x1]
      %v6617 = vsel %vm341, %v6331, %v6616
      %6618 = vst [vmem:[%s6516 + $0x84] sm:$0x1] %v6617
      %v6619 = vld [vmem:[%s6516 + $0x88] sm:$0xf]
      %v6620 = vsel %vm1373, %v6338, %v6619
      %6621 = vst [vmem:[%s6516 + $0x88] sm:$0xf] %v6620
      %v6622 = vld [vmem:[%s6516 + $0x8c] sm:$0x1]
      %v6623 = vsel %vm341, %v6339, %v6622
      %6624 = vst [vmem:[%s6516 + $0x8c] sm:$0x1] %v6623
      %v6625 = vld [vmem:[%s6516 + $0x90] sm:$0xf]
      %v6626 = vsel %vm1373, %v6346, %v6625
      %6627 = vst [vmem:[%s6516 + $0x90] sm:$0xf] %v6626
      %v6628 = vld [vmem:[%s6516 + $0x94] sm:$0x1]
      %v6629 = vsel %vm341, %v6347, %v6628
      %6630 = vst [vmem:[%s6516 + $0x94] sm:$0x1] %v6629
      %v6631 = vld [vmem:[%s6516 + $0x98] sm:$0xf]
      %v6632 = vsel %vm1373, %v6354, %v6631
      %6633 = vst [vmem:[%s6516 + $0x98] sm:$0xf] %v6632
      %v6634 = vld [vmem:[%s6516 + $0x9c] sm:$0x1]
      %v6635 = vsel %vm341, %v6355, %v6634
      %6636 = vst [vmem:[%s6516 + $0x9c] sm:$0x1] %v6635
      %v6637 = vld [vmem:[%s6516 + $0xa0] sm:$0xf]
      %v6638 = vsel %vm1373, %v6362, %v6637
      %6639 = vst [vmem:[%s6516 + $0xa0] sm:$0xf] %v6638
      %v6640 = vld [vmem:[%s6516 + $0xa4] sm:$0x1]
      %v6641 = vsel %vm341, %v6363, %v6640
      %6642 = vst [vmem:[%s6516 + $0xa4] sm:$0x1] %v6641
      %v6643 = vld [vmem:[%s6516 + $0xa8] sm:$0xf]
      %v6644 = vsel %vm1373, %v6370, %v6643
      %6645 = vst [vmem:[%s6516 + $0xa8] sm:$0xf] %v6644
      %v6646 = vld [vmem:[%s6516 + $0xac] sm:$0x1]
      %v6647 = vsel %vm341, %v6371, %v6646
      %6648 = vst [vmem:[%s6516 + $0xac] sm:$0x1] %v6647
      %v6649 = vld [vmem:[%s6516 + $0xb0] sm:$0xf]
      %v6650 = vsel %vm1373, %v6378, %v6649
      %6651 = vst [vmem:[%s6516 + $0xb0] sm:$0xf] %v6650
      %v6652 = vld [vmem:[%s6516 + $0xb4] sm:$0x1]
      %v6653 = vsel %vm341, %v6379, %v6652
      %6654 = vst [vmem:[%s6516 + $0xb4] sm:$0x1] %v6653
      %v6655 = vld [vmem:[%s6516 + $0xb8] sm:$0xf]
      %v6656 = vsel %vm1373, %v6386, %v6655
      %6657 = vst [vmem:[%s6516 + $0xb8] sm:$0xf] %v6656
      %v6658 = vld [vmem:[%s6516 + $0xbc] sm:$0x1]
      %v6659 = vsel %vm341, %v6387, %v6658
      %6660 = vst [vmem:[%s6516 + $0xbc] sm:$0x1] %v6659
      %v6661 = vld [vmem:[%s6516 + $0xc0] sm:$0xf]
      %v6662 = vsel %vm1373, %v6394, %v6661
      %6663 = vst [vmem:[%s6516 + $0xc0] sm:$0xf] %v6662
      %v6664 = vld [vmem:[%s6516 + $0xc4] sm:$0x1]
      %v6665 = vsel %vm341, %v6395, %v6664
      %6666 = vst [vmem:[%s6516 + $0xc4] sm:$0x1] %v6665
      %v6667 = vld [vmem:[%s6516 + $0xc8] sm:$0xf]
      %v6668 = vsel %vm1373, %v6402, %v6667
      %6669 = vst [vmem:[%s6516 + $0xc8] sm:$0xf] %v6668
      %v6670 = vld [vmem:[%s6516 + $0xcc] sm:$0x1]
      %v6671 = vsel %vm341, %v6403, %v6670
      %6672 = vst [vmem:[%s6516 + $0xcc] sm:$0x1] %v6671
      %v6673 = vld [vmem:[%s6516 + $0xd0] sm:$0xf]
      %v6674 = vsel %vm1373, %v6410, %v6673
      %6675 = vst [vmem:[%s6516 + $0xd0] sm:$0xf] %v6674
      %v6676 = vld [vmem:[%s6516 + $0xd4] sm:$0x1]
      %v6677 = vsel %vm341, %v6411, %v6676
      %6678 = vst [vmem:[%s6516 + $0xd4] sm:$0x1] %v6677
      %v6679 = vld [vmem:[%s6516 + $0xd8] sm:$0xf]
      %v6680 = vsel %vm1373, %v6418, %v6679
      %6681 = vst [vmem:[%s6516 + $0xd8] sm:$0xf] %v6680
      %v6682 = vld [vmem:[%s6516 + $0xdc] sm:$0x1]
      %v6683 = vsel %vm341, %v6419, %v6682
      %6684 = vst [vmem:[%s6516 + $0xdc] sm:$0x1] %v6683
      %v6685 = vld [vmem:[%s6516 + $0xe0] sm:$0xf]
      %v6686 = vsel %vm1373, %v6426, %v6685
      %6687 = vst [vmem:[%s6516 + $0xe0] sm:$0xf] %v6686
      %v6688 = vld [vmem:[%s6516 + $0xe4] sm:$0x1]
      %v6689 = vsel %vm341, %v6427, %v6688
      %6690 = vst [vmem:[%s6516 + $0xe4] sm:$0x1] %v6689
      %v6691 = vld [vmem:[%s6516 + $0xe8] sm:$0xf]
      %v6692 = vsel %vm1373, %v6434, %v6691
      %6693 = vst [vmem:[%s6516 + $0xe8] sm:$0xf] %v6692
      %v6694 = vld [vmem:[%s6516 + $0xec] sm:$0x1]
      %v6695 = vsel %vm341, %v6435, %v6694
      %6696 = vst [vmem:[%s6516 + $0xec] sm:$0x1] %v6695
      %v6697 = vld [vmem:[%s6516 + $0xf0] sm:$0xf]
      %v6698 = vsel %vm1373, %v6442, %v6697
      %6699 = vst [vmem:[%s6516 + $0xf0] sm:$0xf] %v6698
      %v6700 = vld [vmem:[%s6516 + $0xf4] sm:$0x1]
      %v6701 = vsel %vm341, %v6443, %v6700
      %6702 = vst [vmem:[%s6516 + $0xf4] sm:$0x1] %v6701
      %v6703 = vld [vmem:[%s6516 + $0xf8] sm:$0xf]
      %v6704 = vsel %vm1373, %v6450, %v6703
      %6705 = vst [vmem:[%s6516 + $0xf8] sm:$0xf] %v6704
      %v6706 = vld [vmem:[%s6516 + $0xfc] sm:$0x1]
      %v6707 = vsel %vm341, %v6451, %v6706
      %6708 = vst [vmem:[%s6516 + $0xfc] sm:$0x1] %v6707
      %v6709 = vld [vmem:[%s6516] sm:$0xf]
      %v6710 = vld [vmem:[%s6516 + $0x4] sm:$0x1]
      %v6711 = vld [vmem:[%s6516 + $0x8] sm:$0xf]
      %v6712 = vld [vmem:[%s6516 + $0xc] sm:$0x1]
      %v6713 = vld [vmem:[%s6516 + $0x10] sm:$0xf]
      %v6714 = vld [vmem:[%s6516 + $0x14] sm:$0x1]
      %v6715 = vld [vmem:[%s6516 + $0x18] sm:$0xf]
      %v6716 = vld [vmem:[%s6516 + $0x1c] sm:$0x1]
      %v6717 = vld [vmem:[%s6516 + $0x20] sm:$0xf]
      %v6718 = vld [vmem:[%s6516 + $0x24] sm:$0x1]
      %v6719 = vld [vmem:[%s6516 + $0x28] sm:$0xf]
      %v6720 = vld [vmem:[%s6516 + $0x2c] sm:$0x1]
      %v6721 = vld [vmem:[%s6516 + $0x30] sm:$0xf]
      %v6722 = vld [vmem:[%s6516 + $0x34] sm:$0x1]
      %v6723 = vld [vmem:[%s6516 + $0x38] sm:$0xf]
      %v6724 = vld [vmem:[%s6516 + $0x3c] sm:$0x1]
      %v6725 = vld [vmem:[%s6516 + $0x40] sm:$0xf]
      %v6726 = vld [vmem:[%s6516 + $0x44] sm:$0x1]
      %v6727 = vld [vmem:[%s6516 + $0x48] sm:$0xf]
      %v6728 = vld [vmem:[%s6516 + $0x4c] sm:$0x1]
      %v6729 = vld [vmem:[%s6516 + $0x50] sm:$0xf]
      %v6730 = vld [vmem:[%s6516 + $0x54] sm:$0x1]
      %v6731 = vld [vmem:[%s6516 + $0x58] sm:$0xf]
      %v6732 = vld [vmem:[%s6516 + $0x5c] sm:$0x1]
      %v6733 = vld [vmem:[%s6516 + $0x60] sm:$0xf]
      %v6734 = vld [vmem:[%s6516 + $0x64] sm:$0x1]
      %v6735 = vld [vmem:[%s6516 + $0x68] sm:$0xf]
      %v6736 = vld [vmem:[%s6516 + $0x6c] sm:$0x1]
      %v6737 = vld [vmem:[%s6516 + $0x70] sm:$0xf]
      %v6738 = vld [vmem:[%s6516 + $0x74] sm:$0x1]
      %v6739 = vld [vmem:[%s6516 + $0x78] sm:$0xf]
      %v6740 = vld [vmem:[%s6516 + $0x7c] sm:$0x1]
      %v6741 = vld [vmem:[%s6516 + $0x80] sm:$0xf]
      %v6742 = vld [vmem:[%s6516 + $0x84] sm:$0x1]
      %v6743 = vld [vmem:[%s6516 + $0x88] sm:$0xf]
      %v6744 = vld [vmem:[%s6516 + $0x8c] sm:$0x1]
      %v6745 = vld [vmem:[%s6516 + $0x90] sm:$0xf]
      %v6746 = vld [vmem:[%s6516 + $0x94] sm:$0x1]
      %v6747 = vld [vmem:[%s6516 + $0x98] sm:$0xf]
      %v6748 = vld [vmem:[%s6516 + $0x9c] sm:$0x1]
      %v6749 = vld [vmem:[%s6516 + $0xa0] sm:$0xf]
      %v6750 = vld [vmem:[%s6516 + $0xa4] sm:$0x1]
      %v6751 = vld [vmem:[%s6516 + $0xa8] sm:$0xf]
      %v6752 = vld [vmem:[%s6516 + $0xac] sm:$0x1]
      %v6753 = vld [vmem:[%s6516 + $0xb0] sm:$0xf]
      %v6754 = vld [vmem:[%s6516 + $0xb4] sm:$0x1]
      %v6755 = vld [vmem:[%s6516 + $0xb8] sm:$0xf]
      %v6756 = vld [vmem:[%s6516 + $0xbc] sm:$0x1]
      %v6757 = vld [vmem:[%s6516 + $0xc0] sm:$0xf]
      %v6758 = vld [vmem:[%s6516 + $0xc4] sm:$0x1]
      %v6759 = vld [vmem:[%s6516 + $0xc8] sm:$0xf]
      %v6760 = vld [vmem:[%s6516 + $0xcc] sm:$0x1]
      %v6761 = vld [vmem:[%s6516 + $0xd0] sm:$0xf]
      %v6762 = vld [vmem:[%s6516 + $0xd4] sm:$0x1]
      %v6763 = vld [vmem:[%s6516 + $0xd8] sm:$0xf]
      %v6764 = vld [vmem:[%s6516 + $0xdc] sm:$0x1]
      %v6765 = vld [vmem:[%s6516 + $0xe0] sm:$0xf]
      %v6766 = vld [vmem:[%s6516 + $0xe4] sm:$0x1]
      %v6767 = vld [vmem:[%s6516 + $0xe8] sm:$0xf]
      %v6768 = vld [vmem:[%s6516 + $0xec] sm:$0x1]
      %v6769 = vld [vmem:[%s6516 + $0xf0] sm:$0xf]
      %v6770 = vld [vmem:[%s6516 + $0xf4] sm:$0x1]
      %v6771 = vld [vmem:[%s6516 + $0xf8] sm:$0xf]
      %v6772 = vld [vmem:[%s6516 + $0xfc] sm:$0x1]
      %v6774 = vshrl.u32 %v6709, 16
      %v6776 = vrot.slane %v6774, 4
      %v6777 = vshll.u32 %v6709, 16
      %v6779 = vrot.slane %v6777, 5
      %v6780 = vor.u32 %v6776, %v6779
      %v6781 = vrot.slane %v6780, 4
      %v6783 = vshll.u32 %v6710, 16
      %v6785 = vrot.slane %v6783, 5
      %v6786 = vsel %vm1504, %v6781, %v6785
      %v6788 = vshrl.u32 %v6711, 16
      %v6790 = vrot.slane %v6788, 4
      %v6791 = vshll.u32 %v6711, 16
      %v6793 = vrot.slane %v6791, 5
      %v6794 = vor.u32 %v6790, %v6793
      %v6795 = vrot.slane %v6794, 4
      %v6797 = vshll.u32 %v6712, 16
      %v6799 = vrot.slane %v6797, 5
      %v6800 = vsel %vm1504, %v6795, %v6799
      %v6802 = vshrl.u32 %v6713, 16
      %v6804 = vrot.slane %v6802, 4
      %v6805 = vshll.u32 %v6713, 16
      %v6807 = vrot.slane %v6805, 5
      %v6808 = vor.u32 %v6804, %v6807
      %v6809 = vrot.slane %v6808, 4
      %v6811 = vshll.u32 %v6714, 16
      %v6813 = vrot.slane %v6811, 5
      %v6814 = vsel %vm1504, %v6809, %v6813
      %v6816 = vshrl.u32 %v6715, 16
      %v6818 = vrot.slane %v6816, 4
      %v6819 = vshll.u32 %v6715, 16
      %v6821 = vrot.slane %v6819, 5
      %v6822 = vor.u32 %v6818, %v6821
      %v6823 = vrot.slane %v6822, 4
      %v6825 = vshll.u32 %v6716, 16
      %v6827 = vrot.slane %v6825, 5
      %v6828 = vsel %vm1504, %v6823, %v6827
      %v6830 = vshrl.u32 %v6717, 16
      %v6832 = vrot.slane %v6830, 4
      %v6833 = vshll.u32 %v6717, 16
      %v6835 = vrot.slane %v6833, 5
      %v6836 = vor.u32 %v6832, %v6835
      %v6837 = vrot.slane %v6836, 4
      %v6839 = vshll.u32 %v6718, 16
      %v6841 = vrot.slane %v6839, 5
      %v6842 = vsel %vm1504, %v6837, %v6841
      %v6844 = vshrl.u32 %v6719, 16
      %v6846 = vrot.slane %v6844, 4
      %v6847 = vshll.u32 %v6719, 16
      %v6849 = vrot.slane %v6847, 5
      %v6850 = vor.u32 %v6846, %v6849
      %v6851 = vrot.slane %v6850, 4
      %v6853 = vshll.u32 %v6720, 16
      %v6855 = vrot.slane %v6853, 5
      %v6856 = vsel %vm1504, %v6851, %v6855
      %v6858 = vshrl.u32 %v6721, 16
      %v6860 = vrot.slane %v6858, 4
      %v6861 = vshll.u32 %v6721, 16
      %v6863 = vrot.slane %v6861, 5
      %v6864 = vor.u32 %v6860, %v6863
      %v6865 = vrot.slane %v6864, 4
      %v6867 = vshll.u32 %v6722, 16
      %v6869 = vrot.slane %v6867, 5
      %v6870 = vsel %vm1504, %v6865, %v6869
      %v6872 = vshrl.u32 %v6723, 16
      %v6874 = vrot.slane %v6872, 4
      %v6875 = vshll.u32 %v6723, 16
      %v6877 = vrot.slane %v6875, 5
      %v6878 = vor.u32 %v6874, %v6877
      %v6879 = vrot.slane %v6878, 4
      %v6881 = vshll.u32 %v6724, 16
      %v6883 = vrot.slane %v6881, 5
      %v6884 = vsel %vm1504, %v6879, %v6883
      %v6886 = vshrl.u32 %v6725, 16
      %v6888 = vrot.slane %v6886, 4
      %v6889 = vshll.u32 %v6725, 16
      %v6891 = vrot.slane %v6889, 5
      %v6892 = vor.u32 %v6888, %v6891
      %v6893 = vrot.slane %v6892, 4
      %v6895 = vshll.u32 %v6726, 16
      %v6897 = vrot.slane %v6895, 5
      %v6898 = vsel %vm1504, %v6893, %v6897
      %v6900 = vshrl.u32 %v6727, 16
      %v6902 = vrot.slane %v6900, 4
      %v6903 = vshll.u32 %v6727, 16
      %v6905 = vrot.slane %v6903, 5
      %v6906 = vor.u32 %v6902, %v6905
      %v6907 = vrot.slane %v6906, 4
      %v6909 = vshll.u32 %v6728, 16
      %v6911 = vrot.slane %v6909, 5
      %v6912 = vsel %vm1504, %v6907, %v6911
      %v6914 = vshrl.u32 %v6729, 16
      %v6916 = vrot.slane %v6914, 4
      %v6917 = vshll.u32 %v6729, 16
      %v6919 = vrot.slane %v6917, 5
      %v6920 = vor.u32 %v6916, %v6919
      %v6921 = vrot.slane %v6920, 4
      %v6923 = vshll.u32 %v6730, 16
      %v6925 = vrot.slane %v6923, 5
      %v6926 = vsel %vm1504, %v6921, %v6925
      %v6928 = vshrl.u32 %v6731, 16
      %v6930 = vrot.slane %v6928, 4
      %v6931 = vshll.u32 %v6731, 16
      %v6933 = vrot.slane %v6931, 5
      %v6934 = vor.u32 %v6930, %v6933
      %v6935 = vrot.slane %v6934, 4
      %v6937 = vshll.u32 %v6732, 16
      %v6939 = vrot.slane %v6937, 5
      %v6940 = vsel %vm1504, %v6935, %v6939
      %v6942 = vshrl.u32 %v6733, 16
      %v6944 = vrot.slane %v6942, 4
      %v6945 = vshll.u32 %v6733, 16
      %v6947 = vrot.slane %v6945, 5
      %v6948 = vor.u32 %v6944, %v6947
      %v6949 = vrot.slane %v6948, 4
      %v6951 = vshll.u32 %v6734, 16
      %v6953 = vrot.slane %v6951, 5
      %v6954 = vsel %vm1504, %v6949, %v6953
      %v6956 = vshrl.u32 %v6735, 16
      %v6958 = vrot.slane %v6956, 4
      %v6959 = vshll.u32 %v6735, 16
      %v6961 = vrot.slane %v6959, 5
      %v6962 = vor.u32 %v6958, %v6961
      %v6963 = vrot.slane %v6962, 4
      %v6965 = vshll.u32 %v6736, 16
      %v6967 = vrot.slane %v6965, 5
      %v6968 = vsel %vm1504, %v6963, %v6967
      %v6970 = vshrl.u32 %v6737, 16
      %v6972 = vrot.slane %v6970, 4
      %v6973 = vshll.u32 %v6737, 16
      %v6975 = vrot.slane %v6973, 5
      %v6976 = vor.u32 %v6972, %v6975
      %v6977 = vrot.slane %v6976, 4
      %v6979 = vshll.u32 %v6738, 16
      %v6981 = vrot.slane %v6979, 5
      %v6982 = vsel %vm1504, %v6977, %v6981
      %v6984 = vshrl.u32 %v6739, 16
      %v6986 = vrot.slane %v6984, 4
      %v6987 = vshll.u32 %v6739, 16
      %v6989 = vrot.slane %v6987, 5
      %v6990 = vor.u32 %v6986, %v6989
      %v6991 = vrot.slane %v6990, 4
      %v6993 = vshll.u32 %v6740, 16
      %v6995 = vrot.slane %v6993, 5
      %v6996 = vsel %vm1504, %v6991, %v6995
      %v6998 = vshrl.u32 %v6741, 16
      %v7000 = vrot.slane %v6998, 4
      %v7001 = vshll.u32 %v6741, 16
      %v7003 = vrot.slane %v7001, 5
      %v7004 = vor.u32 %v7000, %v7003
      %v7005 = vrot.slane %v7004, 4
      %v7007 = vshll.u32 %v6742, 16
      %v7009 = vrot.slane %v7007, 5
      %v7010 = vsel %vm1504, %v7005, %v7009
      %v7012 = vshrl.u32 %v6743, 16
      %v7014 = vrot.slane %v7012, 4
      %v7015 = vshll.u32 %v6743, 16
      %v7017 = vrot.slane %v7015, 5
      %v7018 = vor.u32 %v7014, %v7017
      %v7019 = vrot.slane %v7018, 4
      %v7021 = vshll.u32 %v6744, 16
      %v7023 = vrot.slane %v7021, 5
      %v7024 = vsel %vm1504, %v7019, %v7023
      %v7026 = vshrl.u32 %v6745, 16
      %v7028 = vrot.slane %v7026, 4
      %v7029 = vshll.u32 %v6745, 16
      %v7031 = vrot.slane %v7029, 5
      %v7032 = vor.u32 %v7028, %v7031
      %v7033 = vrot.slane %v7032, 4
      %v7035 = vshll.u32 %v6746, 16
      %v7037 = vrot.slane %v7035, 5
      %v7038 = vsel %vm1504, %v7033, %v7037
      %v7040 = vshrl.u32 %v6747, 16
      %v7042 = vrot.slane %v7040, 4
      %v7043 = vshll.u32 %v6747, 16
      %v7045 = vrot.slane %v7043, 5
      %v7046 = vor.u32 %v7042, %v7045
      %v7047 = vrot.slane %v7046, 4
      %v7049 = vshll.u32 %v6748, 16
      %v7051 = vrot.slane %v7049, 5
      %v7052 = vsel %vm1504, %v7047, %v7051
      %v7054 = vshrl.u32 %v6749, 16
      %v7056 = vrot.slane %v7054, 4
      %v7057 = vshll.u32 %v6749, 16
      %v7059 = vrot.slane %v7057, 5
      %v7060 = vor.u32 %v7056, %v7059
      %v7061 = vrot.slane %v7060, 4
      %v7063 = vshll.u32 %v6750, 16
      %v7065 = vrot.slane %v7063, 5
      %v7066 = vsel %vm1504, %v7061, %v7065
      %v7068 = vshrl.u32 %v6751, 16
      %v7070 = vrot.slane %v7068, 4
      %v7071 = vshll.u32 %v6751, 16
      %v7073 = vrot.slane %v7071, 5
      %v7074 = vor.u32 %v7070, %v7073
      %v7075 = vrot.slane %v7074, 4
      %v7077 = vshll.u32 %v6752, 16
      %v7079 = vrot.slane %v7077, 5
      %v7080 = vsel %vm1504, %v7075, %v7079
      %v7082 = vshrl.u32 %v6753, 16
      %v7084 = vrot.slane %v7082, 4
      %v7085 = vshll.u32 %v6753, 16
      %v7087 = vrot.slane %v7085, 5
      %v7088 = vor.u32 %v7084, %v7087
      %v7089 = vrot.slane %v7088, 4
      %v7091 = vshll.u32 %v6754, 16
      %v7093 = vrot.slane %v7091, 5
      %v7094 = vsel %vm1504, %v7089, %v7093
      %v7096 = vshrl.u32 %v6755, 16
      %v7098 = vrot.slane %v7096, 4
      %v7099 = vshll.u32 %v6755, 16
      %v7101 = vrot.slane %v7099, 5
      %v7102 = vor.u32 %v7098, %v7101
      %v7103 = vrot.slane %v7102, 4
      %v7105 = vshll.u32 %v6756, 16
      %v7107 = vrot.slane %v7105, 5
      %v7108 = vsel %vm1504, %v7103, %v7107
      %v7110 = vshrl.u32 %v6757, 16
      %v7112 = vrot.slane %v7110, 4
      %v7113 = vshll.u32 %v6757, 16
      %v7115 = vrot.slane %v7113, 5
      %v7116 = vor.u32 %v7112, %v7115
      %v7117 = vrot.slane %v7116, 4
      %v7119 = vshll.u32 %v6758, 16
      %v7121 = vrot.slane %v7119, 5
      %v7122 = vsel %vm1504, %v7117, %v7121
      %v7124 = vshrl.u32 %v6759, 16
      %v7126 = vrot.slane %v7124, 4
      %v7127 = vshll.u32 %v6759, 16
      %v7129 = vrot.slane %v7127, 5
      %v7130 = vor.u32 %v7126, %v7129
      %v7131 = vrot.slane %v7130, 4
      %v7133 = vshll.u32 %v6760, 16
      %v7135 = vrot.slane %v7133, 5
      %v7136 = vsel %vm1504, %v7131, %v7135
      %v7138 = vshrl.u32 %v6761, 16
      %v7140 = vrot.slane %v7138, 4
      %v7141 = vshll.u32 %v6761, 16
      %v7143 = vrot.slane %v7141, 5
      %v7144 = vor.u32 %v7140, %v7143
      %v7145 = vrot.slane %v7144, 4
      %v7147 = vshll.u32 %v6762, 16
      %v7149 = vrot.slane %v7147, 5
      %v7150 = vsel %vm1504, %v7145, %v7149
      %v7152 = vshrl.u32 %v6763, 16
      %v7154 = vrot.slane %v7152, 4
      %v7155 = vshll.u32 %v6763, 16
      %v7157 = vrot.slane %v7155, 5
      %v7158 = vor.u32 %v7154, %v7157
      %v7159 = vrot.slane %v7158, 4
      %v7161 = vshll.u32 %v6764, 16
      %v7163 = vrot.slane %v7161, 5
      %v7164 = vsel %vm1504, %v7159, %v7163
      %v7166 = vshrl.u32 %v6765, 16
      %v7168 = vrot.slane %v7166, 4
      %v7169 = vshll.u32 %v6765, 16
      %v7171 = vrot.slane %v7169, 5
      %v7172 = vor.u32 %v7168, %v7171
      %v7173 = vrot.slane %v7172, 4
      %v7175 = vshll.u32 %v6766, 16
      %v7177 = vrot.slane %v7175, 5
      %v7178 = vsel %vm1504, %v7173, %v7177
      %v7180 = vshrl.u32 %v6767, 16
      %v7182 = vrot.slane %v7180, 4
      %v7183 = vshll.u32 %v6767, 16
      %v7185 = vrot.slane %v7183, 5
      %v7186 = vor.u32 %v7182, %v7185
      %v7187 = vrot.slane %v7186, 4
      %v7189 = vshll.u32 %v6768, 16
      %v7191 = vrot.slane %v7189, 5
      %v7192 = vsel %vm1504, %v7187, %v7191
      %v7194 = vshrl.u32 %v6769, 16
      %v7196 = vrot.slane %v7194, 4
      %v7197 = vshll.u32 %v6769, 16
      %v7199 = vrot.slane %v7197, 5
      %v7200 = vor.u32 %v7196, %v7199
      %v7201 = vrot.slane %v7200, 4
      %v7203 = vshll.u32 %v6770, 16
      %v7205 = vrot.slane %v7203, 5
      %v7206 = vsel %vm1504, %v7201, %v7205
      %v7208 = vshrl.u32 %v6771, 16
      %v7210 = vrot.slane %v7208, 4
      %v7211 = vshll.u32 %v6771, 16
      %v7213 = vrot.slane %v7211, 5
      %v7214 = vor.u32 %v7210, %v7213
      %v7215 = vrot.slane %v7214, 4
      %v7217 = vshll.u32 %v6772, 16
      %v7219 = vrot.slane %v7217, 5
      %v7220 = vsel %vm1504, %v7215, %v7219
      %v7221 = vld [vmem:[%s6516] sm:$0xe]
      %v7222 = vld [vmem:[%s6516 + $0x8] sm:$0xe]
      %v7223 = vld [vmem:[%s6516 + $0x10] sm:$0xe]
      %v7224 = vld [vmem:[%s6516 + $0x18] sm:$0xe]
      %v7225 = vld [vmem:[%s6516 + $0x20] sm:$0xe]
      %v7226 = vld [vmem:[%s6516 + $0x28] sm:$0xe]
      %v7227 = vld [vmem:[%s6516 + $0x30] sm:$0xe]
      %v7228 = vld [vmem:[%s6516 + $0x38] sm:$0xe]
      %v7229 = vld [vmem:[%s6516 + $0x40] sm:$0xe]
      %v7230 = vld [vmem:[%s6516 + $0x48] sm:$0xe]
      %v7231 = vld [vmem:[%s6516 + $0x50] sm:$0xe]
      %v7232 = vld [vmem:[%s6516 + $0x58] sm:$0xe]
      %v7233 = vld [vmem:[%s6516 + $0x60] sm:$0xe]
      %v7234 = vld [vmem:[%s6516 + $0x68] sm:$0xe]
      %v7235 = vld [vmem:[%s6516 + $0x70] sm:$0xe]
      %v7236 = vld [vmem:[%s6516 + $0x78] sm:$0xe]
      %v7237 = vld [vmem:[%s6516 + $0x80] sm:$0xe]
      %v7238 = vld [vmem:[%s6516 + $0x88] sm:$0xe]
      %v7239 = vld [vmem:[%s6516 + $0x90] sm:$0xe]
      %v7240 = vld [vmem:[%s6516 + $0x98] sm:$0xe]
      %v7241 = vld [vmem:[%s6516 + $0xa0] sm:$0xe]
      %v7242 = vld [vmem:[%s6516 + $0xa8] sm:$0xe]
      %v7243 = vld [vmem:[%s6516 + $0xb0] sm:$0xe]
      %v7244 = vld [vmem:[%s6516 + $0xb8] sm:$0xe]
      %v7245 = vld [vmem:[%s6516 + $0xc0] sm:$0xe]
      %v7246 = vld [vmem:[%s6516 + $0xc8] sm:$0xe]
      %v7247 = vld [vmem:[%s6516 + $0xd0] sm:$0xe]
      %v7248 = vld [vmem:[%s6516 + $0xd8] sm:$0xe]
      %v7249 = vld [vmem:[%s6516 + $0xe0] sm:$0xe]
      %v7250 = vld [vmem:[%s6516 + $0xe8] sm:$0xe]
      %v7251 = vld [vmem:[%s6516 + $0xf0] sm:$0xe]
      %v7252 = vld [vmem:[%s6516 + $0xf8] sm:$0xe]
      %v7317 = vrot.slane %v7221, 5
      %v7318 = vrot.slane %v7317, 4
      %v7319 = vrot.slane %v6710, 5
      %v7320 = vsel %vm1779, %v7318, %v7319
      %v7321 = vrot.slane %v7222, 5
      %v7322 = vrot.slane %v7321, 4
      %v7323 = vrot.slane %v6712, 5
      %v7324 = vsel %vm1779, %v7322, %v7323
      %v7325 = vrot.slane %v7223, 5
      %v7326 = vrot.slane %v7325, 4
      %v7327 = vrot.slane %v6714, 5
      %v7328 = vsel %vm1779, %v7326, %v7327
      %v7329 = vrot.slane %v7224, 5
      %v7330 = vrot.slane %v7329, 4
      %v7331 = vrot.slane %v6716, 5
      %v7332 = vsel %vm1779, %v7330, %v7331
      %v7333 = vrot.slane %v7225, 5
      %v7334 = vrot.slane %v7333, 4
      %v7335 = vrot.slane %v6718, 5
      %v7336 = vsel %vm1779, %v7334, %v7335
      %v7337 = vrot.slane %v7226, 5
      %v7338 = vrot.slane %v7337, 4
      %v7339 = vrot.slane %v6720, 5
      %v7340 = vsel %vm1779, %v7338, %v7339
      %v7341 = vrot.slane %v7227, 5
      %v7342 = vrot.slane %v7341, 4
      %v7343 = vrot.slane %v6722, 5
      %v7344 = vsel %vm1779, %v7342, %v7343
      %v7345 = vrot.slane %v7228, 5
      %v7346 = vrot.slane %v7345, 4
      %v7347 = vrot.slane %v6724, 5
      %v7348 = vsel %vm1779, %v7346, %v7347
      %v7349 = vrot.slane %v7229, 5
      %v7350 = vrot.slane %v7349, 4
      %v7351 = vrot.slane %v6726, 5
      %v7352 = vsel %vm1779, %v7350, %v7351
      %v7353 = vrot.slane %v7230, 5
      %v7354 = vrot.slane %v7353, 4
      %v7355 = vrot.slane %v6728, 5
      %v7356 = vsel %vm1779, %v7354, %v7355
      %v7357 = vrot.slane %v7231, 5
      %v7358 = vrot.slane %v7357, 4
      %v7359 = vrot.slane %v6730, 5
      %v7360 = vsel %vm1779, %v7358, %v7359
      %v7361 = vrot.slane %v7232, 5
      %v7362 = vrot.slane %v7361, 4
      %v7363 = vrot.slane %v6732, 5
      %v7364 = vsel %vm1779, %v7362, %v7363
      %v7365 = vrot.slane %v7233, 5
      %v7366 = vrot.slane %v7365, 4
      %v7367 = vrot.slane %v6734, 5
      %v7368 = vsel %vm1779, %v7366, %v7367
      %v7369 = vrot.slane %v7234, 5
      %v7370 = vrot.slane %v7369, 4
      %v7371 = vrot.slane %v6736, 5
      %v7372 = vsel %vm1779, %v7370, %v7371
      %v7373 = vrot.slane %v7235, 5
      %v7374 = vrot.slane %v7373, 4
      %v7375 = vrot.slane %v6738, 5
      %v7376 = vsel %vm1779, %v7374, %v7375
      %v7377 = vrot.slane %v7236, 5
      %v7378 = vrot.slane %v7377, 4
      %v7379 = vrot.slane %v6740, 5
      %v7380 = vsel %vm1779, %v7378, %v7379
      %v7381 = vrot.slane %v7237, 5
      %v7382 = vrot.slane %v7381, 4
      %v7383 = vrot.slane %v6742, 5
      %v7384 = vsel %vm1779, %v7382, %v7383
      %v7385 = vrot.slane %v7238, 5
      %v7386 = vrot.slane %v7385, 4
      %v7387 = vrot.slane %v6744, 5
      %v7388 = vsel %vm1779, %v7386, %v7387
      %v7389 = vrot.slane %v7239, 5
      %v7390 = vrot.slane %v7389, 4
      %v7391 = vrot.slane %v6746, 5
      %v7392 = vsel %vm1779, %v7390, %v7391
      %v7393 = vrot.slane %v7240, 5
      %v7394 = vrot.slane %v7393, 4
      %v7395 = vrot.slane %v6748, 5
      %v7396 = vsel %vm1779, %v7394, %v7395
      %v7397 = vrot.slane %v7241, 5
      %v7398 = vrot.slane %v7397, 4
      %v7399 = vrot.slane %v6750, 5
      %v7400 = vsel %vm1779, %v7398, %v7399
      %v7401 = vrot.slane %v7242, 5
      %v7402 = vrot.slane %v7401, 4
      %v7403 = vrot.slane %v6752, 5
      %v7404 = vsel %vm1779, %v7402, %v7403
      %v7405 = vrot.slane %v7243, 5
      %v7406 = vrot.slane %v7405, 4
      %v7407 = vrot.slane %v6754, 5
      %v7408 = vsel %vm1779, %v7406, %v7407
      %v7409 = vrot.slane %v7244, 5
      %v7410 = vrot.slane %v7409, 4
      %v7411 = vrot.slane %v6756, 5
      %v7412 = vsel %vm1779, %v7410, %v7411
      %v7413 = vrot.slane %v7245, 5
      %v7414 = vrot.slane %v7413, 4
      %v7415 = vrot.slane %v6758, 5
      %v7416 = vsel %vm1779, %v7414, %v7415
      %v7417 = vrot.slane %v7246, 5
      %v7418 = vrot.slane %v7417, 4
      %v7419 = vrot.slane %v6760, 5
      %v7420 = vsel %vm1779, %v7418, %v7419
      %v7421 = vrot.slane %v7247, 5
      %v7422 = vrot.slane %v7421, 4
      %v7423 = vrot.slane %v6762, 5
      %v7424 = vsel %vm1779, %v7422, %v7423
      %v7425 = vrot.slane %v7248, 5
      %v7426 = vrot.slane %v7425, 4
      %v7427 = vrot.slane %v6764, 5
      %v7428 = vsel %vm1779, %v7426, %v7427
      %v7429 = vrot.slane %v7249, 5
      %v7430 = vrot.slane %v7429, 4
      %v7431 = vrot.slane %v6766, 5
      %v7432 = vsel %vm1779, %v7430, %v7431
      %v7433 = vrot.slane %v7250, 5
      %v7434 = vrot.slane %v7433, 4
      %v7435 = vrot.slane %v6768, 5
      %v7436 = vsel %vm1779, %v7434, %v7435
      %v7437 = vrot.slane %v7251, 5
      %v7438 = vrot.slane %v7437, 4
      %v7439 = vrot.slane %v6770, 5
      %v7440 = vsel %vm1779, %v7438, %v7439
      %v7441 = vrot.slane %v7252, 5
      %v7442 = vrot.slane %v7441, 4
      %v7443 = vrot.slane %v6772, 5
      %v7444 = vsel %vm1779, %v7442, %v7443
      %s7445 = scalar_lea.vmem [#allocation4], 16
      %v7446 = vld [vmem:[%s7445] sm:$0xf]
      %v7447 = vld [vmem:[%s7445 + $0x4] sm:$0x1]
      %v7448 = vld [vmem:[%s7445 + $0x8] sm:$0xf]
      %v7449 = vld [vmem:[%s7445 + $0xc] sm:$0x1]
      %v7450 = vld [vmem:[%s7445 + $0x10] sm:$0xf]
      %v7451 = vld [vmem:[%s7445 + $0x14] sm:$0x1]
      %v7452 = vld [vmem:[%s7445 + $0x18] sm:$0xf]
      %v7453 = vld [vmem:[%s7445 + $0x1c] sm:$0x1]
      %v7454 = vld [vmem:[%s7445 + $0x20] sm:$0xf]
      %v7455 = vld [vmem:[%s7445 + $0x24] sm:$0x1]
      %v7456 = vld [vmem:[%s7445 + $0x28] sm:$0xf]
      %v7457 = vld [vmem:[%s7445 + $0x2c] sm:$0x1]
      %v7458 = vld [vmem:[%s7445 + $0x30] sm:$0xf]
      %v7459 = vld [vmem:[%s7445 + $0x34] sm:$0x1]
      %v7460 = vld [vmem:[%s7445 + $0x38] sm:$0xf]
      %v7461 = vld [vmem:[%s7445 + $0x3c] sm:$0x1]
      %v7462 = vld [vmem:[%s7445 + $0x40] sm:$0xf]
      %v7463 = vld [vmem:[%s7445 + $0x44] sm:$0x1]
      %v7464 = vld [vmem:[%s7445 + $0x48] sm:$0xf]
      %v7465 = vld [vmem:[%s7445 + $0x4c] sm:$0x1]
      %v7466 = vld [vmem:[%s7445 + $0x50] sm:$0xf]
      %v7467 = vld [vmem:[%s7445 + $0x54] sm:$0x1]
      %v7468 = vld [vmem:[%s7445 + $0x58] sm:$0xf]
      %v7469 = vld [vmem:[%s7445 + $0x5c] sm:$0x1]
      %v7470 = vld [vmem:[%s7445 + $0x60] sm:$0xf]
      %v7471 = vld [vmem:[%s7445 + $0x64] sm:$0x1]
      %v7472 = vld [vmem:[%s7445 + $0x68] sm:$0xf]
      %v7473 = vld [vmem:[%s7445 + $0x6c] sm:$0x1]
      %v7474 = vld [vmem:[%s7445 + $0x70] sm:$0xf]
      %v7475 = vld [vmem:[%s7445 + $0x74] sm:$0x1]
      %v7476 = vld [vmem:[%s7445 + $0x78] sm:$0xf]
      %v7477 = vld [vmem:[%s7445 + $0x7c] sm:$0x1]
      %v7478 = vld [vmem:[%s7445 + $0x80] sm:$0xf]
      %v7479 = vld [vmem:[%s7445 + $0x84] sm:$0x1]
      %v7480 = vld [vmem:[%s7445 + $0x88] sm:$0xf]
      %v7481 = vld [vmem:[%s7445 + $0x8c] sm:$0x1]
      %v7482 = vld [vmem:[%s7445 + $0x90] sm:$0xf]
      %v7483 = vld [vmem:[%s7445 + $0x94] sm:$0x1]
      %v7484 = vld [vmem:[%s7445 + $0x98] sm:$0xf]
      %v7485 = vld [vmem:[%s7445 + $0x9c] sm:$0x1]
      %v7486 = vld [vmem:[%s7445 + $0xa0] sm:$0xf]
      %v7487 = vld [vmem:[%s7445 + $0xa4] sm:$0x1]
      %v7488 = vld [vmem:[%s7445 + $0xa8] sm:$0xf]
      %v7489 = vld [vmem:[%s7445 + $0xac] sm:$0x1]
      %v7490 = vld [vmem:[%s7445 + $0xb0] sm:$0xf]
      %v7491 = vld [vmem:[%s7445 + $0xb4] sm:$0x1]
      %v7492 = vld [vmem:[%s7445 + $0xb8] sm:$0xf]
      %v7493 = vld [vmem:[%s7445 + $0xbc] sm:$0x1]
      %v7494 = vld [vmem:[%s7445 + $0xc0] sm:$0xf]
      %v7495 = vld [vmem:[%s7445 + $0xc4] sm:$0x1]
      %v7496 = vld [vmem:[%s7445 + $0xc8] sm:$0xf]
      %v7497 = vld [vmem:[%s7445 + $0xcc] sm:$0x1]
      %v7498 = vld [vmem:[%s7445 + $0xd0] sm:$0xf]
      %v7499 = vld [vmem:[%s7445 + $0xd4] sm:$0x1]
      %v7500 = vld [vmem:[%s7445 + $0xd8] sm:$0xf]
      %v7501 = vld [vmem:[%s7445 + $0xdc] sm:$0x1]
      %v7502 = vld [vmem:[%s7445 + $0xe0] sm:$0xf]
      %v7503 = vld [vmem:[%s7445 + $0xe4] sm:$0x1]
      %v7504 = vld [vmem:[%s7445 + $0xe8] sm:$0xf]
      %v7505 = vld [vmem:[%s7445 + $0xec] sm:$0x1]
      %v7506 = vld [vmem:[%s7445 + $0xf0] sm:$0xf]
      %v7507 = vld [vmem:[%s7445 + $0xf4] sm:$0x1]
      %v7508 = vld [vmem:[%s7445 + $0xf8] sm:$0xf]
      %v7509 = vld [vmem:[%s7445 + $0xfc] sm:$0x1]
      %v7511 = vshrl.u32 %v7446, 16
      %v7513 = vrot.slane %v7511, 4
      %v7514 = vshll.u32 %v7446, 16
      %v7516 = vrot.slane %v7514, 5
      %v7517 = vor.u32 %v7513, %v7516
      %v7518 = vrot.slane %v7517, 4
      %v7520 = vshll.u32 %v7447, 16
      %v7522 = vrot.slane %v7520, 5
      %v7523 = vsel %vm1504, %v7518, %v7522
      %v7525 = vshrl.u32 %v7448, 16
      %v7527 = vrot.slane %v7525, 4
      %v7528 = vshll.u32 %v7448, 16
      %v7530 = vrot.slane %v7528, 5
      %v7531 = vor.u32 %v7527, %v7530
      %v7532 = vrot.slane %v7531, 4
      %v7534 = vshll.u32 %v7449, 16
      %v7536 = vrot.slane %v7534, 5
      %v7537 = vsel %vm1504, %v7532, %v7536
      %v7539 = vshrl.u32 %v7450, 16
      %v7541 = vrot.slane %v7539, 4
      %v7542 = vshll.u32 %v7450, 16
      %v7544 = vrot.slane %v7542, 5
      %v7545 = vor.u32 %v7541, %v7544
      %v7546 = vrot.slane %v7545, 4
      %v7548 = vshll.u32 %v7451, 16
      %v7550 = vrot.slane %v7548, 5
      %v7551 = vsel %vm1504, %v7546, %v7550
      %v7553 = vshrl.u32 %v7452, 16
      %v7555 = vrot.slane %v7553, 4
      %v7556 = vshll.u32 %v7452, 16
      %v7558 = vrot.slane %v7556, 5
      %v7559 = vor.u32 %v7555, %v7558
      %v7560 = vrot.slane %v7559, 4
      %v7562 = vshll.u32 %v7453, 16
      %v7564 = vrot.slane %v7562, 5
      %v7565 = vsel %vm1504, %v7560, %v7564
      %v7567 = vshrl.u32 %v7454, 16
      %v7569 = vrot.slane %v7567, 4
      %v7570 = vshll.u32 %v7454, 16
      %v7572 = vrot.slane %v7570, 5
      %v7573 = vor.u32 %v7569, %v7572
      %v7574 = vrot.slane %v7573, 4
      %v7576 = vshll.u32 %v7455, 16
      %v7578 = vrot.slane %v7576, 5
      %v7579 = vsel %vm1504, %v7574, %v7578
      %v7581 = vshrl.u32 %v7456, 16
      %v7583 = vrot.slane %v7581, 4
      %v7584 = vshll.u32 %v7456, 16
      %v7586 = vrot.slane %v7584, 5
      %v7587 = vor.u32 %v7583, %v7586
      %v7588 = vrot.slane %v7587, 4
      %v7590 = vshll.u32 %v7457, 16
      %v7592 = vrot.slane %v7590, 5
      %v7593 = vsel %vm1504, %v7588, %v7592
      %v7595 = vshrl.u32 %v7458, 16
      %v7597 = vrot.slane %v7595, 4
      %v7598 = vshll.u32 %v7458, 16
      %v7600 = vrot.slane %v7598, 5
      %v7601 = vor.u32 %v7597, %v7600
      %v7602 = vrot.slane %v7601, 4
      %v7604 = vshll.u32 %v7459, 16
      %v7606 = vrot.slane %v7604, 5
      %v7607 = vsel %vm1504, %v7602, %v7606
      %v7609 = vshrl.u32 %v7460, 16
      %v7611 = vrot.slane %v7609, 4
      %v7612 = vshll.u32 %v7460, 16
      %v7614 = vrot.slane %v7612, 5
      %v7615 = vor.u32 %v7611, %v7614
      %v7616 = vrot.slane %v7615, 4
      %v7618 = vshll.u32 %v7461, 16
      %v7620 = vrot.slane %v7618, 5
      %v7621 = vsel %vm1504, %v7616, %v7620
      %v7623 = vshrl.u32 %v7462, 16
      %v7625 = vrot.slane %v7623, 4
      %v7626 = vshll.u32 %v7462, 16
      %v7628 = vrot.slane %v7626, 5
      %v7629 = vor.u32 %v7625, %v7628
      %v7630 = vrot.slane %v7629, 4
      %v7632 = vshll.u32 %v7463, 16
      %v7634 = vrot.slane %v7632, 5
      %v7635 = vsel %vm1504, %v7630, %v7634
      %v7637 = vshrl.u32 %v7464, 16
      %v7639 = vrot.slane %v7637, 4
      %v7640 = vshll.u32 %v7464, 16
      %v7642 = vrot.slane %v7640, 5
      %v7643 = vor.u32 %v7639, %v7642
      %v7644 = vrot.slane %v7643, 4
      %v7646 = vshll.u32 %v7465, 16
      %v7648 = vrot.slane %v7646, 5
      %v7649 = vsel %vm1504, %v7644, %v7648
      %v7651 = vshrl.u32 %v7466, 16
      %v7653 = vrot.slane %v7651, 4
      %v7654 = vshll.u32 %v7466, 16
      %v7656 = vrot.slane %v7654, 5
      %v7657 = vor.u32 %v7653, %v7656
      %v7658 = vrot.slane %v7657, 4
      %v7660 = vshll.u32 %v7467, 16
      %v7662 = vrot.slane %v7660, 5
      %v7663 = vsel %vm1504, %v7658, %v7662
      %v7665 = vshrl.u32 %v7468, 16
      %v7667 = vrot.slane %v7665, 4
      %v7668 = vshll.u32 %v7468, 16
      %v7670 = vrot.slane %v7668, 5
      %v7671 = vor.u32 %v7667, %v7670
      %v7672 = vrot.slane %v7671, 4
      %v7674 = vshll.u32 %v7469, 16
      %v7676 = vrot.slane %v7674, 5
      %v7677 = vsel %vm1504, %v7672, %v7676
      %v7679 = vshrl.u32 %v7470, 16
      %v7681 = vrot.slane %v7679, 4
      %v7682 = vshll.u32 %v7470, 16
      %v7684 = vrot.slane %v7682, 5
      %v7685 = vor.u32 %v7681, %v7684
      %v7686 = vrot.slane %v7685, 4
      %v7688 = vshll.u32 %v7471, 16
      %v7690 = vrot.slane %v7688, 5
      %v7691 = vsel %vm1504, %v7686, %v7690
      %v7693 = vshrl.u32 %v7472, 16
      %v7695 = vrot.slane %v7693, 4
      %v7696 = vshll.u32 %v7472, 16
      %v7698 = vrot.slane %v7696, 5
      %v7699 = vor.u32 %v7695, %v7698
      %v7700 = vrot.slane %v7699, 4
      %v7702 = vshll.u32 %v7473, 16
      %v7704 = vrot.slane %v7702, 5
      %v7705 = vsel %vm1504, %v7700, %v7704
      %v7707 = vshrl.u32 %v7474, 16
      %v7709 = vrot.slane %v7707, 4
      %v7710 = vshll.u32 %v7474, 16
      %v7712 = vrot.slane %v7710, 5
      %v7713 = vor.u32 %v7709, %v7712
      %v7714 = vrot.slane %v7713, 4
      %v7716 = vshll.u32 %v7475, 16
      %v7718 = vrot.slane %v7716, 5
      %v7719 = vsel %vm1504, %v7714, %v7718
      %v7721 = vshrl.u32 %v7476, 16
      %v7723 = vrot.slane %v7721, 4
      %v7724 = vshll.u32 %v7476, 16
      %v7726 = vrot.slane %v7724, 5
      %v7727 = vor.u32 %v7723, %v7726
      %v7728 = vrot.slane %v7727, 4
      %v7730 = vshll.u32 %v7477, 16
      %v7732 = vrot.slane %v7730, 5
      %v7733 = vsel %vm1504, %v7728, %v7732
      %v7735 = vshrl.u32 %v7478, 16
      %v7737 = vrot.slane %v7735, 4
      %v7738 = vshll.u32 %v7478, 16
      %v7740 = vrot.slane %v7738, 5
      %v7741 = vor.u32 %v7737, %v7740
      %v7742 = vrot.slane %v7741, 4
      %v7744 = vshll.u32 %v7479, 16
      %v7746 = vrot.slane %v7744, 5
      %v7747 = vsel %vm1504, %v7742, %v7746
      %v7749 = vshrl.u32 %v7480, 16
      %v7751 = vrot.slane %v7749, 4
      %v7752 = vshll.u32 %v7480, 16
      %v7754 = vrot.slane %v7752, 5
      %v7755 = vor.u32 %v7751, %v7754
      %v7756 = vrot.slane %v7755, 4
      %v7758 = vshll.u32 %v7481, 16
      %v7760 = vrot.slane %v7758, 5
      %v7761 = vsel %vm1504, %v7756, %v7760
      %v7763 = vshrl.u32 %v7482, 16
      %v7765 = vrot.slane %v7763, 4
      %v7766 = vshll.u32 %v7482, 16
      %v7768 = vrot.slane %v7766, 5
      %v7769 = vor.u32 %v7765, %v7768
      %v7770 = vrot.slane %v7769, 4
      %v7772 = vshll.u32 %v7483, 16
      %v7774 = vrot.slane %v7772, 5
      %v7775 = vsel %vm1504, %v7770, %v7774
      %v7777 = vshrl.u32 %v7484, 16
      %v7779 = vrot.slane %v7777, 4
      %v7780 = vshll.u32 %v7484, 16
      %v7782 = vrot.slane %v7780, 5
      %v7783 = vor.u32 %v7779, %v7782
      %v7784 = vrot.slane %v7783, 4
      %v7786 = vshll.u32 %v7485, 16
      %v7788 = vrot.slane %v7786, 5
      %v7789 = vsel %vm1504, %v7784, %v7788
      %v7791 = vshrl.u32 %v7486, 16
      %v7793 = vrot.slane %v7791, 4
      %v7794 = vshll.u32 %v7486, 16
      %v7796 = vrot.slane %v7794, 5
      %v7797 = vor.u32 %v7793, %v7796
      %v7798 = vrot.slane %v7797, 4
      %v7800 = vshll.u32 %v7487, 16
      %v7802 = vrot.slane %v7800, 5
      %v7803 = vsel %vm1504, %v7798, %v7802
      %v7805 = vshrl.u32 %v7488, 16
      %v7807 = vrot.slane %v7805, 4
      %v7808 = vshll.u32 %v7488, 16
      %v7810 = vrot.slane %v7808, 5
      %v7811 = vor.u32 %v7807, %v7810
      %v7812 = vrot.slane %v7811, 4
      %v7814 = vshll.u32 %v7489, 16
      %v7816 = vrot.slane %v7814, 5
      %v7817 = vsel %vm1504, %v7812, %v7816
      %v7819 = vshrl.u32 %v7490, 16
      %v7821 = vrot.slane %v7819, 4
      %v7822 = vshll.u32 %v7490, 16
      %v7824 = vrot.slane %v7822, 5
      %v7825 = vor.u32 %v7821, %v7824
      %v7826 = vrot.slane %v7825, 4
      %v7828 = vshll.u32 %v7491, 16
      %v7830 = vrot.slane %v7828, 5
      %v7831 = vsel %vm1504, %v7826, %v7830
      %v7833 = vshrl.u32 %v7492, 16
      %v7835 = vrot.slane %v7833, 4
      %v7836 = vshll.u32 %v7492, 16
      %v7838 = vrot.slane %v7836, 5
      %v7839 = vor.u32 %v7835, %v7838
      %v7840 = vrot.slane %v7839, 4
      %v7842 = vshll.u32 %v7493, 16
      %v7844 = vrot.slane %v7842, 5
      %v7845 = vsel %vm1504, %v7840, %v7844
      %v7847 = vshrl.u32 %v7494, 16
      %v7849 = vrot.slane %v7847, 4
      %v7850 = vshll.u32 %v7494, 16
      %v7852 = vrot.slane %v7850, 5
      %v7853 = vor.u32 %v7849, %v7852
      %v7854 = vrot.slane %v7853, 4
      %v7856 = vshll.u32 %v7495, 16
      %v7858 = vrot.slane %v7856, 5
      %v7859 = vsel %vm1504, %v7854, %v7858
      %v7861 = vshrl.u32 %v7496, 16
      %v7863 = vrot.slane %v7861, 4
      %v7864 = vshll.u32 %v7496, 16
      %v7866 = vrot.slane %v7864, 5
      %v7867 = vor.u32 %v7863, %v7866
      %v7868 = vrot.slane %v7867, 4
      %v7870 = vshll.u32 %v7497, 16
      %v7872 = vrot.slane %v7870, 5
      %v7873 = vsel %vm1504, %v7868, %v7872
      %v7875 = vshrl.u32 %v7498, 16
      %v7877 = vrot.slane %v7875, 4
      %v7878 = vshll.u32 %v7498, 16
      %v7880 = vrot.slane %v7878, 5
      %v7881 = vor.u32 %v7877, %v7880
      %v7882 = vrot.slane %v7881, 4
      %v7884 = vshll.u32 %v7499, 16
      %v7886 = vrot.slane %v7884, 5
      %v7887 = vsel %vm1504, %v7882, %v7886
      %v7889 = vshrl.u32 %v7500, 16
      %v7891 = vrot.slane %v7889, 4
      %v7892 = vshll.u32 %v7500, 16
      %v7894 = vrot.slane %v7892, 5
      %v7895 = vor.u32 %v7891, %v7894
      %v7896 = vrot.slane %v7895, 4
      %v7898 = vshll.u32 %v7501, 16
      %v7900 = vrot.slane %v7898, 5
      %v7901 = vsel %vm1504, %v7896, %v7900
      %v7903 = vshrl.u32 %v7502, 16
      %v7905 = vrot.slane %v7903, 4
      %v7906 = vshll.u32 %v7502, 16
      %v7908 = vrot.slane %v7906, 5
      %v7909 = vor.u32 %v7905, %v7908
      %v7910 = vrot.slane %v7909, 4
      %v7912 = vshll.u32 %v7503, 16
      %v7914 = vrot.slane %v7912, 5
      %v7915 = vsel %vm1504, %v7910, %v7914
      %v7917 = vshrl.u32 %v7504, 16
      %v7919 = vrot.slane %v7917, 4
      %v7920 = vshll.u32 %v7504, 16
      %v7922 = vrot.slane %v7920, 5
      %v7923 = vor.u32 %v7919, %v7922
      %v7924 = vrot.slane %v7923, 4
      %v7926 = vshll.u32 %v7505, 16
      %v7928 = vrot.slane %v7926, 5
      %v7929 = vsel %vm1504, %v7924, %v7928
      %v7931 = vshrl.u32 %v7506, 16
      %v7933 = vrot.slane %v7931, 4
      %v7934 = vshll.u32 %v7506, 16
      %v7936 = vrot.slane %v7934, 5
      %v7937 = vor.u32 %v7933, %v7936
      %v7938 = vrot.slane %v7937, 4
      %v7940 = vshll.u32 %v7507, 16
      %v7942 = vrot.slane %v7940, 5
      %v7943 = vsel %vm1504, %v7938, %v7942
      %v7945 = vshrl.u32 %v7508, 16
      %v7947 = vrot.slane %v7945, 4
      %v7948 = vshll.u32 %v7508, 16
      %v7950 = vrot.slane %v7948, 5
      %v7951 = vor.u32 %v7947, %v7950
      %v7952 = vrot.slane %v7951, 4
      %v7954 = vshll.u32 %v7509, 16
      %v7956 = vrot.slane %v7954, 5
      %v7957 = vsel %vm1504, %v7952, %v7956
      %v7958 = vld [vmem:[%s7445] sm:$0xe]
      %v7959 = vld [vmem:[%s7445 + $0x8] sm:$0xe]
      %v7960 = vld [vmem:[%s7445 + $0x10] sm:$0xe]
      %v7961 = vld [vmem:[%s7445 + $0x18] sm:$0xe]
      %v7962 = vld [vmem:[%s7445 + $0x20] sm:$0xe]
      %v7963 = vld [vmem:[%s7445 + $0x28] sm:$0xe]
      %v7964 = vld [vmem:[%s7445 + $0x30] sm:$0xe]
      %v7965 = vld [vmem:[%s7445 + $0x38] sm:$0xe]
      %v7966 = vld [vmem:[%s7445 + $0x40] sm:$0xe]
      %v7967 = vld [vmem:[%s7445 + $0x48] sm:$0xe]
      %v7968 = vld [vmem:[%s7445 + $0x50] sm:$0xe]
      %v7969 = vld [vmem:[%s7445 + $0x58] sm:$0xe]
      %v7970 = vld [vmem:[%s7445 + $0x60] sm:$0xe]
      %v7971 = vld [vmem:[%s7445 + $0x68] sm:$0xe]
      %v7972 = vld [vmem:[%s7445 + $0x70] sm:$0xe]
      %v7973 = vld [vmem:[%s7445 + $0x78] sm:$0xe]
      %v7974 = vld [vmem:[%s7445 + $0x80] sm:$0xe]
      %v7975 = vld [vmem:[%s7445 + $0x88] sm:$0xe]
      %v7976 = vld [vmem:[%s7445 + $0x90] sm:$0xe]
      %v7977 = vld [vmem:[%s7445 + $0x98] sm:$0xe]
      %v7978 = vld [vmem:[%s7445 + $0xa0] sm:$0xe]
      %v7979 = vld [vmem:[%s7445 + $0xa8] sm:$0xe]
      %v7980 = vld [vmem:[%s7445 + $0xb0] sm:$0xe]
      %v7981 = vld [vmem:[%s7445 + $0xb8] sm:$0xe]
      %v7982 = vld [vmem:[%s7445 + $0xc0] sm:$0xe]
      %v7983 = vld [vmem:[%s7445 + $0xc8] sm:$0xe]
      %v7984 = vld [vmem:[%s7445 + $0xd0] sm:$0xe]
      %v7985 = vld [vmem:[%s7445 + $0xd8] sm:$0xe]
      %v7986 = vld [vmem:[%s7445 + $0xe0] sm:$0xe]
      %v7987 = vld [vmem:[%s7445 + $0xe8] sm:$0xe]
      %v7988 = vld [vmem:[%s7445 + $0xf0] sm:$0xe]
      %v7989 = vld [vmem:[%s7445 + $0xf8] sm:$0xe]
      %v8054 = vrot.slane %v7958, 5
      %v8055 = vrot.slane %v8054, 4
      %v8056 = vrot.slane %v7447, 5
      %v8057 = vsel %vm1779, %v8055, %v8056
      %v8058 = vrot.slane %v7959, 5
      %v8059 = vrot.slane %v8058, 4
      %v8060 = vrot.slane %v7449, 5
      %v8061 = vsel %vm1779, %v8059, %v8060
      %v8062 = vrot.slane %v7960, 5
      %v8063 = vrot.slane %v8062, 4
      %v8064 = vrot.slane %v7451, 5
      %v8065 = vsel %vm1779, %v8063, %v8064
      %v8066 = vrot.slane %v7961, 5
      %v8067 = vrot.slane %v8066, 4
      %v8068 = vrot.slane %v7453, 5
      %v8069 = vsel %vm1779, %v8067, %v8068
      %v8070 = vrot.slane %v7962, 5
      %v8071 = vrot.slane %v8070, 4
      %v8072 = vrot.slane %v7455, 5
      %v8073 = vsel %vm1779, %v8071, %v8072
      %v8074 = vrot.slane %v7963, 5
      %v8075 = vrot.slane %v8074, 4
      %v8076 = vrot.slane %v7457, 5
      %v8077 = vsel %vm1779, %v8075, %v8076
      %v8078 = vrot.slane %v7964, 5
      %v8079 = vrot.slane %v8078, 4
      %v8080 = vrot.slane %v7459, 5
      %v8081 = vsel %vm1779, %v8079, %v8080
      %v8082 = vrot.slane %v7965, 5
      %v8083 = vrot.slane %v8082, 4
      %v8084 = vrot.slane %v7461, 5
      %v8085 = vsel %vm1779, %v8083, %v8084
      %v8086 = vrot.slane %v7966, 5
      %v8087 = vrot.slane %v8086, 4
      %v8088 = vrot.slane %v7463, 5
      %v8089 = vsel %vm1779, %v8087, %v8088
      %v8090 = vrot.slane %v7967, 5
      %v8091 = vrot.slane %v8090, 4
      %v8092 = vrot.slane %v7465, 5
      %v8093 = vsel %vm1779, %v8091, %v8092
      %v8094 = vrot.slane %v7968, 5
      %v8095 = vrot.slane %v8094, 4
      %v8096 = vrot.slane %v7467, 5
      %v8097 = vsel %vm1779, %v8095, %v8096
      %v8098 = vrot.slane %v7969, 5
      %v8099 = vrot.slane %v8098, 4
      %v8100 = vrot.slane %v7469, 5
      %v8101 = vsel %vm1779, %v8099, %v8100
      %v8102 = vrot.slane %v7970, 5
      %v8103 = vrot.slane %v8102, 4
      %v8104 = vrot.slane %v7471, 5
      %v8105 = vsel %vm1779, %v8103, %v8104
      %v8106 = vrot.slane %v7971, 5
      %v8107 = vrot.slane %v8106, 4
      %v8108 = vrot.slane %v7473, 5
      %v8109 = vsel %vm1779, %v8107, %v8108
      %v8110 = vrot.slane %v7972, 5
      %v8111 = vrot.slane %v8110, 4
      %v8112 = vrot.slane %v7475, 5
      %v8113 = vsel %vm1779, %v8111, %v8112
      %v8114 = vrot.slane %v7973, 5
      %v8115 = vrot.slane %v8114, 4
      %v8116 = vrot.slane %v7477, 5
      %v8117 = vsel %vm1779, %v8115, %v8116
      %v8118 = vrot.slane %v7974, 5
      %v8119 = vrot.slane %v8118, 4
      %v8120 = vrot.slane %v7479, 5
      %v8121 = vsel %vm1779, %v8119, %v8120
      %v8122 = vrot.slane %v7975, 5
      %v8123 = vrot.slane %v8122, 4
      %v8124 = vrot.slane %v7481, 5
      %v8125 = vsel %vm1779, %v8123, %v8124
      %v8126 = vrot.slane %v7976, 5
      %v8127 = vrot.slane %v8126, 4
      %v8128 = vrot.slane %v7483, 5
      %v8129 = vsel %vm1779, %v8127, %v8128
      %v8130 = vrot.slane %v7977, 5
      %v8131 = vrot.slane %v8130, 4
      %v8132 = vrot.slane %v7485, 5
      %v8133 = vsel %vm1779, %v8131, %v8132
      %v8134 = vrot.slane %v7978, 5
      %v8135 = vrot.slane %v8134, 4
      %v8136 = vrot.slane %v7487, 5
      %v8137 = vsel %vm1779, %v8135, %v8136
      %v8138 = vrot.slane %v7979, 5
      %v8139 = vrot.slane %v8138, 4
      %v8140 = vrot.slane %v7489, 5
      %v8141 = vsel %vm1779, %v8139, %v8140
      %v8142 = vrot.slane %v7980, 5
      %v8143 = vrot.slane %v8142, 4
      %v8144 = vrot.slane %v7491, 5
      %v8145 = vsel %vm1779, %v8143, %v8144
      %v8146 = vrot.slane %v7981, 5
      %v8147 = vrot.slane %v8146, 4
      %v8148 = vrot.slane %v7493, 5
      %v8149 = vsel %vm1779, %v8147, %v8148
      %v8150 = vrot.slane %v7982, 5
      %v8151 = vrot.slane %v8150, 4
      %v8152 = vrot.slane %v7495, 5
      %v8153 = vsel %vm1779, %v8151, %v8152
      %v8154 = vrot.slane %v7983, 5
      %v8155 = vrot.slane %v8154, 4
      %v8156 = vrot.slane %v7497, 5
      %v8157 = vsel %vm1779, %v8155, %v8156
      %v8158 = vrot.slane %v7984, 5
      %v8159 = vrot.slane %v8158, 4
      %v8160 = vrot.slane %v7499, 5
      %v8161 = vsel %vm1779, %v8159, %v8160
      %v8162 = vrot.slane %v7985, 5
      %v8163 = vrot.slane %v8162, 4
      %v8164 = vrot.slane %v7501, 5
      %v8165 = vsel %vm1779, %v8163, %v8164
      %v8166 = vrot.slane %v7986, 5
      %v8167 = vrot.slane %v8166, 4
      %v8168 = vrot.slane %v7503, 5
      %v8169 = vsel %vm1779, %v8167, %v8168
      %v8170 = vrot.slane %v7987, 5
      %v8171 = vrot.slane %v8170, 4
      %v8172 = vrot.slane %v7505, 5
      %v8173 = vsel %vm1779, %v8171, %v8172
      %v8174 = vrot.slane %v7988, 5
      %v8175 = vrot.slane %v8174, 4
      %v8176 = vrot.slane %v7507, 5
      %v8177 = vsel %vm1779, %v8175, %v8176
      %v8178 = vrot.slane %v7989, 5
      %v8179 = vrot.slane %v8178, 4
      %v8180 = vrot.slane %v7509, 5
      %v8181 = vsel %vm1779, %v8179, %v8180
      %v8182 = vunpack.c.l.b16 %v6786
      %v8183 = vunpack.c.l.b16 %v6800
      %v8184 = vunpack.c.l.b16 %v6814
      %v8185 = vunpack.c.l.b16 %v6828
      %v8186 = vunpack.c.l.b16 %v6842
      %v8187 = vunpack.c.l.b16 %v6856
      %v8188 = vunpack.c.l.b16 %v6870
      %v8189 = vunpack.c.l.b16 %v6884
      %v8190 = vunpack.c.l.b16 %v6898
      %v8191 = vunpack.c.l.b16 %v6912
      %v8192 = vunpack.c.l.b16 %v6926
      %v8193 = vunpack.c.l.b16 %v6940
      %v8194 = vunpack.c.l.b16 %v6954
      %v8195 = vunpack.c.l.b16 %v6968
      %v8196 = vunpack.c.l.b16 %v6982
      %v8197 = vunpack.c.l.b16 %v6996
      %v8198 = vunpack.c.l.b16 %v7010
      %v8199 = vunpack.c.l.b16 %v7024
      %v8200 = vunpack.c.l.b16 %v7038
      %v8201 = vunpack.c.l.b16 %v7052
      %v8202 = vunpack.c.l.b16 %v7066
      %v8203 = vunpack.c.l.b16 %v7080
      %v8204 = vunpack.c.l.b16 %v7094
      %v8205 = vunpack.c.l.b16 %v7108
      %v8206 = vunpack.c.l.b16 %v7122
      %v8207 = vunpack.c.l.b16 %v7136
      %v8208 = vunpack.c.l.b16 %v7150
      %v8209 = vunpack.c.l.b16 %v7164
      %v8210 = vunpack.c.l.b16 %v7178
      %v8211 = vunpack.c.l.b16 %v7192
      %v8212 = vunpack.c.l.b16 %v7206
      %v8213 = vunpack.c.l.b16 %v7220
      %v8214 = vpack.c.b16 %v8183, %v8182
      %v8215 = vpack.c.b16 %v8185, %v8184
      %v8216 = vpack.c.b16 %v8187, %v8186
      %v8217 = vpack.c.b16 %v8189, %v8188
      %v8218 = vpack.c.b16 %v8191, %v8190
      %v8219 = vpack.c.b16 %v8193, %v8192
      %v8220 = vpack.c.b16 %v8195, %v8194
      %v8221 = vpack.c.b16 %v8197, %v8196
      %v8222 = vpack.c.b16 %v8199, %v8198
      %v8223 = vpack.c.b16 %v8201, %v8200
      %v8224 = vpack.c.b16 %v8203, %v8202
      %v8225 = vpack.c.b16 %v8205, %v8204
      %v8226 = vpack.c.b16 %v8207, %v8206
      %v8227 = vpack.c.b16 %v8209, %v8208
      %v8228 = vpack.c.b16 %v8211, %v8210
      %v8229 = vpack.c.b16 %v8213, %v8212
      %v8246 = vunpack.c.l.b16 %v7320
      %v8247 = vunpack.c.l.b16 %v7324
      %v8248 = vunpack.c.l.b16 %v7328
      %v8249 = vunpack.c.l.b16 %v7332
      %v8250 = vunpack.c.l.b16 %v7336
      %v8251 = vunpack.c.l.b16 %v7340
      %v8252 = vunpack.c.l.b16 %v7344
      %v8253 = vunpack.c.l.b16 %v7348
      %v8254 = vunpack.c.l.b16 %v7352
      %v8255 = vunpack.c.l.b16 %v7356
      %v8256 = vunpack.c.l.b16 %v7360
      %v8257 = vunpack.c.l.b16 %v7364
      %v8258 = vunpack.c.l.b16 %v7368
      %v8259 = vunpack.c.l.b16 %v7372
      %v8260 = vunpack.c.l.b16 %v7376
      %v8261 = vunpack.c.l.b16 %v7380
      %v8262 = vunpack.c.l.b16 %v7384
      %v8263 = vunpack.c.l.b16 %v7388
      %v8264 = vunpack.c.l.b16 %v7392
      %v8265 = vunpack.c.l.b16 %v7396
      %v8266 = vunpack.c.l.b16 %v7400
      %v8267 = vunpack.c.l.b16 %v7404
      %v8268 = vunpack.c.l.b16 %v7408
      %v8269 = vunpack.c.l.b16 %v7412
      %v8270 = vunpack.c.l.b16 %v7416
      %v8271 = vunpack.c.l.b16 %v7420
      %v8272 = vunpack.c.l.b16 %v7424
      %v8273 = vunpack.c.l.b16 %v7428
      %v8274 = vunpack.c.l.b16 %v7432
      %v8275 = vunpack.c.l.b16 %v7436
      %v8276 = vunpack.c.l.b16 %v7440
      %v8277 = vunpack.c.l.b16 %v7444
      %v8278 = vpack.c.b16 %v8247, %v8246
      %v8279 = vpack.c.b16 %v8249, %v8248
      %v8280 = vpack.c.b16 %v8251, %v8250
      %v8281 = vpack.c.b16 %v8253, %v8252
      %v8282 = vpack.c.b16 %v8255, %v8254
      %v8283 = vpack.c.b16 %v8257, %v8256
      %v8284 = vpack.c.b16 %v8259, %v8258
      %v8285 = vpack.c.b16 %v8261, %v8260
      %v8286 = vpack.c.b16 %v8263, %v8262
      %v8287 = vpack.c.b16 %v8265, %v8264
      %v8288 = vpack.c.b16 %v8267, %v8266
      %v8289 = vpack.c.b16 %v8269, %v8268
      %v8290 = vpack.c.b16 %v8271, %v8270
      %v8291 = vpack.c.b16 %v8273, %v8272
      %v8292 = vpack.c.b16 %v8275, %v8274
      %v8293 = vpack.c.b16 %v8277, %v8276
      %v8310 = vunpack.c.l.b16 %v7523
      %v8311 = vunpack.c.l.b16 %v7537
      %v8312 = vunpack.c.l.b16 %v7551
      %v8313 = vunpack.c.l.b16 %v7565
      %v8314 = vunpack.c.l.b16 %v7579
      %v8315 = vunpack.c.l.b16 %v7593
      %v8316 = vunpack.c.l.b16 %v7607
      %v8317 = vunpack.c.l.b16 %v7621
      %v8318 = vunpack.c.l.b16 %v7635
      %v8319 = vunpack.c.l.b16 %v7649
      %v8320 = vunpack.c.l.b16 %v7663
      %v8321 = vunpack.c.l.b16 %v7677
      %v8322 = vunpack.c.l.b16 %v7691
      %v8323 = vunpack.c.l.b16 %v7705
      %v8324 = vunpack.c.l.b16 %v7719
      %v8325 = vunpack.c.l.b16 %v7733
      %v8326 = vunpack.c.l.b16 %v7747
      %v8327 = vunpack.c.l.b16 %v7761
      %v8328 = vunpack.c.l.b16 %v7775
      %v8329 = vunpack.c.l.b16 %v7789
      %v8330 = vunpack.c.l.b16 %v7803
      %v8331 = vunpack.c.l.b16 %v7817
      %v8332 = vunpack.c.l.b16 %v7831
      %v8333 = vunpack.c.l.b16 %v7845
      %v8334 = vunpack.c.l.b16 %v7859
      %v8335 = vunpack.c.l.b16 %v7873
      %v8336 = vunpack.c.l.b16 %v7887
      %v8337 = vunpack.c.l.b16 %v7901
      %v8338 = vunpack.c.l.b16 %v7915
      %v8339 = vunpack.c.l.b16 %v7929
      %v8340 = vunpack.c.l.b16 %v7943
      %v8341 = vunpack.c.l.b16 %v7957
      %v8342 = vpack.c.b16 %v8311, %v8310
      %v8343 = vpack.c.b16 %v8313, %v8312
      %v8344 = vpack.c.b16 %v8315, %v8314
      %v8345 = vpack.c.b16 %v8317, %v8316
      %v8346 = vpack.c.b16 %v8319, %v8318
      %v8347 = vpack.c.b16 %v8321, %v8320
      %v8348 = vpack.c.b16 %v8323, %v8322
      %v8349 = vpack.c.b16 %v8325, %v8324
      %v8350 = vpack.c.b16 %v8327, %v8326
      %v8351 = vpack.c.b16 %v8329, %v8328
      %v8352 = vpack.c.b16 %v8331, %v8330
      %v8353 = vpack.c.b16 %v8333, %v8332
      %v8354 = vpack.c.b16 %v8335, %v8334
      %v8355 = vpack.c.b16 %v8337, %v8336
      %v8356 = vpack.c.b16 %v8339, %v8338
      %v8357 = vpack.c.b16 %v8341, %v8340
      %v8374 = vunpack.c.l.b16 %v8057
      %v8375 = vunpack.c.l.b16 %v8061
      %v8376 = vunpack.c.l.b16 %v8065
      %v8377 = vunpack.c.l.b16 %v8069
      %v8378 = vunpack.c.l.b16 %v8073
      %v8379 = vunpack.c.l.b16 %v8077
      %v8380 = vunpack.c.l.b16 %v8081
      %v8381 = vunpack.c.l.b16 %v8085
      %v8382 = vunpack.c.l.b16 %v8089
      %v8383 = vunpack.c.l.b16 %v8093
      %v8384 = vunpack.c.l.b16 %v8097
      %v8385 = vunpack.c.l.b16 %v8101
      %v8386 = vunpack.c.l.b16 %v8105
      %v8387 = vunpack.c.l.b16 %v8109
      %v8388 = vunpack.c.l.b16 %v8113
      %v8389 = vunpack.c.l.b16 %v8117
      %v8390 = vunpack.c.l.b16 %v8121
      %v8391 = vunpack.c.l.b16 %v8125
      %v8392 = vunpack.c.l.b16 %v8129
      %v8393 = vunpack.c.l.b16 %v8133
      %v8394 = vunpack.c.l.b16 %v8137
      %v8395 = vunpack.c.l.b16 %v8141
      %v8396 = vunpack.c.l.b16 %v8145
      %v8397 = vunpack.c.l.b16 %v8149
      %v8398 = vunpack.c.l.b16 %v8153
      %v8399 = vunpack.c.l.b16 %v8157
      %v8400 = vunpack.c.l.b16 %v8161
      %v8401 = vunpack.c.l.b16 %v8165
      %v8402 = vunpack.c.l.b16 %v8169
      %v8403 = vunpack.c.l.b16 %v8173
      %v8404 = vunpack.c.l.b16 %v8177
      %v8405 = vunpack.c.l.b16 %v8181
      %v8406 = vpack.c.b16 %v8375, %v8374
      %v8407 = vpack.c.b16 %v8377, %v8376
      %v8408 = vpack.c.b16 %v8379, %v8378
      %v8409 = vpack.c.b16 %v8381, %v8380
      %v8410 = vpack.c.b16 %v8383, %v8382
      %v8411 = vpack.c.b16 %v8385, %v8384
      %v8412 = vpack.c.b16 %v8387, %v8386
      %v8413 = vpack.c.b16 %v8389, %v8388
      %v8414 = vpack.c.b16 %v8391, %v8390
      %v8415 = vpack.c.b16 %v8393, %v8392
      %v8416 = vpack.c.b16 %v8395, %v8394
      %v8417 = vpack.c.b16 %v8397, %v8396
      %v8418 = vpack.c.b16 %v8399, %v8398
      %v8419 = vpack.c.b16 %v8401, %v8400
      %v8420 = vpack.c.b16 %v8403, %v8402
      %v8421 = vpack.c.b16 %v8405, %v8404
      %v8438 = vld [vmem:[%s8] sm:$0x1]
      %v8439 = vld [vmem:[%s4] sm:$0xf]
      %v8440 = vld [vmem:[%s4 + $0x4] sm:$0xf]
      %v8441 = vld [vmem:[%s4 + $0x8] sm:$0xf]
      %v8442 = vld [vmem:[%s4 + $0xc] sm:$0xf]
      %v8443 = vld [vmem:[%s4 + $0x10] sm:$0xf]
      %v8444 = vld [vmem:[%s4 + $0x14] sm:$0xf]
      %v8445 = vld [vmem:[%s4 + $0x18] sm:$0xf]
      %v8446 = vld [vmem:[%s4 + $0x1c] sm:$0xf]
      %v8447 = vld [vmem:[%s4 + $0x20] sm:$0xf]
      %v8448 = vld [vmem:[%s4 + $0x24] sm:$0xf]
      %v8449 = vld [vmem:[%s4 + $0x28] sm:$0xf]
      %v8450 = vld [vmem:[%s4 + $0x2c] sm:$0xf]
      %v8451 = vld [vmem:[%s4 + $0x30] sm:$0xf]
      %v8452 = vld [vmem:[%s4 + $0x34] sm:$0xf]
      %v8453 = vld [vmem:[%s4 + $0x38] sm:$0xf]
      %v8454 = vld [vmem:[%s4 + $0x3c] sm:$0xf]
      %v8455 = vld [vmem:[%s4 + $0x40] sm:$0xf]
      %v8456 = vld [vmem:[%s4 + $0x44] sm:$0xf]
      %v8457 = vld [vmem:[%s4 + $0x48] sm:$0xf]
      %v8458 = vld [vmem:[%s4 + $0x4c] sm:$0xf]
      %v8459 = vld [vmem:[%s4 + $0x50] sm:$0xf]
      %v8460 = vld [vmem:[%s4 + $0x54] sm:$0xf]
      %v8461 = vld [vmem:[%s4 + $0x58] sm:$0xf]
      %v8462 = vld [vmem:[%s4 + $0x5c] sm:$0xf]
      %v8463 = vld [vmem:[%s4 + $0x60] sm:$0xf]
      %v8464 = vld [vmem:[%s4 + $0x64] sm:$0xf]
      %v8465 = vld [vmem:[%s4 + $0x68] sm:$0xf]
      %v8466 = vld [vmem:[%s4 + $0x6c] sm:$0xf]
      %v8467 = vld [vmem:[%s4 + $0x70] sm:$0xf]
      %v8468 = vld [vmem:[%s4 + $0x74] sm:$0xf]
      %v8469 = vld [vmem:[%s4 + $0x78] sm:$0xf]
      %v8470 = vld [vmem:[%s4 + $0x7c] sm:$0xf]
      %v8471 = vld [vmem:[%s4 + $0x80] sm:$0xf]
      %v8472 = vld [vmem:[%s4 + $0x84] sm:$0xf]
      %v8473 = vld [vmem:[%s4 + $0x88] sm:$0xf]
      %v8474 = vld [vmem:[%s4 + $0x8c] sm:$0xf]
      %v8475 = vld [vmem:[%s4 + $0x90] sm:$0xf]
      %v8476 = vld [vmem:[%s4 + $0x94] sm:$0xf]
      %v8477 = vld [vmem:[%s4 + $0x98] sm:$0xf]
      %v8478 = vld [vmem:[%s4 + $0x9c] sm:$0xf]
      %v8479 = vld [vmem:[%s4 + $0xa0] sm:$0xf]
      %v8480 = vld [vmem:[%s4 + $0xa4] sm:$0xf]
      %v8481 = vld [vmem:[%s4 + $0xa8] sm:$0xf]
      %v8482 = vld [vmem:[%s4 + $0xac] sm:$0xf]
      %v8483 = vld [vmem:[%s4 + $0xb0] sm:$0xf]
      %v8484 = vld [vmem:[%s4 + $0xb4] sm:$0xf]
      %v8485 = vld [vmem:[%s4 + $0xb8] sm:$0xf]
      %v8486 = vld [vmem:[%s4 + $0xbc] sm:$0xf]
      %v8487 = vld [vmem:[%s4 + $0xc0] sm:$0xf]
      %v8488 = vld [vmem:[%s4 + $0xc4] sm:$0xf]
      %v8489 = vld [vmem:[%s4 + $0xc8] sm:$0xf]
      %v8490 = vld [vmem:[%s4 + $0xcc] sm:$0xf]
      %v8491 = vld [vmem:[%s4 + $0xd0] sm:$0xf]
      %v8492 = vld [vmem:[%s4 + $0xd4] sm:$0xf]
      %v8493 = vld [vmem:[%s4 + $0xd8] sm:$0xf]
      %v8494 = vld [vmem:[%s4 + $0xdc] sm:$0xf]
      %v8495 = vld [vmem:[%s4 + $0xe0] sm:$0xf]
      %v8496 = vld [vmem:[%s4 + $0xe4] sm:$0xf]
      %v8497 = vld [vmem:[%s4 + $0xe8] sm:$0xf]
      %v8498 = vld [vmem:[%s4 + $0xec] sm:$0xf]
      %v8499 = vld [vmem:[%s4 + $0xf0] sm:$0xf]
      %v8500 = vld [vmem:[%s4 + $0xf4] sm:$0xf]
      %v8501 = vld [vmem:[%s4 + $0xf8] sm:$0xf]
      %v8502 = vld [vmem:[%s4 + $0xfc] sm:$0xf]
      %v8504 = vlaneseq
      %v8505 = vshrl.u32 %v8504, 7
      %v8506 = vsub.s32 0, %v8505
      %v8507 = vrot.slane %v8438, %v8506
      %v8573 = vunpack.c.l.b16 %v8439
      %v8574 = vunpack.c.l.b16 %v8440
      %v8575 = vunpack.c.l.b16 %v8441
      %v8576 = vunpack.c.l.b16 %v8442
      %v8577 = vunpack.c.l.b16 %v8443
      %v8578 = vunpack.c.l.b16 %v8444
      %v8579 = vunpack.c.l.b16 %v8445
      %v8580 = vunpack.c.l.b16 %v8446
      %v8581 = vunpack.c.l.b16 %v8447
      %v8582 = vunpack.c.l.b16 %v8448
      %v8583 = vunpack.c.l.b16 %v8449
      %v8584 = vunpack.c.l.b16 %v8450
      %v8585 = vunpack.c.l.b16 %v8451
      %v8586 = vunpack.c.l.b16 %v8452
      %v8587 = vunpack.c.l.b16 %v8453
      %v8588 = vunpack.c.l.b16 %v8454
      %v8589 = vunpack.c.l.b16 %v8455
      %v8590 = vunpack.c.l.b16 %v8456
      %v8591 = vunpack.c.l.b16 %v8457
      %v8592 = vunpack.c.l.b16 %v8458
      %v8593 = vunpack.c.l.b16 %v8459
      %v8594 = vunpack.c.l.b16 %v8460
      %v8595 = vunpack.c.l.b16 %v8461
      %v8596 = vunpack.c.l.b16 %v8462
      %v8597 = vunpack.c.l.b16 %v8463
      %v8598 = vunpack.c.l.b16 %v8464
      %v8599 = vunpack.c.l.b16 %v8465
      %v8600 = vunpack.c.l.b16 %v8466
      %v8601 = vunpack.c.l.b16 %v8467
      %v8602 = vunpack.c.l.b16 %v8468
      %v8603 = vunpack.c.l.b16 %v8469
      %v8604 = vunpack.c.l.b16 %v8470
      %v8605 = vunpack.c.l.b16 %v8471
      %v8606 = vunpack.c.l.b16 %v8472
      %v8607 = vunpack.c.l.b16 %v8473
      %v8608 = vunpack.c.l.b16 %v8474
      %v8609 = vunpack.c.l.b16 %v8475
      %v8610 = vunpack.c.l.b16 %v8476
      %v8611 = vunpack.c.l.b16 %v8477
      %v8612 = vunpack.c.l.b16 %v8478
      %v8613 = vunpack.c.l.b16 %v8479
      %v8614 = vunpack.c.l.b16 %v8480
      %v8615 = vunpack.c.l.b16 %v8481
      %v8616 = vunpack.c.l.b16 %v8482
      %v8617 = vunpack.c.l.b16 %v8483
      %v8618 = vunpack.c.l.b16 %v8484
      %v8619 = vunpack.c.l.b16 %v8485
      %v8620 = vunpack.c.l.b16 %v8486
      %v8621 = vunpack.c.l.b16 %v8487
      %v8622 = vunpack.c.l.b16 %v8488
      %v8623 = vunpack.c.l.b16 %v8489
      %v8624 = vunpack.c.l.b16 %v8490
      %v8625 = vunpack.c.l.b16 %v8491
      %v8626 = vunpack.c.l.b16 %v8492
      %v8627 = vunpack.c.l.b16 %v8493
      %v8628 = vunpack.c.l.b16 %v8494
      %v8629 = vunpack.c.l.b16 %v8495
      %v8630 = vunpack.c.l.b16 %v8496
      %v8631 = vunpack.c.l.b16 %v8497
      %v8632 = vunpack.c.l.b16 %v8498
      %v8633 = vunpack.c.l.b16 %v8499
      %v8634 = vunpack.c.l.b16 %v8500
      %v8635 = vunpack.c.l.b16 %v8501
      %v8636 = vunpack.c.l.b16 %v8502
      %v8637 = vpack.c.b16 %v8574, %v8573
      %v8638 = vpack.c.b16 %v8576, %v8575
      %v8639 = vpack.c.b16 %v8578, %v8577
      %v8640 = vpack.c.b16 %v8580, %v8579
      %v8641 = vpack.c.b16 %v8582, %v8581
      %v8642 = vpack.c.b16 %v8584, %v8583
      %v8643 = vpack.c.b16 %v8586, %v8585
      %v8644 = vpack.c.b16 %v8588, %v8587
      %v8645 = vpack.c.b16 %v8590, %v8589
      %v8646 = vpack.c.b16 %v8592, %v8591
      %v8647 = vpack.c.b16 %v8594, %v8593
      %v8648 = vpack.c.b16 %v8596, %v8595
      %v8649 = vpack.c.b16 %v8598, %v8597
      %v8650 = vpack.c.b16 %v8600, %v8599
      %v8651 = vpack.c.b16 %v8602, %v8601
      %v8652 = vpack.c.b16 %v8604, %v8603
      %v8653 = vpack.c.b16 %v8606, %v8605
      %v8654 = vpack.c.b16 %v8608, %v8607
      %v8655 = vpack.c.b16 %v8610, %v8609
      %v8656 = vpack.c.b16 %v8612, %v8611
      %v8657 = vpack.c.b16 %v8614, %v8613
      %v8658 = vpack.c.b16 %v8616, %v8615
      %v8659 = vpack.c.b16 %v8618, %v8617
      %v8660 = vpack.c.b16 %v8620, %v8619
      %v8661 = vpack.c.b16 %v8622, %v8621
      %v8662 = vpack.c.b16 %v8624, %v8623
      %v8663 = vpack.c.b16 %v8626, %v8625
      %v8664 = vpack.c.b16 %v8628, %v8627
      %v8665 = vpack.c.b16 %v8630, %v8629
      %v8666 = vpack.c.b16 %v8632, %v8631
      %v8667 = vpack.c.b16 %v8634, %v8633
      %v8668 = vpack.c.b16 %v8636, %v8635
      %8701 = vmatprep.subr.bf16.mxu0 0
      %8702 = vmatpush1.bf16.msra.mxu0 %v8637
      %8703 = vmatprep.subr.bf16.mxu0 0
      %8704 = vmatpush1.bf16.msra.mxu0 %v8638
      %8705 = vmatprep.subr.bf16.mxu0 0
      %8706 = vmatpush1.bf16.msra.mxu0 %v8639
      %8707 = vmatprep.subr.bf16.mxu0 0
      %8708 = vmatpush1.bf16.msra.mxu0 %v8640
      %8709 = vmatprep.subr.bf16.mxu0 0
      %8710 = vmatpush1.bf16.msra.mxu0 %v8641
      %8711 = vmatprep.subr.bf16.mxu0 0
      %8712 = vmatpush1.bf16.msra.mxu0 %v8642
      %8713 = vmatprep.subr.bf16.mxu0 0
      %8714 = vmatpush1.bf16.msra.mxu0 %v8643
      %8715 = vmatprep.subr.bf16.mxu0 0
      %8716 = vmatpush1.bf16.msra.mxu0 %v8644
      %8717 = vmatprep.subr.bf16.mxu0 0
      %8718 = vmatpush1.bf16.msra.mxu0 %v8645
      %8719 = vmatprep.subr.bf16.mxu0 0
      %8720 = vmatpush1.bf16.msra.mxu0 %v8646
      %8721 = vmatprep.subr.bf16.mxu0 0
      %8722 = vmatpush1.bf16.msra.mxu0 %v8647
      %8723 = vmatprep.subr.bf16.mxu0 0
      %8724 = vmatpush1.bf16.msra.mxu0 %v8648
      %8725 = vmatprep.subr.bf16.mxu0 0
      %8726 = vmatpush1.bf16.msra.mxu0 %v8649
      %8727 = vmatprep.subr.bf16.mxu0 0
      %8728 = vmatpush1.bf16.msra.mxu0 %v8650
      %8729 = vmatprep.subr.bf16.mxu0 0
      %8730 = vmatpush1.bf16.msra.mxu0 %v8651
      %8731 = vmatprep.subr.bf16.mxu0 0
      %8732 = vmatpush1.bf16.msra.mxu0 %v8652
      %8733 = vmatprep.mubr.bf16.mxu0 %v8278
      %8734 = vmatmul.mubr.bf16.gmra.mrb[0].mxu0 %v8214
      %v8735 = vpop.f32.mrb[0].mxu0
      %v8736 = vadd.f32 %v8507, %v8735
      %v8737 = vpop.f32.mrb[0].mxu0
      %v8738 = vpop.f32.mrb[0].mxu0
      %v8739 = vadd.f32 %v8507, %v8738
      %v8740 = vpop.f32.mrb[0].mxu0
      %8741 = vmatprep.mubr.bf16.mxu0 %v8279
      %8742 = vmatmul.mubr.bf16.gmra.mrb[0].mxu0 %v8215
      %v8743 = vpop.f32.mrb[0].mxu0
      %v8744 = vadd.f32 %v8507, %v8743
      %v8745 = vpop.f32.mrb[0].mxu0
      %v8746 = vpop.f32.mrb[0].mxu0
      %v8747 = vadd.f32 %v8507, %v8746
      %v8748 = vpop.f32.mrb[0].mxu0
      %8749 = vmatprep.mubr.bf16.mxu0 %v8280
      %8750 = vmatmul.mubr.bf16.gmra.mrb[0].mxu0 %v8216
      %v8751 = vpop.f32.mrb[0].mxu0
      %v8752 = vadd.f32 %v8507, %v8751
      %v8753 = vpop.f32.mrb[0].mxu0
      %v8754 = vpop.f32.mrb[0].mxu0
      %v8755 = vadd.f32 %v8507, %v8754
      %v8756 = vpop.f32.mrb[0].mxu0
      %8757 = vmatprep.mubr.bf16.mxu0 %v8281
      %8758 = vmatmul.mubr.bf16.gmra.mrb[0].mxu0 %v8217
      %v8759 = vpop.f32.mrb[0].mxu0
      %v8760 = vadd.f32 %v8507, %v8759
      %v8761 = vpop.f32.mrb[0].mxu0
      %v8762 = vpop.f32.mrb[0].mxu0
      %v8763 = vadd.f32 %v8507, %v8762
      %v8764 = vpop.f32.mrb[0].mxu0
      %8765 = vmatprep.mubr.bf16.mxu0 %v8282
      %8766 = vmatmul.mubr.bf16.gmra.mrb[0].mxu0 %v8218
      %v8767 = vpop.f32.mrb[0].mxu0
      %v8768 = vadd.f32 %v8507, %v8767
      %v8769 = vpop.f32.mrb[0].mxu0
      %v8770 = vpop.f32.mrb[0].mxu0
      %v8771 = vadd.f32 %v8507, %v8770
      %v8772 = vpop.f32.mrb[0].mxu0
      %8773 = vmatprep.mubr.bf16.mxu0 %v8283
      %8774 = vmatmul.mubr.bf16.gmra.mrb[0].mxu0 %v8219
      %v8775 = vpop.f32.mrb[0].mxu0
      %v8776 = vadd.f32 %v8507, %v8775
      %v8777 = vpop.f32.mrb[0].mxu0
      %v8778 = vpop.f32.mrb[0].mxu0
      %v8779 = vadd.f32 %v8507, %v8778
      %v8780 = vpop.f32.mrb[0].mxu0
      %8781 = vmatprep.mubr.bf16.mxu0 %v8284
      %8782 = vmatmul.mubr.bf16.gmra.mrb[0].mxu0 %v8220
      %v8783 = vpop.f32.mrb[0].mxu0
      %v8784 = vadd.f32 %v8507, %v8783
      %v8785 = vpop.f32.mrb[0].mxu0
      %v8786 = vpop.f32.mrb[0].mxu0
      %v8787 = vadd.f32 %v8507, %v8786
      %v8788 = vpop.f32.mrb[0].mxu0
      %8789 = vmatprep.mubr.bf16.mxu0 %v8285
      %8790 = vmatmul.mubr.bf16.gmra.mrb[0].mxu0 %v8221
      %v8791 = vpop.f32.mrb[0].mxu0
      %v8792 = vadd.f32 %v8507, %v8791
      %v8793 = vpop.f32.mrb[0].mxu0
      %v8794 = vpop.f32.mrb[0].mxu0
      %v8795 = vadd.f32 %v8507, %v8794
      %v8796 = vpop.f32.mrb[0].mxu0
      %8797 = vmatprep.mubr.bf16.mxu0 %v8286
      %8798 = vmatmul.mubr.bf16.gmra.mrb[0].mxu0 %v8222
      %v8799 = vpop.f32.mrb[0].mxu0
      %v8800 = vadd.f32 %v8507, %v8799
      %v8801 = vpop.f32.mrb[0].mxu0
      %v8802 = vpop.f32.mrb[0].mxu0
      %v8803 = vadd.f32 %v8507, %v8802
      %v8804 = vpop.f32.mrb[0].mxu0
      %8805 = vmatprep.mubr.bf16.mxu0 %v8287
      %8806 = vmatmul.mubr.bf16.gmra.mrb[0].mxu0 %v8223
      %v8807 = vpop.f32.mrb[0].mxu0
      %v8808 = vadd.f32 %v8507, %v8807
      %v8809 = vpop.f32.mrb[0].mxu0
      %v8810 = vpop.f32.mrb[0].mxu0
      %v8811 = vadd.f32 %v8507, %v8810
      %v8812 = vpop.f32.mrb[0].mxu0
      %8813 = vmatprep.mubr.bf16.mxu0 %v8288
      %8814 = vmatmul.mubr.bf16.gmra.mrb[0].mxu0 %v8224
      %v8815 = vpop.f32.mrb[0].mxu0
      %v8816 = vadd.f32 %v8507, %v8815
      %v8817 = vpop.f32.mrb[0].mxu0
      %v8818 = vpop.f32.mrb[0].mxu0
      %v8819 = vadd.f32 %v8507, %v8818
      %v8820 = vpop.f32.mrb[0].mxu0
      %8821 = vmatprep.mubr.bf16.mxu0 %v8289
      %8822 = vmatmul.mubr.bf16.gmra.mrb[0].mxu0 %v8225
      %v8823 = vpop.f32.mrb[0].mxu0
      %v8824 = vadd.f32 %v8507, %v8823
      %v8825 = vpop.f32.mrb[0].mxu0
      %v8826 = vpop.f32.mrb[0].mxu0
      %v8827 = vadd.f32 %v8507, %v8826
      %v8828 = vpop.f32.mrb[0].mxu0
      %8829 = vmatprep.mubr.bf16.mxu0 %v8290
      %8830 = vmatmul.mubr.bf16.gmra.mrb[0].mxu0 %v8226
      %v8831 = vpop.f32.mrb[0].mxu0
      %v8832 = vadd.f32 %v8507, %v8831
      %v8833 = vpop.f32.mrb[0].mxu0
      %v8834 = vpop.f32.mrb[0].mxu0
      %v8835 = vadd.f32 %v8507, %v8834
      %v8836 = vpop.f32.mrb[0].mxu0
      %8837 = vmatprep.mubr.bf16.mxu0 %v8291
      %8838 = vmatmul.mubr.bf16.gmra.mrb[0].mxu0 %v8227
      %v8839 = vpop.f32.mrb[0].mxu0
      %v8840 = vadd.f32 %v8507, %v8839
      %v8841 = vpop.f32.mrb[0].mxu0
      %v8842 = vpop.f32.mrb[0].mxu0
      %v8843 = vadd.f32 %v8507, %v8842
      %v8844 = vpop.f32.mrb[0].mxu0
      %8845 = vmatprep.mubr.bf16.mxu0 %v8292
      %8846 = vmatmul.mubr.bf16.gmra.mrb[0].mxu0 %v8228
      %v8847 = vpop.f32.mrb[0].mxu0
      %v8848 = vadd.f32 %v8507, %v8847
      %v8849 = vpop.f32.mrb[0].mxu0
      %v8850 = vpop.f32.mrb[0].mxu0
      %v8851 = vadd.f32 %v8507, %v8850
      %v8852 = vpop.f32.mrb[0].mxu0
      %8853 = vmatprep.mubr.bf16.mxu0 %v8293
      %8854 = vmatmul.mubr.bf16.gmra.mrb[0].mxu0 %v8229
      %v8855 = vpop.f32.mrb[0].mxu0
      %v8856 = vadd.f32 %v8507, %v8855
      %v8857 = vpop.f32.mrb[0].mxu0
      %v8858 = vpop.f32.mrb[0].mxu0
      %v8859 = vadd.f32 %v8507, %v8858
      %v8860 = vpop.f32.mrb[0].mxu0
      %8861 = vdwg.mxu0
      %8862 = vmatprep.subr.bf16.mxu0 0
      %8863 = vmatpush1.bf16.msra.mxu0 %v8653
      %8864 = vmatprep.subr.bf16.mxu0 0
      %8865 = vmatpush1.bf16.msra.mxu0 %v8654
      %8866 = vmatprep.subr.bf16.mxu0 0
      %8867 = vmatpush1.bf16.msra.mxu0 %v8655
      %8868 = vmatprep.subr.bf16.mxu0 0
      %8869 = vmatpush1.bf16.msra.mxu0 %v8656
      %8870 = vmatprep.subr.bf16.mxu0 0
      %8871 = vmatpush1.bf16.msra.mxu0 %v8657
      %8872 = vmatprep.subr.bf16.mxu0 0
      %8873 = vmatpush1.bf16.msra.mxu0 %v8658
      %8874 = vmatprep.subr.bf16.mxu0 0
      %8875 = vmatpush1.bf16.msra.mxu0 %v8659
      %8876 = vmatprep.subr.bf16.mxu0 0
      %8877 = vmatpush1.bf16.msra.mxu0 %v8660
      %8878 = vmatprep.subr.bf16.mxu0 0
      %8879 = vmatpush1.bf16.msra.mxu0 %v8661
      %8880 = vmatprep.subr.bf16.mxu0 0
      %8881 = vmatpush1.bf16.msra.mxu0 %v8662
      %8882 = vmatprep.subr.bf16.mxu0 0
      %8883 = vmatpush1.bf16.msra.mxu0 %v8663
      %8884 = vmatprep.subr.bf16.mxu0 0
      %8885 = vmatpush1.bf16.msra.mxu0 %v8664
      %8886 = vmatprep.subr.bf16.mxu0 0
      %8887 = vmatpush1.bf16.msra.mxu0 %v8665
      %8888 = vmatprep.subr.bf16.mxu0 0
      %8889 = vmatpush1.bf16.msra.mxu0 %v8666
      %8890 = vmatprep.subr.bf16.mxu0 0
      %8891 = vmatpush1.bf16.msra.mxu0 %v8667
      %8892 = vmatprep.subr.bf16.mxu0 0
      %8893 = vmatpush1.bf16.msra.mxu0 %v8668
      %8894 = vmatprep.mubr.bf16.mxu0 %v8406
      %8895 = vmatmul.mubr.bf16.gmra.mrb[0].mxu0 %v8342
      %v8896 = vpop.f32.mrb[0].mxu0
      %v8897 = vadd.f32 %v8736, %v8896
      %v8898 = vpop.f32.mrb[0].mxu0
      %v8899 = vpop.f32.mrb[0].mxu0
      %v8900 = vadd.f32 %v8739, %v8899
      %v8901 = vpop.f32.mrb[0].mxu0
      %8902 = vmatprep.mubr.bf16.mxu0 %v8407
      %8903 = vmatmul.mubr.bf16.gmra.mrb[0].mxu0 %v8343
      %v8904 = vpop.f32.mrb[0].mxu0
      %v8905 = vadd.f32 %v8744, %v8904
      %v8906 = vpop.f32.mrb[0].mxu0
      %v8907 = vpop.f32.mrb[0].mxu0
      %v8908 = vadd.f32 %v8747, %v8907
      %v8909 = vpop.f32.mrb[0].mxu0
      %8910 = vmatprep.mubr.bf16.mxu0 %v8408
      %8911 = vmatmul.mubr.bf16.gmra.mrb[0].mxu0 %v8344
      %v8912 = vpop.f32.mrb[0].mxu0
      %v8913 = vadd.f32 %v8752, %v8912
      %v8914 = vpop.f32.mrb[0].mxu0
      %v8915 = vpop.f32.mrb[0].mxu0
      %v8916 = vadd.f32 %v8755, %v8915
      %v8917 = vpop.f32.mrb[0].mxu0
      %8918 = vmatprep.mubr.bf16.mxu0 %v8409
      %8919 = vmatmul.mubr.bf16.gmra.mrb[0].mxu0 %v8345
      %v8920 = vpop.f32.mrb[0].mxu0
      %v8921 = vadd.f32 %v8760, %v8920
      %v8922 = vpop.f32.mrb[0].mxu0
      %v8923 = vpop.f32.mrb[0].mxu0
      %v8924 = vadd.f32 %v8763, %v8923
      %v8925 = vpop.f32.mrb[0].mxu0
      %8926 = vmatprep.mubr.bf16.mxu0 %v8410
      %8927 = vmatmul.mubr.bf16.gmra.mrb[0].mxu0 %v8346
      %v8928 = vpop.f32.mrb[0].mxu0
      %v8929 = vadd.f32 %v8768, %v8928
      %v8930 = vpop.f32.mrb[0].mxu0
      %v8931 = vpop.f32.mrb[0].mxu0
      %v8932 = vadd.f32 %v8771, %v8931
      %v8933 = vpop.f32.mrb[0].mxu0
      %8934 = vmatprep.mubr.bf16.mxu0 %v8411
      %8935 = vmatmul.mubr.bf16.gmra.mrb[0].mxu0 %v8347
      %v8936 = vpop.f32.mrb[0].mxu0
      %v8937 = vadd.f32 %v8776, %v8936
      %v8938 = vpop.f32.mrb[0].mxu0
      %v8939 = vpop.f32.mrb[0].mxu0
      %v8940 = vadd.f32 %v8779, %v8939
      %v8941 = vpop.f32.mrb[0].mxu0
      %8942 = vmatprep.mubr.bf16.mxu0 %v8412
      %8943 = vmatmul.mubr.bf16.gmra.mrb[0].mxu0 %v8348
      %v8944 = vpop.f32.mrb[0].mxu0
      %v8945 = vadd.f32 %v8784, %v8944
      %v8946 = vpop.f32.mrb[0].mxu0
      %v8947 = vpop.f32.mrb[0].mxu0
      %v8948 = vadd.f32 %v8787, %v8947
      %v8949 = vpop.f32.mrb[0].mxu0
      %8950 = vmatprep.mubr.bf16.mxu0 %v8413
      %8951 = vmatmul.mubr.bf16.gmra.mrb[0].mxu0 %v8349
      %v8952 = vpop.f32.mrb[0].mxu0
      %v8953 = vadd.f32 %v8792, %v8952
      %v8954 = vpop.f32.mrb[0].mxu0
      %v8955 = vpop.f32.mrb[0].mxu0
      %v8956 = vadd.f32 %v8795, %v8955
      %v8957 = vpop.f32.mrb[0].mxu0
      %8958 = vmatprep.mubr.bf16.mxu0 %v8414
      %8959 = vmatmul.mubr.bf16.gmra.mrb[0].mxu0 %v8350
      %v8960 = vpop.f32.mrb[0].mxu0
      %v8961 = vadd.f32 %v8800, %v8960
      %v8962 = vpop.f32.mrb[0].mxu0
      %v8963 = vpop.f32.mrb[0].mxu0
      %v8964 = vadd.f32 %v8803, %v8963
      %v8965 = vpop.f32.mrb[0].mxu0
      %8966 = vmatprep.mubr.bf16.mxu0 %v8415
      %8967 = vmatmul.mubr.bf16.gmra.mrb[0].mxu0 %v8351
      %v8968 = vpop.f32.mrb[0].mxu0
      %v8969 = vadd.f32 %v8808, %v8968
      %v8970 = vpop.f32.mrb[0].mxu0
      %v8971 = vpop.f32.mrb[0].mxu0
      %v8972 = vadd.f32 %v8811, %v8971
      %v8973 = vpop.f32.mrb[0].mxu0
      %8974 = vmatprep.mubr.bf16.mxu0 %v8416
      %8975 = vmatmul.mubr.bf16.gmra.mrb[0].mxu0 %v8352
      %v8976 = vpop.f32.mrb[0].mxu0
      %v8977 = vadd.f32 %v8816, %v8976
      %v8978 = vpop.f32.mrb[0].mxu0
      %v8979 = vpop.f32.mrb[0].mxu0
      %v8980 = vadd.f32 %v8819, %v8979
      %v8981 = vpop.f32.mrb[0].mxu0
      %8982 = vmatprep.mubr.bf16.mxu0 %v8417
      %8983 = vmatmul.mubr.bf16.gmra.mrb[0].mxu0 %v8353
      %v8984 = vpop.f32.mrb[0].mxu0
      %v8985 = vadd.f32 %v8824, %v8984
      %v8986 = vpop.f32.mrb[0].mxu0
      %v8987 = vpop.f32.mrb[0].mxu0
      %v8988 = vadd.f32 %v8827, %v8987
      %v8989 = vpop.f32.mrb[0].mxu0
      %8990 = vmatprep.mubr.bf16.mxu0 %v8418
      %8991 = vmatmul.mubr.bf16.gmra.mrb[0].mxu0 %v8354
      %v8992 = vpop.f32.mrb[0].mxu0
      %v8993 = vadd.f32 %v8832, %v8992
      %v8994 = vpop.f32.mrb[0].mxu0
      %v8995 = vpop.f32.mrb[0].mxu0
      %v8996 = vadd.f32 %v8835, %v8995
      %v8997 = vpop.f32.mrb[0].mxu0
      %8998 = vmatprep.mubr.bf16.mxu0 %v8419
      %8999 = vmatmul.mubr.bf16.gmra.mrb[0].mxu0 %v8355
      %v9000 = vpop.f32.mrb[0].mxu0
      %v9001 = vadd.f32 %v8840, %v9000
      %v9002 = vpop.f32.mrb[0].mxu0
      %v9003 = vpop.f32.mrb[0].mxu0
      %v9004 = vadd.f32 %v8843, %v9003
      %v9005 = vpop.f32.mrb[0].mxu0
      %9006 = vmatprep.mubr.bf16.mxu0 %v8420
      %9007 = vmatmul.mubr.bf16.gmra.mrb[0].mxu0 %v8356
      %v9008 = vpop.f32.mrb[0].mxu0
      %v9009 = vadd.f32 %v8848, %v9008
      %v9010 = vpop.f32.mrb[0].mxu0
      %v9011 = vpop.f32.mrb[0].mxu0
      %v9012 = vadd.f32 %v8851, %v9011
      %v9013 = vpop.f32.mrb[0].mxu0
      %9014 = vmatprep.mubr.bf16.mxu0 %v8421
      %9015 = vmatmul.mubr.bf16.gmra.mrb[0].mxu0 %v8357
      %v9016 = vpop.f32.mrb[0].mxu0
      %v9017 = vadd.f32 %v8856, %v9016
      %v9018 = vpop.f32.mrb[0].mxu0
      %v9019 = vpop.f32.mrb[0].mxu0
      %v9020 = vadd.f32 %v8859, %v9019
      %v9021 = vpop.f32.mrb[0].mxu0
      %9022 = vdwg.mxu0
      %v9023 = vxor.u32 %v8897, 2147483648
      %v9024 = vxor.u32 %v8900, 2147483648
      %v9025 = vxor.u32 %v8905, 2147483648
      %v9026 = vxor.u32 %v8908, 2147483648
      %v9027 = vxor.u32 %v8913, 2147483648
      %v9028 = vxor.u32 %v8916, 2147483648
      %v9029 = vxor.u32 %v8921, 2147483648
      %v9030 = vxor.u32 %v8924, 2147483648
      %v9031 = vxor.u32 %v8929, 2147483648
      %v9032 = vxor.u32 %v8932, 2147483648
      %v9033 = vxor.u32 %v8937, 2147483648
      %v9034 = vxor.u32 %v8940, 2147483648
      %v9035 = vxor.u32 %v8945, 2147483648
      %v9036 = vxor.u32 %v8948, 2147483648
      %v9037 = vxor.u32 %v8953, 2147483648
      %v9038 = vxor.u32 %v8956, 2147483648
      %v9039 = vxor.u32 %v8961, 2147483648
      %v9040 = vxor.u32 %v8964, 2147483648
      %v9041 = vxor.u32 %v8969, 2147483648
      %v9042 = vxor.u32 %v8972, 2147483648
      %v9043 = vxor.u32 %v8977, 2147483648
      %v9044 = vxor.u32 %v8980, 2147483648
      %v9045 = vxor.u32 %v8985, 2147483648
      %v9046 = vxor.u32 %v8988, 2147483648
      %v9047 = vxor.u32 %v8993, 2147483648
      %v9048 = vxor.u32 %v8996, 2147483648
      %v9049 = vxor.u32 %v9001, 2147483648
      %v9050 = vxor.u32 %v9004, 2147483648
      %v9051 = vxor.u32 %v9009, 2147483648
      %v9052 = vxor.u32 %v9012, 2147483648
      %v9053 = vxor.u32 %v9017, 2147483648
      %v9054 = vxor.u32 %v9020, 2147483648
      %v9055 = vmul.f32 %v9023, 1.442695
      %v9056 = vpow.pop %v9055
      %v9057 = vmul.f32 %v9024, 1.442695
      %v9058 = vpow.pop %v9057
      %v9059 = vmul.f32 %v9025, 1.442695
      %v9060 = vpow.pop %v9059
      %v9061 = vmul.f32 %v9026, 1.442695
      %v9062 = vpow.pop %v9061
      %v9063 = vmul.f32 %v9027, 1.442695
      %v9064 = vpow.pop %v9063
      %v9065 = vmul.f32 %v9028, 1.442695
      %v9066 = vpow.pop %v9065
      %v9067 = vmul.f32 %v9029, 1.442695
      %v9068 = vpow.pop %v9067
      %v9069 = vmul.f32 %v9030, 1.442695
      %v9070 = vpow.pop %v9069
      %v9071 = vmul.f32 %v9031, 1.442695
      %v9072 = vpow.pop %v9071
      %v9073 = vmul.f32 %v9032, 1.442695
      %v9074 = vpow.pop %v9073
      %v9075 = vmul.f32 %v9033, 1.442695
      %v9076 = vpow.pop %v9075
      %v9077 = vmul.f32 %v9034, 1.442695
      %v9078 = vpow.pop %v9077
      %v9079 = vmul.f32 %v9035, 1.442695
      %v9080 = vpow.pop %v9079
      %v9081 = vmul.f32 %v9036, 1.442695
      %v9082 = vpow.pop %v9081
      %v9083 = vmul.f32 %v9037, 1.442695
      %v9084 = vpow.pop %v9083
      %v9085 = vmul.f32 %v9038, 1.442695
      %v9086 = vpow.pop %v9085
      %v9087 = vmul.f32 %v9039, 1.442695
      %v9088 = vpow.pop %v9087
      %v9089 = vmul.f32 %v9040, 1.442695
      %v9090 = vpow.pop %v9089
      %v9091 = vmul.f32 %v9041, 1.442695
      %v9092 = vpow.pop %v9091
      %v9093 = vmul.f32 %v9042, 1.442695
      %v9094 = vpow.pop %v9093
      %v9095 = vmul.f32 %v9043, 1.442695
      %v9096 = vpow.pop %v9095
      %v9097 = vmul.f32 %v9044, 1.442695
      %v9098 = vpow.pop %v9097
      %v9099 = vmul.f32 %v9045, 1.442695
      %v9100 = vpow.pop %v9099
      %v9101 = vmul.f32 %v9046, 1.442695
      %v9102 = vpow.pop %v9101
      %v9103 = vmul.f32 %v9047, 1.442695
      %v9104 = vpow.pop %v9103
      %v9105 = vmul.f32 %v9048, 1.442695
      %v9106 = vpow.pop %v9105
      %v9107 = vmul.f32 %v9049, 1.442695
      %v9108 = vpow.pop %v9107
      %v9109 = vmul.f32 %v9050, 1.442695
      %v9110 = vpow.pop %v9109
      %v9111 = vmul.f32 %v9051, 1.442695
      %v9112 = vpow.pop %v9111
      %v9113 = vmul.f32 %v9052, 1.442695
      %v9114 = vpow.pop %v9113
      %v9115 = vmul.f32 %v9053, 1.442695
      %v9116 = vpow.pop %v9115
      %v9117 = vmul.f32 %v9054, 1.442695
      %v9118 = vpow.pop %v9117
      %v9119 = vadd.f32 %v9056, 1.0
      %v9120 = vadd.f32 %v9058, 1.0
      %v9121 = vadd.f32 %v9060, 1.0
      %v9122 = vadd.f32 %v9062, 1.0
      %v9123 = vadd.f32 %v9064, 1.0
      %v9124 = vadd.f32 %v9066, 1.0
      %v9125 = vadd.f32 %v9068, 1.0
      %v9126 = vadd.f32 %v9070, 1.0
      %v9127 = vadd.f32 %v9072, 1.0
      %v9128 = vadd.f32 %v9074, 1.0
      %v9129 = vadd.f32 %v9076, 1.0
      %v9130 = vadd.f32 %v9078, 1.0
      %v9131 = vadd.f32 %v9080, 1.0
      %v9132 = vadd.f32 %v9082, 1.0
      %v9133 = vadd.f32 %v9084, 1.0
      %v9134 = vadd.f32 %v9086, 1.0
      %v9135 = vadd.f32 %v9088, 1.0
      %v9136 = vadd.f32 %v9090, 1.0
      %v9137 = vadd.f32 %v9092, 1.0
      %v9138 = vadd.f32 %v9094, 1.0
      %v9139 = vadd.f32 %v9096, 1.0
      %v9140 = vadd.f32 %v9098, 1.0
      %v9141 = vadd.f32 %v9100, 1.0
      %v9142 = vadd.f32 %v9102, 1.0
      %v9143 = vadd.f32 %v9104, 1.0
      %v9144 = vadd.f32 %v9106, 1.0
      %v9145 = vadd.f32 %v9108, 1.0
      %v9146 = vadd.f32 %v9110, 1.0
      %v9147 = vadd.f32 %v9112, 1.0
      %v9148 = vadd.f32 %v9114, 1.0
      %v9149 = vadd.f32 %v9116, 1.0
      %v9150 = vadd.f32 %v9118, 1.0
      %v9151 = vrcp.pop %v9119
      %v9152 = vmul.f32 1.0, %v9151
      %v9153 = vrcp.pop %v9120
      %v9154 = vmul.f32 1.0, %v9153
      %v9155 = vrcp.pop %v9121
      %v9156 = vmul.f32 1.0, %v9155
      %v9157 = vrcp.pop %v9122
      %v9158 = vmul.f32 1.0, %v9157
      %v9159 = vrcp.pop %v9123
      %v9160 = vmul.f32 1.0, %v9159
      %v9161 = vrcp.pop %v9124
      %v9162 = vmul.f32 1.0, %v9161
      %v9163 = vrcp.pop %v9125
      %v9164 = vmul.f32 1.0, %v9163
      %v9165 = vrcp.pop %v9126
      %v9166 = vmul.f32 1.0, %v9165
      %v9167 = vrcp.pop %v9127
      %v9168 = vmul.f32 1.0, %v9167
      %v9169 = vrcp.pop %v9128
      %v9170 = vmul.f32 1.0, %v9169
      %v9171 = vrcp.pop %v9129
      %v9172 = vmul.f32 1.0, %v9171
      %v9173 = vrcp.pop %v9130
      %v9174 = vmul.f32 1.0, %v9173
      %v9175 = vrcp.pop %v9131
      %v9176 = vmul.f32 1.0, %v9175
      %v9177 = vrcp.pop %v9132
      %v9178 = vmul.f32 1.0, %v9177
      %v9179 = vrcp.pop %v9133
      %v9180 = vmul.f32 1.0, %v9179
      %v9181 = vrcp.pop %v9134
      %v9182 = vmul.f32 1.0, %v9181
      %v9183 = vrcp.pop %v9135
      %v9184 = vmul.f32 1.0, %v9183
      %v9185 = vrcp.pop %v9136
      %v9186 = vmul.f32 1.0, %v9185
      %v9187 = vrcp.pop %v9137
      %v9188 = vmul.f32 1.0, %v9187
      %v9189 = vrcp.pop %v9138
      %v9190 = vmul.f32 1.0, %v9189
      %v9191 = vrcp.pop %v9139
      %v9192 = vmul.f32 1.0, %v9191
      %v9193 = vrcp.pop %v9140
      %v9194 = vmul.f32 1.0, %v9193
      %v9195 = vrcp.pop %v9141
      %v9196 = vmul.f32 1.0, %v9195
      %v9197 = vrcp.pop %v9142
      %v9198 = vmul.f32 1.0, %v9197
      %v9199 = vrcp.pop %v9143
      %v9200 = vmul.f32 1.0, %v9199
      %v9201 = vrcp.pop %v9144
      %v9202 = vmul.f32 1.0, %v9201
      %v9203 = vrcp.pop %v9145
      %v9204 = vmul.f32 1.0, %v9203
      %v9205 = vrcp.pop %v9146
      %v9206 = vmul.f32 1.0, %v9205
      %v9207 = vrcp.pop %v9147
      %v9208 = vmul.f32 1.0, %v9207
      %v9209 = vrcp.pop %v9148
      %v9210 = vmul.f32 1.0, %v9209
      %v9211 = vrcp.pop %v9149
      %v9212 = vmul.f32 1.0, %v9211
      %v9213 = vrcp.pop %v9150
      %v9214 = vmul.f32 1.0, %v9213
      %v9215 = vmul.f32 %v9152, 2.0
      %v9216 = vmul.f32 %v9154, 2.0
      %v9217 = vmul.f32 %v9156, 2.0
      %v9218 = vmul.f32 %v9158, 2.0
      %v9219 = vmul.f32 %v9160, 2.0
      %v9220 = vmul.f32 %v9162, 2.0
      %v9221 = vmul.f32 %v9164, 2.0
      %v9222 = vmul.f32 %v9166, 2.0
      %v9223 = vmul.f32 %v9168, 2.0
      %v9224 = vmul.f32 %v9170, 2.0
      %v9225 = vmul.f32 %v9172, 2.0
      %v9226 = vmul.f32 %v9174, 2.0
      %v9227 = vmul.f32 %v9176, 2.0
      %v9228 = vmul.f32 %v9178, 2.0
      %v9229 = vmul.f32 %v9180, 2.0
      %v9230 = vmul.f32 %v9182, 2.0
      %v9231 = vmul.f32 %v9184, 2.0
      %v9232 = vmul.f32 %v9186, 2.0
      %v9233 = vmul.f32 %v9188, 2.0
      %v9234 = vmul.f32 %v9190, 2.0
      %v9235 = vmul.f32 %v9192, 2.0
      %v9236 = vmul.f32 %v9194, 2.0
      %v9237 = vmul.f32 %v9196, 2.0
      %v9238 = vmul.f32 %v9198, 2.0
      %v9239 = vmul.f32 %v9200, 2.0
      %v9240 = vmul.f32 %v9202, 2.0
      %v9241 = vmul.f32 %v9204, 2.0
      %v9242 = vmul.f32 %v9206, 2.0
      %v9243 = vmul.f32 %v9208, 2.0
      %v9244 = vmul.f32 %v9210, 2.0
      %v9245 = vmul.f32 %v9212, 2.0
      %v9246 = vmul.f32 %v9214, 2.0
      %v9247 = vsub.f32 %v9215, 1.0
      %v9248 = vsub.f32 %v9216, 1.0
      %v9249 = vsub.f32 %v9217, 1.0
      %v9250 = vsub.f32 %v9218, 1.0
      %v9251 = vsub.f32 %v9219, 1.0
      %v9252 = vsub.f32 %v9220, 1.0
      %v9253 = vsub.f32 %v9221, 1.0
      %v9254 = vsub.f32 %v9222, 1.0
      %v9255 = vsub.f32 %v9223, 1.0
      %v9256 = vsub.f32 %v9224, 1.0
      %v9257 = vsub.f32 %v9225, 1.0
      %v9258 = vsub.f32 %v9226, 1.0
      %v9259 = vsub.f32 %v9227, 1.0
      %v9260 = vsub.f32 %v9228, 1.0
      %v9261 = vsub.f32 %v9229, 1.0
      %v9262 = vsub.f32 %v9230, 1.0
      %v9263 = vsub.f32 %v9231, 1.0
      %v9264 = vsub.f32 %v9232, 1.0
      %v9265 = vsub.f32 %v9233, 1.0
      %v9266 = vsub.f32 %v9234, 1.0
      %v9267 = vsub.f32 %v9235, 1.0
      %v9268 = vsub.f32 %v9236, 1.0
      %v9269 = vsub.f32 %v9237, 1.0
      %v9270 = vsub.f32 %v9238, 1.0
      %v9271 = vsub.f32 %v9239, 1.0
      %v9272 = vsub.f32 %v9240, 1.0
      %v9273 = vsub.f32 %v9241, 1.0
      %v9274 = vsub.f32 %v9242, 1.0
      %v9275 = vsub.f32 %v9243, 1.0
      %v9276 = vsub.f32 %v9244, 1.0
      %v9277 = vsub.f32 %v9245, 1.0
      %v9278 = vsub.f32 %v9246, 1.0
      %s9279 = scalar_lea.vmem %s4, 256
      %v9280 = vld [vmem:[%s9279] sm:$0xf]
      %v9281 = vld [vmem:[%s9279 + $0x4] sm:$0xf]
      %v9282 = vld [vmem:[%s9279 + $0x8] sm:$0xf]
      %v9283 = vld [vmem:[%s9279 + $0xc] sm:$0xf]
      %v9284 = vld [vmem:[%s9279 + $0x10] sm:$0xf]
      %v9285 = vld [vmem:[%s9279 + $0x14] sm:$0xf]
      %v9286 = vld [vmem:[%s9279 + $0x18] sm:$0xf]
      %v9287 = vld [vmem:[%s9279 + $0x1c] sm:$0xf]
      %v9288 = vld [vmem:[%s9279 + $0x20] sm:$0xf]
      %v9289 = vld [vmem:[%s9279 + $0x24] sm:$0xf]
      %v9290 = vld [vmem:[%s9279 + $0x28] sm:$0xf]
      %v9291 = vld [vmem:[%s9279 + $0x2c] sm:$0xf]
      %v9292 = vld [vmem:[%s9279 + $0x30] sm:$0xf]
      %v9293 = vld [vmem:[%s9279 + $0x34] sm:$0xf]
      %v9294 = vld [vmem:[%s9279 + $0x38] sm:$0xf]
      %v9295 = vld [vmem:[%s9279 + $0x3c] sm:$0xf]
      %v9296 = vld [vmem:[%s9279 + $0x40] sm:$0xf]
      %v9297 = vld [vmem:[%s9279 + $0x44] sm:$0xf]
      %v9298 = vld [vmem:[%s9279 + $0x48] sm:$0xf]
      %v9299 = vld [vmem:[%s9279 + $0x4c] sm:$0xf]
      %v9300 = vld [vmem:[%s9279 + $0x50] sm:$0xf]
      %v9301 = vld [vmem:[%s9279 + $0x54] sm:$0xf]
      %v9302 = vld [vmem:[%s9279 + $0x58] sm:$0xf]
      %v9303 = vld [vmem:[%s9279 + $0x5c] sm:$0xf]
      %v9304 = vld [vmem:[%s9279 + $0x60] sm:$0xf]
      %v9305 = vld [vmem:[%s9279 + $0x64] sm:$0xf]
      %v9306 = vld [vmem:[%s9279 + $0x68] sm:$0xf]
      %v9307 = vld [vmem:[%s9279 + $0x6c] sm:$0xf]
      %v9308 = vld [vmem:[%s9279 + $0x70] sm:$0xf]
      %v9309 = vld [vmem:[%s9279 + $0x74] sm:$0xf]
      %v9310 = vld [vmem:[%s9279 + $0x78] sm:$0xf]
      %v9311 = vld [vmem:[%s9279 + $0x7c] sm:$0xf]
      %v9312 = vld [vmem:[%s9279 + $0x80] sm:$0xf]
      %v9313 = vld [vmem:[%s9279 + $0x84] sm:$0xf]
      %v9314 = vld [vmem:[%s9279 + $0x88] sm:$0xf]
      %v9315 = vld [vmem:[%s9279 + $0x8c] sm:$0xf]
      %v9316 = vld [vmem:[%s9279 + $0x90] sm:$0xf]
      %v9317 = vld [vmem:[%s9279 + $0x94] sm:$0xf]
      %v9318 = vld [vmem:[%s9279 + $0x98] sm:$0xf]
      %v9319 = vld [vmem:[%s9279 + $0x9c] sm:$0xf]
      %v9320 = vld [vmem:[%s9279 + $0xa0] sm:$0xf]
      %v9321 = vld [vmem:[%s9279 + $0xa4] sm:$0xf]
      %v9322 = vld [vmem:[%s9279 + $0xa8] sm:$0xf]
      %v9323 = vld [vmem:[%s9279 + $0xac] sm:$0xf]
      %v9324 = vld [vmem:[%s9279 + $0xb0] sm:$0xf]
      %v9325 = vld [vmem:[%s9279 + $0xb4] sm:$0xf]
      %v9326 = vld [vmem:[%s9279 + $0xb8] sm:$0xf]
      %v9327 = vld [vmem:[%s9279 + $0xbc] sm:$0xf]
      %v9328 = vld [vmem:[%s9279 + $0xc0] sm:$0xf]
      %v9329 = vld [vmem:[%s9279 + $0xc4] sm:$0xf]
      %v9330 = vld [vmem:[%s9279 + $0xc8] sm:$0xf]
      %v9331 = vld [vmem:[%s9279 + $0xcc] sm:$0xf]
      %v9332 = vld [vmem:[%s9279 + $0xd0] sm:$0xf]
      %v9333 = vld [vmem:[%s9279 + $0xd4] sm:$0xf]
      %v9334 = vld [vmem:[%s9279 + $0xd8] sm:$0xf]
      %v9335 = vld [vmem:[%s9279 + $0xdc] sm:$0xf]
      %v9336 = vld [vmem:[%s9279 + $0xe0] sm:$0xf]
      %v9337 = vld [vmem:[%s9279 + $0xe4] sm:$0xf]
      %v9338 = vld [vmem:[%s9279 + $0xe8] sm:$0xf]
      %v9339 = vld [vmem:[%s9279 + $0xec] sm:$0xf]
      %v9340 = vld [vmem:[%s9279 + $0xf0] sm:$0xf]
      %v9341 = vld [vmem:[%s9279 + $0xf4] sm:$0xf]
      %v9342 = vld [vmem:[%s9279 + $0xf8] sm:$0xf]
      %v9343 = vld [vmem:[%s9279 + $0xfc] sm:$0xf]
      %v9408 = vunpack.c.l.b16 %v9280
      %v9409 = vunpack.c.l.b16 %v9281
      %v9410 = vunpack.c.l.b16 %v9282
      %v9411 = vunpack.c.l.b16 %v9283
      %v9412 = vunpack.c.l.b16 %v9284
      %v9413 = vunpack.c.l.b16 %v9285
      %v9414 = vunpack.c.l.b16 %v9286
      %v9415 = vunpack.c.l.b16 %v9287
      %v9416 = vunpack.c.l.b16 %v9288
      %v9417 = vunpack.c.l.b16 %v9289
      %v9418 = vunpack.c.l.b16 %v9290
      %v9419 = vunpack.c.l.b16 %v9291
      %v9420 = vunpack.c.l.b16 %v9292
      %v9421 = vunpack.c.l.b16 %v9293
      %v9422 = vunpack.c.l.b16 %v9294
      %v9423 = vunpack.c.l.b16 %v9295
      %v9424 = vunpack.c.l.b16 %v9296
      %v9425 = vunpack.c.l.b16 %v9297
      %v9426 = vunpack.c.l.b16 %v9298
      %v9427 = vunpack.c.l.b16 %v9299
      %v9428 = vunpack.c.l.b16 %v9300
      %v9429 = vunpack.c.l.b16 %v9301
      %v9430 = vunpack.c.l.b16 %v9302
      %v9431 = vunpack.c.l.b16 %v9303
      %v9432 = vunpack.c.l.b16 %v9304
      %v9433 = vunpack.c.l.b16 %v9305
      %v9434 = vunpack.c.l.b16 %v9306
      %v9435 = vunpack.c.l.b16 %v9307
      %v9436 = vunpack.c.l.b16 %v9308
      %v9437 = vunpack.c.l.b16 %v9309
      %v9438 = vunpack.c.l.b16 %v9310
      %v9439 = vunpack.c.l.b16 %v9311
      %v9440 = vunpack.c.l.b16 %v9312
      %v9441 = vunpack.c.l.b16 %v9313
      %v9442 = vunpack.c.l.b16 %v9314
      %v9443 = vunpack.c.l.b16 %v9315
      %v9444 = vunpack.c.l.b16 %v9316
      %v9445 = vunpack.c.l.b16 %v9317
      %v9446 = vunpack.c.l.b16 %v9318
      %v9447 = vunpack.c.l.b16 %v9319
      %v9448 = vunpack.c.l.b16 %v9320
      %v9449 = vunpack.c.l.b16 %v9321
      %v9450 = vunpack.c.l.b16 %v9322
      %v9451 = vunpack.c.l.b16 %v9323
      %v9452 = vunpack.c.l.b16 %v9324
      %v9453 = vunpack.c.l.b16 %v9325
      %v9454 = vunpack.c.l.b16 %v9326
      %v9455 = vunpack.c.l.b16 %v9327
      %v9456 = vunpack.c.l.b16 %v9328
      %v9457 = vunpack.c.l.b16 %v9329
      %v9458 = vunpack.c.l.b16 %v9330
      %v9459 = vunpack.c.l.b16 %v9331
      %v9460 = vunpack.c.l.b16 %v9332
      %v9461 = vunpack.c.l.b16 %v9333
      %v9462 = vunpack.c.l.b16 %v9334
      %v9463 = vunpack.c.l.b16 %v9335
      %v9464 = vunpack.c.l.b16 %v9336
      %v9465 = vunpack.c.l.b16 %v9337
      %v9466 = vunpack.c.l.b16 %v9338
      %v9467 = vunpack.c.l.b16 %v9339
      %v9468 = vunpack.c.l.b16 %v9340
      %v9469 = vunpack.c.l.b16 %v9341
      %v9470 = vunpack.c.l.b16 %v9342
      %v9471 = vunpack.c.l.b16 %v9343
      %v9472 = vpack.c.b16 %v9409, %v9408
      %v9473 = vpack.c.b16 %v9411, %v9410
      %v9474 = vpack.c.b16 %v9413, %v9412
      %v9475 = vpack.c.b16 %v9415, %v9414
      %v9476 = vpack.c.b16 %v9417, %v9416
      %v9477 = vpack.c.b16 %v9419, %v9418
      %v9478 = vpack.c.b16 %v9421, %v9420
      %v9479 = vpack.c.b16 %v9423, %v9422
      %v9480 = vpack.c.b16 %v9425, %v9424
      %v9481 = vpack.c.b16 %v9427, %v9426
      %v9482 = vpack.c.b16 %v9429, %v9428
      %v9483 = vpack.c.b16 %v9431, %v9430
      %v9484 = vpack.c.b16 %v9433, %v9432
      %v9485 = vpack.c.b16 %v9435, %v9434
      %v9486 = vpack.c.b16 %v9437, %v9436
      %v9487 = vpack.c.b16 %v9439, %v9438
      %v9488 = vpack.c.b16 %v9441, %v9440
      %v9489 = vpack.c.b16 %v9443, %v9442
      %v9490 = vpack.c.b16 %v9445, %v9444
      %v9491 = vpack.c.b16 %v9447, %v9446
      %v9492 = vpack.c.b16 %v9449, %v9448
      %v9493 = vpack.c.b16 %v9451, %v9450
      %v9494 = vpack.c.b16 %v9453, %v9452
      %v9495 = vpack.c.b16 %v9455, %v9454
      %v9496 = vpack.c.b16 %v9457, %v9456
      %v9497 = vpack.c.b16 %v9459, %v9458
      %v9498 = vpack.c.b16 %v9461, %v9460
      %v9499 = vpack.c.b16 %v9463, %v9462
      %v9500 = vpack.c.b16 %v9465, %v9464
      %v9501 = vpack.c.b16 %v9467, %v9466
      %v9502 = vpack.c.b16 %v9469, %v9468
      %v9503 = vpack.c.b16 %v9471, %v9470
      %9536 = vmatprep.subr.bf16.mxu0 0
      %9537 = vmatpush1.bf16.msra.mxu0 %v9472
      %9538 = vmatprep.subr.bf16.mxu0 0
      %9539 = vmatpush1.bf16.msra.mxu0 %v9473
      %9540 = vmatprep.subr.bf16.mxu0 0
      %9541 = vmatpush1.bf16.msra.mxu0 %v9474
      %9542 = vmatprep.subr.bf16.mxu0 0
      %9543 = vmatpush1.bf16.msra.mxu0 %v9475
      %9544 = vmatprep.subr.bf16.mxu0 0
      %9545 = vmatpush1.bf16.msra.mxu0 %v9476
      %9546 = vmatprep.subr.bf16.mxu0 0
      %9547 = vmatpush1.bf16.msra.mxu0 %v9477
      %9548 = vmatprep.subr.bf16.mxu0 0
      %9549 = vmatpush1.bf16.msra.mxu0 %v9478
      %9550 = vmatprep.subr.bf16.mxu0 0
      %9551 = vmatpush1.bf16.msra.mxu0 %v9479
      %9552 = vmatprep.subr.bf16.mxu0 0
      %9553 = vmatpush1.bf16.msra.mxu0 %v9480
      %9554 = vmatprep.subr.bf16.mxu0 0
      %9555 = vmatpush1.bf16.msra.mxu0 %v9481
      %9556 = vmatprep.subr.bf16.mxu0 0
      %9557 = vmatpush1.bf16.msra.mxu0 %v9482
      %9558 = vmatprep.subr.bf16.mxu0 0
      %9559 = vmatpush1.bf16.msra.mxu0 %v9483
      %9560 = vmatprep.subr.bf16.mxu0 0
      %9561 = vmatpush1.bf16.msra.mxu0 %v9484
      %9562 = vmatprep.subr.bf16.mxu0 0
      %9563 = vmatpush1.bf16.msra.mxu0 %v9485
      %9564 = vmatprep.subr.bf16.mxu0 0
      %9565 = vmatpush1.bf16.msra.mxu0 %v9486
      %9566 = vmatprep.subr.bf16.mxu0 0
      %9567 = vmatpush1.bf16.msra.mxu0 %v9487
      %9568 = vmatprep.mubr.bf16.mxu0 %v8278
      %9569 = vmatmul.mubr.bf16.gmra.mrb[0].mxu0 %v8214
      %v9570 = vpop.f32.mrb[0].mxu0
      %v9571 = vadd.f32 %v8507, %v9570
      %v9572 = vpop.f32.mrb[0].mxu0
      %v9573 = vpop.f32.mrb[0].mxu0
      %v9574 = vadd.f32 %v8507, %v9573
      %v9575 = vpop.f32.mrb[0].mxu0
      %9576 = vmatprep.mubr.bf16.mxu0 %v8279
      %9577 = vmatmul.mubr.bf16.gmra.mrb[0].mxu0 %v8215
      %v9578 = vpop.f32.mrb[0].mxu0
      %v9579 = vadd.f32 %v8507, %v9578
      %v9580 = vpop.f32.mrb[0].mxu0
      %v9581 = vpop.f32.mrb[0].mxu0
      %v9582 = vadd.f32 %v8507, %v9581
      %v9583 = vpop.f32.mrb[0].mxu0
      %9584 = vmatprep.mubr.bf16.mxu0 %v8280
      %9585 = vmatmul.mubr.bf16.gmra.mrb[0].mxu0 %v8216
      %v9586 = vpop.f32.mrb[0].mxu0
      %v9587 = vadd.f32 %v8507, %v9586
      %v9588 = vpop.f32.mrb[0].mxu0
      %v9589 = vpop.f32.mrb[0].mxu0
      %v9590 = vadd.f32 %v8507, %v9589
      %v9591 = vpop.f32.mrb[0].mxu0
      %9592 = vmatprep.mubr.bf16.mxu0 %v8281
      %9593 = vmatmul.mubr.bf16.gmra.mrb[0].mxu0 %v8217
      %v9594 = vpop.f32.mrb[0].mxu0
      %v9595 = vadd.f32 %v8507, %v9594
      %v9596 = vpop.f32.mrb[0].mxu0
      %v9597 = vpop.f32.mrb[0].mxu0
      %v9598 = vadd.f32 %v8507, %v9597
      %v9599 = vpop.f32.mrb[0].mxu0
      %9600 = vmatprep.mubr.bf16.mxu0 %v8282
      %9601 = vmatmul.mubr.bf16.gmra.mrb[0].mxu0 %v8218
      %v9602 = vpop.f32.mrb[0].mxu0
      %v9603 = vadd.f32 %v8507, %v9602
      %v9604 = vpop.f32.mrb[0].mxu0
      %v9605 = vpop.f32.mrb[0].mxu0
      %v9606 = vadd.f32 %v8507, %v9605
      %v9607 = vpop.f32.mrb[0].mxu0
      %9608 = vmatprep.mubr.bf16.mxu0 %v8283
      %9609 = vmatmul.mubr.bf16.gmra.mrb[0].mxu0 %v8219
      %v9610 = vpop.f32.mrb[0].mxu0
      %v9611 = vadd.f32 %v8507, %v9610
      %v9612 = vpop.f32.mrb[0].mxu0
      %v9613 = vpop.f32.mrb[0].mxu0
      %v9614 = vadd.f32 %v8507, %v9613
      %v9615 = vpop.f32.mrb[0].mxu0
      %9616 = vmatprep.mubr.bf16.mxu0 %v8284
      %9617 = vmatmul.mubr.bf16.gmra.mrb[0].mxu0 %v8220
      %v9618 = vpop.f32.mrb[0].mxu0
      %v9619 = vadd.f32 %v8507, %v9618
      %v9620 = vpop.f32.mrb[0].mxu0
      %v9621 = vpop.f32.mrb[0].mxu0
      %v9622 = vadd.f32 %v8507, %v9621
      %v9623 = vpop.f32.mrb[0].mxu0
      %9624 = vmatprep.mubr.bf16.mxu0 %v8285
      %9625 = vmatmul.mubr.bf16.gmra.mrb[0].mxu0 %v8221
      %v9626 = vpop.f32.mrb[0].mxu0
      %v9627 = vadd.f32 %v8507, %v9626
      %v9628 = vpop.f32.mrb[0].mxu0
      %v9629 = vpop.f32.mrb[0].mxu0
      %v9630 = vadd.f32 %v8507, %v9629
      %v9631 = vpop.f32.mrb[0].mxu0
      %9632 = vmatprep.mubr.bf16.mxu0 %v8286
      %9633 = vmatmul.mubr.bf16.gmra.mrb[0].mxu0 %v8222
      %v9634 = vpop.f32.mrb[0].mxu0
      %v9635 = vadd.f32 %v8507, %v9634
      %v9636 = vpop.f32.mrb[0].mxu0
      %v9637 = vpop.f32.mrb[0].mxu0
      %v9638 = vadd.f32 %v8507, %v9637
      %v9639 = vpop.f32.mrb[0].mxu0
      %9640 = vmatprep.mubr.bf16.mxu0 %v8287
      %9641 = vmatmul.mubr.bf16.gmra.mrb[0].mxu0 %v8223
      %v9642 = vpop.f32.mrb[0].mxu0
      %v9643 = vadd.f32 %v8507, %v9642
      %v9644 = vpop.f32.mrb[0].mxu0
      %v9645 = vpop.f32.mrb[0].mxu0
      %v9646 = vadd.f32 %v8507, %v9645
      %v9647 = vpop.f32.mrb[0].mxu0
      %9648 = vmatprep.mubr.bf16.mxu0 %v8288
      %9649 = vmatmul.mubr.bf16.gmra.mrb[0].mxu0 %v8224
      %v9650 = vpop.f32.mrb[0].mxu0
      %v9651 = vadd.f32 %v8507, %v9650
      %v9652 = vpop.f32.mrb[0].mxu0
      %v9653 = vpop.f32.mrb[0].mxu0
      %v9654 = vadd.f32 %v8507, %v9653
      %v9655 = vpop.f32.mrb[0].mxu0
      %9656 = vmatprep.mubr.bf16.mxu0 %v8289
      %9657 = vmatmul.mubr.bf16.gmra.mrb[0].mxu0 %v8225
      %v9658 = vpop.f32.mrb[0].mxu0
      %v9659 = vadd.f32 %v8507, %v9658
      %v9660 = vpop.f32.mrb[0].mxu0
      %v9661 = vpop.f32.mrb[0].mxu0
      %v9662 = vadd.f32 %v8507, %v9661
      %v9663 = vpop.f32.mrb[0].mxu0
      %9664 = vmatprep.mubr.bf16.mxu0 %v8290
      %9665 = vmatmul.mubr.bf16.gmra.mrb[0].mxu0 %v8226
      %v9666 = vpop.f32.mrb[0].mxu0
      %v9667 = vadd.f32 %v8507, %v9666
      %v9668 = vpop.f32.mrb[0].mxu0
      %v9669 = vpop.f32.mrb[0].mxu0
      %v9670 = vadd.f32 %v8507, %v9669
      %v9671 = vpop.f32.mrb[0].mxu0
      %9672 = vmatprep.mubr.bf16.mxu0 %v8291
      %9673 = vmatmul.mubr.bf16.gmra.mrb[0].mxu0 %v8227
      %v9674 = vpop.f32.mrb[0].mxu0
      %v9675 = vadd.f32 %v8507, %v9674
      %v9676 = vpop.f32.mrb[0].mxu0
      %v9677 = vpop.f32.mrb[0].mxu0
      %v9678 = vadd.f32 %v8507, %v9677
      %v9679 = vpop.f32.mrb[0].mxu0
      %9680 = vmatprep.mubr.bf16.mxu0 %v8292
      %9681 = vmatmul.mubr.bf16.gmra.mrb[0].mxu0 %v8228
      %v9682 = vpop.f32.mrb[0].mxu0
      %v9683 = vadd.f32 %v8507, %v9682
      %v9684 = vpop.f32.mrb[0].mxu0
      %v9685 = vpop.f32.mrb[0].mxu0
      %v9686 = vadd.f32 %v8507, %v9685
      %v9687 = vpop.f32.mrb[0].mxu0
      %9688 = vmatprep.mubr.bf16.mxu0 %v8293
      %9689 = vmatmul.mubr.bf16.gmra.mrb[0].mxu0 %v8229
      %v9690 = vpop.f32.mrb[0].mxu0
      %v9691 = vadd.f32 %v8507, %v9690
      %v9692 = vpop.f32.mrb[0].mxu0
      %v9693 = vpop.f32.mrb[0].mxu0
      %v9694 = vadd.f32 %v8507, %v9693
      %v9695 = vpop.f32.mrb[0].mxu0
      %9696 = vdwg.mxu0
      %9697 = vmatprep.subr.bf16.mxu0 0
      %9698 = vmatpush1.bf16.msra.mxu0 %v9488
      %9699 = vmatprep.subr.bf16.mxu0 0
      %9700 = vmatpush1.bf16.msra.mxu0 %v9489
      %9701 = vmatprep.subr.bf16.mxu0 0
      %9702 = vmatpush1.bf16.msra.mxu0 %v9490
      %9703 = vmatprep.subr.bf16.mxu0 0
      %9704 = vmatpush1.bf16.msra.mxu0 %v9491
      %9705 = vmatprep.subr.bf16.mxu0 0
      %9706 = vmatpush1.bf16.msra.mxu0 %v9492
      %9707 = vmatprep.subr.bf16.mxu0 0
      %9708 = vmatpush1.bf16.msra.mxu0 %v9493
      %9709 = vmatprep.subr.bf16.mxu0 0
      %9710 = vmatpush1.bf16.msra.mxu0 %v9494
      %9711 = vmatprep.subr.bf16.mxu0 0
      %9712 = vmatpush1.bf16.msra.mxu0 %v9495
      %9713 = vmatprep.subr.bf16.mxu0 0
      %9714 = vmatpush1.bf16.msra.mxu0 %v9496
      %9715 = vmatprep.subr.bf16.mxu0 0
      %9716 = vmatpush1.bf16.msra.mxu0 %v9497
      %9717 = vmatprep.subr.bf16.mxu0 0
      %9718 = vmatpush1.bf16.msra.mxu0 %v9498
      %9719 = vmatprep.subr.bf16.mxu0 0
      %9720 = vmatpush1.bf16.msra.mxu0 %v9499
      %9721 = vmatprep.subr.bf16.mxu0 0
      %9722 = vmatpush1.bf16.msra.mxu0 %v9500
      %9723 = vmatprep.subr.bf16.mxu0 0
      %9724 = vmatpush1.bf16.msra.mxu0 %v9501
      %9725 = vmatprep.subr.bf16.mxu0 0
      %9726 = vmatpush1.bf16.msra.mxu0 %v9502
      %9727 = vmatprep.subr.bf16.mxu0 0
      %9728 = vmatpush1.bf16.msra.mxu0 %v9503
      %9729 = vmatprep.mubr.bf16.mxu0 %v8406
      %9730 = vmatmul.mubr.bf16.gmra.mrb[0].mxu0 %v8342
      %v9731 = vpop.f32.mrb[0].mxu0
      %v9732 = vadd.f32 %v9571, %v9731
      %v9733 = vpop.f32.mrb[0].mxu0
      %v9734 = vpop.f32.mrb[0].mxu0
      %v9735 = vadd.f32 %v9574, %v9734
      %v9736 = vpop.f32.mrb[0].mxu0
      %9737 = vmatprep.mubr.bf16.mxu0 %v8407
      %9738 = vmatmul.mubr.bf16.gmra.mrb[0].mxu0 %v8343
      %v9739 = vpop.f32.mrb[0].mxu0
      %v9740 = vadd.f32 %v9579, %v9739
      %v9741 = vpop.f32.mrb[0].mxu0
      %v9742 = vpop.f32.mrb[0].mxu0
      %v9743 = vadd.f32 %v9582, %v9742
      %v9744 = vpop.f32.mrb[0].mxu0
      %9745 = vmatprep.mubr.bf16.mxu0 %v8408
      %9746 = vmatmul.mubr.bf16.gmra.mrb[0].mxu0 %v8344
      %v9747 = vpop.f32.mrb[0].mxu0
      %v9748 = vadd.f32 %v9587, %v9747
      %v9749 = vpop.f32.mrb[0].mxu0
      %v9750 = vpop.f32.mrb[0].mxu0
      %v9751 = vadd.f32 %v9590, %v9750
      %v9752 = vpop.f32.mrb[0].mxu0
      %9753 = vmatprep.mubr.bf16.mxu0 %v8409
      %9754 = vmatmul.mubr.bf16.gmra.mrb[0].mxu0 %v8345
      %v9755 = vpop.f32.mrb[0].mxu0
      %v9756 = vadd.f32 %v9595, %v9755
      %v9757 = vpop.f32.mrb[0].mxu0
      %v9758 = vpop.f32.mrb[0].mxu0
      %v9759 = vadd.f32 %v9598, %v9758
      %v9760 = vpop.f32.mrb[0].mxu0
      %9761 = vmatprep.mubr.bf16.mxu0 %v8410
      %9762 = vmatmul.mubr.bf16.gmra.mrb[0].mxu0 %v8346
      %v9763 = vpop.f32.mrb[0].mxu0
      %v9764 = vadd.f32 %v9603, %v9763
      %v9765 = vpop.f32.mrb[0].mxu0
      %v9766 = vpop.f32.mrb[0].mxu0
      %v9767 = vadd.f32 %v9606, %v9766
      %v9768 = vpop.f32.mrb[0].mxu0
      %9769 = vmatprep.mubr.bf16.mxu0 %v8411
      %9770 = vmatmul.mubr.bf16.gmra.mrb[0].mxu0 %v8347
      %v9771 = vpop.f32.mrb[0].mxu0
      %v9772 = vadd.f32 %v9611, %v9771
      %v9773 = vpop.f32.mrb[0].mxu0
      %v9774 = vpop.f32.mrb[0].mxu0
      %v9775 = vadd.f32 %v9614, %v9774
      %v9776 = vpop.f32.mrb[0].mxu0
      %9777 = vmatprep.mubr.bf16.mxu0 %v8412
      %9778 = vmatmul.mubr.bf16.gmra.mrb[0].mxu0 %v8348
      %v9779 = vpop.f32.mrb[0].mxu0
      %v9780 = vadd.f32 %v9619, %v9779
      %v9781 = vpop.f32.mrb[0].mxu0
      %v9782 = vpop.f32.mrb[0].mxu0
      %v9783 = vadd.f32 %v9622, %v9782
      %v9784 = vpop.f32.mrb[0].mxu0
      %9785 = vmatprep.mubr.bf16.mxu0 %v8413
      %9786 = vmatmul.mubr.bf16.gmra.mrb[0].mxu0 %v8349
      %v9787 = vpop.f32.mrb[0].mxu0
      %v9788 = vadd.f32 %v9627, %v9787
      %v9789 = vpop.f32.mrb[0].mxu0
      %v9790 = vpop.f32.mrb[0].mxu0
      %v9791 = vadd.f32 %v9630, %v9790
      %v9792 = vpop.f32.mrb[0].mxu0
      %9793 = vmatprep.mubr.bf16.mxu0 %v8414
      %9794 = vmatmul.mubr.bf16.gmra.mrb[0].mxu0 %v8350
      %v9795 = vpop.f32.mrb[0].mxu0
      %v9796 = vadd.f32 %v9635, %v9795
      %v9797 = vpop.f32.mrb[0].mxu0
      %v9798 = vpop.f32.mrb[0].mxu0
      %v9799 = vadd.f32 %v9638, %v9798
      %v9800 = vpop.f32.mrb[0].mxu0
      %9801 = vmatprep.mubr.bf16.mxu0 %v8415
      %9802 = vmatmul.mubr.bf16.gmra.mrb[0].mxu0 %v8351
      %v9803 = vpop.f32.mrb[0].mxu0
      %v9804 = vadd.f32 %v9643, %v9803
      %v9805 = vpop.f32.mrb[0].mxu0
      %v9806 = vpop.f32.mrb[0].mxu0
      %v9807 = vadd.f32 %v9646, %v9806
      %v9808 = vpop.f32.mrb[0].mxu0
      %9809 = vmatprep.mubr.bf16.mxu0 %v8416
      %9810 = vmatmul.mubr.bf16.gmra.mrb[0].mxu0 %v8352
      %v9811 = vpop.f32.mrb[0].mxu0
      %v9812 = vadd.f32 %v9651, %v9811
      %v9813 = vpop.f32.mrb[0].mxu0
      %v9814 = vpop.f32.mrb[0].mxu0
      %v9815 = vadd.f32 %v9654, %v9814
      %v9816 = vpop.f32.mrb[0].mxu0
      %9817 = vmatprep.mubr.bf16.mxu0 %v8417
      %9818 = vmatmul.mubr.bf16.gmra.mrb[0].mxu0 %v8353
      %v9819 = vpop.f32.mrb[0].mxu0
      %v9820 = vadd.f32 %v9659, %v9819
      %v9821 = vpop.f32.mrb[0].mxu0
      %v9822 = vpop.f32.mrb[0].mxu0
      %v9823 = vadd.f32 %v9662, %v9822
      %v9824 = vpop.f32.mrb[0].mxu0
      %9825 = vmatprep.mubr.bf16.mxu0 %v8418
      %9826 = vmatmul.mubr.bf16.gmra.mrb[0].mxu0 %v8354
      %v9827 = vpop.f32.mrb[0].mxu0
      %v9828 = vadd.f32 %v9667, %v9827
      %v9829 = vpop.f32.mrb[0].mxu0
      %v9830 = vpop.f32.mrb[0].mxu0
      %v9831 = vadd.f32 %v9670, %v9830
      %v9832 = vpop.f32.mrb[0].mxu0
      %9833 = vmatprep.mubr.bf16.mxu0 %v8419
      %9834 = vmatmul.mubr.bf16.gmra.mrb[0].mxu0 %v8355
      %v9835 = vpop.f32.mrb[0].mxu0
      %v9836 = vadd.f32 %v9675, %v9835
      %v9837 = vpop.f32.mrb[0].mxu0
      %v9838 = vpop.f32.mrb[0].mxu0
      %v9839 = vadd.f32 %v9678, %v9838
      %v9840 = vpop.f32.mrb[0].mxu0
      %9841 = vmatprep.mubr.bf16.mxu0 %v8420
      %9842 = vmatmul.mubr.bf16.gmra.mrb[0].mxu0 %v8356
      %v9843 = vpop.f32.mrb[0].mxu0
      %v9844 = vadd.f32 %v9683, %v9843
      %v9845 = vpop.f32.mrb[0].mxu0
      %v9846 = vpop.f32.mrb[0].mxu0
      %v9847 = vadd.f32 %v9686, %v9846
      %v9848 = vpop.f32.mrb[0].mxu0
      %9849 = vmatprep.mubr.bf16.mxu0 %v8421
      %9850 = vmatmul.mubr.bf16.gmra.mrb[0].mxu0 %v8357
      %v9851 = vpop.f32.mrb[0].mxu0
      %v9852 = vadd.f32 %v9691, %v9851
      %v9853 = vpop.f32.mrb[0].mxu0
      %v9854 = vpop.f32.mrb[0].mxu0
      %v9855 = vadd.f32 %v9694, %v9854
      %v9856 = vpop.f32.mrb[0].mxu0
      %9857 = vdwg.mxu0
      %v9858 = vxor.u32 %v9732, 2147483648
      %v9859 = vxor.u32 %v9735, 2147483648
      %v9860 = vxor.u32 %v9740, 2147483648
      %v9861 = vxor.u32 %v9743, 2147483648
      %v9862 = vxor.u32 %v9748, 2147483648
      %v9863 = vxor.u32 %v9751, 2147483648
      %v9864 = vxor.u32 %v9756, 2147483648
      %v9865 = vxor.u32 %v9759, 2147483648
      %v9866 = vxor.u32 %v9764, 2147483648
      %v9867 = vxor.u32 %v9767, 2147483648
      %v9868 = vxor.u32 %v9772, 2147483648
      %v9869 = vxor.u32 %v9775, 2147483648
      %v9870 = vxor.u32 %v9780, 2147483648
      %v9871 = vxor.u32 %v9783, 2147483648
      %v9872 = vxor.u32 %v9788, 2147483648
      %v9873 = vxor.u32 %v9791, 2147483648
      %v9874 = vxor.u32 %v9796, 2147483648
      %v9875 = vxor.u32 %v9799, 2147483648
      %v9876 = vxor.u32 %v9804, 2147483648
      %v9877 = vxor.u32 %v9807, 2147483648
      %v9878 = vxor.u32 %v9812, 2147483648
      %v9879 = vxor.u32 %v9815, 2147483648
      %v9880 = vxor.u32 %v9820, 2147483648
      %v9881 = vxor.u32 %v9823, 2147483648
      %v9882 = vxor.u32 %v9828, 2147483648
      %v9883 = vxor.u32 %v9831, 2147483648
      %v9884 = vxor.u32 %v9836, 2147483648
      %v9885 = vxor.u32 %v9839, 2147483648
      %v9886 = vxor.u32 %v9844, 2147483648
      %v9887 = vxor.u32 %v9847, 2147483648
      %v9888 = vxor.u32 %v9852, 2147483648
      %v9889 = vxor.u32 %v9855, 2147483648
      %v9890 = vmul.f32 %v9858, 1.442695
      %v9891 = vpow.pop %v9890
      %v9892 = vmul.f32 %v9859, 1.442695
      %v9893 = vpow.pop %v9892
      %v9894 = vmul.f32 %v9860, 1.442695
      %v9895 = vpow.pop %v9894
      %v9896 = vmul.f32 %v9861, 1.442695
      %v9897 = vpow.pop %v9896
      %v9898 = vmul.f32 %v9862, 1.442695
      %v9899 = vpow.pop %v9898
      %v9900 = vmul.f32 %v9863, 1.442695
      %v9901 = vpow.pop %v9900
      %v9902 = vmul.f32 %v9864, 1.442695
      %v9903 = vpow.pop %v9902
      %v9904 = vmul.f32 %v9865, 1.442695
      %v9905 = vpow.pop %v9904
      %v9906 = vmul.f32 %v9866, 1.442695
      %v9907 = vpow.pop %v9906
      %v9908 = vmul.f32 %v9867, 1.442695
      %v9909 = vpow.pop %v9908
      %v9910 = vmul.f32 %v9868, 1.442695
      %v9911 = vpow.pop %v9910
      %v9912 = vmul.f32 %v9869, 1.442695
      %v9913 = vpow.pop %v9912
      %v9914 = vmul.f32 %v9870, 1.442695
      %v9915 = vpow.pop %v9914
      %v9916 = vmul.f32 %v9871, 1.442695
      %v9917 = vpow.pop %v9916
      %v9918 = vmul.f32 %v9872, 1.442695
      %v9919 = vpow.pop %v9918
      %v9920 = vmul.f32 %v9873, 1.442695
      %v9921 = vpow.pop %v9920
      %v9922 = vmul.f32 %v9874, 1.442695
      %v9923 = vpow.pop %v9922
      %v9924 = vmul.f32 %v9875, 1.442695
      %v9925 = vpow.pop %v9924
      %v9926 = vmul.f32 %v9876, 1.442695
      %v9927 = vpow.pop %v9926
      %v9928 = vmul.f32 %v9877, 1.442695
      %v9929 = vpow.pop %v9928
      %v9930 = vmul.f32 %v9878, 1.442695
      %v9931 = vpow.pop %v9930
      %v9932 = vmul.f32 %v9879, 1.442695
      %v9933 = vpow.pop %v9932
      %v9934 = vmul.f32 %v9880, 1.442695
      %v9935 = vpow.pop %v9934
      %v9936 = vmul.f32 %v9881, 1.442695
      %v9937 = vpow.pop %v9936
      %v9938 = vmul.f32 %v9882, 1.442695
      %v9939 = vpow.pop %v9938
      %v9940 = vmul.f32 %v9883, 1.442695
      %v9941 = vpow.pop %v9940
      %v9942 = vmul.f32 %v9884, 1.442695
      %v9943 = vpow.pop %v9942
      %v9944 = vmul.f32 %v9885, 1.442695
      %v9945 = vpow.pop %v9944
      %v9946 = vmul.f32 %v9886, 1.442695
      %v9947 = vpow.pop %v9946
      %v9948 = vmul.f32 %v9887, 1.442695
      %v9949 = vpow.pop %v9948
      %v9950 = vmul.f32 %v9888, 1.442695
      %v9951 = vpow.pop %v9950
      %v9952 = vmul.f32 %v9889, 1.442695
      %v9953 = vpow.pop %v9952
      %v9954 = vadd.f32 %v9891, 1.0
      %v9955 = vadd.f32 %v9893, 1.0
      %v9956 = vadd.f32 %v9895, 1.0
      %v9957 = vadd.f32 %v9897, 1.0
      %v9958 = vadd.f32 %v9899, 1.0
      %v9959 = vadd.f32 %v9901, 1.0
      %v9960 = vadd.f32 %v9903, 1.0
      %v9961 = vadd.f32 %v9905, 1.0
      %v9962 = vadd.f32 %v9907, 1.0
      %v9963 = vadd.f32 %v9909, 1.0
      %v9964 = vadd.f32 %v9911, 1.0
      %v9965 = vadd.f32 %v9913, 1.0
      %v9966 = vadd.f32 %v9915, 1.0
      %v9967 = vadd.f32 %v9917, 1.0
      %v9968 = vadd.f32 %v9919, 1.0
      %v9969 = vadd.f32 %v9921, 1.0
      %v9970 = vadd.f32 %v9923, 1.0
      %v9971 = vadd.f32 %v9925, 1.0
      %v9972 = vadd.f32 %v9927, 1.0
      %v9973 = vadd.f32 %v9929, 1.0
      %v9974 = vadd.f32 %v9931, 1.0
      %v9975 = vadd.f32 %v9933, 1.0
      %v9976 = vadd.f32 %v9935, 1.0
      %v9977 = vadd.f32 %v9937, 1.0
      %v9978 = vadd.f32 %v9939, 1.0
      %v9979 = vadd.f32 %v9941, 1.0
      %v9980 = vadd.f32 %v9943, 1.0
      %v9981 = vadd.f32 %v9945, 1.0
      %v9982 = vadd.f32 %v9947, 1.0
      %v9983 = vadd.f32 %v9949, 1.0
      %v9984 = vadd.f32 %v9951, 1.0
      %v9985 = vadd.f32 %v9953, 1.0
      %v9986 = vrcp.pop %v9954
      %v9987 = vmul.f32 1.0, %v9986
      %v9988 = vrcp.pop %v9955
      %v9989 = vmul.f32 1.0, %v9988
      %v9990 = vrcp.pop %v9956
      %v9991 = vmul.f32 1.0, %v9990
      %v9992 = vrcp.pop %v9957
      %v9993 = vmul.f32 1.0, %v9992
      %v9994 = vrcp.pop %v9958
      %v9995 = vmul.f32 1.0, %v9994
      %v9996 = vrcp.pop %v9959
      %v9997 = vmul.f32 1.0, %v9996
      %v9998 = vrcp.pop %v9960
      %v9999 = vmul.f32 1.0, %v9998
      %v10000 = vrcp.pop %v9961
      %v10001 = vmul.f32 1.0, %v10000
      %v10002 = vrcp.pop %v9962
      %v10003 = vmul.f32 1.0, %v10002
      %v10004 = vrcp.pop %v9963
      %v10005 = vmul.f32 1.0, %v10004
      %v10006 = vrcp.pop %v9964
      %v10007 = vmul.f32 1.0, %v10006
      %v10008 = vrcp.pop %v9965
      %v10009 = vmul.f32 1.0, %v10008
      %v10010 = vrcp.pop %v9966
      %v10011 = vmul.f32 1.0, %v10010
      %v10012 = vrcp.pop %v9967
      %v10013 = vmul.f32 1.0, %v10012
      %v10014 = vrcp.pop %v9968
      %v10015 = vmul.f32 1.0, %v10014
      %v10016 = vrcp.pop %v9969
      %v10017 = vmul.f32 1.0, %v10016
      %v10018 = vrcp.pop %v9970
      %v10019 = vmul.f32 1.0, %v10018
      %v10020 = vrcp.pop %v9971
      %v10021 = vmul.f32 1.0, %v10020
      %v10022 = vrcp.pop %v9972
      %v10023 = vmul.f32 1.0, %v10022
      %v10024 = vrcp.pop %v9973
      %v10025 = vmul.f32 1.0, %v10024
      %v10026 = vrcp.pop %v9974
      %v10027 = vmul.f32 1.0, %v10026
      %v10028 = vrcp.pop %v9975
      %v10029 = vmul.f32 1.0, %v10028
      %v10030 = vrcp.pop %v9976
      %v10031 = vmul.f32 1.0, %v10030
      %v10032 = vrcp.pop %v9977
      %v10033 = vmul.f32 1.0, %v10032
      %v10034 = vrcp.pop %v9978
      %v10035 = vmul.f32 1.0, %v10034
      %v10036 = vrcp.pop %v9979
      %v10037 = vmul.f32 1.0, %v10036
      %v10038 = vrcp.pop %v9980
      %v10039 = vmul.f32 1.0, %v10038
      %v10040 = vrcp.pop %v9981
      %v10041 = vmul.f32 1.0, %v10040
      %v10042 = vrcp.pop %v9982
      %v10043 = vmul.f32 1.0, %v10042
      %v10044 = vrcp.pop %v9983
      %v10045 = vmul.f32 1.0, %v10044
      %v10046 = vrcp.pop %v9984
      %v10047 = vmul.f32 1.0, %v10046
      %v10048 = vrcp.pop %v9985
      %v10049 = vmul.f32 1.0, %v10048
      %v10050 = vmul.f32 %v9987, 2.0
      %v10051 = vmul.f32 %v9989, 2.0
      %v10052 = vmul.f32 %v9991, 2.0
      %v10053 = vmul.f32 %v9993, 2.0
      %v10054 = vmul.f32 %v9995, 2.0
      %v10055 = vmul.f32 %v9997, 2.0
      %v10056 = vmul.f32 %v9999, 2.0
      %v10057 = vmul.f32 %v10001, 2.0
      %v10058 = vmul.f32 %v10003, 2.0
      %v10059 = vmul.f32 %v10005, 2.0
      %v10060 = vmul.f32 %v10007, 2.0
      %v10061 = vmul.f32 %v10009, 2.0
      %v10062 = vmul.f32 %v10011, 2.0
      %v10063 = vmul.f32 %v10013, 2.0
      %v10064 = vmul.f32 %v10015, 2.0
      %v10065 = vmul.f32 %v10017, 2.0
      %v10066 = vmul.f32 %v10019, 2.0
      %v10067 = vmul.f32 %v10021, 2.0
      %v10068 = vmul.f32 %v10023, 2.0
      %v10069 = vmul.f32 %v10025, 2.0
      %v10070 = vmul.f32 %v10027, 2.0
      %v10071 = vmul.f32 %v10029, 2.0
      %v10072 = vmul.f32 %v10031, 2.0
      %v10073 = vmul.f32 %v10033, 2.0
      %v10074 = vmul.f32 %v10035, 2.0
      %v10075 = vmul.f32 %v10037, 2.0
      %v10076 = vmul.f32 %v10039, 2.0
      %v10077 = vmul.f32 %v10041, 2.0
      %v10078 = vmul.f32 %v10043, 2.0
      %v10079 = vmul.f32 %v10045, 2.0
      %v10080 = vmul.f32 %v10047, 2.0
      %v10081 = vmul.f32 %v10049, 2.0
      %v10082 = vsub.f32 %v10050, 1.0
      %v10083 = vsub.f32 %v10051, 1.0
      %v10084 = vsub.f32 %v10052, 1.0
      %v10085 = vsub.f32 %v10053, 1.0
      %v10086 = vsub.f32 %v10054, 1.0
      %v10087 = vsub.f32 %v10055, 1.0
      %v10088 = vsub.f32 %v10056, 1.0
      %v10089 = vsub.f32 %v10057, 1.0
      %v10090 = vsub.f32 %v10058, 1.0
      %v10091 = vsub.f32 %v10059, 1.0
      %v10092 = vsub.f32 %v10060, 1.0
      %v10093 = vsub.f32 %v10061, 1.0
      %v10094 = vsub.f32 %v10062, 1.0
      %v10095 = vsub.f32 %v10063, 1.0
      %v10096 = vsub.f32 %v10064, 1.0
      %v10097 = vsub.f32 %v10065, 1.0
      %v10098 = vsub.f32 %v10066, 1.0
      %v10099 = vsub.f32 %v10067, 1.0
      %v10100 = vsub.f32 %v10068, 1.0
      %v10101 = vsub.f32 %v10069, 1.0
      %v10102 = vsub.f32 %v10070, 1.0
      %v10103 = vsub.f32 %v10071, 1.0
      %v10104 = vsub.f32 %v10072, 1.0
      %v10105 = vsub.f32 %v10073, 1.0
      %v10106 = vsub.f32 %v10074, 1.0
      %v10107 = vsub.f32 %v10075, 1.0
      %v10108 = vsub.f32 %v10076, 1.0
      %v10109 = vsub.f32 %v10077, 1.0
      %v10110 = vsub.f32 %v10078, 1.0
      %v10111 = vsub.f32 %v10079, 1.0
      %v10112 = vsub.f32 %v10080, 1.0
      %v10113 = vsub.f32 %v10081, 1.0
      %vm10114 = vcmask 195584
      %10115 = vst.msk [vmem:[%s332] sm:$0xff] %vm10114, %v9247
      %10116 = vst.msk [vmem:[%s332 + $0x8] sm:$0xff] %vm10114, %v10082
      %10117 = vst.msk [vmem:[%s332 + $0x10] sm:$0xff] %vm10114, %v9248
      %10118 = vst.msk [vmem:[%s332 + $0x18] sm:$0xff] %vm10114, %v10083
      %10119 = vst.msk [vmem:[%s332 + $0x20] sm:$0xff] %vm10114, %v9249
      %10120 = vst.msk [vmem:[%s332 + $0x28] sm:$0xff] %vm10114, %v10084
      %10121 = vst.msk [vmem:[%s332 + $0x30] sm:$0xff] %vm10114, %v9250
      %10122 = vst.msk [vmem:[%s332 + $0x38] sm:$0xff] %vm10114, %v10085
      %10123 = vst.msk [vmem:[%s332 + $0x40] sm:$0xff] %vm10114, %v9251
      %10124 = vst.msk [vmem:[%s332 + $0x48] sm:$0xff] %vm10114, %v10086
      %10125 = vst.msk [vmem:[%s332 + $0x50] sm:$0xff] %vm10114, %v9252
      %10126 = vst.msk [vmem:[%s332 + $0x58] sm:$0xff] %vm10114, %v10087
      %10127 = vst.msk [vmem:[%s332 + $0x60] sm:$0xff] %vm10114, %v9253
      %10128 = vst.msk [vmem:[%s332 + $0x68] sm:$0xff] %vm10114, %v10088
      %10129 = vst.msk [vmem:[%s332 + $0x70] sm:$0xff] %vm10114, %v9254
      %10130 = vst.msk [vmem:[%s332 + $0x78] sm:$0xff] %vm10114, %v10089
      %10131 = vst.msk [vmem:[%s332 + $0x80] sm:$0xff] %vm10114, %v9255
      %10132 = vst.msk [vmem:[%s332 + $0x88] sm:$0xff] %vm10114, %v10090
      %10133 = vst.msk [vmem:[%s332 + $0x90] sm:$0xff] %vm10114, %v9256
      %10134 = vst.msk [vmem:[%s332 + $0x98] sm:$0xff] %vm10114, %v10091
      %10135 = vst.msk [vmem:[%s332 + $0xa0] sm:$0xff] %vm10114, %v9257
      %10136 = vst.msk [vmem:[%s332 + $0xa8] sm:$0xff] %vm10114, %v10092
      %10137 = vst.msk [vmem:[%s332 + $0xb0] sm:$0xff] %vm10114, %v9258
      %10138 = vst.msk [vmem:[%s332 + $0xb8] sm:$0xff] %vm10114, %v10093
      %10139 = vst.msk [vmem:[%s332 + $0xc0] sm:$0xff] %vm10114, %v9259
      %10140 = vst.msk [vmem:[%s332 + $0xc8] sm:$0xff] %vm10114, %v10094
      %10141 = vst.msk [vmem:[%s332 + $0xd0] sm:$0xff] %vm10114, %v9260
      %10142 = vst.msk [vmem:[%s332 + $0xd8] sm:$0xff] %vm10114, %v10095
      %10143 = vst.msk [vmem:[%s332 + $0xe0] sm:$0xff] %vm10114, %v9261
      %10144 = vst.msk [vmem:[%s332 + $0xe8] sm:$0xff] %vm10114, %v10096
      %10145 = vst.msk [vmem:[%s332 + $0xf0] sm:$0xff] %vm10114, %v9262
      %10146 = vst.msk [vmem:[%s332 + $0xf8] sm:$0xff] %vm10114, %v10097
      %10147 = vst.msk [vmem:[%s332 + $0x100] sm:$0xff] %vm10114, %v9263
      %10148 = vst.msk [vmem:[%s332 + $0x108] sm:$0xff] %vm10114, %v10098
      %10149 = vst.msk [vmem:[%s332 + $0x110] sm:$0xff] %vm10114, %v9264
      %10150 = vst.msk [vmem:[%s332 + $0x118] sm:$0xff] %vm10114, %v10099
      %10151 = vst.msk [vmem:[%s332 + $0x120] sm:$0xff] %vm10114, %v9265
      %10152 = vst.msk [vmem:[%s332 + $0x128] sm:$0xff] %vm10114, %v10100
      %10153 = vst.msk [vmem:[%s332 + $0x130] sm:$0xff] %vm10114, %v9266
      %10154 = vst.msk [vmem:[%s332 + $0x138] sm:$0xff] %vm10114, %v10101
      %10155 = vst.msk [vmem:[%s332 + $0x140] sm:$0xff] %vm10114, %v9267
      %10156 = vst.msk [vmem:[%s332 + $0x148] sm:$0xff] %vm10114, %v10102
      %10157 = vst.msk [vmem:[%s332 + $0x150] sm:$0xff] %vm10114, %v9268
      %10158 = vst.msk [vmem:[%s332 + $0x158] sm:$0xff] %vm10114, %v10103
      %10159 = vst.msk [vmem:[%s332 + $0x160] sm:$0xff] %vm10114, %v9269
      %10160 = vst.msk [vmem:[%s332 + $0x168] sm:$0xff] %vm10114, %v10104
      %10161 = vst.msk [vmem:[%s332 + $0x170] sm:$0xff] %vm10114, %v9270
      %10162 = vst.msk [vmem:[%s332 + $0x178] sm:$0xff] %vm10114, %v10105
      %10163 = vst.msk [vmem:[%s332 + $0x180] sm:$0xff] %vm10114, %v9271
      %10164 = vst.msk [vmem:[%s332 + $0x188] sm:$0xff] %vm10114, %v10106
      %10165 = vst.msk [vmem:[%s332 + $0x190] sm:$0xff] %vm10114, %v9272
      %10166 = vst.msk [vmem:[%s332 + $0x198] sm:$0xff] %vm10114, %v10107
      %10167 = vst.msk [vmem:[%s332 + $0x1a0] sm:$0xff] %vm10114, %v9273
      %10168 = vst.msk [vmem:[%s332 + $0x1a8] sm:$0xff] %vm10114, %v10108
      %10169 = vst.msk [vmem:[%s332 + $0x1b0] sm:$0xff] %vm10114, %v9274
      %10170 = vst.msk [vmem:[%s332 + $0x1b8] sm:$0xff] %vm10114, %v10109
      %10171 = vst.msk [vmem:[%s332 + $0x1c0] sm:$0xff] %vm10114, %v9275
      %10172 = vst.msk [vmem:[%s332 + $0x1c8] sm:$0xff] %vm10114, %v10110
      %10173 = vst.msk [vmem:[%s332 + $0x1d0] sm:$0xff] %vm10114, %v9276
      %10174 = vst.msk [vmem:[%s332 + $0x1d8] sm:$0xff] %vm10114, %v10111
      %10175 = vst.msk [vmem:[%s332 + $0x1e0] sm:$0xff] %vm10114, %v9277
      %10176 = vst.msk [vmem:[%s332 + $0x1e8] sm:$0xff] %vm10114, %v10112
      %10177 = vst.msk [vmem:[%s332 + $0x1f0] sm:$0xff] %vm10114, %v9278
      %10178 = vst.msk [vmem:[%s332 + $0x1f8] sm:$0xff] %vm10114, %v10113
      %p10179 = scmp.lt.s32.totalorder %s20, 1
      %s10180 = scalar_select %p10179, %s20, 1
      %s10181 = smul.addr %s10180, 64
      %s10182 = smul.addr %s10181, 8
      %s10183 = scalar_lea.vmem %s9, %s10182
      // Predicated region
      $region57: #{decoder_forward_nchw.1} parent=55 // pred_check
        %p10184 = pneg %p232
      $region58: #{decoder_forward_nchw.1} parent=55 // pred_check_branch
        %10186 = sbr.rel (%p10184) target = $region60
      $region59: #{decoder_forward_nchw.1} parent=55 // pred_region
        _
      $region60: #{decoder_forward_nchw.1} parent=55 // pred_fallthru
        _
    $region56: #{decoder_forward_nchw.1} parent=5 // pred_fallthru
      _
    %p10187 = scmp.le.s32.totalorder 2, %s15
    // Predicated region
    $region61: #{decoder_forward_nchw.1} parent=5 // pred_check
      %p10188 = pneg %p10187
    $region62: #{decoder_forward_nchw.1} parent=5 // pred_check_branch
      %10190 = sbr.rel (%p10188) target = $region64
    $region63: #{decoder_forward_nchw.1} parent=5 // pred_region
      %s10191 = ssub.s32 %s15, 2
      // Predicated region
      $region65: #{decoder_forward_nchw.1} parent=63 // pred_check
        %p10192 = pneg %p238
      $region66: #{decoder_forward_nchw.1} parent=63 // pred_check_branch
        %10194 = sbr.rel (%p10192) target = $region68
      $region67: #{decoder_forward_nchw.1} parent=63 // pred_region
        %p10195 = scmp.lt.s32.totalorder %s21, 1
        %s10196 = scalar_select %p10195, %s21, 1
        %s10197 = smul.addr %s10196, 64
        %s10198 = smul.addr %s10197, 8
        %s10199 = scalar_lea.vmem %s9, %s10198
      $region68: #{decoder_forward_nchw.1} parent=63 // pred_fallthru
        _
    $region64: #{decoder_forward_nchw.1} parent=5 // pred_fallthru
      _
  $region6: #{decoder_forward_nchw.1} parent=0 // loop_footer
    %s19 = sadd.s32 1, %s15
  $region7: #{decoder_forward_nchw.1} parent=0 // loop_footer_branch
    %14 = sbr.rel target = $region3
  $region8: #{decoder_forward_nchw.1} parent=0 // loop_exit
    _

</llo_original>
